<compile_context>
chip_gen: v5e
topology: v5e:2x2
jax: 0.10.0
libtpu: 0.0.40
codegen_flags: <defaults>
</compile_context>

<pallas_src>
import jax
import jax.numpy as jnp
from jax.experimental import pallas as pl
from jax.experimental.pallas import tpu as pltpu


def _leaky_relu(v):
    # nn.LeakyReLU default negative_slope = 0.01
    return jnp.where(v >= 0, v, 0.01 * v)


def _depthwise3x3(x, wmap, bias):
    """Depthwise 3x3 'same' cross-correlation.

    x: (BB, H, W, C).  wmap: (3, 3, W, C) per-tap channel weights with the W-edge
    zeros already folded in (tap dx=0 is zero at w=0, tap dx=2 at w=W-1), so the
    wrap-around values produced by pltpu.roll are killed by the multiply and no
    iota / compare / select is emitted.  H-axis taps are tile-aligned major-dim
    concats/slices (no sublane-unaligned copies).
    """
    BB, H, W, C = x.shape
    x_m = pltpu.roll(x, 1, 2)        # reads x[..., w-1, :] (wrap masked by wmap)
    x_p = pltpu.roll(x, W - 1, 2)    # reads x[..., w+1, :]
    cols = (x_m, x, x_p)

    rows = []
    for dy in range(3):
        r = (cols[0] * wmap[dy, 0] + cols[1] * wmap[dy, 1] + cols[2] * wmap[dy, 2])
        rows.append(r)

    # taps along H: out[h] = rows[0][h-1] + rows[1][h] + rows[2][h+1]
    zrow = jnp.zeros((BB, 1, W, C), x.dtype)
    top = jnp.concatenate([zrow, rows[0][:, :H - 1]], axis=1)
    bot = jnp.concatenate([rows[2][:, 1:], zrow], axis=1)
    out = rows[1] + top + bot
    if bias is not None:
        out = out + bias
    return out


def _bottleneck_lstm_cell_kernel(x_ref, h_ref, c_ref,
                                 wdx_ref, bdx_ref, wyx_ref, wyh_ref, by_ref,
                                 wdi_ref, wb_ref, gamma_ref, beta_ref,
                                 gsum_ref, gbcast_ref,
                                 newh_ref, newc_ref):
    x = x_ref[...]                    # (BB, H, W, Cin) f32
    h = h_ref[...]                    # (BB, H, W, C)   f32
    c = c_ref[...]                    # (BB, H, W, C)   f32
    BB, H, W, Cin = x.shape
    C = h.shape[-1]
    HW = H * W

    # self.W : depthwise 3x3 conv on the input (bias filled with 1)
    xw = _depthwise3x3(x, wdx_ref[...], bdx_ref[0])

    # self.Wy : 1x1 conv on cat([xw, h], channels).  Input path is a full MXU dot
    # (no per-channel broadcast loop); operands bf16, accumulation f32.
    h2 = h.reshape(BB * HW, C).astype(jnp.bfloat16)
    xw2 = xw.reshape(BB * HW, Cin).astype(jnp.bfloat16)
    i_flat = (jnp.dot(h2, wyh_ref[...], preferred_element_type=jnp.float32)
              + jnp.dot(xw2, wyx_ref[...], preferred_element_type=jnp.float32)
              + by_ref[0])

    # self.Wi : depthwise 3x3 conv, no bias
    b = _depthwise3x3(i_flat.reshape(BB, H, W, C), wdi_ref[...], None)

    # Fused gate 1x1 convs: one (BB*HW, C) @ (C, 4C) bf16 matmul; gates [i|f|c|o]
    # land on 4C = 128 lanes (lane-dense for the whole epilogue).
    b2 = b.reshape(BB * HW, C).astype(jnp.bfloat16)
    pre = jnp.dot(b2, wb_ref[...], preferred_element_type=jnp.float32)
    pre = pre.reshape(BB, HW, 4 * C)

    # GroupNorm(1, C) per gate & batch element == LayerNorm over (C, H, W).
    # One-pass stats (f32); the per-gate fold/broadcast runs as two merged tiny
    # matmuls ([s1;s2] @ gsum, [mean;rstd] @ gbcast).  1/(HW*C) is folded into
    # gsum host-side; the GN affine is folded into one FMA on the big tensor.
    s1 = jnp.sum(pre, axis=1)                                   # (BB, 4C)
    s2 = jnp.sum(pre * pre, axis=1)                             # (BB, 4C)
    s12 = jnp.concatenate([s1[None], s2[None]], axis=0).reshape(2 * BB, 4 * C)
    stat = jnp.dot(s12, gsum_ref[...], preferred_element_type=jnp.float32)  # (2BB, 4)
    stat = stat.reshape(2, BB, 4)
    mean, ex2 = stat[0], stat[1]                                # (BB, 4)
    rstd = jax.lax.rsqrt(ex2 - mean * mean + 1e-5)
    mr = jnp.concatenate([mean[None], rstd[None]], axis=0).reshape(2 * BB, 4)
    mr_l = jnp.dot(mr, gbcast_ref[...], preferred_element_type=jnp.float32)  # (2BB, 4C)
    mr_l = mr_l.reshape(2, BB, 4 * C)
    mean_l, rstd_l = mr_l[0], mr_l[1]                           # (BB, 4C)
    scale_l = rstd_l * gamma_ref[0]
    shift_l = beta_ref[0] - mean_l * scale_l
    g = pre * scale_l[:, None, :] + shift_l[:, None, :]

    # Cell update: sigmoid on the fused 128-lane tensor (EUP filler), leaky_relu
    # only on the c-gate slice (VPU is the scarce unit at these shapes).
    sig = jax.nn.sigmoid(g)
    ci = sig[:, :, 0 * C:1 * C]
    cf = sig[:, :, 1 * C:2 * C]
    co = sig[:, :, 3 * C:4 * C]
    gc = _leaky_relu(g[:, :, 2 * C:3 * C])

    cc = cf * c.reshape(BB, HW, C) + ci * gc
    ch = co * _leaky_relu(cc)

    newh_ref[...] = ch.reshape(BB, H, W, C)
    newc_ref[...] = cc.reshape(BB, H, W, C)


def _tensorcores_per_device():
    """1 on single-TC inference chips (v5e / v6e); 2 on megacore / v7x devices."""
    try:
        kind = jax.devices()[0].device_kind.lower()
    except Exception:
        return 1
    if "lite" in kind or "v5e" in kind or "v6e" in kind:
        return 1
    if "v4" in kind or "v5p" in kind or "v7" in kind or "7x" in kind:
        return 2
    return 1


def _pick_batch_block(B, H, W, cin, chid, n_tc, vmem_budget=20 << 20):
    """Largest divisor of B that (a) keeps >= n_tc grid steps so no TensorCore
    idles and (b) keeps the per-step VMEM footprint (double-buffered I/O blocks +
    in-kernel intermediates, all lane-padded to 128) within the scoped budget."""
    per_elem = H * W * 128 * 4 * 26          # ~26 lane-padded HxW f32 buffers / batch elem
    max_bb = max(1, vmem_budget // per_elem)
    best = 1
    for bb in range(1, B + 1):
        if B % bb == 0 and bb <= max_bb and (B // bb) >= n_tc:
            best = bb
    return best


def _make_tap_weight_maps(w, W):
    """(3,3,C) depthwise weights -> (3,3,W,C) per-tap maps with W-edge zeros folded in."""
    C = w.shape[-1]
    wmap = jnp.broadcast_to(w[:, :, None, :], (3, 3, W, C))
    wmap = wmap.at[:, 0, 0, :].set(0.0)       # dx=0 tap reads w-1 -> invalid at w=0
    wmap = wmap.at[:, 2, W - 1, :].set(0.0)   # dx=2 tap reads w+1 -> invalid at w=W-1
    return wmap.astype(jnp.float32)


def bottleneck_lstm_forward(x, h, c, params, *, batch_block=None):
    """x: (B,H,W,Cin); h, c: (B,H,W,Chid) or both None (zero-init, as in BottleneckLSTM.forward)."""
    B, H, W, Cin = x.shape
    Chid = params["wy"].shape[1]
    if (h is None) != (c is None):
        raise ValueError("h and c must both be None or both be tensors")
    if h is None:
        h = jnp.zeros((B, H, W, Chid), x.dtype)
        c = jnp.zeros((B, H, W, Chid), x.dtype)

    n_tc = _tensorcores_per_device()
    bb = _pick_batch_block(B, H, W, Cin, Chid, n_tc) if batch_block is None else batch_block
    assert B % bb == 0

    # Host-side parameter fusion / packing.
    wdx_map = _make_tap_weight_maps(params["wdx"], W)                        # (3,3,W,Cin)
    wdi_map = _make_tap_weight_maps(params["wdi"], W)                        # (3,3,W,Chid)
    wy_x = params["wy"][:Cin].astype(jnp.bfloat16)                           # (Cin, Chid)
    wy_h = params["wy"][Cin:].astype(jnp.bfloat16)                           # (Chid, Chid)
    wb_fused = jnp.concatenate([params["wb"][g] for g in range(4)],
                               axis=1).astype(jnp.bfloat16)                  # (Chid, 4*Chid)
    gamma_f = params["gamma"].reshape(1, 4 * Chid)
    beta_f = params["beta"].reshape(1, 4 * Chid)
    lane = jnp.arange(4 * Chid)
    gsum = (lane[:, None] // Chid == jnp.arange(4)[None, :]).astype(jnp.float32)  # (4C, 4)
    gsum_scaled = gsum / float(H * W * Chid)                                 # fold 1/N in
    gbcast = gsum.T                                                          # (4, 4C)

    def rep(shape):
        nd = len(shape)
        return pl.BlockSpec(shape, lambda b, nd=nd: (0,) * nd)

    grid_spec = pltpu.PrefetchScalarGridSpec(
        num_scalar_prefetch=0,
        grid=(B // bb,),
        in_specs=[
            pl.BlockSpec((bb, H, W, Cin), lambda b: (b, 0, 0, 0)),
            pl.BlockSpec((bb, H, W, Chid), lambda b: (b, 0, 0, 0)),
            pl.BlockSpec((bb, H, W, Chid), lambda b: (b, 0, 0, 0)),
            rep(wdx_map.shape),
            rep(params["bdx"].shape),
            rep(wy_x.shape),
            rep(wy_h.shape),
            rep(params["by"].shape),
            rep(wdi_map.shape),
            rep(wb_fused.shape),
            rep(gamma_f.shape),
            rep(beta_f.shape),
            rep(gsum_scaled.shape),
            rep(gbcast.shape),
        ],
        out_specs=[
            pl.BlockSpec((bb, H, W, Chid), lambda b: (b, 0, 0, 0)),
            pl.BlockSpec((bb, H, W, Chid), lambda b: (b, 0, 0, 0)),
        ],
    )
    out_shape = (jax.ShapeDtypeStruct((B, H, W, Chid), jnp.float32),
                 jax.ShapeDtypeStruct((B, H, W, Chid), jnp.float32))
    new_h, new_c = pl.pallas_call(
        _bottleneck_lstm_cell_kernel,
        out_shape=out_shape,
        grid_spec=grid_spec,
        compiler_params=pltpu.CompilerParams(
            dimension_semantics=("parallel",),
            vmem_limit_bytes=32 * 1024 * 1024,
        ),
    )(x, h, c, wdx_map, params["bdx"], wy_x, wy_h, params["by"],
      wdi_map, wb_fused, gamma_f, beta_f, gsum_scaled, gbcast)
    return new_h, new_c


def init_params(key, cin, chid):
    """Deterministic synthetic parameters.  Conv biases filled with 1 (per
    _initialize_weights), GroupNorm affine at PyTorch defaults (gamma=1, beta=0)."""
    ks = jax.random.split(key, 4)
    return {
        "wdx": jax.random.normal(ks[0], (3, 3, cin), jnp.float32) * 0.2,      # self.W weight (depthwise)
        "bdx": jnp.ones((1, cin), jnp.float32),                               # self.W bias = 1
        "wy": jax.random.normal(ks[1], (cin + chid, chid), jnp.float32)
              / jnp.sqrt(float(cin + chid)),                                  # self.Wy weight (1x1)
        "by": jnp.ones((1, chid), jnp.float32),                               # self.Wy bias = 1
        "wdi": jax.random.normal(ks[2], (3, 3, chid), jnp.float32) * 0.2,     # self.Wi weight (depthwise)
        "wb": jax.random.normal(ks[3], (4, chid, chid), jnp.float32)
              / jnp.sqrt(float(chid)),                                        # Wbi, Wbf, Wbc, Wbo
        "gamma": jnp.ones((4, chid), jnp.float32),                            # GroupNorm weights
        "beta": jnp.zeros((4, chid), jnp.float32),                            # GroupNorm biases
    }


def ref_forward(x, h, c, p, matmul_dtype=jnp.float32):
    """Pure-JAX reference replicating BottleneckLSTMCell.forward (NHWC).
    matmul_dtype=bfloat16 mirrors the kernel's MXU operand precision."""
    B, H, W, Cin = x.shape
    hi = jax.lax.Precision.HIGHEST

    def dw3x3(z, w, bias):
        zp = jnp.pad(z, ((0, 0), (1, 1), (1, 1), (0, 0)))
        out = jnp.zeros_like(z)
        for dy in range(3):
            for dx in range(3):
                out = out + zp[:, dy:dy + H, dx:dx + W, :] * w[dy, dx]
        return out if bias is None else out + bias

    def mm(a, w):
        return jnp.einsum("bhwc,cd->bhwd", a.astype(matmul_dtype), w.astype(matmul_dtype),
                          precision=hi, preferred_element_type=jnp.float32)

    xw = dw3x3(x, p["wdx"], p["bdx"][0])
    y = jnp.concatenate([xw, h], axis=-1)
    i = mm(y, p["wy"]) + p["by"][0]
    bfeat = dw3x3(i, p["wdi"], None)

    def gate(g):
        pre = mm(bfeat, p["wb"][g])
        mu = jnp.mean(pre, axis=(1, 2, 3), keepdims=True)
        var = jnp.mean((pre - mu) ** 2, axis=(1, 2, 3), keepdims=True)
        return (pre - mu) / jnp.sqrt(var + 1e-5) * p["gamma"][g] + p["beta"][g]

    lrelu = lambda v: jnp.where(v >= 0, v, 0.01 * v)
    ci = jax.nn.sigmoid(gate(0))
    cf = jax.nn.sigmoid(gate(1))
    cc = cf * c + ci * lrelu(gate(2))
    co = jax.nn.sigmoid(gate(3))
    ch = co * lrelu(cc)
    return ch, cc


if __name__ == "__main__":
    key = jax.random.PRNGKey(0)
    kx, kp = jax.random.split(key)

    B, H, W, Cin, Chid = 2, 16, 16, 8, 32   # Chid must be even (module assert)
    x = jax.random.normal(kx, (B, H, W, Cin), jnp.float32)
    params = init_params(kp, Cin, Chid)

    # h, c = None -> zero-initialised, as in BottleneckLSTM.forward
    new_h, new_c = bottleneck_lstm_forward(x, None, None, params)
    jax.block_until_ready((new_h, new_c))

    z = jnp.zeros((B, H, W, Chid), jnp.float32)
    ref_h32, ref_c32 = ref_forward(x, z, z, params)
    ref_hbf, ref_cbf = ref_forward(x, z, z, params, matmul_dtype=jnp.bfloat16)

    # (1) Kernel math matches a reference with the same bf16-operand matmul
    #     precision tightly (validates the kernel itself).
    err_h_bf = float(jnp.max(jnp.abs(new_h - ref_hbf)))
    err_c_bf = float(jnp.max(jnp.abs(new_c - ref_cbf)))
    assert err_h_bf < 1e-2 and err_c_bf < 1e-2, (err_h_bf, err_c_bf)
    # (2) Vs. the pure-f32 module reference the bound is set by the
    #     review-recommended bf16 operand rounding in the two MXU matmuls.
    err_h_f32 = float(jnp.max(jnp.abs(new_h - ref_h32)))
    err_c_f32 = float(jnp.max(jnp.abs(new_c - ref_c32)))
    assert err_h_f32 < 6e-2 and err_c_f32 < 6e-2, (err_h_f32, err_c_f32)

    print("KERNEL_OK")
</pallas_src>

<mosaic_0001>
module attributes {stable_mosaic.version = 11 : i64} {
  func.func @_bottleneck_lstm_cell_kernel(%arg0: i32, %arg1: memref<2x16x16x8xf32, #tpu.memory_space<vmem>>, %arg2: memref<2x16x16x32xf32, #tpu.memory_space<vmem>>, %arg3: memref<2x16x16x32xf32, #tpu.memory_space<vmem>>, %arg4: memref<3x3x16x8xf32, #tpu.memory_space<vmem>>, %arg5: memref<1x8xf32, #tpu.memory_space<vmem>>, %arg6: memref<8x32xbf16, #tpu.memory_space<vmem>>, %arg7: memref<32x32xbf16, #tpu.memory_space<vmem>>, %arg8: memref<1x32xf32, #tpu.memory_space<vmem>>, %arg9: memref<3x3x16x32xf32, #tpu.memory_space<vmem>>, %arg10: memref<32x128xbf16, #tpu.memory_space<vmem>>, %arg11: memref<1x128xf32, #tpu.memory_space<vmem>>, %arg12: memref<1x128xf32, #tpu.memory_space<vmem>>, %arg13: memref<128x4xf32, #tpu.memory_space<vmem>>, %arg14: memref<4x128xf32, #tpu.memory_space<vmem>>, %arg15: memref<2x16x16x32xf32, #tpu.memory_space<vmem>>, %arg16: memref<2x16x16x32xf32, #tpu.memory_space<vmem>>) attributes {dimension_semantics = [#tpu.dimension_semantics<parallel>], iteration_bounds = array<i64: 1>, scalar_prefetch = 0 : i64, scratch_operands = 0 : i64, tpu.core_type = #tpu.core_type<tc>, window_params = [{transform_indices = @transform_0, window_bounds = array<i64: 2, 16, 16, 8>}, {transform_indices = @transform_1, window_bounds = array<i64: 2, 16, 16, 32>}, {transform_indices = @transform_2, window_bounds = array<i64: 2, 16, 16, 32>}, {pipeline_mode = #tpu.pipeline_mode<synchronous>, transform_indices = @transform_3, window_bounds = array<i64: 3, 3, 16, 8>}, {pipeline_mode = #tpu.pipeline_mode<synchronous>, transform_indices = @transform_4, window_bounds = array<i64: 1, 8>}, {pipeline_mode = #tpu.pipeline_mode<synchronous>, transform_indices = @transform_5, window_bounds = array<i64: 8, 32>}, {pipeline_mode = #tpu.pipeline_mode<synchronous>, transform_indices = @transform_6, window_bounds = array<i64: 32, 32>}, {pipeline_mode = #tpu.pipeline_mode<synchronous>, transform_indices = @transform_7, window_bounds = array<i64: 1, 32>}, {pipeline_mode = #tpu.pipeline_mode<synchronous>, transform_indices = @transform_8, window_bounds = array<i64: 3, 3, 16, 32>}, {pipeline_mode = #tpu.pipeline_mode<synchronous>, transform_indices = @transform_9, window_bounds = array<i64: 32, 128>}, {pipeline_mode = #tpu.pipeline_mode<synchronous>, transform_indices = @transform_10, window_bounds = array<i64: 1, 128>}, {pipeline_mode = #tpu.pipeline_mode<synchronous>, transform_indices = @transform_11, window_bounds = array<i64: 1, 128>}, {pipeline_mode = #tpu.pipeline_mode<synchronous>, transform_indices = @transform_12, window_bounds = array<i64: 128, 4>}, {pipeline_mode = #tpu.pipeline_mode<synchronous>, transform_indices = @transform_13, window_bounds = array<i64: 4, 128>}, {transform_indices = @transform_14, window_bounds = array<i64: 2, 16, 16, 32>}, {transform_indices = @transform_15, window_bounds = array<i64: 2, 16, 16, 32>}]} {
    %c0 = arith.constant 0 : index
    %c0_0 = arith.constant 0 : index
    %c0_1 = arith.constant 0 : index
    %c0_2 = arith.constant 0 : index
    %0 = vector.load %arg1[%c0, %c0_0, %c0_1, %c0_2] : memref<2x16x16x8xf32, #tpu.memory_space<vmem>>, vector<2x16x16x8xf32>
    %c0_3 = arith.constant 0 : index
    %c0_4 = arith.constant 0 : index
    %c0_5 = arith.constant 0 : index
    %c0_6 = arith.constant 0 : index
    %1 = vector.load %arg2[%c0_3, %c0_4, %c0_5, %c0_6] : memref<2x16x16x32xf32, #tpu.memory_space<vmem>>, vector<2x16x16x32xf32>
    %c0_7 = arith.constant 0 : index
    %c0_8 = arith.constant 0 : index
    %c0_9 = arith.constant 0 : index
    %c0_10 = arith.constant 0 : index
    %2 = vector.load %arg3[%c0_7, %c0_8, %c0_9, %c0_10] : memref<2x16x16x32xf32, #tpu.memory_space<vmem>>, vector<2x16x16x32xf32>
    %c0_11 = arith.constant 0 : index
    %c0_12 = arith.constant 0 : index
    %c0_13 = arith.constant 0 : index
    %c0_14 = arith.constant 0 : index
    %3 = vector.load %arg4[%c0_11, %c0_12, %c0_13, %c0_14] : memref<3x3x16x8xf32, #tpu.memory_space<vmem>>, vector<3x3x16x8xf32>
    %c0_15 = arith.constant 0 : index
    %c0_16 = arith.constant 0 : index
    %4 = vector.load %arg5[%c0_15, %c0_16] : memref<1x8xf32, #tpu.memory_space<vmem>>, vector<1x8xf32>
    %5 = vector.shape_cast %4 : vector<1x8xf32> to vector<8xf32>
    %c1_i32 = arith.constant 1 : i32
    %6 = tpu.dynamic_rotate %0 by %c1_i32 dim 2 : vector<2x16x16x8xf32>, i32 -> vector<2x16x16x8xf32>
    %c15_i32 = arith.constant 15 : i32
    %7 = tpu.dynamic_rotate %0 by %c15_i32 dim 2 : vector<2x16x16x8xf32>, i32 -> vector<2x16x16x8xf32>
    %8 = vector.extract_strided_slice %3 {offsets = [0, 0, 0, 0], sizes = [1, 1, 16, 8], strides = [1, 1, 1, 1]} : vector<3x3x16x8xf32> to vector<1x1x16x8xf32>
    %9 = vector.shape_cast %8 : vector<1x1x16x8xf32> to vector<16x8xf32>
    %10 = vector.shape_cast %9 : vector<16x8xf32> to vector<1x1x16x8xf32>
    %11 = vector.broadcast %10 : vector<1x1x16x8xf32> to vector<2x16x16x8xf32>
    %12 = arith.mulf %6, %11 : vector<2x16x16x8xf32>
    %13 = vector.extract_strided_slice %3 {offsets = [0, 1, 0, 0], sizes = [1, 1, 16, 8], strides = [1, 1, 1, 1]} : vector<3x3x16x8xf32> to vector<1x1x16x8xf32>
    %14 = vector.shape_cast %13 : vector<1x1x16x8xf32> to vector<16x8xf32>
    %15 = vector.shape_cast %14 : vector<16x8xf32> to vector<1x1x16x8xf32>
    %16 = vector.broadcast %15 : vector<1x1x16x8xf32> to vector<2x16x16x8xf32>
    %17 = arith.mulf %0, %16 : vector<2x16x16x8xf32>
    %18 = arith.addf %12, %17 : vector<2x16x16x8xf32>
    %19 = vector.extract_strided_slice %3 {offsets = [0, 2, 0, 0], sizes = [1, 1, 16, 8], strides = [1, 1, 1, 1]} : vector<3x3x16x8xf32> to vector<1x1x16x8xf32>
    %20 = vector.shape_cast %19 : vector<1x1x16x8xf32> to vector<16x8xf32>
    %21 = vector.shape_cast %20 : vector<16x8xf32> to vector<1x1x16x8xf32>
    %22 = vector.broadcast %21 : vector<1x1x16x8xf32> to vector<2x16x16x8xf32>
    %23 = arith.mulf %7, %22 : vector<2x16x16x8xf32>
    %24 = arith.addf %18, %23 : vector<2x16x16x8xf32>
    %25 = vector.extract_strided_slice %3 {offsets = [1, 0, 0, 0], sizes = [1, 1, 16, 8], strides = [1, 1, 1, 1]} : vector<3x3x16x8xf32> to vector<1x1x16x8xf32>
    %26 = vector.shape_cast %25 : vector<1x1x16x8xf32> to vector<16x8xf32>
    %27 = vector.shape_cast %26 : vector<16x8xf32> to vector<1x1x16x8xf32>
    %28 = vector.broadcast %27 : vector<1x1x16x8xf32> to vector<2x16x16x8xf32>
    %29 = arith.mulf %6, %28 : vector<2x16x16x8xf32>
    %30 = vector.extract_strided_slice %3 {offsets = [1, 1, 0, 0], sizes = [1, 1, 16, 8], strides = [1, 1, 1, 1]} : vector<3x3x16x8xf32> to vector<1x1x16x8xf32>
    %31 = vector.shape_cast %30 : vector<1x1x16x8xf32> to vector<16x8xf32>
    %32 = vector.shape_cast %31 : vector<16x8xf32> to vector<1x1x16x8xf32>
    %33 = vector.broadcast %32 : vector<1x1x16x8xf32> to vector<2x16x16x8xf32>
    %34 = arith.mulf %0, %33 : vector<2x16x16x8xf32>
    %35 = arith.addf %29, %34 : vector<2x16x16x8xf32>
    %36 = vector.extract_strided_slice %3 {offsets = [1, 2, 0, 0], sizes = [1, 1, 16, 8], strides = [1, 1, 1, 1]} : vector<3x3x16x8xf32> to vector<1x1x16x8xf32>
    %37 = vector.shape_cast %36 : vector<1x1x16x8xf32> to vector<16x8xf32>
    %38 = vector.shape_cast %37 : vector<16x8xf32> to vector<1x1x16x8xf32>
    %39 = vector.broadcast %38 : vector<1x1x16x8xf32> to vector<2x16x16x8xf32>
    %40 = arith.mulf %7, %39 : vector<2x16x16x8xf32>
    %41 = arith.addf %35, %40 : vector<2x16x16x8xf32>
    %42 = vector.extract_strided_slice %3 {offsets = [2, 0, 0, 0], sizes = [1, 1, 16, 8], strides = [1, 1, 1, 1]} : vector<3x3x16x8xf32> to vector<1x1x16x8xf32>
    %43 = vector.shape_cast %42 : vector<1x1x16x8xf32> to vector<16x8xf32>
    %44 = vector.shape_cast %43 : vector<16x8xf32> to vector<1x1x16x8xf32>
    %45 = vector.broadcast %44 : vector<1x1x16x8xf32> to vector<2x16x16x8xf32>
    %46 = arith.mulf %6, %45 : vector<2x16x16x8xf32>
    %47 = vector.extract_strided_slice %3 {offsets = [2, 1, 0, 0], sizes = [1, 1, 16, 8], strides = [1, 1, 1, 1]} : vector<3x3x16x8xf32> to vector<1x1x16x8xf32>
    %48 = vector.shape_cast %47 : vector<1x1x16x8xf32> to vector<16x8xf32>
    %49 = vector.shape_cast %48 : vector<16x8xf32> to vector<1x1x16x8xf32>
    %50 = vector.broadcast %49 : vector<1x1x16x8xf32> to vector<2x16x16x8xf32>
    %51 = arith.mulf %0, %50 : vector<2x16x16x8xf32>
    %52 = arith.addf %46, %51 : vector<2x16x16x8xf32>
    %53 = vector.extract_strided_slice %3 {offsets = [2, 2, 0, 0], sizes = [1, 1, 16, 8], strides = [1, 1, 1, 1]} : vector<3x3x16x8xf32> to vector<1x1x16x8xf32>
    %54 = vector.shape_cast %53 : vector<1x1x16x8xf32> to vector<16x8xf32>
    %55 = vector.shape_cast %54 : vector<16x8xf32> to vector<1x1x16x8xf32>
    %56 = vector.broadcast %55 : vector<1x1x16x8xf32> to vector<2x16x16x8xf32>
    %57 = arith.mulf %7, %56 : vector<2x16x16x8xf32>
    %58 = arith.addf %52, %57 : vector<2x16x16x8xf32>
    %cst = arith.constant 0.000000e+00 : f32
    %59 = vector.broadcast %cst : f32 to vector<2x1x16x8xf32>
    %60 = vector.extract_strided_slice %24 {offsets = [0, 0, 0, 0], sizes = [2, 15, 16, 8], strides = [1, 1, 1, 1]} : vector<2x16x16x8xf32> to vector<2x15x16x8xf32>
    %61 = tpu.concatenate %59, %60 in 1 : vector<2x1x16x8xf32>, vector<2x15x16x8xf32> -> vector<2x16x16x8xf32>
    %62 = vector.extract_strided_slice %58 {offsets = [0, 1, 0, 0], sizes = [2, 15, 16, 8], strides = [1, 1, 1, 1]} : vector<2x16x16x8xf32> to vector<2x15x16x8xf32>
    %63 = tpu.concatenate %62, %59 in 1 : vector<2x15x16x8xf32>, vector<2x1x16x8xf32> -> vector<2x16x16x8xf32>
    %64 = arith.addf %41, %61 : vector<2x16x16x8xf32>
    %65 = arith.addf %64, %63 : vector<2x16x16x8xf32>
    %66 = vector.shape_cast %5 : vector<8xf32> to vector<1x1x1x8xf32>
    %67 = vector.broadcast %66 : vector<1x1x1x8xf32> to vector<2x16x16x8xf32>
    %68 = arith.addf %65, %67 : vector<2x16x16x8xf32>
    %69 = vector.shape_cast %1 : vector<2x16x16x32xf32> to vector<512x32xf32>
    %70 = arith.truncf %69 : vector<512x32xf32> to vector<512x32xbf16>
    %71 = vector.shape_cast %68 : vector<2x16x16x8xf32> to vector<512x8xf32>
    %72 = arith.truncf %71 : vector<512x8xf32> to vector<512x8xbf16>
    %c0_17 = arith.constant 0 : index
    %c0_18 = arith.constant 0 : index
    %73 = vector.load %arg7[%c0_17, %c0_18] : memref<32x32xbf16, #tpu.memory_space<vmem>>, vector<32x32xbf16>
    %cst_19 = arith.constant dense<0.000000e+00> : vector<512x32xf32>
    %74 = tpu.matmul %70, %73, %cst_19 {dimension_numbers = #tpu.dot_dimension_numbers<[1], [0], [0], [1], [0, 0, 1, 1], [], []>} : vector<512x32xbf16>, vector<32x32xbf16>, vector<512x32xf32> -> vector<512x32xf32>
    %c0_20 = arith.constant 0 : index
    %c0_21 = arith.constant 0 : index
    %75 = vector.load %arg6[%c0_20, %c0_21] : memref<8x32xbf16, #tpu.memory_space<vmem>>, vector<8x32xbf16>
    %cst_22 = arith.constant dense<0.000000e+00> : vector<512x32xf32>
    %76 = tpu.matmul %72, %75, %cst_22 {dimension_numbers = #tpu.dot_dimension_numbers<[1], [0], [0], [1], [0, 0, 1, 1], [], []>} : vector<512x8xbf16>, vector<8x32xbf16>, vector<512x32xf32> -> vector<512x32xf32>
    %77 = arith.addf %74, %76 : vector<512x32xf32>
    %c0_23 = arith.constant 0 : index
    %c0_24 = arith.constant 0 : index
    %78 = vector.load %arg8[%c0_23, %c0_24] : memref<1x32xf32, #tpu.memory_space<vmem>>, vector<1x32xf32>
    %79 = vector.shape_cast %78 : vector<1x32xf32> to vector<32xf32>
    %80 = vector.shape_cast %79 : vector<32xf32> to vector<1x32xf32>
    %81 = vector.broadcast %80 : vector<1x32xf32> to vector<512x32xf32>
    %82 = arith.addf %77, %81 : vector<512x32xf32>
    %83 = vector.shape_cast %82 : vector<512x32xf32> to vector<2x16x16x32xf32>
    %c0_25 = arith.constant 0 : index
    %c0_26 = arith.constant 0 : index
    %c0_27 = arith.constant 0 : index
    %c0_28 = arith.constant 0 : index
    %84 = vector.load %arg9[%c0_25, %c0_26, %c0_27, %c0_28] : memref<3x3x16x32xf32, #tpu.memory_space<vmem>>, vector<3x3x16x32xf32>
    %c1_i32_29 = arith.constant 1 : i32
    %85 = tpu.dynamic_rotate %83 by %c1_i32_29 dim 2 : vector<2x16x16x32xf32>, i32 -> vector<2x16x16x32xf32>
    %c15_i32_30 = arith.constant 15 : i32
    %86 = tpu.dynamic_rotate %83 by %c15_i32_30 dim 2 : vector<2x16x16x32xf32>, i32 -> vector<2x16x16x32xf32>
    %87 = vector.extract_strided_slice %84 {offsets = [0, 0, 0, 0], sizes = [1, 1, 16, 32], strides = [1, 1, 1, 1]} : vector<3x3x16x32xf32> to vector<1x1x16x32xf32>
    %88 = vector.shape_cast %87 : vector<1x1x16x32xf32> to vector<16x32xf32>
    %89 = vector.shape_cast %88 : vector<16x32xf32> to vector<1x1x16x32xf32>
    %90 = vector.broadcast %89 : vector<1x1x16x32xf32> to vector<2x16x16x32xf32>
    %91 = arith.mulf %85, %90 : vector<2x16x16x32xf32>
    %92 = vector.extract_strided_slice %84 {offsets = [0, 1, 0, 0], sizes = [1, 1, 16, 32], strides = [1, 1, 1, 1]} : vector<3x3x16x32xf32> to vector<1x1x16x32xf32>
    %93 = vector.shape_cast %92 : vector<1x1x16x32xf32> to vector<16x32xf32>
    %94 = vector.shape_cast %93 : vector<16x32xf32> to vector<1x1x16x32xf32>
    %95 = vector.broadcast %94 : vector<1x1x16x32xf32> to vector<2x16x16x32xf32>
    %96 = arith.mulf %83, %95 : vector<2x16x16x32xf32>
    %97 = arith.addf %91, %96 : vector<2x16x16x32xf32>
    %98 = vector.extract_strided_slice %84 {offsets = [0, 2, 0, 0], sizes = [1, 1, 16, 32], strides = [1, 1, 1, 1]} : vector<3x3x16x32xf32> to vector<1x1x16x32xf32>
    %99 = vector.shape_cast %98 : vector<1x1x16x32xf32> to vector<16x32xf32>
    %100 = vector.shape_cast %99 : vector<16x32xf32> to vector<1x1x16x32xf32>
    %101 = vector.broadcast %100 : vector<1x1x16x32xf32> to vector<2x16x16x32xf32>
    %102 = arith.mulf %86, %101 : vector<2x16x16x32xf32>
    %103 = arith.addf %97, %102 : vector<2x16x16x32xf32>
    %104 = vector.extract_strided_slice %84 {offsets = [1, 0, 0, 0], sizes = [1, 1, 16, 32], strides = [1, 1, 1, 1]} : vector<3x3x16x32xf32> to vector<1x1x16x32xf32>
    %105 = vector.shape_cast %104 : vector<1x1x16x32xf32> to vector<16x32xf32>
    %106 = vector.shape_cast %105 : vector<16x32xf32> to vector<1x1x16x32xf32>
    %107 = vector.broadcast %106 : vector<1x1x16x32xf32> to vector<2x16x16x32xf32>
    %108 = arith.mulf %85, %107 : vector<2x16x16x32xf32>
    %109 = vector.extract_strided_slice %84 {offsets = [1, 1, 0, 0], sizes = [1, 1, 16, 32], strides = [1, 1, 1, 1]} : vector<3x3x16x32xf32> to vector<1x1x16x32xf32>
    %110 = vector.shape_cast %109 : vector<1x1x16x32xf32> to vector<16x32xf32>
    %111 = vector.shape_cast %110 : vector<16x32xf32> to vector<1x1x16x32xf32>
    %112 = vector.broadcast %111 : vector<1x1x16x32xf32> to vector<2x16x16x32xf32>
    %113 = arith.mulf %83, %112 : vector<2x16x16x32xf32>
    %114 = arith.addf %108, %113 : vector<2x16x16x32xf32>
    %115 = vector.extract_strided_slice %84 {offsets = [1, 2, 0, 0], sizes = [1, 1, 16, 32], strides = [1, 1, 1, 1]} : vector<3x3x16x32xf32> to vector<1x1x16x32xf32>
    %116 = vector.shape_cast %115 : vector<1x1x16x32xf32> to vector<16x32xf32>
    %117 = vector.shape_cast %116 : vector<16x32xf32> to vector<1x1x16x32xf32>
    %118 = vector.broadcast %117 : vector<1x1x16x32xf32> to vector<2x16x16x32xf32>
    %119 = arith.mulf %86, %118 : vector<2x16x16x32xf32>
    %120 = arith.addf %114, %119 : vector<2x16x16x32xf32>
    %121 = vector.extract_strided_slice %84 {offsets = [2, 0, 0, 0], sizes = [1, 1, 16, 32], strides = [1, 1, 1, 1]} : vector<3x3x16x32xf32> to vector<1x1x16x32xf32>
    %122 = vector.shape_cast %121 : vector<1x1x16x32xf32> to vector<16x32xf32>
    %123 = vector.shape_cast %122 : vector<16x32xf32> to vector<1x1x16x32xf32>
    %124 = vector.broadcast %123 : vector<1x1x16x32xf32> to vector<2x16x16x32xf32>
    %125 = arith.mulf %85, %124 : vector<2x16x16x32xf32>
    %126 = vector.extract_strided_slice %84 {offsets = [2, 1, 0, 0], sizes = [1, 1, 16, 32], strides = [1, 1, 1, 1]} : vector<3x3x16x32xf32> to vector<1x1x16x32xf32>
    %127 = vector.shape_cast %126 : vector<1x1x16x32xf32> to vector<16x32xf32>
    %128 = vector.shape_cast %127 : vector<16x32xf32> to vector<1x1x16x32xf32>
    %129 = vector.broadcast %128 : vector<1x1x16x32xf32> to vector<2x16x16x32xf32>
    %130 = arith.mulf %83, %129 : vector<2x16x16x32xf32>
    %131 = arith.addf %125, %130 : vector<2x16x16x32xf32>
    %132 = vector.extract_strided_slice %84 {offsets = [2, 2, 0, 0], sizes = [1, 1, 16, 32], strides = [1, 1, 1, 1]} : vector<3x3x16x32xf32> to vector<1x1x16x32xf32>
    %133 = vector.shape_cast %132 : vector<1x1x16x32xf32> to vector<16x32xf32>
    %134 = vector.shape_cast %133 : vector<16x32xf32> to vector<1x1x16x32xf32>
    %135 = vector.broadcast %134 : vector<1x1x16x32xf32> to vector<2x16x16x32xf32>
    %136 = arith.mulf %86, %135 : vector<2x16x16x32xf32>
    %137 = arith.addf %131, %136 : vector<2x16x16x32xf32>
    %cst_31 = arith.constant 0.000000e+00 : f32
    %138 = vector.broadcast %cst_31 : f32 to vector<2x1x16x32xf32>
    %139 = vector.extract_strided_slice %103 {offsets = [0, 0, 0, 0], sizes = [2, 15, 16, 32], strides = [1, 1, 1, 1]} : vector<2x16x16x32xf32> to vector<2x15x16x32xf32>
    %140 = tpu.concatenate %138, %139 in 1 : vector<2x1x16x32xf32>, vector<2x15x16x32xf32> -> vector<2x16x16x32xf32>
    %141 = vector.extract_strided_slice %137 {offsets = [0, 1, 0, 0], sizes = [2, 15, 16, 32], strides = [1, 1, 1, 1]} : vector<2x16x16x32xf32> to vector<2x15x16x32xf32>
    %142 = tpu.concatenate %141, %138 in 1 : vector<2x15x16x32xf32>, vector<2x1x16x32xf32> -> vector<2x16x16x32xf32>
    %143 = arith.addf %120, %140 : vector<2x16x16x32xf32>
    %144 = arith.addf %143, %142 : vector<2x16x16x32xf32>
    %145 = vector.shape_cast %144 : vector<2x16x16x32xf32> to vector<512x32xf32>
    %146 = arith.truncf %145 : vector<512x32xf32> to vector<512x32xbf16>
    %c0_32 = arith.constant 0 : index
    %c0_33 = arith.constant 0 : index
    %147 = vector.load %arg10[%c0_32, %c0_33] : memref<32x128xbf16, #tpu.memory_space<vmem>>, vector<32x128xbf16>
    %cst_34 = arith.constant dense<0.000000e+00> : vector<512x128xf32>
    %148 = tpu.matmul %146, %147, %cst_34 {dimension_numbers = #tpu.dot_dimension_numbers<[1], [0], [0], [1], [0, 0, 1, 1], [], []>} : vector<512x32xbf16>, vector<32x128xbf16>, vector<512x128xf32> -> vector<512x128xf32>
    %149 = vector.shape_cast %148 : vector<512x128xf32> to vector<2x256x128xf32>
    %cst_35 = arith.constant dense<0.000000e+00> : vector<2x128xf32>
    %150 = vector.multi_reduction <add>, %149, %cst_35 [1] : vector<2x256x128xf32> to vector<2x128xf32>
    %151 = arith.mulf %149, %149 : vector<2x256x128xf32>
    %cst_36 = arith.constant dense<0.000000e+00> : vector<2x128xf32>
    %152 = vector.multi_reduction <add>, %151, %cst_36 [1] : vector<2x256x128xf32> to vector<2x128xf32>
    %153 = vector.shape_cast %150 : vector<2x128xf32> to vector<1x2x128xf32>
    %154 = vector.shape_cast %152 : vector<2x128xf32> to vector<1x2x128xf32>
    %155 = tpu.concatenate %153, %154 in 0 : vector<1x2x128xf32>, vector<1x2x128xf32> -> vector<2x2x128xf32>
    %156 = vector.shape_cast %155 : vector<2x2x128xf32> to vector<4x128xf32>
    %c0_37 = arith.constant 0 : index
    %c0_38 = arith.constant 0 : index
    %157 = vector.load %arg13[%c0_37, %c0_38] : memref<128x4xf32, #tpu.memory_space<vmem>>, vector<128x4xf32>
    %cst_39 = arith.constant dense<0.000000e+00> : vector<4x4xf32>
    %158 = tpu.matmul %156, %157, %cst_39 {dimension_numbers = #tpu.dot_dimension_numbers<[1], [0], [0], [1], [0, 0, 1, 1], [], []>} : vector<4x128xf32>, vector<128x4xf32>, vector<4x4xf32> -> vector<4x4xf32>
    %159 = vector.shape_cast %158 : vector<4x4xf32> to vector<2x2x4xf32>
    %160 = vector.extract_strided_slice %159 {offsets = [0, 0, 0], sizes = [1, 2, 4], strides = [1, 1, 1]} : vector<2x2x4xf32> to vector<1x2x4xf32>
    %161 = vector.shape_cast %160 : vector<1x2x4xf32> to vector<2x4xf32>
    %162 = vector.extract_strided_slice %159 {offsets = [1, 0, 0], sizes = [1, 2, 4], strides = [1, 1, 1]} : vector<2x2x4xf32> to vector<1x2x4xf32>
    %163 = vector.shape_cast %162 : vector<1x2x4xf32> to vector<2x4xf32>
    %164 = arith.mulf %161, %161 : vector<2x4xf32>
    %165 = arith.subf %163, %164 : vector<2x4xf32>
    %cst_40 = arith.constant 9.99999974E-6 : f32
    %166 = vector.broadcast %cst_40 : f32 to vector<2x4xf32>
    %167 = arith.addf %165, %166 : vector<2x4xf32>
    %168 = math.rsqrt %167 : vector<2x4xf32>
    %169 = vector.shape_cast %161 : vector<2x4xf32> to vector<1x2x4xf32>
    %170 = vector.shape_cast %168 : vector<2x4xf32> to vector<1x2x4xf32>
    %171 = tpu.concatenate %169, %170 in 0 : vector<1x2x4xf32>, vector<1x2x4xf32> -> vector<2x2x4xf32>
    %172 = vector.shape_cast %171 : vector<2x2x4xf32> to vector<4x4xf32>
    %c0_41 = arith.constant 0 : index
    %c0_42 = arith.constant 0 : index
    %173 = vector.load %arg14[%c0_41, %c0_42] : memref<4x128xf32, #tpu.memory_space<vmem>>, vector<4x128xf32>
    %cst_43 = arith.constant dense<0.000000e+00> : vector<4x128xf32>
    %174 = tpu.matmul %172, %173, %cst_43 {dimension_numbers = #tpu.dot_dimension_numbers<[1], [0], [0], [1], [0, 0, 1, 1], [], []>} : vector<4x4xf32>, vector<4x128xf32>, vector<4x128xf32> -> vector<4x128xf32>
    %175 = vector.shape_cast %174 : vector<4x128xf32> to vector<2x2x128xf32>
    %176 = vector.extract_strided_slice %175 {offsets = [0, 0, 0], sizes = [1, 2, 128], strides = [1, 1, 1]} : vector<2x2x128xf32> to vector<1x2x128xf32>
    %177 = vector.shape_cast %176 : vector<1x2x128xf32> to vector<2x128xf32>
    %178 = vector.extract_strided_slice %175 {offsets = [1, 0, 0], sizes = [1, 2, 128], strides = [1, 1, 1]} : vector<2x2x128xf32> to vector<1x2x128xf32>
    %179 = vector.shape_cast %178 : vector<1x2x128xf32> to vector<2x128xf32>
    %c0_44 = arith.constant 0 : index
    %c0_45 = arith.constant 0 : index
    %180 = vector.load %arg11[%c0_44, %c0_45] : memref<1x128xf32, #tpu.memory_space<vmem>>, vector<1x128xf32>
    %181 = vector.shape_cast %180 : vector<1x128xf32> to vector<128xf32>
    %182 = vector.shape_cast %181 : vector<128xf32> to vector<1x128xf32>
    %183 = vector.broadcast %182 : vector<1x128xf32> to vector<2x128xf32>
    %184 = arith.mulf %179, %183 : vector<2x128xf32>
    %c0_46 = arith.constant 0 : index
    %c0_47 = arith.constant 0 : index
    %185 = vector.load %arg12[%c0_46, %c0_47] : memref<1x128xf32, #tpu.memory_space<vmem>>, vector<1x128xf32>
    %186 = vector.shape_cast %185 : vector<1x128xf32> to vector<128xf32>
    %187 = arith.mulf %177, %184 : vector<2x128xf32>
    %188 = vector.shape_cast %186 : vector<128xf32> to vector<1x128xf32>
    %189 = vector.broadcast %188 : vector<1x128xf32> to vector<2x128xf32>
    %190 = arith.subf %189, %187 : vector<2x128xf32>
    %191 = vector.shape_cast %184 : vector<2x128xf32> to vector<2x1x128xf32>
    %192 = vector.broadcast %191 : vector<2x1x128xf32> to vector<2x256x128xf32>
    %193 = arith.mulf %149, %192 : vector<2x256x128xf32>
    %194 = vector.shape_cast %190 : vector<2x128xf32> to vector<2x1x128xf32>
    %195 = vector.broadcast %194 : vector<2x1x128xf32> to vector<2x256x128xf32>
    %196 = arith.addf %193, %195 : vector<2x256x128xf32>
    %197 = arith.negf %196 : vector<2x256x128xf32>
    %198 = math.exp %197 : vector<2x256x128xf32>
    %cst_48 = arith.constant 1.000000e+00 : f32
    %199 = vector.broadcast %cst_48 : f32 to vector<2x256x128xf32>
    %200 = arith.addf %199, %198 : vector<2x256x128xf32>
    %201 = arith.divf %199, %200 : vector<2x256x128xf32>
    %202 = vector.extract_strided_slice %201 {offsets = [0, 0, 0], sizes = [2, 256, 32], strides = [1, 1, 1]} : vector<2x256x128xf32> to vector<2x256x32xf32>
    %203 = vector.extract_strided_slice %201 {offsets = [0, 0, 32], sizes = [2, 256, 32], strides = [1, 1, 1]} : vector<2x256x128xf32> to vector<2x256x32xf32>
    %204 = vector.extract_strided_slice %201 {offsets = [0, 0, 96], sizes = [2, 256, 32], strides = [1, 1, 1]} : vector<2x256x128xf32> to vector<2x256x32xf32>
    %205 = vector.extract_strided_slice %196 {offsets = [0, 0, 64], sizes = [2, 256, 32], strides = [1, 1, 1]} : vector<2x256x128xf32> to vector<2x256x32xf32>
    %cst_49 = arith.constant 0.000000e+00 : f32
    %206 = vector.broadcast %cst_49 : f32 to vector<2x256x32xf32>
    %207 = arith.cmpf oge, %205, %206 : vector<2x256x32xf32>
    %cst_50 = arith.constant 0.00999999977 : f32
    %208 = vector.broadcast %cst_50 : f32 to vector<2x256x32xf32>
    %209 = arith.mulf %208, %205 : vector<2x256x32xf32>
    %210 = arith.select %207, %205, %209 : vector<2x256x32xi1>, vector<2x256x32xf32>
    %211 = vector.shape_cast %2 : vector<2x16x16x32xf32> to vector<2x256x32xf32>
    %212 = arith.mulf %203, %211 : vector<2x256x32xf32>
    %213 = arith.mulf %202, %210 : vector<2x256x32xf32>
    %214 = arith.addf %212, %213 : vector<2x256x32xf32>
    %cst_51 = arith.constant 0.000000e+00 : f32
    %215 = vector.broadcast %cst_51 : f32 to vector<2x256x32xf32>
    %216 = arith.cmpf oge, %214, %215 : vector<2x256x32xf32>
    %cst_52 = arith.constant 0.00999999977 : f32
    %217 = vector.broadcast %cst_52 : f32 to vector<2x256x32xf32>
    %218 = arith.mulf %217, %214 : vector<2x256x32xf32>
    %219 = arith.select %216, %214, %218 : vector<2x256x32xi1>, vector<2x256x32xf32>
    %220 = arith.mulf %204, %219 : vector<2x256x32xf32>
    %221 = vector.shape_cast %220 : vector<2x256x32xf32> to vector<2x16x16x32xf32>
    %c0_53 = arith.constant 0 : index
    %c0_54 = arith.constant 0 : index
    %c0_55 = arith.constant 0 : index
    %c0_56 = arith.constant 0 : index
    %222 = vector.load %arg15[%c0_53, %c0_54, %c0_55, %c0_56] : memref<2x16x16x32xf32, #tpu.memory_space<vmem>>, vector<2x16x16x32xf32>
    tpu.vector_store %arg15[%c0_53, %c0_54, %c0_55, %c0_56], %221 {strides = array<i32>} : memref<2x16x16x32xf32, #tpu.memory_space<vmem>>, vector<2x16x16x32xf32>,
    %223 = vector.shape_cast %214 : vector<2x256x32xf32> to vector<2x16x16x32xf32>
    %c0_57 = arith.constant 0 : index
    %c0_58 = arith.constant 0 : index
    %c0_59 = arith.constant 0 : index
    %c0_60 = arith.constant 0 : index
    %224 = vector.load %arg16[%c0_57, %c0_58, %c0_59, %c0_60] : memref<2x16x16x32xf32, #tpu.memory_space<vmem>>, vector<2x16x16x32xf32>
    tpu.vector_store %arg16[%c0_57, %c0_58, %c0_59, %c0_60], %223 {strides = array<i32>} : memref<2x16x16x32xf32, #tpu.memory_space<vmem>>, vector<2x16x16x32xf32>,
    return
  }
  func.func @transform_0(%arg0: i32) -> (i32, i32, i32, i32) {
    %c0_i32 = arith.constant 0 : i32
    %c0_i32_0 = arith.constant 0 : i32
    %c0_i32_1 = arith.constant 0 : i32
    %c0_i32_2 = arith.constant 0 : i32
    return %arg0, %c0_i32, %c0_i32_0, %c0_i32_1 : i32, i32, i32, i32
  }
  func.func @transform_1(%arg0: i32) -> (i32, i32, i32, i32) {
    %c0_i32 = arith.constant 0 : i32
    %c0_i32_0 = arith.constant 0 : i32
    %c0_i32_1 = arith.constant 0 : i32
    %c0_i32_2 = arith.constant 0 : i32
    return %arg0, %c0_i32, %c0_i32_0, %c0_i32_1 : i32, i32, i32, i32
  }
  func.func @transform_2(%arg0: i32) -> (i32, i32, i32, i32) {
    %c0_i32 = arith.constant 0 : i32
    %c0_i32_0 = arith.constant 0 : i32
    %c0_i32_1 = arith.constant 0 : i32
    %c0_i32_2 = arith.constant 0 : i32
    return %arg0, %c0_i32, %c0_i32_0, %c0_i32_1 : i32, i32, i32, i32
  }
  func.func @transform_3(%arg0: i32) -> (i32, i32, i32, i32) {
    %c0_i32 = arith.constant 0 : i32
    %c0_i32_0 = arith.constant 0 : i32
    %c0_i32_1 = arith.constant 0 : i32
    %c0_i32_2 = arith.constant 0 : i32
    %c0_i32_3 = arith.constant 0 : i32
    return %c0_i32, %c0_i32_0, %c0_i32_1, %c0_i32_2 : i32, i32, i32, i32
  }
  func.func @transform_4(%arg0: i32) -> (i32, i32) {
    %c0_i32 = arith.constant 0 : i32
    %c0_i32_0 = arith.constant 0 : i32
    %c0_i32_1 = arith.constant 0 : i32
    return %c0_i32, %c0_i32_0 : i32, i32
  }
  func.func @transform_5(%arg0: i32) -> (i32, i32) {
    %c0_i32 = arith.constant 0 : i32
    %c0_i32_0 = arith.constant 0 : i32
    %c0_i32_1 = arith.constant 0 : i32
    return %c0_i32, %c0_i32_0 : i32, i32
  }
  func.func @transform_6(%arg0: i32) -> (i32, i32) {
    %c0_i32 = arith.constant 0 : i32
    %c0_i32_0 = arith.constant 0 : i32
    %c0_i32_1 = arith.constant 0 : i32
    return %c0_i32, %c0_i32_0 : i32, i32
  }
  func.func @transform_7(%arg0: i32) -> (i32, i32) {
    %c0_i32 = arith.constant 0 : i32
    %c0_i32_0 = arith.constant 0 : i32
    %c0_i32_1 = arith.constant 0 : i32
    return %c0_i32, %c0_i32_0 : i32, i32
  }
  func.func @transform_8(%arg0: i32) -> (i32, i32, i32, i32) {
    %c0_i32 = arith.constant 0 : i32
    %c0_i32_0 = arith.constant 0 : i32
    %c0_i32_1 = arith.constant 0 : i32
    %c0_i32_2 = arith.constant 0 : i32
    %c0_i32_3 = arith.constant 0 : i32
    return %c0_i32, %c0_i32_0, %c0_i32_1, %c0_i32_2 : i32, i32, i32, i32
  }
  func.func @transform_9(%arg0: i32) -> (i32, i32) {
    %c0_i32 = arith.constant 0 : i32
    %c0_i32_0 = arith.constant 0 : i32
    %c0_i32_1 = arith.constant 0 : i32
    return %c0_i32, %c0_i32_0 : i32, i32
  }
  func.func @transform_10(%arg0: i32) -> (i32, i32) {
    %c0_i32 = arith.constant 0 : i32
    %c0_i32_0 = arith.constant 0 : i32
    %c0_i32_1 = arith.constant 0 : i32
    return %c0_i32, %c0_i32_0 : i32, i32
  }
  func.func @transform_11(%arg0: i32) -> (i32, i32) {
    %c0_i32 = arith.constant 0 : i32
    %c0_i32_0 = arith.constant 0 : i32
    %c0_i32_1 = arith.constant 0 : i32
    return %c0_i32, %c0_i32_0 : i32, i32
  }
  func.func @transform_12(%arg0: i32) -> (i32, i32) {
    %c0_i32 = arith.constant 0 : i32
    %c0_i32_0 = arith.constant 0 : i32
    %c0_i32_1 = arith.constant 0 : i32
    return %c0_i32, %c0_i32_0 : i32, i32
  }
  func.func @transform_13(%arg0: i32) -> (i32, i32) {
    %c0_i32 = arith.constant 0 : i32
    %c0_i32_0 = arith.constant 0 : i32
    %c0_i32_1 = arith.constant 0 : i32
    return %c0_i32, %c0_i32_0 : i32, i32
  }
  func.func @transform_14(%arg0: i32) -> (i32, i32, i32, i32) {
    %c0_i32 = arith.constant 0 : i32
    %c0_i32_0 = arith.constant 0 : i32
    %c0_i32_1 = arith.constant 0 : i32
    %c0_i32_2 = arith.constant 0 : i32
    return %arg0, %c0_i32, %c0_i32_0, %c0_i32_1 : i32, i32, i32, i32
  }
  func.func @transform_15(%arg0: i32) -> (i32, i32, i32, i32) {
    %c0_i32 = arith.constant 0 : i32
    %c0_i32_0 = arith.constant 0 : i32
    %c0_i32_1 = arith.constant 0 : i32
    %c0_i32_2 = arith.constant 0 : i32
    return %arg0, %c0_i32, %c0_i32_0, %c0_i32_1 : i32, i32, i32, i32
  }
}

</mosaic_0001>

<llo_original>
// kernel: tpu_custom_call.1
$region0: #{tpu_custom_call.1}
  #allocation0 [shape = 'u32[]', space=smem, size = 0x4, offset = 0x4, fixed_abs, tag = 'smem constant byte address 0x4 - core index']
  #allocation1 [shape = 'u32[72,128]{1,0:T(1,128)}', space=vmem, size = 0x9000, scoped, tag = 'internal scratch']
  %s0 = inlined_call_operand.vmem [shape: f32[2,16,16,8], index: 0, kind: input, shape index: {}]
  %s1 = inlined_call_operand.vmem [shape: f32[2,16,16,32], index: 1, kind: input, shape index: {}]
  %s2 = inlined_call_operand.hbm [shape: f32[2,16,16,32], index: 2, kind: input, shape index: {}]
  %s3 = inlined_call_operand.vmem [shape: f32[3,3,16,8], index: 3, kind: input, shape index: {}]
  %s4 = inlined_call_operand.vmem [shape: f32[1,8], index: 4, kind: input, shape index: {}]
  %s5 = inlined_call_operand.vmem [shape: bf16[8,32], index: 5, kind: input, shape index: {}]
  %s6 = inlined_call_operand.vmem [shape: bf16[32,32], index: 6, kind: input, shape index: {}]
  %s7 = inlined_call_operand.vmem [shape: f32[1,32], index: 7, kind: input, shape index: {}]
  %s8 = inlined_call_operand.vmem [shape: f32[3,3,16,32], index: 8, kind: input, shape index: {}]
  %s9 = inlined_call_operand.vmem [shape: bf16[32,128], index: 9, kind: input, shape index: {}]
  %s10 = inlined_call_operand.vmem [shape: f32[1,128], index: 10, kind: input, shape index: {}]
  %s11 = inlined_call_operand.vmem [shape: f32[1,128], index: 11, kind: input, shape index: {}]
  %s12 = inlined_call_operand.vmem [shape: f32[128,4], index: 12, kind: input, shape index: {}]
  %s13 = inlined_call_operand.vmem [shape: f32[4,128], index: 13, kind: input, shape index: {}]
  %s14 = inlined_call_operand.hbm [shape: f32[2,16,16,32], index: 14, kind: output, shape index: {0}]
  %s15 = inlined_call_operand.hbm [shape: f32[2,16,16,32], index: 15, kind: output, shape index: {1}]
  %16 = xla_tuple %s14, %s15
  %s17 = sld [smem:[#allocation0]]
  $region78: #{tpu_custom_call.1} parent=0
    _
  %s19 = ssub.s32 1, %s17
  %s20 = scalar_select 0, %s19, %s17
  $region1: #{tpu_custom_call.1} parent=0
    #allocation2 [shape = 'u8[262144]{0}', space=vmem, size = 0x40000, scoped, tag = 'input window, operand 2, single buffered']
    #allocation3 [shape = 's32[1]{0}', space=sflag, size = 0x4, scoped, tag = 'scoped memory for tpu_custom_call.1']
    #allocation4 [shape = 's32[1]{0}', space=sflag, size = 0x4, scoped, tag = 'scoped memory for tpu_custom_call.1']
    #allocation5 [shape = 'u8[262144]{0}', space=vmem, size = 0x40000, scoped, tag = 'output window, operand 0, single buffered']
    #allocation6 [shape = 'u8[262144]{0}', space=vmem, size = 0x40000, scoped, tag = 'output window, operand 1, single buffered']
    #allocation7 [shape = 's32[1]{0}', space=sflag, size = 0x4, scoped, tag = 'scoped memory for tpu_custom_call.1']
    %21 = vsyncpa [#allocation3], 0
    %22 = vsyncpa [#allocation4], 0
    %23 = vsyncpa [#allocation7], 0
    // Predicated region
    $region2: #{tpu_custom_call.1} parent=1 // pred_check
      _
    $region3: #{tpu_custom_call.1} parent=1 // pred_check_branch
      %25 = sbr.rel (0) target = $region5
    $region4: #{tpu_custom_call.1} parent=1 // pred_region
      _
    $region5: #{tpu_custom_call.1} parent=1 // pred_fallthru
      _
    // Predicated region
    $region6: #{tpu_custom_call.1} parent=1 // pred_check
      _
    $region7: #{tpu_custom_call.1} parent=1 // pred_check_branch
      %27 = sbr.rel (0) target = $region9
    $region8: #{tpu_custom_call.1} parent=1 // pred_region
      _
    $region9: #{tpu_custom_call.1} parent=1 // pred_fallthru
      _
    // Predicated region
    $region10: #{tpu_custom_call.1} parent=1 // pred_check
      _
    $region11: #{tpu_custom_call.1} parent=1 // pred_check_branch
      %29 = sbr.rel (0) target = $region13
    $region12: #{tpu_custom_call.1} parent=1 // pred_region
      %31 = vsyncadd [#allocation3], 0
      %s32 = sshll.u32 %s2, 4
      %s33 = int_to_ptr.hbm [resolvable:$true] %s32
      %s34 = sshll.u32 [#allocation2], 4
      %s35 = int_to_ptr.vmem [resolvable:$true] %s34
      %40 = dma.hbm_to_vmem [thread:$0]  %s33, 8192, %s35, [#allocation3], 128, 128, 8
    $region13: #{tpu_custom_call.1} parent=1 // pred_fallthru
      _
    // Predicated region
    $region14: #{tpu_custom_call.1} parent=1 // pred_check
      _
    $region15: #{tpu_custom_call.1} parent=1 // pred_check_branch
      %42 = sbr.rel (0) target = $region17
    $region16: #{tpu_custom_call.1} parent=1 // pred_region
      _
    $region17: #{tpu_custom_call.1} parent=1 // pred_fallthru
      _
    // Predicated region
    $region18: #{tpu_custom_call.1} parent=1 // pred_check
      _
    $region19: #{tpu_custom_call.1} parent=1 // pred_check_branch
      %44 = sbr.rel (0) target = $region21
    $region20: #{tpu_custom_call.1} parent=1 // pred_region
      _
    $region21: #{tpu_custom_call.1} parent=1 // pred_fallthru
      _
    // Predicated region
    $region22: #{tpu_custom_call.1} parent=1 // pred_check
      _
    $region23: #{tpu_custom_call.1} parent=1 // pred_check_branch
      %46 = sbr.rel (0) target = $region25
    $region24: #{tpu_custom_call.1} parent=1 // pred_region
      _
    $region25: #{tpu_custom_call.1} parent=1 // pred_fallthru
      _
    // Predicated region
    $region26: #{tpu_custom_call.1} parent=1 // pred_check
      _
    $region27: #{tpu_custom_call.1} parent=1 // pred_check_branch
      %48 = sbr.rel (0) target = $region29
    $region28: #{tpu_custom_call.1} parent=1 // pred_region
      _
    $region29: #{tpu_custom_call.1} parent=1 // pred_fallthru
      _
    // Predicated region
    $region30: #{tpu_custom_call.1} parent=1 // pred_check
      _
    $region31: #{tpu_custom_call.1} parent=1 // pred_check_branch
      %50 = sbr.rel (0) target = $region33
    $region32: #{tpu_custom_call.1} parent=1 // pred_region
      _
    $region33: #{tpu_custom_call.1} parent=1 // pred_fallthru
      _
    // Predicated region
    $region34: #{tpu_custom_call.1} parent=1 // pred_check
      _
    $region35: #{tpu_custom_call.1} parent=1 // pred_check_branch
      %52 = sbr.rel (0) target = $region37
    $region36: #{tpu_custom_call.1} parent=1 // pred_region
      _
    $region37: #{tpu_custom_call.1} parent=1 // pred_fallthru
      _
    // Predicated region
    $region38: #{tpu_custom_call.1} parent=1 // pred_check
      _
    $region39: #{tpu_custom_call.1} parent=1 // pred_check_branch
      %54 = sbr.rel (0) target = $region41
    $region40: #{tpu_custom_call.1} parent=1 // pred_region
      _
    $region41: #{tpu_custom_call.1} parent=1 // pred_fallthru
      _
    // Predicated region
    $region42: #{tpu_custom_call.1} parent=1 // pred_check
      _
    $region43: #{tpu_custom_call.1} parent=1 // pred_check_branch
      %56 = sbr.rel (0) target = $region45
    $region44: #{tpu_custom_call.1} parent=1 // pred_region
      _
    $region45: #{tpu_custom_call.1} parent=1 // pred_fallthru
      _
    // Predicated region
    $region46: #{tpu_custom_call.1} parent=1 // pred_check
      _
    $region47: #{tpu_custom_call.1} parent=1 // pred_check_branch
      %58 = sbr.rel (0) target = $region49
    $region48: #{tpu_custom_call.1} parent=1 // pred_region
      _
    $region49: #{tpu_custom_call.1} parent=1 // pred_fallthru
      _
    // Predicated region
    $region50: #{tpu_custom_call.1} parent=1 // pred_check
      _
    $region51: #{tpu_custom_call.1} parent=1 // pred_check_branch
      %60 = sbr.rel (0) target = $region53
    $region52: #{tpu_custom_call.1} parent=1 // pred_region
      _
    $region53: #{tpu_custom_call.1} parent=1 // pred_fallthru
      _
    // Predicated region
    $region54: #{tpu_custom_call.1} parent=1 // pred_check
      _
    $region55: #{tpu_custom_call.1} parent=1 // pred_check_branch
      %62 = sbr.rel (0) target = $region57
    $region56: #{tpu_custom_call.1} parent=1 // pred_region
      _
    $region57: #{tpu_custom_call.1} parent=1 // pred_fallthru
      _
    // Predicated region
    $region58: #{tpu_custom_call.1} parent=1 // pred_check
      _
    $region59: #{tpu_custom_call.1} parent=1 // pred_check_branch
      %64 = sbr.rel (0) target = $region61
    $region60: #{tpu_custom_call.1} parent=1 // pred_region
      %66 = dma.done [#allocation3], 8192
    $region61: #{tpu_custom_call.1} parent=1 // pred_fallthru
      _
    %v68 = vld [vmem:[%s0] sm:$0xff]
    %v69 = vld [vmem:[%s0 + $0x8] sm:$0xff]
    %v70 = vld [vmem:[%s0 + $0x10] sm:$0xff]
    %v71 = vld [vmem:[%s0 + $0x18] sm:$0xff]
    %v72 = vld [vmem:[%s0 + $0x20] sm:$0xff]
    %v73 = vld [vmem:[%s0 + $0x28] sm:$0xff]
    %v74 = vld [vmem:[%s0 + $0x30] sm:$0xff]
    %v75 = vld [vmem:[%s0 + $0x38] sm:$0xff]
    %v76 = vld [vmem:[%s0 + $0x40] sm:$0xff]
    %v77 = vld [vmem:[%s0 + $0x48] sm:$0xff]
    %v78 = vld [vmem:[%s0 + $0x50] sm:$0xff]
    %v79 = vld [vmem:[%s0 + $0x58] sm:$0xff]
    %v80 = vld [vmem:[%s0 + $0x60] sm:$0xff]
    %v81 = vld [vmem:[%s0 + $0x68] sm:$0xff]
    %v82 = vld [vmem:[%s0 + $0x70] sm:$0xff]
    %v83 = vld [vmem:[%s0 + $0x78] sm:$0xff]
    %v84 = vld [vmem:[%s0 + $0x80] sm:$0xff]
    %v85 = vld [vmem:[%s0 + $0x88] sm:$0xff]
    %v86 = vld [vmem:[%s0 + $0x90] sm:$0xff]
    %v87 = vld [vmem:[%s0 + $0x98] sm:$0xff]
    %v88 = vld [vmem:[%s0 + $0xa0] sm:$0xff]
    %v89 = vld [vmem:[%s0 + $0xa8] sm:$0xff]
    %v90 = vld [vmem:[%s0 + $0xb0] sm:$0xff]
    %v91 = vld [vmem:[%s0 + $0xb8] sm:$0xff]
    %v92 = vld [vmem:[%s0 + $0xc0] sm:$0xff]
    %v93 = vld [vmem:[%s0 + $0xc8] sm:$0xff]
    %v94 = vld [vmem:[%s0 + $0xd0] sm:$0xff]
    %v95 = vld [vmem:[%s0 + $0xd8] sm:$0xff]
    %v96 = vld [vmem:[%s0 + $0xe0] sm:$0xff]
    %v97 = vld [vmem:[%s0 + $0xe8] sm:$0xff]
    %v98 = vld [vmem:[%s0 + $0xf0] sm:$0xff]
    %v99 = vld [vmem:[%s0 + $0xf8] sm:$0xff]
    %v100 = vld [vmem:[%s0 + $0x100] sm:$0xff]
    %v101 = vld [vmem:[%s0 + $0x108] sm:$0xff]
    %v102 = vld [vmem:[%s0 + $0x110] sm:$0xff]
    %v103 = vld [vmem:[%s0 + $0x118] sm:$0xff]
    %v104 = vld [vmem:[%s0 + $0x120] sm:$0xff]
    %v105 = vld [vmem:[%s0 + $0x128] sm:$0xff]
    %v106 = vld [vmem:[%s0 + $0x130] sm:$0xff]
    %v107 = vld [vmem:[%s0 + $0x138] sm:$0xff]
    %v108 = vld [vmem:[%s0 + $0x140] sm:$0xff]
    %v109 = vld [vmem:[%s0 + $0x148] sm:$0xff]
    %v110 = vld [vmem:[%s0 + $0x150] sm:$0xff]
    %v111 = vld [vmem:[%s0 + $0x158] sm:$0xff]
    %v112 = vld [vmem:[%s0 + $0x160] sm:$0xff]
    %v113 = vld [vmem:[%s0 + $0x168] sm:$0xff]
    %v114 = vld [vmem:[%s0 + $0x170] sm:$0xff]
    %v115 = vld [vmem:[%s0 + $0x178] sm:$0xff]
    %v116 = vld [vmem:[%s0 + $0x180] sm:$0xff]
    %v117 = vld [vmem:[%s0 + $0x188] sm:$0xff]
    %v118 = vld [vmem:[%s0 + $0x190] sm:$0xff]
    %v119 = vld [vmem:[%s0 + $0x198] sm:$0xff]
    %v120 = vld [vmem:[%s0 + $0x1a0] sm:$0xff]
    %v121 = vld [vmem:[%s0 + $0x1a8] sm:$0xff]
    %v122 = vld [vmem:[%s0 + $0x1b0] sm:$0xff]
    %v123 = vld [vmem:[%s0 + $0x1b8] sm:$0xff]
    %v124 = vld [vmem:[%s0 + $0x1c0] sm:$0xff]
    %v125 = vld [vmem:[%s0 + $0x1c8] sm:$0xff]
    %v126 = vld [vmem:[%s0 + $0x1d0] sm:$0xff]
    %v127 = vld [vmem:[%s0 + $0x1d8] sm:$0xff]
    %v128 = vld [vmem:[%s0 + $0x1e0] sm:$0xff]
    %v129 = vld [vmem:[%s0 + $0x1e8] sm:$0xff]
    %v130 = vld [vmem:[%s0 + $0x1f0] sm:$0xff]
    %v131 = vld [vmem:[%s0 + $0x1f8] sm:$0xff]
    %v132 = vld [vmem:[%s1] sm:$0xff]
    %v133 = vld [vmem:[%s1 + $0x8] sm:$0xff]
    %v134 = vld [vmem:[%s1 + $0x10] sm:$0xff]
    %v135 = vld [vmem:[%s1 + $0x18] sm:$0xff]
    %v136 = vld [vmem:[%s1 + $0x20] sm:$0xff]
    %v137 = vld [vmem:[%s1 + $0x28] sm:$0xff]
    %v138 = vld [vmem:[%s1 + $0x30] sm:$0xff]
    %v139 = vld [vmem:[%s1 + $0x38] sm:$0xff]
    %v140 = vld [vmem:[%s1 + $0x40] sm:$0xff]
    %v141 = vld [vmem:[%s1 + $0x48] sm:$0xff]
    %v142 = vld [vmem:[%s1 + $0x50] sm:$0xff]
    %v143 = vld [vmem:[%s1 + $0x58] sm:$0xff]
    %v144 = vld [vmem:[%s1 + $0x60] sm:$0xff]
    %v145 = vld [vmem:[%s1 + $0x68] sm:$0xff]
    %v146 = vld [vmem:[%s1 + $0x70] sm:$0xff]
    %v147 = vld [vmem:[%s1 + $0x78] sm:$0xff]
    %v148 = vld [vmem:[%s1 + $0x80] sm:$0xff]
    %v149 = vld [vmem:[%s1 + $0x88] sm:$0xff]
    %v150 = vld [vmem:[%s1 + $0x90] sm:$0xff]
    %v151 = vld [vmem:[%s1 + $0x98] sm:$0xff]
    %v152 = vld [vmem:[%s1 + $0xa0] sm:$0xff]
    %v153 = vld [vmem:[%s1 + $0xa8] sm:$0xff]
    %v154 = vld [vmem:[%s1 + $0xb0] sm:$0xff]
    %v155 = vld [vmem:[%s1 + $0xb8] sm:$0xff]
    %v156 = vld [vmem:[%s1 + $0xc0] sm:$0xff]
    %v157 = vld [vmem:[%s1 + $0xc8] sm:$0xff]
    %v158 = vld [vmem:[%s1 + $0xd0] sm:$0xff]
    %v159 = vld [vmem:[%s1 + $0xd8] sm:$0xff]
    %v160 = vld [vmem:[%s1 + $0xe0] sm:$0xff]
    %v161 = vld [vmem:[%s1 + $0xe8] sm:$0xff]
    %v162 = vld [vmem:[%s1 + $0xf0] sm:$0xff]
    %v163 = vld [vmem:[%s1 + $0xf8] sm:$0xff]
    %v164 = vld [vmem:[%s1 + $0x100] sm:$0xff]
    %v165 = vld [vmem:[%s1 + $0x108] sm:$0xff]
    %v166 = vld [vmem:[%s1 + $0x110] sm:$0xff]
    %v167 = vld [vmem:[%s1 + $0x118] sm:$0xff]
    %v168 = vld [vmem:[%s1 + $0x120] sm:$0xff]
    %v169 = vld [vmem:[%s1 + $0x128] sm:$0xff]
    %v170 = vld [vmem:[%s1 + $0x130] sm:$0xff]
    %v171 = vld [vmem:[%s1 + $0x138] sm:$0xff]
    %v172 = vld [vmem:[%s1 + $0x140] sm:$0xff]
    %v173 = vld [vmem:[%s1 + $0x148] sm:$0xff]
    %v174 = vld [vmem:[%s1 + $0x150] sm:$0xff]
    %v175 = vld [vmem:[%s1 + $0x158] sm:$0xff]
    %v176 = vld [vmem:[%s1 + $0x160] sm:$0xff]
    %v177 = vld [vmem:[%s1 + $0x168] sm:$0xff]
    %v178 = vld [vmem:[%s1 + $0x170] sm:$0xff]
    %v179 = vld [vmem:[%s1 + $0x178] sm:$0xff]
    %v180 = vld [vmem:[%s1 + $0x180] sm:$0xff]
    %v181 = vld [vmem:[%s1 + $0x188] sm:$0xff]
    %v182 = vld [vmem:[%s1 + $0x190] sm:$0xff]
    %v183 = vld [vmem:[%s1 + $0x198] sm:$0xff]
    %v184 = vld [vmem:[%s1 + $0x1a0] sm:$0xff]
    %v185 = vld [vmem:[%s1 + $0x1a8] sm:$0xff]
    %v186 = vld [vmem:[%s1 + $0x1b0] sm:$0xff]
    %v187 = vld [vmem:[%s1 + $0x1b8] sm:$0xff]
    %v188 = vld [vmem:[%s1 + $0x1c0] sm:$0xff]
    %v189 = vld [vmem:[%s1 + $0x1c8] sm:$0xff]
    %v190 = vld [vmem:[%s1 + $0x1d0] sm:$0xff]
    %v191 = vld [vmem:[%s1 + $0x1d8] sm:$0xff]
    %v192 = vld [vmem:[%s1 + $0x1e0] sm:$0xff]
    %v193 = vld [vmem:[%s1 + $0x1e8] sm:$0xff]
    %v194 = vld [vmem:[%s1 + $0x1f0] sm:$0xff]
    %v195 = vld [vmem:[%s1 + $0x1f8] sm:$0xff]
    %v196 = vld [vmem:[#allocation2] sm:$0xff]
    %v197 = vld [vmem:[#allocation2 + $0x8] sm:$0xff]
    %v198 = vld [vmem:[#allocation2 + $0x10] sm:$0xff]
    %v199 = vld [vmem:[#allocation2 + $0x18] sm:$0xff]
    %v200 = vld [vmem:[#allocation2 + $0x20] sm:$0xff]
    %v201 = vld [vmem:[#allocation2 + $0x28] sm:$0xff]
    %v202 = vld [vmem:[#allocation2 + $0x30] sm:$0xff]
    %v203 = vld [vmem:[#allocation2 + $0x38] sm:$0xff]
    %v204 = vld [vmem:[#allocation2 + $0x40] sm:$0xff]
    %v205 = vld [vmem:[#allocation2 + $0x48] sm:$0xff]
    %v206 = vld [vmem:[#allocation2 + $0x50] sm:$0xff]
    %v207 = vld [vmem:[#allocation2 + $0x58] sm:$0xff]
    %v208 = vld [vmem:[#allocation2 + $0x60] sm:$0xff]
    %v209 = vld [vmem:[#allocation2 + $0x68] sm:$0xff]
    %v210 = vld [vmem:[#allocation2 + $0x70] sm:$0xff]
    %v211 = vld [vmem:[#allocation2 + $0x78] sm:$0xff]
    %v212 = vld [vmem:[#allocation2 + $0x80] sm:$0xff]
    %v213 = vld [vmem:[#allocation2 + $0x88] sm:$0xff]
    %v214 = vld [vmem:[#allocation2 + $0x90] sm:$0xff]
    %v215 = vld [vmem:[#allocation2 + $0x98] sm:$0xff]
    %v216 = vld [vmem:[#allocation2 + $0xa0] sm:$0xff]
    %v217 = vld [vmem:[#allocation2 + $0xa8] sm:$0xff]
    %v218 = vld [vmem:[#allocation2 + $0xb0] sm:$0xff]
    %v219 = vld [vmem:[#allocation2 + $0xb8] sm:$0xff]
    %v220 = vld [vmem:[#allocation2 + $0xc0] sm:$0xff]
    %v221 = vld [vmem:[#allocation2 + $0xc8] sm:$0xff]
    %v222 = vld [vmem:[#allocation2 + $0xd0] sm:$0xff]
    %v223 = vld [vmem:[#allocation2 + $0xd8] sm:$0xff]
    %v224 = vld [vmem:[#allocation2 + $0xe0] sm:$0xff]
    %v225 = vld [vmem:[#allocation2 + $0xe8] sm:$0xff]
    %v226 = vld [vmem:[#allocation2 + $0xf0] sm:$0xff]
    %v227 = vld [vmem:[#allocation2 + $0xf8] sm:$0xff]
    %v228 = vld [vmem:[#allocation2 + $0x100] sm:$0xff]
    %v229 = vld [vmem:[#allocation2 + $0x108] sm:$0xff]
    %v230 = vld [vmem:[#allocation2 + $0x110] sm:$0xff]
    %v231 = vld [vmem:[#allocation2 + $0x118] sm:$0xff]
    %v232 = vld [vmem:[#allocation2 + $0x120] sm:$0xff]
    %v233 = vld [vmem:[#allocation2 + $0x128] sm:$0xff]
    %v234 = vld [vmem:[#allocation2 + $0x130] sm:$0xff]
    %v235 = vld [vmem:[#allocation2 + $0x138] sm:$0xff]
    %v236 = vld [vmem:[#allocation2 + $0x140] sm:$0xff]
    %v237 = vld [vmem:[#allocation2 + $0x148] sm:$0xff]
    %v238 = vld [vmem:[#allocation2 + $0x150] sm:$0xff]
    %v239 = vld [vmem:[#allocation2 + $0x158] sm:$0xff]
    %v240 = vld [vmem:[#allocation2 + $0x160] sm:$0xff]
    %v241 = vld [vmem:[#allocation2 + $0x168] sm:$0xff]
    %v242 = vld [vmem:[#allocation2 + $0x170] sm:$0xff]
    %v243 = vld [vmem:[#allocation2 + $0x178] sm:$0xff]
    %v244 = vld [vmem:[#allocation2 + $0x180] sm:$0xff]
    %v245 = vld [vmem:[#allocation2 + $0x188] sm:$0xff]
    %v246 = vld [vmem:[#allocation2 + $0x190] sm:$0xff]
    %v247 = vld [vmem:[#allocation2 + $0x198] sm:$0xff]
    %v248 = vld [vmem:[#allocation2 + $0x1a0] sm:$0xff]
    %v249 = vld [vmem:[#allocation2 + $0x1a8] sm:$0xff]
    %v250 = vld [vmem:[#allocation2 + $0x1b0] sm:$0xff]
    %v251 = vld [vmem:[#allocation2 + $0x1b8] sm:$0xff]
    %v252 = vld [vmem:[#allocation2 + $0x1c0] sm:$0xff]
    %v253 = vld [vmem:[#allocation2 + $0x1c8] sm:$0xff]
    %v254 = vld [vmem:[#allocation2 + $0x1d0] sm:$0xff]
    %v255 = vld [vmem:[#allocation2 + $0x1d8] sm:$0xff]
    %v256 = vld [vmem:[#allocation2 + $0x1e0] sm:$0xff]
    %v257 = vld [vmem:[#allocation2 + $0x1e8] sm:$0xff]
    %v258 = vld [vmem:[#allocation2 + $0x1f0] sm:$0xff]
    %v259 = vld [vmem:[#allocation2 + $0x1f8] sm:$0xff]
    %v260 = vld [vmem:[%s3] sm:$0xff]
    %v261 = vld [vmem:[%s3 + $0x8] sm:$0xff]
    %v262 = vld [vmem:[%s3 + $0x10] sm:$0xff]
    %v263 = vld [vmem:[%s3 + $0x18] sm:$0xff]
    %v264 = vld [vmem:[%s3 + $0x20] sm:$0xff]
    %v265 = vld [vmem:[%s3 + $0x28] sm:$0xff]
    %v266 = vld [vmem:[%s3 + $0x30] sm:$0xff]
    %v267 = vld [vmem:[%s3 + $0x38] sm:$0xff]
    %v268 = vld [vmem:[%s3 + $0x40] sm:$0xff]
    %v269 = vld [vmem:[%s3 + $0x48] sm:$0xff]
    %v270 = vld [vmem:[%s3 + $0x50] sm:$0xff]
    %v271 = vld [vmem:[%s3 + $0x58] sm:$0xff]
    %v272 = vld [vmem:[%s3 + $0x60] sm:$0xff]
    %v273 = vld [vmem:[%s3 + $0x68] sm:$0xff]
    %v274 = vld [vmem:[%s3 + $0x70] sm:$0xff]
    %v275 = vld [vmem:[%s3 + $0x78] sm:$0xff]
    %v276 = vld [vmem:[%s3 + $0x80] sm:$0xff]
    %v277 = vld [vmem:[%s3 + $0x88] sm:$0xff]
    %v278 = vld [vmem:[%s4] sm:$0x1]
    %v279 = vrot.slane %v68, 7
    %v280 = vrot.slane %v70, 7
    %v281 = vrot.slane %v72, 7
    %v282 = vrot.slane %v74, 7
    %v283 = vrot.slane %v76, 7
    %v284 = vrot.slane %v78, 7
    %v285 = vrot.slane %v80, 7
    %v286 = vrot.slane %v82, 7
    %v287 = vrot.slane %v84, 7
    %v288 = vrot.slane %v86, 7
    %v289 = vrot.slane %v88, 7
    %v290 = vrot.slane %v90, 7
    %v291 = vrot.slane %v92, 7
    %v292 = vrot.slane %v94, 7
    %v293 = vrot.slane %v96, 7
    %v294 = vrot.slane %v98, 7
    %v295 = vrot.slane %v100, 7
    %v296 = vrot.slane %v102, 7
    %v297 = vrot.slane %v104, 7
    %v298 = vrot.slane %v106, 7
    %v299 = vrot.slane %v108, 7
    %v300 = vrot.slane %v110, 7
    %v301 = vrot.slane %v112, 7
    %v302 = vrot.slane %v114, 7
    %v303 = vrot.slane %v116, 7
    %v304 = vrot.slane %v118, 7
    %v305 = vrot.slane %v120, 7
    %v306 = vrot.slane %v122, 7
    %v307 = vrot.slane %v124, 7
    %v308 = vrot.slane %v126, 7
    %v309 = vrot.slane %v128, 7
    %v310 = vrot.slane %v130, 7
    %v311 = vrot.slane %v69, 7
    %v312 = vrot.slane %v71, 7
    %v313 = vrot.slane %v73, 7
    %v314 = vrot.slane %v75, 7
    %v315 = vrot.slane %v77, 7
    %v316 = vrot.slane %v79, 7
    %v317 = vrot.slane %v81, 7
    %v318 = vrot.slane %v83, 7
    %v319 = vrot.slane %v85, 7
    %v320 = vrot.slane %v87, 7
    %v321 = vrot.slane %v89, 7
    %v322 = vrot.slane %v91, 7
    %v323 = vrot.slane %v93, 7
    %v324 = vrot.slane %v95, 7
    %v325 = vrot.slane %v97, 7
    %v326 = vrot.slane %v99, 7
    %v327 = vrot.slane %v101, 7
    %v328 = vrot.slane %v103, 7
    %v329 = vrot.slane %v105, 7
    %v330 = vrot.slane %v107, 7
    %v331 = vrot.slane %v109, 7
    %v332 = vrot.slane %v111, 7
    %v333 = vrot.slane %v113, 7
    %v334 = vrot.slane %v115, 7
    %v335 = vrot.slane %v117, 7
    %v336 = vrot.slane %v119, 7
    %v337 = vrot.slane %v121, 7
    %v338 = vrot.slane %v123, 7
    %v339 = vrot.slane %v125, 7
    %v340 = vrot.slane %v127, 7
    %v341 = vrot.slane %v129, 7
    %v342 = vrot.slane %v131, 7
    %v343 = vlaneseq
    %v344 = vshrl.u32 %v343, 7
    %vm345 = vcmp.lt.s32.totalorder %v344, 1
    %v346 = vsel %vm345, %v279, %v311
    %v347 = vsel %vm345, %v280, %v312
    %v348 = vsel %vm345, %v281, %v313
    %v349 = vsel %vm345, %v282, %v314
    %v350 = vsel %vm345, %v283, %v315
    %v351 = vsel %vm345, %v284, %v316
    %v352 = vsel %vm345, %v285, %v317
    %v353 = vsel %vm345, %v286, %v318
    %v354 = vsel %vm345, %v287, %v319
    %v355 = vsel %vm345, %v288, %v320
    %v356 = vsel %vm345, %v289, %v321
    %v357 = vsel %vm345, %v290, %v322
    %v358 = vsel %vm345, %v291, %v323
    %v359 = vsel %vm345, %v292, %v324
    %v360 = vsel %vm345, %v293, %v325
    %v361 = vsel %vm345, %v294, %v326
    %v362 = vsel %vm345, %v295, %v327
    %v363 = vsel %vm345, %v296, %v328
    %v364 = vsel %vm345, %v297, %v329
    %v365 = vsel %vm345, %v298, %v330
    %v366 = vsel %vm345, %v299, %v331
    %v367 = vsel %vm345, %v300, %v332
    %v368 = vsel %vm345, %v301, %v333
    %v369 = vsel %vm345, %v302, %v334
    %v370 = vsel %vm345, %v303, %v335
    %v371 = vsel %vm345, %v304, %v336
    %v372 = vsel %vm345, %v305, %v337
    %v373 = vsel %vm345, %v306, %v338
    %v374 = vsel %vm345, %v307, %v339
    %v375 = vsel %vm345, %v308, %v340
    %v376 = vsel %vm345, %v309, %v341
    %v377 = vsel %vm345, %v310, %v342
    %v378 = vsel %vm345, %v311, %v279
    %v379 = vsel %vm345, %v312, %v280
    %v380 = vsel %vm345, %v313, %v281
    %v381 = vsel %vm345, %v314, %v282
    %v382 = vsel %vm345, %v315, %v283
    %v383 = vsel %vm345, %v316, %v284
    %v384 = vsel %vm345, %v317, %v285
    %v385 = vsel %vm345, %v318, %v286
    %v386 = vsel %vm345, %v319, %v287
    %v387 = vsel %vm345, %v320, %v288
    %v388 = vsel %vm345, %v321, %v289
    %v389 = vsel %vm345, %v322, %v290
    %v390 = vsel %vm345, %v323, %v291
    %v391 = vsel %vm345, %v324, %v292
    %v392 = vsel %vm345, %v325, %v293
    %v393 = vsel %vm345, %v326, %v294
    %v394 = vsel %vm345, %v327, %v295
    %v395 = vsel %vm345, %v328, %v296
    %v396 = vsel %vm345, %v329, %v297
    %v397 = vsel %vm345, %v330, %v298
    %v398 = vsel %vm345, %v331, %v299
    %v399 = vsel %vm345, %v332, %v300
    %v400 = vsel %vm345, %v333, %v301
    %v401 = vsel %vm345, %v334, %v302
    %v402 = vsel %vm345, %v335, %v303
    %v403 = vsel %vm345, %v336, %v304
    %v404 = vsel %vm345, %v337, %v305
    %v405 = vsel %vm345, %v338, %v306
    %v406 = vsel %vm345, %v339, %v307
    %v407 = vsel %vm345, %v340, %v308
    %v408 = vsel %vm345, %v341, %v309
    %v409 = vsel %vm345, %v342, %v310
    %v410 = vrot.slane %v68, 1
    %v411 = vrot.slane %v70, 1
    %v412 = vrot.slane %v72, 1
    %v413 = vrot.slane %v74, 1
    %v414 = vrot.slane %v76, 1
    %v415 = vrot.slane %v78, 1
    %v416 = vrot.slane %v80, 1
    %v417 = vrot.slane %v82, 1
    %v418 = vrot.slane %v84, 1
    %v419 = vrot.slane %v86, 1
    %v420 = vrot.slane %v88, 1
    %v421 = vrot.slane %v90, 1
    %v422 = vrot.slane %v92, 1
    %v423 = vrot.slane %v94, 1
    %v424 = vrot.slane %v96, 1
    %v425 = vrot.slane %v98, 1
    %v426 = vrot.slane %v100, 1
    %v427 = vrot.slane %v102, 1
    %v428 = vrot.slane %v104, 1
    %v429 = vrot.slane %v106, 1
    %v430 = vrot.slane %v108, 1
    %v431 = vrot.slane %v110, 1
    %v432 = vrot.slane %v112, 1
    %v433 = vrot.slane %v114, 1
    %v434 = vrot.slane %v116, 1
    %v435 = vrot.slane %v118, 1
    %v436 = vrot.slane %v120, 1
    %v437 = vrot.slane %v122, 1
    %v438 = vrot.slane %v124, 1
    %v439 = vrot.slane %v126, 1
    %v440 = vrot.slane %v128, 1
    %v441 = vrot.slane %v130, 1
    %v442 = vrot.slane %v69, 1
    %v443 = vrot.slane %v71, 1
    %v444 = vrot.slane %v73, 1
    %v445 = vrot.slane %v75, 1
    %v446 = vrot.slane %v77, 1
    %v447 = vrot.slane %v79, 1
    %v448 = vrot.slane %v81, 1
    %v449 = vrot.slane %v83, 1
    %v450 = vrot.slane %v85, 1
    %v451 = vrot.slane %v87, 1
    %v452 = vrot.slane %v89, 1
    %v453 = vrot.slane %v91, 1
    %v454 = vrot.slane %v93, 1
    %v455 = vrot.slane %v95, 1
    %v456 = vrot.slane %v97, 1
    %v457 = vrot.slane %v99, 1
    %v458 = vrot.slane %v101, 1
    %v459 = vrot.slane %v103, 1
    %v460 = vrot.slane %v105, 1
    %v461 = vrot.slane %v107, 1
    %v462 = vrot.slane %v109, 1
    %v463 = vrot.slane %v111, 1
    %v464 = vrot.slane %v113, 1
    %v465 = vrot.slane %v115, 1
    %v466 = vrot.slane %v117, 1
    %v467 = vrot.slane %v119, 1
    %v468 = vrot.slane %v121, 1
    %v469 = vrot.slane %v123, 1
    %v470 = vrot.slane %v125, 1
    %v471 = vrot.slane %v127, 1
    %v472 = vrot.slane %v129, 1
    %v473 = vrot.slane %v131, 1
    %vm474 = vcmp.lt.s32.totalorder %v344, 7
    %v475 = vsel %vm474, %v410, %v442
    %v476 = vsel %vm474, %v411, %v443
    %v477 = vsel %vm474, %v412, %v444
    %v478 = vsel %vm474, %v413, %v445
    %v479 = vsel %vm474, %v414, %v446
    %v480 = vsel %vm474, %v415, %v447
    %v481 = vsel %vm474, %v416, %v448
    %v482 = vsel %vm474, %v417, %v449
    %v483 = vsel %vm474, %v418, %v450
    %v484 = vsel %vm474, %v419, %v451
    %v485 = vsel %vm474, %v420, %v452
    %v486 = vsel %vm474, %v421, %v453
    %v487 = vsel %vm474, %v422, %v454
    %v488 = vsel %vm474, %v423, %v455
    %v489 = vsel %vm474, %v424, %v456
    %v490 = vsel %vm474, %v425, %v457
    %v491 = vsel %vm474, %v426, %v458
    %v492 = vsel %vm474, %v427, %v459
    %v493 = vsel %vm474, %v428, %v460
    %v494 = vsel %vm474, %v429, %v461
    %v495 = vsel %vm474, %v430, %v462
    %v496 = vsel %vm474, %v431, %v463
    %v497 = vsel %vm474, %v432, %v464
    %v498 = vsel %vm474, %v433, %v465
    %v499 = vsel %vm474, %v434, %v466
    %v500 = vsel %vm474, %v435, %v467
    %v501 = vsel %vm474, %v436, %v468
    %v502 = vsel %vm474, %v437, %v469
    %v503 = vsel %vm474, %v438, %v470
    %v504 = vsel %vm474, %v439, %v471
    %v505 = vsel %vm474, %v440, %v472
    %v506 = vsel %vm474, %v441, %v473
    %v507 = vsel %vm474, %v442, %v410
    %v508 = vsel %vm474, %v443, %v411
    %v509 = vsel %vm474, %v444, %v412
    %v510 = vsel %vm474, %v445, %v413
    %v511 = vsel %vm474, %v446, %v414
    %v512 = vsel %vm474, %v447, %v415
    %v513 = vsel %vm474, %v448, %v416
    %v514 = vsel %vm474, %v449, %v417
    %v515 = vsel %vm474, %v450, %v418
    %v516 = vsel %vm474, %v451, %v419
    %v517 = vsel %vm474, %v452, %v420
    %v518 = vsel %vm474, %v453, %v421
    %v519 = vsel %vm474, %v454, %v422
    %v520 = vsel %vm474, %v455, %v423
    %v521 = vsel %vm474, %v456, %v424
    %v522 = vsel %vm474, %v457, %v425
    %v523 = vsel %vm474, %v458, %v426
    %v524 = vsel %vm474, %v459, %v427
    %v525 = vsel %vm474, %v460, %v428
    %v526 = vsel %vm474, %v461, %v429
    %v527 = vsel %vm474, %v462, %v430
    %v528 = vsel %vm474, %v463, %v431
    %v529 = vsel %vm474, %v464, %v432
    %v530 = vsel %vm474, %v465, %v433
    %v531 = vsel %vm474, %v466, %v434
    %v532 = vsel %vm474, %v467, %v435
    %v533 = vsel %vm474, %v468, %v436
    %v534 = vsel %vm474, %v469, %v437
    %v535 = vsel %vm474, %v470, %v438
    %v536 = vsel %vm474, %v471, %v439
    %v537 = vsel %vm474, %v472, %v440
    %v538 = vsel %vm474, %v473, %v441
    %v539 = vmul.f32 %v378, %v260
    %v540 = vmul.f32 %v346, %v261
    %v541 = vmul.f32 %v379, %v260
    %v542 = vmul.f32 %v347, %v261
    %v543 = vmul.f32 %v380, %v260
    %v544 = vmul.f32 %v348, %v261
    %v545 = vmul.f32 %v381, %v260
    %v546 = vmul.f32 %v349, %v261
    %v547 = vmul.f32 %v382, %v260
    %v548 = vmul.f32 %v350, %v261
    %v549 = vmul.f32 %v383, %v260
    %v550 = vmul.f32 %v351, %v261
    %v551 = vmul.f32 %v384, %v260
    %v552 = vmul.f32 %v352, %v261
    %v553 = vmul.f32 %v385, %v260
    %v554 = vmul.f32 %v353, %v261
    %v555 = vmul.f32 %v386, %v260
    %v556 = vmul.f32 %v354, %v261
    %v557 = vmul.f32 %v387, %v260
    %v558 = vmul.f32 %v355, %v261
    %v559 = vmul.f32 %v388, %v260
    %v560 = vmul.f32 %v356, %v261
    %v561 = vmul.f32 %v389, %v260
    %v562 = vmul.f32 %v357, %v261
    %v563 = vmul.f32 %v390, %v260
    %v564 = vmul.f32 %v358, %v261
    %v565 = vmul.f32 %v391, %v260
    %v566 = vmul.f32 %v359, %v261
    %v567 = vmul.f32 %v392, %v260
    %v568 = vmul.f32 %v360, %v261
    %v569 = vmul.f32 %v394, %v260
    %v570 = vmul.f32 %v362, %v261
    %v571 = vmul.f32 %v395, %v260
    %v572 = vmul.f32 %v363, %v261
    %v573 = vmul.f32 %v396, %v260
    %v574 = vmul.f32 %v364, %v261
    %v575 = vmul.f32 %v397, %v260
    %v576 = vmul.f32 %v365, %v261
    %v577 = vmul.f32 %v398, %v260
    %v578 = vmul.f32 %v366, %v261
    %v579 = vmul.f32 %v399, %v260
    %v580 = vmul.f32 %v367, %v261
    %v581 = vmul.f32 %v400, %v260
    %v582 = vmul.f32 %v368, %v261
    %v583 = vmul.f32 %v401, %v260
    %v584 = vmul.f32 %v369, %v261
    %v585 = vmul.f32 %v402, %v260
    %v586 = vmul.f32 %v370, %v261
    %v587 = vmul.f32 %v403, %v260
    %v588 = vmul.f32 %v371, %v261
    %v589 = vmul.f32 %v404, %v260
    %v590 = vmul.f32 %v372, %v261
    %v591 = vmul.f32 %v405, %v260
    %v592 = vmul.f32 %v373, %v261
    %v593 = vmul.f32 %v406, %v260
    %v594 = vmul.f32 %v374, %v261
    %v595 = vmul.f32 %v407, %v260
    %v596 = vmul.f32 %v375, %v261
    %v597 = vmul.f32 %v408, %v260
    %v598 = vmul.f32 %v376, %v261
    %v599 = vmul.f32 %v68, %v262
    %v600 = vmul.f32 %v69, %v263
    %v601 = vmul.f32 %v70, %v262
    %v602 = vmul.f32 %v71, %v263
    %v603 = vmul.f32 %v72, %v262
    %v604 = vmul.f32 %v73, %v263
    %v605 = vmul.f32 %v74, %v262
    %v606 = vmul.f32 %v75, %v263
    %v607 = vmul.f32 %v76, %v262
    %v608 = vmul.f32 %v77, %v263
    %v609 = vmul.f32 %v78, %v262
    %v610 = vmul.f32 %v79, %v263
    %v611 = vmul.f32 %v80, %v262
    %v612 = vmul.f32 %v81, %v263
    %v613 = vmul.f32 %v82, %v262
    %v614 = vmul.f32 %v83, %v263
    %v615 = vmul.f32 %v84, %v262
    %v616 = vmul.f32 %v85, %v263
    %v617 = vmul.f32 %v86, %v262
    %v618 = vmul.f32 %v87, %v263
    %v619 = vmul.f32 %v88, %v262
    %v620 = vmul.f32 %v89, %v263
    %v621 = vmul.f32 %v90, %v262
    %v622 = vmul.f32 %v91, %v263
    %v623 = vmul.f32 %v92, %v262
    %v624 = vmul.f32 %v93, %v263
    %v625 = vmul.f32 %v94, %v262
    %v626 = vmul.f32 %v95, %v263
    %v627 = vmul.f32 %v96, %v262
    %v628 = vmul.f32 %v97, %v263
    %v629 = vmul.f32 %v100, %v262
    %v630 = vmul.f32 %v101, %v263
    %v631 = vmul.f32 %v102, %v262
    %v632 = vmul.f32 %v103, %v263
    %v633 = vmul.f32 %v104, %v262
    %v634 = vmul.f32 %v105, %v263
    %v635 = vmul.f32 %v106, %v262
    %v636 = vmul.f32 %v107, %v263
    %v637 = vmul.f32 %v108, %v262
    %v638 = vmul.f32 %v109, %v263
    %v639 = vmul.f32 %v110, %v262
    %v640 = vmul.f32 %v111, %v263
    %v641 = vmul.f32 %v112, %v262
    %v642 = vmul.f32 %v113, %v263
    %v643 = vmul.f32 %v114, %v262
    %v644 = vmul.f32 %v115, %v263
    %v645 = vmul.f32 %v116, %v262
    %v646 = vmul.f32 %v117, %v263
    %v647 = vmul.f32 %v118, %v262
    %v648 = vmul.f32 %v119, %v263
    %v649 = vmul.f32 %v120, %v262
    %v650 = vmul.f32 %v121, %v263
    %v651 = vmul.f32 %v122, %v262
    %v652 = vmul.f32 %v123, %v263
    %v653 = vmul.f32 %v124, %v262
    %v654 = vmul.f32 %v125, %v263
    %v655 = vmul.f32 %v126, %v262
    %v656 = vmul.f32 %v127, %v263
    %v657 = vmul.f32 %v128, %v262
    %v658 = vmul.f32 %v129, %v263
    %v659 = vadd.f32 %v539, %v599
    %v660 = vadd.f32 %v540, %v600
    %v661 = vadd.f32 %v541, %v601
    %v662 = vadd.f32 %v542, %v602
    %v663 = vadd.f32 %v543, %v603
    %v664 = vadd.f32 %v544, %v604
    %v665 = vadd.f32 %v545, %v605
    %v666 = vadd.f32 %v546, %v606
    %v667 = vadd.f32 %v547, %v607
    %v668 = vadd.f32 %v548, %v608
    %v669 = vadd.f32 %v549, %v609
    %v670 = vadd.f32 %v550, %v610
    %v671 = vadd.f32 %v551, %v611
    %v672 = vadd.f32 %v552, %v612
    %v673 = vadd.f32 %v553, %v613
    %v674 = vadd.f32 %v554, %v614
    %v675 = vadd.f32 %v555, %v615
    %v676 = vadd.f32 %v556, %v616
    %v677 = vadd.f32 %v557, %v617
    %v678 = vadd.f32 %v558, %v618
    %v679 = vadd.f32 %v559, %v619
    %v680 = vadd.f32 %v560, %v620
    %v681 = vadd.f32 %v561, %v621
    %v682 = vadd.f32 %v562, %v622
    %v683 = vadd.f32 %v563, %v623
    %v684 = vadd.f32 %v564, %v624
    %v685 = vadd.f32 %v565, %v625
    %v686 = vadd.f32 %v566, %v626
    %v687 = vadd.f32 %v567, %v627
    %v688 = vadd.f32 %v568, %v628
    %v689 = vadd.f32 %v569, %v629
    %v690 = vadd.f32 %v570, %v630
    %v691 = vadd.f32 %v571, %v631
    %v692 = vadd.f32 %v572, %v632
    %v693 = vadd.f32 %v573, %v633
    %v694 = vadd.f32 %v574, %v634
    %v695 = vadd.f32 %v575, %v635
    %v696 = vadd.f32 %v576, %v636
    %v697 = vadd.f32 %v577, %v637
    %v698 = vadd.f32 %v578, %v638
    %v699 = vadd.f32 %v579, %v639
    %v700 = vadd.f32 %v580, %v640
    %v701 = vadd.f32 %v581, %v641
    %v702 = vadd.f32 %v582, %v642
    %v703 = vadd.f32 %v583, %v643
    %v704 = vadd.f32 %v584, %v644
    %v705 = vadd.f32 %v585, %v645
    %v706 = vadd.f32 %v586, %v646
    %v707 = vadd.f32 %v587, %v647
    %v708 = vadd.f32 %v588, %v648
    %v709 = vadd.f32 %v589, %v649
    %v710 = vadd.f32 %v590, %v650
    %v711 = vadd.f32 %v591, %v651
    %v712 = vadd.f32 %v592, %v652
    %v713 = vadd.f32 %v593, %v653
    %v714 = vadd.f32 %v594, %v654
    %v715 = vadd.f32 %v595, %v655
    %v716 = vadd.f32 %v596, %v656
    %v717 = vadd.f32 %v597, %v657
    %v718 = vadd.f32 %v598, %v658
    %v719 = vmul.f32 %v475, %v264
    %v720 = vmul.f32 %v507, %v265
    %v721 = vmul.f32 %v476, %v264
    %v722 = vmul.f32 %v508, %v265
    %v723 = vmul.f32 %v477, %v264
    %v724 = vmul.f32 %v509, %v265
    %v725 = vmul.f32 %v478, %v264
    %v726 = vmul.f32 %v510, %v265
    %v727 = vmul.f32 %v479, %v264
    %v728 = vmul.f32 %v511, %v265
    %v729 = vmul.f32 %v480, %v264
    %v730 = vmul.f32 %v512, %v265
    %v731 = vmul.f32 %v481, %v264
    %v732 = vmul.f32 %v513, %v265
    %v733 = vmul.f32 %v482, %v264
    %v734 = vmul.f32 %v514, %v265
    %v735 = vmul.f32 %v483, %v264
    %v736 = vmul.f32 %v515, %v265
    %v737 = vmul.f32 %v484, %v264
    %v738 = vmul.f32 %v516, %v265
    %v739 = vmul.f32 %v485, %v264
    %v740 = vmul.f32 %v517, %v265
    %v741 = vmul.f32 %v486, %v264
    %v742 = vmul.f32 %v518, %v265
    %v743 = vmul.f32 %v487, %v264
    %v744 = vmul.f32 %v519, %v265
    %v745 = vmul.f32 %v488, %v264
    %v746 = vmul.f32 %v520, %v265
    %v747 = vmul.f32 %v489, %v264
    %v748 = vmul.f32 %v521, %v265
    %v749 = vmul.f32 %v491, %v264
    %v750 = vmul.f32 %v523, %v265
    %v751 = vmul.f32 %v492, %v264
    %v752 = vmul.f32 %v524, %v265
    %v753 = vmul.f32 %v493, %v264
    %v754 = vmul.f32 %v525, %v265
    %v755 = vmul.f32 %v494, %v264
    %v756 = vmul.f32 %v526, %v265
    %v757 = vmul.f32 %v495, %v264
    %v758 = vmul.f32 %v527, %v265
    %v759 = vmul.f32 %v496, %v264
    %v760 = vmul.f32 %v528, %v265
    %v761 = vmul.f32 %v497, %v264
    %v762 = vmul.f32 %v529, %v265
    %v763 = vmul.f32 %v498, %v264
    %v764 = vmul.f32 %v530, %v265
    %v765 = vmul.f32 %v499, %v264
    %v766 = vmul.f32 %v531, %v265
    %v767 = vmul.f32 %v500, %v264
    %v768 = vmul.f32 %v532, %v265
    %v769 = vmul.f32 %v501, %v264
    %v770 = vmul.f32 %v533, %v265
    %v771 = vmul.f32 %v502, %v264
    %v772 = vmul.f32 %v534, %v265
    %v773 = vmul.f32 %v503, %v264
    %v774 = vmul.f32 %v535, %v265
    %v775 = vmul.f32 %v504, %v264
    %v776 = vmul.f32 %v536, %v265
    %v777 = vmul.f32 %v505, %v264
    %v778 = vmul.f32 %v537, %v265
    %v779 = vadd.f32 %v659, %v719
    %v780 = vadd.f32 %v660, %v720
    %v781 = vadd.f32 %v661, %v721
    %v782 = vadd.f32 %v662, %v722
    %v783 = vadd.f32 %v663, %v723
    %v784 = vadd.f32 %v664, %v724
    %v785 = vadd.f32 %v665, %v725
    %v786 = vadd.f32 %v666, %v726
    %v787 = vadd.f32 %v667, %v727
    %v788 = vadd.f32 %v668, %v728
    %v789 = vadd.f32 %v669, %v729
    %v790 = vadd.f32 %v670, %v730
    %v791 = vadd.f32 %v671, %v731
    %v792 = vadd.f32 %v672, %v732
    %v793 = vadd.f32 %v673, %v733
    %v794 = vadd.f32 %v674, %v734
    %v795 = vadd.f32 %v675, %v735
    %v796 = vadd.f32 %v676, %v736
    %v797 = vadd.f32 %v677, %v737
    %v798 = vadd.f32 %v678, %v738
    %v799 = vadd.f32 %v679, %v739
    %v800 = vadd.f32 %v680, %v740
    %v801 = vadd.f32 %v681, %v741
    %v802 = vadd.f32 %v682, %v742
    %v803 = vadd.f32 %v683, %v743
    %v804 = vadd.f32 %v684, %v744
    %v805 = vadd.f32 %v685, %v745
    %v806 = vadd.f32 %v686, %v746
    %v807 = vadd.f32 %v687, %v747
    %v808 = vadd.f32 %v688, %v748
    %v809 = vadd.f32 %v689, %v749
    %v810 = vadd.f32 %v690, %v750
    %v811 = vadd.f32 %v691, %v751
    %v812 = vadd.f32 %v692, %v752
    %v813 = vadd.f32 %v693, %v753
    %v814 = vadd.f32 %v694, %v754
    %v815 = vadd.f32 %v695, %v755
    %v816 = vadd.f32 %v696, %v756
    %v817 = vadd.f32 %v697, %v757
    %v818 = vadd.f32 %v698, %v758
    %v819 = vadd.f32 %v699, %v759
    %v820 = vadd.f32 %v700, %v760
    %v821 = vadd.f32 %v701, %v761
    %v822 = vadd.f32 %v702, %v762
    %v823 = vadd.f32 %v703, %v763
    %v824 = vadd.f32 %v704, %v764
    %v825 = vadd.f32 %v705, %v765
    %v826 = vadd.f32 %v706, %v766
    %v827 = vadd.f32 %v707, %v767
    %v828 = vadd.f32 %v708, %v768
    %v829 = vadd.f32 %v709, %v769
    %v830 = vadd.f32 %v710, %v770
    %v831 = vadd.f32 %v711, %v771
    %v832 = vadd.f32 %v712, %v772
    %v833 = vadd.f32 %v713, %v773
    %v834 = vadd.f32 %v714, %v774
    %v835 = vadd.f32 %v715, %v775
    %v836 = vadd.f32 %v716, %v776
    %v837 = vadd.f32 %v717, %v777
    %v838 = vadd.f32 %v718, %v778
    %v839 = vmul.f32 %v378, %v266
    %v840 = vmul.f32 %v346, %v267
    %v841 = vmul.f32 %v379, %v266
    %v842 = vmul.f32 %v347, %v267
    %v843 = vmul.f32 %v380, %v266
    %v844 = vmul.f32 %v348, %v267
    %v845 = vmul.f32 %v381, %v266
    %v846 = vmul.f32 %v349, %v267
    %v847 = vmul.f32 %v382, %v266
    %v848 = vmul.f32 %v350, %v267
    %v849 = vmul.f32 %v383, %v266
    %v850 = vmul.f32 %v351, %v267
    %v851 = vmul.f32 %v384, %v266
    %v852 = vmul.f32 %v352, %v267
    %v853 = vmul.f32 %v385, %v266
    %v854 = vmul.f32 %v353, %v267
    %v855 = vmul.f32 %v386, %v266
    %v856 = vmul.f32 %v354, %v267
    %v857 = vmul.f32 %v387, %v266
    %v858 = vmul.f32 %v355, %v267
    %v859 = vmul.f32 %v388, %v266
    %v860 = vmul.f32 %v356, %v267
    %v861 = vmul.f32 %v389, %v266
    %v862 = vmul.f32 %v357, %v267
    %v863 = vmul.f32 %v390, %v266
    %v864 = vmul.f32 %v358, %v267
    %v865 = vmul.f32 %v391, %v266
    %v866 = vmul.f32 %v359, %v267
    %v867 = vmul.f32 %v392, %v266
    %v868 = vmul.f32 %v360, %v267
    %v869 = vmul.f32 %v393, %v266
    %v870 = vmul.f32 %v361, %v267
    %v871 = vmul.f32 %v394, %v266
    %v872 = vmul.f32 %v362, %v267
    %v873 = vmul.f32 %v395, %v266
    %v874 = vmul.f32 %v363, %v267
    %v875 = vmul.f32 %v396, %v266
    %v876 = vmul.f32 %v364, %v267
    %v877 = vmul.f32 %v397, %v266
    %v878 = vmul.f32 %v365, %v267
    %v879 = vmul.f32 %v398, %v266
    %v880 = vmul.f32 %v366, %v267
    %v881 = vmul.f32 %v399, %v266
    %v882 = vmul.f32 %v367, %v267
    %v883 = vmul.f32 %v400, %v266
    %v884 = vmul.f32 %v368, %v267
    %v885 = vmul.f32 %v401, %v266
    %v886 = vmul.f32 %v369, %v267
    %v887 = vmul.f32 %v402, %v266
    %v888 = vmul.f32 %v370, %v267
    %v889 = vmul.f32 %v403, %v266
    %v890 = vmul.f32 %v371, %v267
    %v891 = vmul.f32 %v404, %v266
    %v892 = vmul.f32 %v372, %v267
    %v893 = vmul.f32 %v405, %v266
    %v894 = vmul.f32 %v373, %v267
    %v895 = vmul.f32 %v406, %v266
    %v896 = vmul.f32 %v374, %v267
    %v897 = vmul.f32 %v407, %v266
    %v898 = vmul.f32 %v375, %v267
    %v899 = vmul.f32 %v408, %v266
    %v900 = vmul.f32 %v376, %v267
    %v901 = vmul.f32 %v409, %v266
    %v902 = vmul.f32 %v377, %v267
    %v903 = vmul.f32 %v68, %v268
    %v904 = vmul.f32 %v69, %v269
    %v905 = vmul.f32 %v70, %v268
    %v906 = vmul.f32 %v71, %v269
    %v907 = vmul.f32 %v72, %v268
    %v908 = vmul.f32 %v73, %v269
    %v909 = vmul.f32 %v74, %v268
    %v910 = vmul.f32 %v75, %v269
    %v911 = vmul.f32 %v76, %v268
    %v912 = vmul.f32 %v77, %v269
    %v913 = vmul.f32 %v78, %v268
    %v914 = vmul.f32 %v79, %v269
    %v915 = vmul.f32 %v80, %v268
    %v916 = vmul.f32 %v81, %v269
    %v917 = vmul.f32 %v82, %v268
    %v918 = vmul.f32 %v83, %v269
    %v919 = vmul.f32 %v84, %v268
    %v920 = vmul.f32 %v85, %v269
    %v921 = vmul.f32 %v86, %v268
    %v922 = vmul.f32 %v87, %v269
    %v923 = vmul.f32 %v88, %v268
    %v924 = vmul.f32 %v89, %v269
    %v925 = vmul.f32 %v90, %v268
    %v926 = vmul.f32 %v91, %v269
    %v927 = vmul.f32 %v92, %v268
    %v928 = vmul.f32 %v93, %v269
    %v929 = vmul.f32 %v94, %v268
    %v930 = vmul.f32 %v95, %v269
    %v931 = vmul.f32 %v96, %v268
    %v932 = vmul.f32 %v97, %v269
    %v933 = vmul.f32 %v98, %v268
    %v934 = vmul.f32 %v99, %v269
    %v935 = vmul.f32 %v100, %v268
    %v936 = vmul.f32 %v101, %v269
    %v937 = vmul.f32 %v102, %v268
    %v938 = vmul.f32 %v103, %v269
    %v939 = vmul.f32 %v104, %v268
    %v940 = vmul.f32 %v105, %v269
    %v941 = vmul.f32 %v106, %v268
    %v942 = vmul.f32 %v107, %v269
    %v943 = vmul.f32 %v108, %v268
    %v944 = vmul.f32 %v109, %v269
    %v945 = vmul.f32 %v110, %v268
    %v946 = vmul.f32 %v111, %v269
    %v947 = vmul.f32 %v112, %v268
    %v948 = vmul.f32 %v113, %v269
    %v949 = vmul.f32 %v114, %v268
    %v950 = vmul.f32 %v115, %v269
    %v951 = vmul.f32 %v116, %v268
    %v952 = vmul.f32 %v117, %v269
    %v953 = vmul.f32 %v118, %v268
    %v954 = vmul.f32 %v119, %v269
    %v955 = vmul.f32 %v120, %v268
    %v956 = vmul.f32 %v121, %v269
    %v957 = vmul.f32 %v122, %v268
    %v958 = vmul.f32 %v123, %v269
    %v959 = vmul.f32 %v124, %v268
    %v960 = vmul.f32 %v125, %v269
    %v961 = vmul.f32 %v126, %v268
    %v962 = vmul.f32 %v127, %v269
    %v963 = vmul.f32 %v128, %v268
    %v964 = vmul.f32 %v129, %v269
    %v965 = vmul.f32 %v130, %v268
    %v966 = vmul.f32 %v131, %v269
    %v967 = vadd.f32 %v839, %v903
    %v968 = vadd.f32 %v840, %v904
    %v969 = vadd.f32 %v841, %v905
    %v970 = vadd.f32 %v842, %v906
    %v971 = vadd.f32 %v843, %v907
    %v972 = vadd.f32 %v844, %v908
    %v973 = vadd.f32 %v845, %v909
    %v974 = vadd.f32 %v846, %v910
    %v975 = vadd.f32 %v847, %v911
    %v976 = vadd.f32 %v848, %v912
    %v977 = vadd.f32 %v849, %v913
    %v978 = vadd.f32 %v850, %v914
    %v979 = vadd.f32 %v851, %v915
    %v980 = vadd.f32 %v852, %v916
    %v981 = vadd.f32 %v853, %v917
    %v982 = vadd.f32 %v854, %v918
    %v983 = vadd.f32 %v855, %v919
    %v984 = vadd.f32 %v856, %v920
    %v985 = vadd.f32 %v857, %v921
    %v986 = vadd.f32 %v858, %v922
    %v987 = vadd.f32 %v859, %v923
    %v988 = vadd.f32 %v860, %v924
    %v989 = vadd.f32 %v861, %v925
    %v990 = vadd.f32 %v862, %v926
    %v991 = vadd.f32 %v863, %v927
    %v992 = vadd.f32 %v864, %v928
    %v993 = vadd.f32 %v865, %v929
    %v994 = vadd.f32 %v866, %v930
    %v995 = vadd.f32 %v867, %v931
    %v996 = vadd.f32 %v868, %v932
    %v997 = vadd.f32 %v869, %v933
    %v998 = vadd.f32 %v870, %v934
    %v999 = vadd.f32 %v871, %v935
    %v1000 = vadd.f32 %v872, %v936
    %v1001 = vadd.f32 %v873, %v937
    %v1002 = vadd.f32 %v874, %v938
    %v1003 = vadd.f32 %v875, %v939
    %v1004 = vadd.f32 %v876, %v940
    %v1005 = vadd.f32 %v877, %v941
    %v1006 = vadd.f32 %v878, %v942
    %v1007 = vadd.f32 %v879, %v943
    %v1008 = vadd.f32 %v880, %v944
    %v1009 = vadd.f32 %v881, %v945
    %v1010 = vadd.f32 %v882, %v946
    %v1011 = vadd.f32 %v883, %v947
    %v1012 = vadd.f32 %v884, %v948
    %v1013 = vadd.f32 %v885, %v949
    %v1014 = vadd.f32 %v886, %v950
    %v1015 = vadd.f32 %v887, %v951
    %v1016 = vadd.f32 %v888, %v952
    %v1017 = vadd.f32 %v889, %v953
    %v1018 = vadd.f32 %v890, %v954
    %v1019 = vadd.f32 %v891, %v955
    %v1020 = vadd.f32 %v892, %v956
    %v1021 = vadd.f32 %v893, %v957
    %v1022 = vadd.f32 %v894, %v958
    %v1023 = vadd.f32 %v895, %v959
    %v1024 = vadd.f32 %v896, %v960
    %v1025 = vadd.f32 %v897, %v961
    %v1026 = vadd.f32 %v898, %v962
    %v1027 = vadd.f32 %v899, %v963
    %v1028 = vadd.f32 %v900, %v964
    %v1029 = vadd.f32 %v901, %v965
    %v1030 = vadd.f32 %v902, %v966
    %v1031 = vmul.f32 %v475, %v270
    %v1032 = vmul.f32 %v507, %v271
    %v1033 = vmul.f32 %v476, %v270
    %v1034 = vmul.f32 %v508, %v271
    %v1035 = vmul.f32 %v477, %v270
    %v1036 = vmul.f32 %v509, %v271
    %v1037 = vmul.f32 %v478, %v270
    %v1038 = vmul.f32 %v510, %v271
    %v1039 = vmul.f32 %v479, %v270
    %v1040 = vmul.f32 %v511, %v271
    %v1041 = vmul.f32 %v480, %v270
    %v1042 = vmul.f32 %v512, %v271
    %v1043 = vmul.f32 %v481, %v270
    %v1044 = vmul.f32 %v513, %v271
    %v1045 = vmul.f32 %v482, %v270
    %v1046 = vmul.f32 %v514, %v271
    %v1047 = vmul.f32 %v483, %v270
    %v1048 = vmul.f32 %v515, %v271
    %v1049 = vmul.f32 %v484, %v270
    %v1050 = vmul.f32 %v516, %v271
    %v1051 = vmul.f32 %v485, %v270
    %v1052 = vmul.f32 %v517, %v271
    %v1053 = vmul.f32 %v486, %v270
    %v1054 = vmul.f32 %v518, %v271
    %v1055 = vmul.f32 %v487, %v270
    %v1056 = vmul.f32 %v519, %v271
    %v1057 = vmul.f32 %v488, %v270
    %v1058 = vmul.f32 %v520, %v271
    %v1059 = vmul.f32 %v489, %v270
    %v1060 = vmul.f32 %v521, %v271
    %v1061 = vmul.f32 %v490, %v270
    %v1062 = vmul.f32 %v522, %v271
    %v1063 = vmul.f32 %v491, %v270
    %v1064 = vmul.f32 %v523, %v271
    %v1065 = vmul.f32 %v492, %v270
    %v1066 = vmul.f32 %v524, %v271
    %v1067 = vmul.f32 %v493, %v270
    %v1068 = vmul.f32 %v525, %v271
    %v1069 = vmul.f32 %v494, %v270
    %v1070 = vmul.f32 %v526, %v271
    %v1071 = vmul.f32 %v495, %v270
    %v1072 = vmul.f32 %v527, %v271
    %v1073 = vmul.f32 %v496, %v270
    %v1074 = vmul.f32 %v528, %v271
    %v1075 = vmul.f32 %v497, %v270
    %v1076 = vmul.f32 %v529, %v271
    %v1077 = vmul.f32 %v498, %v270
    %v1078 = vmul.f32 %v530, %v271
    %v1079 = vmul.f32 %v499, %v270
    %v1080 = vmul.f32 %v531, %v271
    %v1081 = vmul.f32 %v500, %v270
    %v1082 = vmul.f32 %v532, %v271
    %v1083 = vmul.f32 %v501, %v270
    %v1084 = vmul.f32 %v533, %v271
    %v1085 = vmul.f32 %v502, %v270
    %v1086 = vmul.f32 %v534, %v271
    %v1087 = vmul.f32 %v503, %v270
    %v1088 = vmul.f32 %v535, %v271
    %v1089 = vmul.f32 %v504, %v270
    %v1090 = vmul.f32 %v536, %v271
    %v1091 = vmul.f32 %v505, %v270
    %v1092 = vmul.f32 %v537, %v271
    %v1093 = vmul.f32 %v506, %v270
    %v1094 = vmul.f32 %v538, %v271
    %v1095 = vadd.f32 %v967, %v1031
    %v1096 = vadd.f32 %v968, %v1032
    %v1097 = vadd.f32 %v969, %v1033
    %v1098 = vadd.f32 %v970, %v1034
    %v1099 = vadd.f32 %v971, %v1035
    %v1100 = vadd.f32 %v972, %v1036
    %v1101 = vadd.f32 %v973, %v1037
    %v1102 = vadd.f32 %v974, %v1038
    %v1103 = vadd.f32 %v975, %v1039
    %v1104 = vadd.f32 %v976, %v1040
    %v1105 = vadd.f32 %v977, %v1041
    %v1106 = vadd.f32 %v978, %v1042
    %v1107 = vadd.f32 %v979, %v1043
    %v1108 = vadd.f32 %v980, %v1044
    %v1109 = vadd.f32 %v981, %v1045
    %v1110 = vadd.f32 %v982, %v1046
    %v1111 = vadd.f32 %v983, %v1047
    %v1112 = vadd.f32 %v984, %v1048
    %v1113 = vadd.f32 %v985, %v1049
    %v1114 = vadd.f32 %v986, %v1050
    %v1115 = vadd.f32 %v987, %v1051
    %v1116 = vadd.f32 %v988, %v1052
    %v1117 = vadd.f32 %v989, %v1053
    %v1118 = vadd.f32 %v990, %v1054
    %v1119 = vadd.f32 %v991, %v1055
    %v1120 = vadd.f32 %v992, %v1056
    %v1121 = vadd.f32 %v993, %v1057
    %v1122 = vadd.f32 %v994, %v1058
    %v1123 = vadd.f32 %v995, %v1059
    %v1124 = vadd.f32 %v996, %v1060
    %v1125 = vadd.f32 %v997, %v1061
    %v1126 = vadd.f32 %v998, %v1062
    %v1127 = vadd.f32 %v999, %v1063
    %v1128 = vadd.f32 %v1000, %v1064
    %v1129 = vadd.f32 %v1001, %v1065
    %v1130 = vadd.f32 %v1002, %v1066
    %v1131 = vadd.f32 %v1003, %v1067
    %v1132 = vadd.f32 %v1004, %v1068
    %v1133 = vadd.f32 %v1005, %v1069
    %v1134 = vadd.f32 %v1006, %v1070
    %v1135 = vadd.f32 %v1007, %v1071
    %v1136 = vadd.f32 %v1008, %v1072
    %v1137 = vadd.f32 %v1009, %v1073
    %v1138 = vadd.f32 %v1010, %v1074
    %v1139 = vadd.f32 %v1011, %v1075
    %v1140 = vadd.f32 %v1012, %v1076
    %v1141 = vadd.f32 %v1013, %v1077
    %v1142 = vadd.f32 %v1014, %v1078
    %v1143 = vadd.f32 %v1015, %v1079
    %v1144 = vadd.f32 %v1016, %v1080
    %v1145 = vadd.f32 %v1017, %v1081
    %v1146 = vadd.f32 %v1018, %v1082
    %v1147 = vadd.f32 %v1019, %v1083
    %v1148 = vadd.f32 %v1020, %v1084
    %v1149 = vadd.f32 %v1021, %v1085
    %v1150 = vadd.f32 %v1022, %v1086
    %v1151 = vadd.f32 %v1023, %v1087
    %v1152 = vadd.f32 %v1024, %v1088
    %v1153 = vadd.f32 %v1025, %v1089
    %v1154 = vadd.f32 %v1026, %v1090
    %v1155 = vadd.f32 %v1027, %v1091
    %v1156 = vadd.f32 %v1028, %v1092
    %v1157 = vadd.f32 %v1029, %v1093
    %v1158 = vadd.f32 %v1030, %v1094
    %v1159 = vmul.f32 %v379, %v272
    %v1160 = vmul.f32 %v347, %v273
    %v1161 = vmul.f32 %v380, %v272
    %v1162 = vmul.f32 %v348, %v273
    %v1163 = vmul.f32 %v381, %v272
    %v1164 = vmul.f32 %v349, %v273
    %v1165 = vmul.f32 %v382, %v272
    %v1166 = vmul.f32 %v350, %v273
    %v1167 = vmul.f32 %v383, %v272
    %v1168 = vmul.f32 %v351, %v273
    %v1169 = vmul.f32 %v384, %v272
    %v1170 = vmul.f32 %v352, %v273
    %v1171 = vmul.f32 %v385, %v272
    %v1172 = vmul.f32 %v353, %v273
    %v1173 = vmul.f32 %v386, %v272
    %v1174 = vmul.f32 %v354, %v273
    %v1175 = vmul.f32 %v387, %v272
    %v1176 = vmul.f32 %v355, %v273
    %v1177 = vmul.f32 %v388, %v272
    %v1178 = vmul.f32 %v356, %v273
    %v1179 = vmul.f32 %v389, %v272
    %v1180 = vmul.f32 %v357, %v273
    %v1181 = vmul.f32 %v390, %v272
    %v1182 = vmul.f32 %v358, %v273
    %v1183 = vmul.f32 %v391, %v272
    %v1184 = vmul.f32 %v359, %v273
    %v1185 = vmul.f32 %v392, %v272
    %v1186 = vmul.f32 %v360, %v273
    %v1187 = vmul.f32 %v393, %v272
    %v1188 = vmul.f32 %v361, %v273
    %v1189 = vmul.f32 %v395, %v272
    %v1190 = vmul.f32 %v363, %v273
    %v1191 = vmul.f32 %v396, %v272
    %v1192 = vmul.f32 %v364, %v273
    %v1193 = vmul.f32 %v397, %v272
    %v1194 = vmul.f32 %v365, %v273
    %v1195 = vmul.f32 %v398, %v272
    %v1196 = vmul.f32 %v366, %v273
    %v1197 = vmul.f32 %v399, %v272
    %v1198 = vmul.f32 %v367, %v273
    %v1199 = vmul.f32 %v400, %v272
    %v1200 = vmul.f32 %v368, %v273
    %v1201 = vmul.f32 %v401, %v272
    %v1202 = vmul.f32 %v369, %v273
    %v1203 = vmul.f32 %v402, %v272
    %v1204 = vmul.f32 %v370, %v273
    %v1205 = vmul.f32 %v403, %v272
    %v1206 = vmul.f32 %v371, %v273
    %v1207 = vmul.f32 %v404, %v272
    %v1208 = vmul.f32 %v372, %v273
    %v1209 = vmul.f32 %v405, %v272
    %v1210 = vmul.f32 %v373, %v273
    %v1211 = vmul.f32 %v406, %v272
    %v1212 = vmul.f32 %v374, %v273
    %v1213 = vmul.f32 %v407, %v272
    %v1214 = vmul.f32 %v375, %v273
    %v1215 = vmul.f32 %v408, %v272
    %v1216 = vmul.f32 %v376, %v273
    %v1217 = vmul.f32 %v409, %v272
    %v1218 = vmul.f32 %v377, %v273
    %v1219 = vmul.f32 %v70, %v274
    %v1220 = vmul.f32 %v71, %v275
    %v1221 = vmul.f32 %v72, %v274
    %v1222 = vmul.f32 %v73, %v275
    %v1223 = vmul.f32 %v74, %v274
    %v1224 = vmul.f32 %v75, %v275
    %v1225 = vmul.f32 %v76, %v274
    %v1226 = vmul.f32 %v77, %v275
    %v1227 = vmul.f32 %v78, %v274
    %v1228 = vmul.f32 %v79, %v275
    %v1229 = vmul.f32 %v80, %v274
    %v1230 = vmul.f32 %v81, %v275
    %v1231 = vmul.f32 %v82, %v274
    %v1232 = vmul.f32 %v83, %v275
    %v1233 = vmul.f32 %v84, %v274
    %v1234 = vmul.f32 %v85, %v275
    %v1235 = vmul.f32 %v86, %v274
    %v1236 = vmul.f32 %v87, %v275
    %v1237 = vmul.f32 %v88, %v274
    %v1238 = vmul.f32 %v89, %v275
    %v1239 = vmul.f32 %v90, %v274
    %v1240 = vmul.f32 %v91, %v275
    %v1241 = vmul.f32 %v92, %v274
    %v1242 = vmul.f32 %v93, %v275
    %v1243 = vmul.f32 %v94, %v274
    %v1244 = vmul.f32 %v95, %v275
    %v1245 = vmul.f32 %v96, %v274
    %v1246 = vmul.f32 %v97, %v275
    %v1247 = vmul.f32 %v98, %v274
    %v1248 = vmul.f32 %v99, %v275
    %v1249 = vmul.f32 %v102, %v274
    %v1250 = vmul.f32 %v103, %v275
    %v1251 = vmul.f32 %v104, %v274
    %v1252 = vmul.f32 %v105, %v275
    %v1253 = vmul.f32 %v106, %v274
    %v1254 = vmul.f32 %v107, %v275
    %v1255 = vmul.f32 %v108, %v274
    %v1256 = vmul.f32 %v109, %v275
    %v1257 = vmul.f32 %v110, %v274
    %v1258 = vmul.f32 %v111, %v275
    %v1259 = vmul.f32 %v112, %v274
    %v1260 = vmul.f32 %v113, %v275
    %v1261 = vmul.f32 %v114, %v274
    %v1262 = vmul.f32 %v115, %v275
    %v1263 = vmul.f32 %v116, %v274
    %v1264 = vmul.f32 %v117, %v275
    %v1265 = vmul.f32 %v118, %v274
    %v1266 = vmul.f32 %v119, %v275
    %v1267 = vmul.f32 %v120, %v274
    %v1268 = vmul.f32 %v121, %v275
    %v1269 = vmul.f32 %v122, %v274
    %v1270 = vmul.f32 %v123, %v275
    %v1271 = vmul.f32 %v124, %v274
    %v1272 = vmul.f32 %v125, %v275
    %v1273 = vmul.f32 %v126, %v274
    %v1274 = vmul.f32 %v127, %v275
    %v1275 = vmul.f32 %v128, %v274
    %v1276 = vmul.f32 %v129, %v275
    %v1277 = vmul.f32 %v130, %v274
    %v1278 = vmul.f32 %v131, %v275
    %v1279 = vadd.f32 %v1159, %v1219
    %v1280 = vadd.f32 %v1160, %v1220
    %v1281 = vadd.f32 %v1161, %v1221
    %v1282 = vadd.f32 %v1162, %v1222
    %v1283 = vadd.f32 %v1163, %v1223
    %v1284 = vadd.f32 %v1164, %v1224
    %v1285 = vadd.f32 %v1165, %v1225
    %v1286 = vadd.f32 %v1166, %v1226
    %v1287 = vadd.f32 %v1167, %v1227
    %v1288 = vadd.f32 %v1168, %v1228
    %v1289 = vadd.f32 %v1169, %v1229
    %v1290 = vadd.f32 %v1170, %v1230
    %v1291 = vadd.f32 %v1171, %v1231
    %v1292 = vadd.f32 %v1172, %v1232
    %v1293 = vadd.f32 %v1173, %v1233
    %v1294 = vadd.f32 %v1174, %v1234
    %v1295 = vadd.f32 %v1175, %v1235
    %v1296 = vadd.f32 %v1176, %v1236
    %v1297 = vadd.f32 %v1177, %v1237
    %v1298 = vadd.f32 %v1178, %v1238
    %v1299 = vadd.f32 %v1179, %v1239
    %v1300 = vadd.f32 %v1180, %v1240
    %v1301 = vadd.f32 %v1181, %v1241
    %v1302 = vadd.f32 %v1182, %v1242
    %v1303 = vadd.f32 %v1183, %v1243
    %v1304 = vadd.f32 %v1184, %v1244
    %v1305 = vadd.f32 %v1185, %v1245
    %v1306 = vadd.f32 %v1186, %v1246
    %v1307 = vadd.f32 %v1187, %v1247
    %v1308 = vadd.f32 %v1188, %v1248
    %v1309 = vadd.f32 %v1189, %v1249
    %v1310 = vadd.f32 %v1190, %v1250
    %v1311 = vadd.f32 %v1191, %v1251
    %v1312 = vadd.f32 %v1192, %v1252
    %v1313 = vadd.f32 %v1193, %v1253
    %v1314 = vadd.f32 %v1194, %v1254
    %v1315 = vadd.f32 %v1195, %v1255
    %v1316 = vadd.f32 %v1196, %v1256
    %v1317 = vadd.f32 %v1197, %v1257
    %v1318 = vadd.f32 %v1198, %v1258
    %v1319 = vadd.f32 %v1199, %v1259
    %v1320 = vadd.f32 %v1200, %v1260
    %v1321 = vadd.f32 %v1201, %v1261
    %v1322 = vadd.f32 %v1202, %v1262
    %v1323 = vadd.f32 %v1203, %v1263
    %v1324 = vadd.f32 %v1204, %v1264
    %v1325 = vadd.f32 %v1205, %v1265
    %v1326 = vadd.f32 %v1206, %v1266
    %v1327 = vadd.f32 %v1207, %v1267
    %v1328 = vadd.f32 %v1208, %v1268
    %v1329 = vadd.f32 %v1209, %v1269
    %v1330 = vadd.f32 %v1210, %v1270
    %v1331 = vadd.f32 %v1211, %v1271
    %v1332 = vadd.f32 %v1212, %v1272
    %v1333 = vadd.f32 %v1213, %v1273
    %v1334 = vadd.f32 %v1214, %v1274
    %v1335 = vadd.f32 %v1215, %v1275
    %v1336 = vadd.f32 %v1216, %v1276
    %v1337 = vadd.f32 %v1217, %v1277
    %v1338 = vadd.f32 %v1218, %v1278
    %v1339 = vmul.f32 %v476, %v276
    %v1340 = vmul.f32 %v508, %v277
    %v1341 = vmul.f32 %v477, %v276
    %v1342 = vmul.f32 %v509, %v277
    %v1343 = vmul.f32 %v478, %v276
    %v1344 = vmul.f32 %v510, %v277
    %v1345 = vmul.f32 %v479, %v276
    %v1346 = vmul.f32 %v511, %v277
    %v1347 = vmul.f32 %v480, %v276
    %v1348 = vmul.f32 %v512, %v277
    %v1349 = vmul.f32 %v481, %v276
    %v1350 = vmul.f32 %v513, %v277
    %v1351 = vmul.f32 %v482, %v276
    %v1352 = vmul.f32 %v514, %v277
    %v1353 = vmul.f32 %v483, %v276
    %v1354 = vmul.f32 %v515, %v277
    %v1355 = vmul.f32 %v484, %v276
    %v1356 = vmul.f32 %v516, %v277
    %v1357 = vmul.f32 %v485, %v276
    %v1358 = vmul.f32 %v517, %v277
    %v1359 = vmul.f32 %v486, %v276
    %v1360 = vmul.f32 %v518, %v277
    %v1361 = vmul.f32 %v487, %v276
    %v1362 = vmul.f32 %v519, %v277
    %v1363 = vmul.f32 %v488, %v276
    %v1364 = vmul.f32 %v520, %v277
    %v1365 = vmul.f32 %v489, %v276
    %v1366 = vmul.f32 %v521, %v277
    %v1367 = vmul.f32 %v490, %v276
    %v1368 = vmul.f32 %v522, %v277
    %v1369 = vmul.f32 %v492, %v276
    %v1370 = vmul.f32 %v524, %v277
    %v1371 = vmul.f32 %v493, %v276
    %v1372 = vmul.f32 %v525, %v277
    %v1373 = vmul.f32 %v494, %v276
    %v1374 = vmul.f32 %v526, %v277
    %v1375 = vmul.f32 %v495, %v276
    %v1376 = vmul.f32 %v527, %v277
    %v1377 = vmul.f32 %v496, %v276
    %v1378 = vmul.f32 %v528, %v277
    %v1379 = vmul.f32 %v497, %v276
    %v1380 = vmul.f32 %v529, %v277
    %v1381 = vmul.f32 %v498, %v276
    %v1382 = vmul.f32 %v530, %v277
    %v1383 = vmul.f32 %v499, %v276
    %v1384 = vmul.f32 %v531, %v277
    %v1385 = vmul.f32 %v500, %v276
    %v1386 = vmul.f32 %v532, %v277
    %v1387 = vmul.f32 %v501, %v276
    %v1388 = vmul.f32 %v533, %v277
    %v1389 = vmul.f32 %v502, %v276
    %v1390 = vmul.f32 %v534, %v277
    %v1391 = vmul.f32 %v503, %v276
    %v1392 = vmul.f32 %v535, %v277
    %v1393 = vmul.f32 %v504, %v276
    %v1394 = vmul.f32 %v536, %v277
    %v1395 = vmul.f32 %v505, %v276
    %v1396 = vmul.f32 %v537, %v277
    %v1397 = vmul.f32 %v506, %v276
    %v1398 = vmul.f32 %v538, %v277
    %v1399 = vadd.f32 %v1279, %v1339
    %v1400 = vadd.f32 %v1280, %v1340
    %v1401 = vadd.f32 %v1281, %v1341
    %v1402 = vadd.f32 %v1282, %v1342
    %v1403 = vadd.f32 %v1283, %v1343
    %v1404 = vadd.f32 %v1284, %v1344
    %v1405 = vadd.f32 %v1285, %v1345
    %v1406 = vadd.f32 %v1286, %v1346
    %v1407 = vadd.f32 %v1287, %v1347
    %v1408 = vadd.f32 %v1288, %v1348
    %v1409 = vadd.f32 %v1289, %v1349
    %v1410 = vadd.f32 %v1290, %v1350
    %v1411 = vadd.f32 %v1291, %v1351
    %v1412 = vadd.f32 %v1292, %v1352
    %v1413 = vadd.f32 %v1293, %v1353
    %v1414 = vadd.f32 %v1294, %v1354
    %v1415 = vadd.f32 %v1295, %v1355
    %v1416 = vadd.f32 %v1296, %v1356
    %v1417 = vadd.f32 %v1297, %v1357
    %v1418 = vadd.f32 %v1298, %v1358
    %v1419 = vadd.f32 %v1299, %v1359
    %v1420 = vadd.f32 %v1300, %v1360
    %v1421 = vadd.f32 %v1301, %v1361
    %v1422 = vadd.f32 %v1302, %v1362
    %v1423 = vadd.f32 %v1303, %v1363
    %v1424 = vadd.f32 %v1304, %v1364
    %v1425 = vadd.f32 %v1305, %v1365
    %v1426 = vadd.f32 %v1306, %v1366
    %v1427 = vadd.f32 %v1307, %v1367
    %v1428 = vadd.f32 %v1308, %v1368
    %v1429 = vadd.f32 %v1309, %v1369
    %v1430 = vadd.f32 %v1310, %v1370
    %v1431 = vadd.f32 %v1311, %v1371
    %v1432 = vadd.f32 %v1312, %v1372
    %v1433 = vadd.f32 %v1313, %v1373
    %v1434 = vadd.f32 %v1314, %v1374
    %v1435 = vadd.f32 %v1315, %v1375
    %v1436 = vadd.f32 %v1316, %v1376
    %v1437 = vadd.f32 %v1317, %v1377
    %v1438 = vadd.f32 %v1318, %v1378
    %v1439 = vadd.f32 %v1319, %v1379
    %v1440 = vadd.f32 %v1320, %v1380
    %v1441 = vadd.f32 %v1321, %v1381
    %v1442 = vadd.f32 %v1322, %v1382
    %v1443 = vadd.f32 %v1323, %v1383
    %v1444 = vadd.f32 %v1324, %v1384
    %v1445 = vadd.f32 %v1325, %v1385
    %v1446 = vadd.f32 %v1326, %v1386
    %v1447 = vadd.f32 %v1327, %v1387
    %v1448 = vadd.f32 %v1328, %v1388
    %v1449 = vadd.f32 %v1329, %v1389
    %v1450 = vadd.f32 %v1330, %v1390
    %v1451 = vadd.f32 %v1331, %v1391
    %v1452 = vadd.f32 %v1332, %v1392
    %v1453 = vadd.f32 %v1333, %v1393
    %v1454 = vadd.f32 %v1334, %v1394
    %v1455 = vadd.f32 %v1335, %v1395
    %v1456 = vadd.f32 %v1336, %v1396
    %v1457 = vadd.f32 %v1337, %v1397
    %v1458 = vadd.f32 %v1338, %v1398
    %v1459 = vadd.f32 %v1095, 0.0
    %v1460 = vadd.f32 %v1096, 0.0
    %v1461 = vadd.f32 %v1097, %v779
    %v1462 = vadd.f32 %v1098, %v780
    %v1463 = vadd.f32 %v1099, %v781
    %v1464 = vadd.f32 %v1100, %v782
    %v1465 = vadd.f32 %v1101, %v783
    %v1466 = vadd.f32 %v1102, %v784
    %v1467 = vadd.f32 %v1103, %v785
    %v1468 = vadd.f32 %v1104, %v786
    %v1469 = vadd.f32 %v1105, %v787
    %v1470 = vadd.f32 %v1106, %v788
    %v1471 = vadd.f32 %v1107, %v789
    %v1472 = vadd.f32 %v1108, %v790
    %v1473 = vadd.f32 %v1109, %v791
    %v1474 = vadd.f32 %v1110, %v792
    %v1475 = vadd.f32 %v1111, %v793
    %v1476 = vadd.f32 %v1112, %v794
    %v1477 = vadd.f32 %v1113, %v795
    %v1478 = vadd.f32 %v1114, %v796
    %v1479 = vadd.f32 %v1115, %v797
    %v1480 = vadd.f32 %v1116, %v798
    %v1481 = vadd.f32 %v1117, %v799
    %v1482 = vadd.f32 %v1118, %v800
    %v1483 = vadd.f32 %v1119, %v801
    %v1484 = vadd.f32 %v1120, %v802
    %v1485 = vadd.f32 %v1121, %v803
    %v1486 = vadd.f32 %v1122, %v804
    %v1487 = vadd.f32 %v1123, %v805
    %v1488 = vadd.f32 %v1124, %v806
    %v1489 = vadd.f32 %v1125, %v807
    %v1490 = vadd.f32 %v1126, %v808
    %v1491 = vadd.f32 %v1127, 0.0
    %v1492 = vadd.f32 %v1128, 0.0
    %v1493 = vadd.f32 %v1129, %v809
    %v1494 = vadd.f32 %v1130, %v810
    %v1495 = vadd.f32 %v1131, %v811
    %v1496 = vadd.f32 %v1132, %v812
    %v1497 = vadd.f32 %v1133, %v813
    %v1498 = vadd.f32 %v1134, %v814
    %v1499 = vadd.f32 %v1135, %v815
    %v1500 = vadd.f32 %v1136, %v816
    %v1501 = vadd.f32 %v1137, %v817
    %v1502 = vadd.f32 %v1138, %v818
    %v1503 = vadd.f32 %v1139, %v819
    %v1504 = vadd.f32 %v1140, %v820
    %v1505 = vadd.f32 %v1141, %v821
    %v1506 = vadd.f32 %v1142, %v822
    %v1507 = vadd.f32 %v1143, %v823
    %v1508 = vadd.f32 %v1144, %v824
    %v1509 = vadd.f32 %v1145, %v825
    %v1510 = vadd.f32 %v1146, %v826
    %v1511 = vadd.f32 %v1147, %v827
    %v1512 = vadd.f32 %v1148, %v828
    %v1513 = vadd.f32 %v1149, %v829
    %v1514 = vadd.f32 %v1150, %v830
    %v1515 = vadd.f32 %v1151, %v831
    %v1516 = vadd.f32 %v1152, %v832
    %v1517 = vadd.f32 %v1153, %v833
    %v1518 = vadd.f32 %v1154, %v834
    %v1519 = vadd.f32 %v1155, %v835
    %v1520 = vadd.f32 %v1156, %v836
    %v1521 = vadd.f32 %v1157, %v837
    %v1522 = vadd.f32 %v1158, %v838
    %v1523 = vadd.f32 %v1459, %v1399
    %v1524 = vadd.f32 %v1460, %v1400
    %v1525 = vadd.f32 %v1461, %v1401
    %v1526 = vadd.f32 %v1462, %v1402
    %v1527 = vadd.f32 %v1463, %v1403
    %v1528 = vadd.f32 %v1464, %v1404
    %v1529 = vadd.f32 %v1465, %v1405
    %v1530 = vadd.f32 %v1466, %v1406
    %v1531 = vadd.f32 %v1467, %v1407
    %v1532 = vadd.f32 %v1468, %v1408
    %v1533 = vadd.f32 %v1469, %v1409
    %v1534 = vadd.f32 %v1470, %v1410
    %v1535 = vadd.f32 %v1471, %v1411
    %v1536 = vadd.f32 %v1472, %v1412
    %v1537 = vadd.f32 %v1473, %v1413
    %v1538 = vadd.f32 %v1474, %v1414
    %v1539 = vadd.f32 %v1475, %v1415
    %v1540 = vadd.f32 %v1476, %v1416
    %v1541 = vadd.f32 %v1477, %v1417
    %v1542 = vadd.f32 %v1478, %v1418
    %v1543 = vadd.f32 %v1479, %v1419
    %v1544 = vadd.f32 %v1480, %v1420
    %v1545 = vadd.f32 %v1481, %v1421
    %v1546 = vadd.f32 %v1482, %v1422
    %v1547 = vadd.f32 %v1483, %v1423
    %v1548 = vadd.f32 %v1484, %v1424
    %v1549 = vadd.f32 %v1485, %v1425
    %v1550 = vadd.f32 %v1486, %v1426
    %v1551 = vadd.f32 %v1487, %v1427
    %v1552 = vadd.f32 %v1488, %v1428
    %v1553 = vadd.f32 %v1489, 0.0
    %v1554 = vadd.f32 %v1490, 0.0
    %v1555 = vadd.f32 %v1491, %v1429
    %v1556 = vadd.f32 %v1492, %v1430
    %v1557 = vadd.f32 %v1493, %v1431
    %v1558 = vadd.f32 %v1494, %v1432
    %v1559 = vadd.f32 %v1495, %v1433
    %v1560 = vadd.f32 %v1496, %v1434
    %v1561 = vadd.f32 %v1497, %v1435
    %v1562 = vadd.f32 %v1498, %v1436
    %v1563 = vadd.f32 %v1499, %v1437
    %v1564 = vadd.f32 %v1500, %v1438
    %v1565 = vadd.f32 %v1501, %v1439
    %v1566 = vadd.f32 %v1502, %v1440
    %v1567 = vadd.f32 %v1503, %v1441
    %v1568 = vadd.f32 %v1504, %v1442
    %v1569 = vadd.f32 %v1505, %v1443
    %v1570 = vadd.f32 %v1506, %v1444
    %v1571 = vadd.f32 %v1507, %v1445
    %v1572 = vadd.f32 %v1508, %v1446
    %v1573 = vadd.f32 %v1509, %v1447
    %v1574 = vadd.f32 %v1510, %v1448
    %v1575 = vadd.f32 %v1511, %v1449
    %v1576 = vadd.f32 %v1512, %v1450
    %v1577 = vadd.f32 %v1513, %v1451
    %v1578 = vadd.f32 %v1514, %v1452
    %v1579 = vadd.f32 %v1515, %v1453
    %v1580 = vadd.f32 %v1516, %v1454
    %v1581 = vadd.f32 %v1517, %v1455
    %v1582 = vadd.f32 %v1518, %v1456
    %v1583 = vadd.f32 %v1519, %v1457
    %v1584 = vadd.f32 %v1520, %v1458
    %v1585 = vadd.f32 %v1521, 0.0
    %v1586 = vadd.f32 %v1522, 0.0
    %v1588 = vperm.slane %v278, 0
    %v1590 = vadd.f32 %v1523, %v1588
    %v1591 = vadd.f32 %v1524, %v1588
    %v1592 = vadd.f32 %v1525, %v1588
    %v1593 = vadd.f32 %v1526, %v1588
    %v1594 = vadd.f32 %v1527, %v1588
    %v1595 = vadd.f32 %v1528, %v1588
    %v1596 = vadd.f32 %v1529, %v1588
    %v1597 = vadd.f32 %v1530, %v1588
    %v1598 = vadd.f32 %v1531, %v1588
    %v1599 = vadd.f32 %v1532, %v1588
    %v1600 = vadd.f32 %v1533, %v1588
    %v1601 = vadd.f32 %v1534, %v1588
    %v1602 = vadd.f32 %v1535, %v1588
    %v1603 = vadd.f32 %v1536, %v1588
    %v1604 = vadd.f32 %v1537, %v1588
    %v1605 = vadd.f32 %v1538, %v1588
    %v1606 = vadd.f32 %v1539, %v1588
    %v1607 = vadd.f32 %v1540, %v1588
    %v1608 = vadd.f32 %v1541, %v1588
    %v1609 = vadd.f32 %v1542, %v1588
    %v1610 = vadd.f32 %v1543, %v1588
    %v1611 = vadd.f32 %v1544, %v1588
    %v1612 = vadd.f32 %v1545, %v1588
    %v1613 = vadd.f32 %v1546, %v1588
    %v1614 = vadd.f32 %v1547, %v1588
    %v1615 = vadd.f32 %v1548, %v1588
    %v1616 = vadd.f32 %v1549, %v1588
    %v1617 = vadd.f32 %v1550, %v1588
    %v1618 = vadd.f32 %v1551, %v1588
    %v1619 = vadd.f32 %v1552, %v1588
    %v1620 = vadd.f32 %v1553, %v1588
    %v1621 = vadd.f32 %v1554, %v1588
    %v1622 = vadd.f32 %v1555, %v1588
    %v1623 = vadd.f32 %v1556, %v1588
    %v1624 = vadd.f32 %v1557, %v1588
    %v1625 = vadd.f32 %v1558, %v1588
    %v1626 = vadd.f32 %v1559, %v1588
    %v1627 = vadd.f32 %v1560, %v1588
    %v1628 = vadd.f32 %v1561, %v1588
    %v1629 = vadd.f32 %v1562, %v1588
    %v1630 = vadd.f32 %v1563, %v1588
    %v1631 = vadd.f32 %v1564, %v1588
    %v1632 = vadd.f32 %v1565, %v1588
    %v1633 = vadd.f32 %v1566, %v1588
    %v1634 = vadd.f32 %v1567, %v1588
    %v1635 = vadd.f32 %v1568, %v1588
    %v1636 = vadd.f32 %v1569, %v1588
    %v1637 = vadd.f32 %v1570, %v1588
    %v1638 = vadd.f32 %v1571, %v1588
    %v1639 = vadd.f32 %v1572, %v1588
    %v1640 = vadd.f32 %v1573, %v1588
    %v1641 = vadd.f32 %v1574, %v1588
    %v1642 = vadd.f32 %v1575, %v1588
    %v1643 = vadd.f32 %v1576, %v1588
    %v1644 = vadd.f32 %v1577, %v1588
    %v1645 = vadd.f32 %v1578, %v1588
    %v1646 = vadd.f32 %v1579, %v1588
    %v1647 = vadd.f32 %v1580, %v1588
    %v1648 = vadd.f32 %v1581, %v1588
    %v1649 = vadd.f32 %v1582, %v1588
    %v1650 = vadd.f32 %v1583, %v1588
    %v1651 = vadd.f32 %v1584, %v1588
    %v1652 = vadd.f32 %v1585, %v1588
    %v1653 = vadd.f32 %v1586, %v1588
    %v1654 = vpack.c.bf16 %v133, %v132
    %v1655 = vpack.c.bf16 %v135, %v134
    %v1656 = vpack.c.bf16 %v137, %v136
    %v1657 = vpack.c.bf16 %v139, %v138
    %v1658 = vpack.c.bf16 %v141, %v140
    %v1659 = vpack.c.bf16 %v143, %v142
    %v1660 = vpack.c.bf16 %v145, %v144
    %v1661 = vpack.c.bf16 %v147, %v146
    %v1662 = vpack.c.bf16 %v149, %v148
    %v1663 = vpack.c.bf16 %v151, %v150
    %v1664 = vpack.c.bf16 %v153, %v152
    %v1665 = vpack.c.bf16 %v155, %v154
    %v1666 = vpack.c.bf16 %v157, %v156
    %v1667 = vpack.c.bf16 %v159, %v158
    %v1668 = vpack.c.bf16 %v161, %v160
    %v1669 = vpack.c.bf16 %v163, %v162
    %v1670 = vpack.c.bf16 %v165, %v164
    %v1671 = vpack.c.bf16 %v167, %v166
    %v1672 = vpack.c.bf16 %v169, %v168
    %v1673 = vpack.c.bf16 %v171, %v170
    %v1674 = vpack.c.bf16 %v173, %v172
    %v1675 = vpack.c.bf16 %v175, %v174
    %v1676 = vpack.c.bf16 %v177, %v176
    %v1677 = vpack.c.bf16 %v179, %v178
    %v1678 = vpack.c.bf16 %v181, %v180
    %v1679 = vpack.c.bf16 %v183, %v182
    %v1680 = vpack.c.bf16 %v185, %v184
    %v1681 = vpack.c.bf16 %v187, %v186
    %v1682 = vpack.c.bf16 %v189, %v188
    %v1683 = vpack.c.bf16 %v191, %v190
    %v1684 = vpack.c.bf16 %v193, %v192
    %v1685 = vpack.c.bf16 %v195, %v194
    %v1686 = vpack.c.bf16 %v1591, %v1590
    %v1687 = vpack.c.bf16 %v1593, %v1592
    %v1688 = vpack.c.bf16 %v1595, %v1594
    %v1689 = vpack.c.bf16 %v1597, %v1596
    %v1690 = vpack.c.bf16 %v1599, %v1598
    %v1691 = vpack.c.bf16 %v1601, %v1600
    %v1692 = vpack.c.bf16 %v1603, %v1602
    %v1693 = vpack.c.bf16 %v1605, %v1604
    %v1694 = vpack.c.bf16 %v1607, %v1606
    %v1695 = vpack.c.bf16 %v1609, %v1608
    %v1696 = vpack.c.bf16 %v1611, %v1610
    %v1697 = vpack.c.bf16 %v1613, %v1612
    %v1698 = vpack.c.bf16 %v1615, %v1614
    %v1699 = vpack.c.bf16 %v1617, %v1616
    %v1700 = vpack.c.bf16 %v1619, %v1618
    %v1701 = vpack.c.bf16 %v1621, %v1620
    %v1702 = vpack.c.bf16 %v1623, %v1622
    %v1703 = vpack.c.bf16 %v1625, %v1624
    %v1704 = vpack.c.bf16 %v1627, %v1626
    %v1705 = vpack.c.bf16 %v1629, %v1628
    %v1706 = vpack.c.bf16 %v1631, %v1630
    %v1707 = vpack.c.bf16 %v1633, %v1632
    %v1708 = vpack.c.bf16 %v1635, %v1634
    %v1709 = vpack.c.bf16 %v1637, %v1636
    %v1710 = vpack.c.bf16 %v1639, %v1638
    %v1711 = vpack.c.bf16 %v1641, %v1640
    %v1712 = vpack.c.bf16 %v1643, %v1642
    %v1713 = vpack.c.bf16 %v1645, %v1644
    %v1714 = vpack.c.bf16 %v1647, %v1646
    %v1715 = vpack.c.bf16 %v1649, %v1648
    %v1716 = vpack.c.bf16 %v1651, %v1650
    %v1717 = vpack.c.bf16 %v1653, %v1652
    %v1718 = vld [vmem:[%s6] sm:$0xf]
    %v1719 = vld [vmem:[%s6 + $0x4] sm:$0xf]
    %v1720 = vld [vmem:[%s6 + $0x8] sm:$0xf]
    %v1721 = vld [vmem:[%s6 + $0xc] sm:$0xf]
    %v1722 = vld [vmem:[%s5] sm:$0xf]
    %vm1723 = vcmask 64512
    %v1725 = vsel %vm1723, %v1686, 0
    %v1728 = vsel %vm1723, %v1687, 0
    %v1731 = vsel %vm1723, %v1688, 0
    %v1734 = vsel %vm1723, %v1689, 0
    %v1737 = vsel %vm1723, %v1690, 0
    %v1740 = vsel %vm1723, %v1691, 0
    %v1743 = vsel %vm1723, %v1692, 0
    %v1746 = vsel %vm1723, %v1693, 0
    %v1749 = vsel %vm1723, %v1694, 0
    %v1752 = vsel %vm1723, %v1695, 0
    %v1755 = vsel %vm1723, %v1696, 0
    %v1758 = vsel %vm1723, %v1697, 0
    %v1761 = vsel %vm1723, %v1698, 0
    %v1764 = vsel %vm1723, %v1699, 0
    %v1767 = vsel %vm1723, %v1700, 0
    %v1770 = vsel %vm1723, %v1701, 0
    %v1773 = vsel %vm1723, %v1702, 0
    %v1776 = vsel %vm1723, %v1703, 0
    %v1779 = vsel %vm1723, %v1704, 0
    %v1782 = vsel %vm1723, %v1705, 0
    %v1785 = vsel %vm1723, %v1706, 0
    %v1788 = vsel %vm1723, %v1707, 0
    %v1791 = vsel %vm1723, %v1708, 0
    %v1794 = vsel %vm1723, %v1709, 0
    %v1797 = vsel %vm1723, %v1710, 0
    %v1800 = vsel %vm1723, %v1711, 0
    %v1803 = vsel %vm1723, %v1712, 0
    %v1806 = vsel %vm1723, %v1713, 0
    %v1809 = vsel %vm1723, %v1714, 0
    %v1812 = vsel %vm1723, %v1715, 0
    %v1815 = vsel %vm1723, %v1716, 0
    %v1818 = vsel %vm1723, %v1717, 0
    %vm1820 = vcmask 1043456
    %v1822 = vsel %vm1820, %v1722, 0
    %1824 = vmatpush.bf16.msra.mxu0 0
    %1825 = vmatpush.bf16.msra.mxu0 0
    %1826 = vmatpush.bf16.msra.mxu0 0
    %1827 = vmatpush.bf16.msra.mxu0 0
    %1828 = vmatpush.bf16.msra.mxu0 0
    %1829 = vmatpush.bf16.msra.mxu0 0
    %1830 = vmatpush.bf16.msra.mxu0 0
    %1831 = vmatpush.bf16.msra.mxu0 %v1822
    %1832 = vmatmul.bf16.gmra.mxu0 %v1725
    %v1833 = vpop.f32.mrf.mxu0
    %v1834 = vadd.f32 0.0, %v1833
    %v1835 = vpop.f32.mrf.mxu0
    %v1836 = vadd.f32 0.0, %v1835
    %1837 = vmatmul.bf16.gmra.mxu0 %v1728
    %v1838 = vpop.f32.mrf.mxu0
    %v1839 = vadd.f32 0.0, %v1838
    %v1840 = vpop.f32.mrf.mxu0
    %v1841 = vadd.f32 0.0, %v1840
    %1842 = vmatmul.bf16.gmra.mxu0 %v1731
    %v1843 = vpop.f32.mrf.mxu0
    %v1844 = vadd.f32 0.0, %v1843
    %v1845 = vpop.f32.mrf.mxu0
    %v1846 = vadd.f32 0.0, %v1845
    %1847 = vmatmul.bf16.gmra.mxu0 %v1734
    %v1848 = vpop.f32.mrf.mxu0
    %v1849 = vadd.f32 0.0, %v1848
    %v1850 = vpop.f32.mrf.mxu0
    %v1851 = vadd.f32 0.0, %v1850
    %1852 = vmatmul.bf16.gmra.mxu0 %v1737
    %v1853 = vpop.f32.mrf.mxu0
    %v1854 = vadd.f32 0.0, %v1853
    %v1855 = vpop.f32.mrf.mxu0
    %v1856 = vadd.f32 0.0, %v1855
    %1857 = vmatmul.bf16.gmra.mxu0 %v1740
    %v1858 = vpop.f32.mrf.mxu0
    %v1859 = vadd.f32 0.0, %v1858
    %v1860 = vpop.f32.mrf.mxu0
    %v1861 = vadd.f32 0.0, %v1860
    %1862 = vmatmul.bf16.gmra.mxu0 %v1743
    %v1863 = vpop.f32.mrf.mxu0
    %v1864 = vadd.f32 0.0, %v1863
    %v1865 = vpop.f32.mrf.mxu0
    %v1866 = vadd.f32 0.0, %v1865
    %1867 = vmatmul.bf16.gmra.mxu0 %v1746
    %v1868 = vpop.f32.mrf.mxu0
    %v1869 = vadd.f32 0.0, %v1868
    %v1870 = vpop.f32.mrf.mxu0
    %v1871 = vadd.f32 0.0, %v1870
    %1872 = vmatmul.bf16.gmra.mxu0 %v1749
    %v1873 = vpop.f32.mrf.mxu0
    %v1874 = vadd.f32 0.0, %v1873
    %v1875 = vpop.f32.mrf.mxu0
    %v1876 = vadd.f32 0.0, %v1875
    %1877 = vmatmul.bf16.gmra.mxu0 %v1752
    %v1878 = vpop.f32.mrf.mxu0
    %v1879 = vadd.f32 0.0, %v1878
    %v1880 = vpop.f32.mrf.mxu0
    %v1881 = vadd.f32 0.0, %v1880
    %1882 = vmatmul.bf16.gmra.mxu0 %v1755
    %v1883 = vpop.f32.mrf.mxu0
    %v1884 = vadd.f32 0.0, %v1883
    %v1885 = vpop.f32.mrf.mxu0
    %v1886 = vadd.f32 0.0, %v1885
    %1887 = vmatmul.bf16.gmra.mxu0 %v1758
    %v1888 = vpop.f32.mrf.mxu0
    %v1889 = vadd.f32 0.0, %v1888
    %v1890 = vpop.f32.mrf.mxu0
    %v1891 = vadd.f32 0.0, %v1890
    %1892 = vmatmul.bf16.gmra.mxu0 %v1761
    %v1893 = vpop.f32.mrf.mxu0
    %v1894 = vadd.f32 0.0, %v1893
    %v1895 = vpop.f32.mrf.mxu0
    %v1896 = vadd.f32 0.0, %v1895
    %1897 = vmatmul.bf16.gmra.mxu0 %v1764
    %v1898 = vpop.f32.mrf.mxu0
    %v1899 = vadd.f32 0.0, %v1898
    %v1900 = vpop.f32.mrf.mxu0
    %v1901 = vadd.f32 0.0, %v1900
    %1902 = vmatmul.bf16.gmra.mxu0 %v1767
    %v1903 = vpop.f32.mrf.mxu0
    %v1904 = vadd.f32 0.0, %v1903
    %v1905 = vpop.f32.mrf.mxu0
    %v1906 = vadd.f32 0.0, %v1905
    %1907 = vmatmul.bf16.gmra.mxu0 %v1770
    %v1908 = vpop.f32.mrf.mxu0
    %v1909 = vadd.f32 0.0, %v1908
    %v1910 = vpop.f32.mrf.mxu0
    %v1911 = vadd.f32 0.0, %v1910
    %1912 = vmatmul.bf16.gmra.mxu0 %v1773
    %v1913 = vpop.f32.mrf.mxu0
    %v1914 = vadd.f32 0.0, %v1913
    %v1915 = vpop.f32.mrf.mxu0
    %v1916 = vadd.f32 0.0, %v1915
    %1917 = vmatmul.bf16.gmra.mxu0 %v1776
    %v1918 = vpop.f32.mrf.mxu0
    %v1919 = vadd.f32 0.0, %v1918
    %v1920 = vpop.f32.mrf.mxu0
    %v1921 = vadd.f32 0.0, %v1920
    %1922 = vmatmul.bf16.gmra.mxu0 %v1779
    %v1923 = vpop.f32.mrf.mxu0
    %v1924 = vadd.f32 0.0, %v1923
    %v1925 = vpop.f32.mrf.mxu0
    %v1926 = vadd.f32 0.0, %v1925
    %1927 = vmatmul.bf16.gmra.mxu0 %v1782
    %v1928 = vpop.f32.mrf.mxu0
    %v1929 = vadd.f32 0.0, %v1928
    %v1930 = vpop.f32.mrf.mxu0
    %v1931 = vadd.f32 0.0, %v1930
    %1932 = vmatmul.bf16.gmra.mxu0 %v1785
    %v1933 = vpop.f32.mrf.mxu0
    %v1934 = vadd.f32 0.0, %v1933
    %v1935 = vpop.f32.mrf.mxu0
    %v1936 = vadd.f32 0.0, %v1935
    %1937 = vmatmul.bf16.gmra.mxu0 %v1788
    %v1938 = vpop.f32.mrf.mxu0
    %v1939 = vadd.f32 0.0, %v1938
    %v1940 = vpop.f32.mrf.mxu0
    %v1941 = vadd.f32 0.0, %v1940
    %1942 = vmatmul.bf16.gmra.mxu0 %v1791
    %v1943 = vpop.f32.mrf.mxu0
    %v1944 = vadd.f32 0.0, %v1943
    %v1945 = vpop.f32.mrf.mxu0
    %v1946 = vadd.f32 0.0, %v1945
    %1947 = vmatmul.bf16.gmra.mxu0 %v1794
    %v1948 = vpop.f32.mrf.mxu0
    %v1949 = vadd.f32 0.0, %v1948
    %v1950 = vpop.f32.mrf.mxu0
    %v1951 = vadd.f32 0.0, %v1950
    %1952 = vmatmul.bf16.gmra.mxu0 %v1797
    %v1953 = vpop.f32.mrf.mxu0
    %v1954 = vadd.f32 0.0, %v1953
    %v1955 = vpop.f32.mrf.mxu0
    %v1956 = vadd.f32 0.0, %v1955
    %1957 = vmatmul.bf16.gmra.mxu0 %v1800
    %v1958 = vpop.f32.mrf.mxu0
    %v1959 = vadd.f32 0.0, %v1958
    %v1960 = vpop.f32.mrf.mxu0
    %v1961 = vadd.f32 0.0, %v1960
    %1962 = vmatmul.bf16.gmra.mxu0 %v1803
    %v1963 = vpop.f32.mrf.mxu0
    %v1964 = vadd.f32 0.0, %v1963
    %v1965 = vpop.f32.mrf.mxu0
    %v1966 = vadd.f32 0.0, %v1965
    %1967 = vmatmul.bf16.gmra.mxu0 %v1806
    %v1968 = vpop.f32.mrf.mxu0
    %v1969 = vadd.f32 0.0, %v1968
    %v1970 = vpop.f32.mrf.mxu0
    %v1971 = vadd.f32 0.0, %v1970
    %1972 = vmatmul.bf16.gmra.mxu0 %v1809
    %v1973 = vpop.f32.mrf.mxu0
    %v1974 = vadd.f32 0.0, %v1973
    %v1975 = vpop.f32.mrf.mxu0
    %v1976 = vadd.f32 0.0, %v1975
    %1977 = vmatmul.bf16.gmra.mxu0 %v1812
    %v1978 = vpop.f32.mrf.mxu0
    %v1979 = vadd.f32 0.0, %v1978
    %v1980 = vpop.f32.mrf.mxu0
    %v1981 = vadd.f32 0.0, %v1980
    %1982 = vmatmul.bf16.gmra.mxu0 %v1815
    %v1983 = vpop.f32.mrf.mxu0
    %v1984 = vadd.f32 0.0, %v1983
    %v1985 = vpop.f32.mrf.mxu0
    %v1986 = vadd.f32 0.0, %v1985
    %1987 = vmatmul.bf16.gmra.mxu0 %v1818
    %v1988 = vpop.f32.mrf.mxu0
    %v1989 = vadd.f32 0.0, %v1988
    %v1990 = vpop.f32.mrf.mxu0
    %v1991 = vadd.f32 0.0, %v1990
    %1992 = vdwg.mxu0
    %v1997 = vunpack.c.l.b16 %v1718
    %v1998 = vunpack.c.l.b16 %v1719
    %v1999 = vunpack.c.l.b16 %v1720
    %v2000 = vunpack.c.l.b16 %v1721
    %v2001 = vpack.c.b16 %v1998, %v1997
    %v2002 = vpack.c.b16 %v2000, %v1999
    %vm2005 = vcmask 261120
    %v2007 = vsel %vm2005, %v1654, 0
    %v2010 = vsel %vm2005, %v1655, 0
    %v2013 = vsel %vm2005, %v1656, 0
    %v2016 = vsel %vm2005, %v1657, 0
    %v2019 = vsel %vm2005, %v1658, 0
    %v2022 = vsel %vm2005, %v1659, 0
    %v2025 = vsel %vm2005, %v1660, 0
    %v2028 = vsel %vm2005, %v1661, 0
    %v2031 = vsel %vm2005, %v1662, 0
    %v2034 = vsel %vm2005, %v1663, 0
    %v2037 = vsel %vm2005, %v1664, 0
    %v2040 = vsel %vm2005, %v1665, 0
    %v2043 = vsel %vm2005, %v1666, 0
    %v2046 = vsel %vm2005, %v1667, 0
    %v2049 = vsel %vm2005, %v1668, 0
    %v2052 = vsel %vm2005, %v1669, 0
    %v2055 = vsel %vm2005, %v1670, 0
    %v2058 = vsel %vm2005, %v1671, 0
    %v2061 = vsel %vm2005, %v1672, 0
    %v2064 = vsel %vm2005, %v1673, 0
    %v2067 = vsel %vm2005, %v1674, 0
    %v2070 = vsel %vm2005, %v1675, 0
    %v2073 = vsel %vm2005, %v1676, 0
    %v2076 = vsel %vm2005, %v1677, 0
    %v2079 = vsel %vm2005, %v1678, 0
    %v2082 = vsel %vm2005, %v1679, 0
    %v2085 = vsel %vm2005, %v1680, 0
    %v2088 = vsel %vm2005, %v1681, 0
    %v2091 = vsel %vm2005, %v1682, 0
    %v2094 = vsel %vm2005, %v1683, 0
    %v2097 = vsel %vm2005, %v1684, 0
    %v2100 = vsel %vm2005, %v1685, 0
    %2102 = vmatpush.bf16.msra.mxu0 0
    %2103 = vmatpush.bf16.msra.mxu0 0
    %2104 = vmatpush.bf16.msra.mxu0 0
    %2105 = vmatpush.bf16.msra.mxu0 0
    %2106 = vmatpush.bf16.msra.mxu0 0
    %2107 = vmatpush.bf16.msra.mxu0 0
    %2108 = vmatpush.bf16.msra.mxu0 %v2002
    %2109 = vmatpush.bf16.msra.mxu0 %v2001
    %2110 = vmatmul.bf16.gmra.mxu0 %v2007
    %v2111 = vpop.f32.mrf.mxu0
    %v2112 = vadd.f32 %v1834, %v2111
    %v2113 = vpop.f32.mrf.mxu0
    %v2114 = vadd.f32 %v1836, %v2113
    %2115 = vmatmul.bf16.gmra.mxu0 %v2010
    %v2116 = vpop.f32.mrf.mxu0
    %v2117 = vadd.f32 %v1839, %v2116
    %v2118 = vpop.f32.mrf.mxu0
    %v2119 = vadd.f32 %v1841, %v2118
    %2120 = vmatmul.bf16.gmra.mxu0 %v2013
    %v2121 = vpop.f32.mrf.mxu0
    %v2122 = vadd.f32 %v1844, %v2121
    %v2123 = vpop.f32.mrf.mxu0
    %v2124 = vadd.f32 %v1846, %v2123
    %2125 = vmatmul.bf16.gmra.mxu0 %v2016
    %v2126 = vpop.f32.mrf.mxu0
    %v2127 = vadd.f32 %v1849, %v2126
    %v2128 = vpop.f32.mrf.mxu0
    %v2129 = vadd.f32 %v1851, %v2128
    %2130 = vmatmul.bf16.gmra.mxu0 %v2019
    %v2131 = vpop.f32.mrf.mxu0
    %v2132 = vadd.f32 %v1854, %v2131
    %v2133 = vpop.f32.mrf.mxu0
    %v2134 = vadd.f32 %v1856, %v2133
    %2135 = vmatmul.bf16.gmra.mxu0 %v2022
    %v2136 = vpop.f32.mrf.mxu0
    %v2137 = vadd.f32 %v1859, %v2136
    %v2138 = vpop.f32.mrf.mxu0
    %v2139 = vadd.f32 %v1861, %v2138
    %2140 = vmatmul.bf16.gmra.mxu0 %v2025
    %v2141 = vpop.f32.mrf.mxu0
    %v2142 = vadd.f32 %v1864, %v2141
    %v2143 = vpop.f32.mrf.mxu0
    %v2144 = vadd.f32 %v1866, %v2143
    %2145 = vmatmul.bf16.gmra.mxu0 %v2028
    %v2146 = vpop.f32.mrf.mxu0
    %v2147 = vadd.f32 %v1869, %v2146
    %v2148 = vpop.f32.mrf.mxu0
    %v2149 = vadd.f32 %v1871, %v2148
    %2150 = vmatmul.bf16.gmra.mxu0 %v2031
    %v2151 = vpop.f32.mrf.mxu0
    %v2152 = vadd.f32 %v1874, %v2151
    %v2153 = vpop.f32.mrf.mxu0
    %v2154 = vadd.f32 %v1876, %v2153
    %2155 = vmatmul.bf16.gmra.mxu0 %v2034
    %v2156 = vpop.f32.mrf.mxu0
    %v2157 = vadd.f32 %v1879, %v2156
    %v2158 = vpop.f32.mrf.mxu0
    %v2159 = vadd.f32 %v1881, %v2158
    %2160 = vmatmul.bf16.gmra.mxu0 %v2037
    %v2161 = vpop.f32.mrf.mxu0
    %v2162 = vadd.f32 %v1884, %v2161
    %v2163 = vpop.f32.mrf.mxu0
    %v2164 = vadd.f32 %v1886, %v2163
    %2165 = vmatmul.bf16.gmra.mxu0 %v2040
    %v2166 = vpop.f32.mrf.mxu0
    %v2167 = vadd.f32 %v1889, %v2166
    %v2168 = vpop.f32.mrf.mxu0
    %v2169 = vadd.f32 %v1891, %v2168
    %2170 = vmatmul.bf16.gmra.mxu0 %v2043
    %v2171 = vpop.f32.mrf.mxu0
    %v2172 = vadd.f32 %v1894, %v2171
    %v2173 = vpop.f32.mrf.mxu0
    %v2174 = vadd.f32 %v1896, %v2173
    %2175 = vmatmul.bf16.gmra.mxu0 %v2046
    %v2176 = vpop.f32.mrf.mxu0
    %v2177 = vadd.f32 %v1899, %v2176
    %v2178 = vpop.f32.mrf.mxu0
    %v2179 = vadd.f32 %v1901, %v2178
    %2180 = vmatmul.bf16.gmra.mxu0 %v2049
    %v2181 = vpop.f32.mrf.mxu0
    %v2182 = vadd.f32 %v1904, %v2181
    %v2183 = vpop.f32.mrf.mxu0
    %v2184 = vadd.f32 %v1906, %v2183
    %2185 = vmatmul.bf16.gmra.mxu0 %v2052
    %v2186 = vpop.f32.mrf.mxu0
    %v2187 = vadd.f32 %v1909, %v2186
    %v2188 = vpop.f32.mrf.mxu0
    %v2189 = vadd.f32 %v1911, %v2188
    %2190 = vmatmul.bf16.gmra.mxu0 %v2055
    %v2191 = vpop.f32.mrf.mxu0
    %v2192 = vadd.f32 %v1914, %v2191
    %v2193 = vpop.f32.mrf.mxu0
    %v2194 = vadd.f32 %v1916, %v2193
    %2195 = vmatmul.bf16.gmra.mxu0 %v2058
    %v2196 = vpop.f32.mrf.mxu0
    %v2197 = vadd.f32 %v1919, %v2196
    %v2198 = vpop.f32.mrf.mxu0
    %v2199 = vadd.f32 %v1921, %v2198
    %2200 = vmatmul.bf16.gmra.mxu0 %v2061
    %v2201 = vpop.f32.mrf.mxu0
    %v2202 = vadd.f32 %v1924, %v2201
    %v2203 = vpop.f32.mrf.mxu0
    %v2204 = vadd.f32 %v1926, %v2203
    %2205 = vmatmul.bf16.gmra.mxu0 %v2064
    %v2206 = vpop.f32.mrf.mxu0
    %v2207 = vadd.f32 %v1929, %v2206
    %v2208 = vpop.f32.mrf.mxu0
    %v2209 = vadd.f32 %v1931, %v2208
    %2210 = vmatmul.bf16.gmra.mxu0 %v2067
    %v2211 = vpop.f32.mrf.mxu0
    %v2212 = vadd.f32 %v1934, %v2211
    %v2213 = vpop.f32.mrf.mxu0
    %v2214 = vadd.f32 %v1936, %v2213
    %2215 = vmatmul.bf16.gmra.mxu0 %v2070
    %v2216 = vpop.f32.mrf.mxu0
    %v2217 = vadd.f32 %v1939, %v2216
    %v2218 = vpop.f32.mrf.mxu0
    %v2219 = vadd.f32 %v1941, %v2218
    %2220 = vmatmul.bf16.gmra.mxu0 %v2073
    %v2221 = vpop.f32.mrf.mxu0
    %v2222 = vadd.f32 %v1944, %v2221
    %v2223 = vpop.f32.mrf.mxu0
    %v2224 = vadd.f32 %v1946, %v2223
    %2225 = vmatmul.bf16.gmra.mxu0 %v2076
    %v2226 = vpop.f32.mrf.mxu0
    %v2227 = vadd.f32 %v1949, %v2226
    %v2228 = vpop.f32.mrf.mxu0
    %v2229 = vadd.f32 %v1951, %v2228
    %2230 = vmatmul.bf16.gmra.mxu0 %v2079
    %v2231 = vpop.f32.mrf.mxu0
    %v2232 = vadd.f32 %v1954, %v2231
    %v2233 = vpop.f32.mrf.mxu0
    %v2234 = vadd.f32 %v1956, %v2233
    %2235 = vmatmul.bf16.gmra.mxu0 %v2082
    %v2236 = vpop.f32.mrf.mxu0
    %v2237 = vadd.f32 %v1959, %v2236
    %v2238 = vpop.f32.mrf.mxu0
    %v2239 = vadd.f32 %v1961, %v2238
    %2240 = vmatmul.bf16.gmra.mxu0 %v2085
    %v2241 = vpop.f32.mrf.mxu0
    %v2242 = vadd.f32 %v1964, %v2241
    %v2243 = vpop.f32.mrf.mxu0
    %v2244 = vadd.f32 %v1966, %v2243
    %2245 = vmatmul.bf16.gmra.mxu0 %v2088
    %v2246 = vpop.f32.mrf.mxu0
    %v2247 = vadd.f32 %v1969, %v2246
    %v2248 = vpop.f32.mrf.mxu0
    %v2249 = vadd.f32 %v1971, %v2248
    %2250 = vmatmul.bf16.gmra.mxu0 %v2091
    %v2251 = vpop.f32.mrf.mxu0
    %v2252 = vadd.f32 %v1974, %v2251
    %v2253 = vpop.f32.mrf.mxu0
    %v2254 = vadd.f32 %v1976, %v2253
    %2255 = vmatmul.bf16.gmra.mxu0 %v2094
    %v2256 = vpop.f32.mrf.mxu0
    %v2257 = vadd.f32 %v1979, %v2256
    %v2258 = vpop.f32.mrf.mxu0
    %v2259 = vadd.f32 %v1981, %v2258
    %2260 = vmatmul.bf16.gmra.mxu0 %v2097
    %v2261 = vpop.f32.mrf.mxu0
    %v2262 = vadd.f32 %v1984, %v2261
    %v2263 = vpop.f32.mrf.mxu0
    %v2264 = vadd.f32 %v1986, %v2263
    %2265 = vmatmul.bf16.gmra.mxu0 %v2100
    %v2266 = vpop.f32.mrf.mxu0
    %v2267 = vadd.f32 %v1989, %v2266
    %v2268 = vpop.f32.mrf.mxu0
    %v2269 = vadd.f32 %v1991, %v2268
    %2270 = vdwg.mxu0
    %v2271 = vld [vmem:[%s7] sm:$0x1]
    %v2273 = vperm.slane %v2271, 0
    %v2275 = vadd.f32 %v2112, %v2273
    %v2276 = vadd.f32 %v2114, %v2273
    %v2277 = vadd.f32 %v2117, %v2273
    %v2278 = vadd.f32 %v2119, %v2273
    %v2279 = vadd.f32 %v2122, %v2273
    %v2280 = vadd.f32 %v2124, %v2273
    %v2281 = vadd.f32 %v2127, %v2273
    %v2282 = vadd.f32 %v2129, %v2273
    %v2283 = vadd.f32 %v2132, %v2273
    %v2284 = vadd.f32 %v2134, %v2273
    %v2285 = vadd.f32 %v2137, %v2273
    %v2286 = vadd.f32 %v2139, %v2273
    %v2287 = vadd.f32 %v2142, %v2273
    %v2288 = vadd.f32 %v2144, %v2273
    %v2289 = vadd.f32 %v2147, %v2273
    %v2290 = vadd.f32 %v2149, %v2273
    %v2291 = vadd.f32 %v2152, %v2273
    %v2292 = vadd.f32 %v2154, %v2273
    %v2293 = vadd.f32 %v2157, %v2273
    %v2294 = vadd.f32 %v2159, %v2273
    %v2295 = vadd.f32 %v2162, %v2273
    %v2296 = vadd.f32 %v2164, %v2273
    %v2297 = vadd.f32 %v2167, %v2273
    %v2298 = vadd.f32 %v2169, %v2273
    %v2299 = vadd.f32 %v2172, %v2273
    %v2300 = vadd.f32 %v2174, %v2273
    %v2301 = vadd.f32 %v2177, %v2273
    %v2302 = vadd.f32 %v2179, %v2273
    %v2303 = vadd.f32 %v2182, %v2273
    %v2304 = vadd.f32 %v2184, %v2273
    %v2305 = vadd.f32 %v2187, %v2273
    %v2306 = vadd.f32 %v2189, %v2273
    %v2307 = vadd.f32 %v2192, %v2273
    %v2308 = vadd.f32 %v2194, %v2273
    %v2309 = vadd.f32 %v2197, %v2273
    %v2310 = vadd.f32 %v2199, %v2273
    %v2311 = vadd.f32 %v2202, %v2273
    %v2312 = vadd.f32 %v2204, %v2273
    %v2313 = vadd.f32 %v2207, %v2273
    %v2314 = vadd.f32 %v2209, %v2273
    %v2315 = vadd.f32 %v2212, %v2273
    %v2316 = vadd.f32 %v2214, %v2273
    %v2317 = vadd.f32 %v2217, %v2273
    %v2318 = vadd.f32 %v2219, %v2273
    %v2319 = vadd.f32 %v2222, %v2273
    %v2320 = vadd.f32 %v2224, %v2273
    %v2321 = vadd.f32 %v2227, %v2273
    %v2322 = vadd.f32 %v2229, %v2273
    %v2323 = vadd.f32 %v2232, %v2273
    %v2324 = vadd.f32 %v2234, %v2273
    %v2325 = vadd.f32 %v2237, %v2273
    %v2326 = vadd.f32 %v2239, %v2273
    %v2327 = vadd.f32 %v2242, %v2273
    %v2328 = vadd.f32 %v2244, %v2273
    %v2329 = vadd.f32 %v2247, %v2273
    %v2330 = vadd.f32 %v2249, %v2273
    %v2331 = vadd.f32 %v2252, %v2273
    %v2332 = vadd.f32 %v2254, %v2273
    %v2333 = vadd.f32 %v2257, %v2273
    %v2334 = vadd.f32 %v2259, %v2273
    %v2335 = vadd.f32 %v2262, %v2273
    %v2336 = vadd.f32 %v2264, %v2273
    %v2337 = vadd.f32 %v2267, %v2273
    %v2338 = vadd.f32 %v2269, %v2273
    %v2339 = vld [vmem:[%s8] sm:$0xff]
    %v2340 = vld [vmem:[%s8 + $0x8] sm:$0xff]
    %v2341 = vld [vmem:[%s8 + $0x10] sm:$0xff]
    %v2342 = vld [vmem:[%s8 + $0x18] sm:$0xff]
    %v2343 = vld [vmem:[%s8 + $0x20] sm:$0xff]
    %v2344 = vld [vmem:[%s8 + $0x28] sm:$0xff]
    %v2345 = vld [vmem:[%s8 + $0x30] sm:$0xff]
    %v2346 = vld [vmem:[%s8 + $0x38] sm:$0xff]
    %v2347 = vld [vmem:[%s8 + $0x40] sm:$0xff]
    %v2348 = vld [vmem:[%s8 + $0x48] sm:$0xff]
    %v2349 = vld [vmem:[%s8 + $0x50] sm:$0xff]
    %v2350 = vld [vmem:[%s8 + $0x58] sm:$0xff]
    %v2351 = vld [vmem:[%s8 + $0x60] sm:$0xff]
    %v2352 = vld [vmem:[%s8 + $0x68] sm:$0xff]
    %v2353 = vld [vmem:[%s8 + $0x70] sm:$0xff]
    %v2354 = vld [vmem:[%s8 + $0x78] sm:$0xff]
    %v2355 = vld [vmem:[%s8 + $0x80] sm:$0xff]
    %v2356 = vld [vmem:[%s8 + $0x88] sm:$0xff]
    %v2357 = vrot.slane %v2275, 7
    %v2358 = vrot.slane %v2277, 7
    %v2359 = vrot.slane %v2279, 7
    %v2360 = vrot.slane %v2281, 7
    %v2361 = vrot.slane %v2283, 7
    %v2362 = vrot.slane %v2285, 7
    %v2363 = vrot.slane %v2287, 7
    %v2364 = vrot.slane %v2289, 7
    %v2365 = vrot.slane %v2291, 7
    %v2366 = vrot.slane %v2293, 7
    %v2367 = vrot.slane %v2295, 7
    %v2368 = vrot.slane %v2297, 7
    %v2369 = vrot.slane %v2299, 7
    %v2370 = vrot.slane %v2301, 7
    %v2371 = vrot.slane %v2303, 7
    %v2372 = vrot.slane %v2305, 7
    %v2373 = vrot.slane %v2307, 7
    %v2374 = vrot.slane %v2309, 7
    %v2375 = vrot.slane %v2311, 7
    %v2376 = vrot.slane %v2313, 7
    %v2377 = vrot.slane %v2315, 7
    %v2378 = vrot.slane %v2317, 7
    %v2379 = vrot.slane %v2319, 7
    %v2380 = vrot.slane %v2321, 7
    %v2381 = vrot.slane %v2323, 7
    %v2382 = vrot.slane %v2325, 7
    %v2383 = vrot.slane %v2327, 7
    %v2384 = vrot.slane %v2329, 7
    %v2385 = vrot.slane %v2331, 7
    %v2386 = vrot.slane %v2333, 7
    %v2387 = vrot.slane %v2335, 7
    %v2388 = vrot.slane %v2337, 7
    %v2389 = vrot.slane %v2276, 7
    %v2390 = vrot.slane %v2278, 7
    %v2391 = vrot.slane %v2280, 7
    %v2392 = vrot.slane %v2282, 7
    %v2393 = vrot.slane %v2284, 7
    %v2394 = vrot.slane %v2286, 7
    %v2395 = vrot.slane %v2288, 7
    %v2396 = vrot.slane %v2290, 7
    %v2397 = vrot.slane %v2292, 7
    %v2398 = vrot.slane %v2294, 7
    %v2399 = vrot.slane %v2296, 7
    %v2400 = vrot.slane %v2298, 7
    %v2401 = vrot.slane %v2300, 7
    %v2402 = vrot.slane %v2302, 7
    %v2403 = vrot.slane %v2304, 7
    %v2404 = vrot.slane %v2306, 7
    %v2405 = vrot.slane %v2308, 7
    %v2406 = vrot.slane %v2310, 7
    %v2407 = vrot.slane %v2312, 7
    %v2408 = vrot.slane %v2314, 7
    %v2409 = vrot.slane %v2316, 7
    %v2410 = vrot.slane %v2318, 7
    %v2411 = vrot.slane %v2320, 7
    %v2412 = vrot.slane %v2322, 7
    %v2413 = vrot.slane %v2324, 7
    %v2414 = vrot.slane %v2326, 7
    %v2415 = vrot.slane %v2328, 7
    %v2416 = vrot.slane %v2330, 7
    %v2417 = vrot.slane %v2332, 7
    %v2418 = vrot.slane %v2334, 7
    %v2419 = vrot.slane %v2336, 7
    %v2420 = vrot.slane %v2338, 7
    %v2421 = vsel %vm345, %v2357, %v2389
    %v2422 = vsel %vm345, %v2358, %v2390
    %v2423 = vsel %vm345, %v2359, %v2391
    %v2424 = vsel %vm345, %v2360, %v2392
    %v2425 = vsel %vm345, %v2361, %v2393
    %v2426 = vsel %vm345, %v2362, %v2394
    %v2427 = vsel %vm345, %v2363, %v2395
    %v2428 = vsel %vm345, %v2364, %v2396
    %v2429 = vsel %vm345, %v2365, %v2397
    %v2430 = vsel %vm345, %v2366, %v2398
    %v2431 = vsel %vm345, %v2367, %v2399
    %v2432 = vsel %vm345, %v2368, %v2400
    %v2433 = vsel %vm345, %v2369, %v2401
    %v2434 = vsel %vm345, %v2370, %v2402
    %v2435 = vsel %vm345, %v2371, %v2403
    %v2436 = vsel %vm345, %v2372, %v2404
    %v2437 = vsel %vm345, %v2373, %v2405
    %v2438 = vsel %vm345, %v2374, %v2406
    %v2439 = vsel %vm345, %v2375, %v2407
    %v2440 = vsel %vm345, %v2376, %v2408
    %v2441 = vsel %vm345, %v2377, %v2409
    %v2442 = vsel %vm345, %v2378, %v2410
    %v2443 = vsel %vm345, %v2379, %v2411
    %v2444 = vsel %vm345, %v2380, %v2412
    %v2445 = vsel %vm345, %v2381, %v2413
    %v2446 = vsel %vm345, %v2382, %v2414
    %v2447 = vsel %vm345, %v2383, %v2415
    %v2448 = vsel %vm345, %v2384, %v2416
    %v2449 = vsel %vm345, %v2385, %v2417
    %v2450 = vsel %vm345, %v2386, %v2418
    %v2451 = vsel %vm345, %v2387, %v2419
    %v2452 = vsel %vm345, %v2388, %v2420
    %v2453 = vsel %vm345, %v2389, %v2357
    %v2454 = vsel %vm345, %v2390, %v2358
    %v2455 = vsel %vm345, %v2391, %v2359
    %v2456 = vsel %vm345, %v2392, %v2360
    %v2457 = vsel %vm345, %v2393, %v2361
    %v2458 = vsel %vm345, %v2394, %v2362
    %v2459 = vsel %vm345, %v2395, %v2363
    %v2460 = vsel %vm345, %v2396, %v2364
    %v2461 = vsel %vm345, %v2397, %v2365
    %v2462 = vsel %vm345, %v2398, %v2366
    %v2463 = vsel %vm345, %v2399, %v2367
    %v2464 = vsel %vm345, %v2400, %v2368
    %v2465 = vsel %vm345, %v2401, %v2369
    %v2466 = vsel %vm345, %v2402, %v2370
    %v2467 = vsel %vm345, %v2403, %v2371
    %v2468 = vsel %vm345, %v2404, %v2372
    %v2469 = vsel %vm345, %v2405, %v2373
    %v2470 = vsel %vm345, %v2406, %v2374
    %v2471 = vsel %vm345, %v2407, %v2375
    %v2472 = vsel %vm345, %v2408, %v2376
    %v2473 = vsel %vm345, %v2409, %v2377
    %v2474 = vsel %vm345, %v2410, %v2378
    %v2475 = vsel %vm345, %v2411, %v2379
    %v2476 = vsel %vm345, %v2412, %v2380
    %v2477 = vsel %vm345, %v2413, %v2381
    %v2478 = vsel %vm345, %v2414, %v2382
    %v2479 = vsel %vm345, %v2415, %v2383
    %v2480 = vsel %vm345, %v2416, %v2384
    %v2481 = vsel %vm345, %v2417, %v2385
    %v2482 = vsel %vm345, %v2418, %v2386
    %v2483 = vsel %vm345, %v2419, %v2387
    %v2484 = vsel %vm345, %v2420, %v2388
    %v2485 = vrot.slane %v2275, 1
    %v2486 = vrot.slane %v2277, 1
    %v2487 = vrot.slane %v2279, 1
    %v2488 = vrot.slane %v2281, 1
    %v2489 = vrot.slane %v2283, 1
    %v2490 = vrot.slane %v2285, 1
    %v2491 = vrot.slane %v2287, 1
    %v2492 = vrot.slane %v2289, 1
    %v2493 = vrot.slane %v2291, 1
    %v2494 = vrot.slane %v2293, 1
    %v2495 = vrot.slane %v2295, 1
    %v2496 = vrot.slane %v2297, 1
    %v2497 = vrot.slane %v2299, 1
    %v2498 = vrot.slane %v2301, 1
    %v2499 = vrot.slane %v2303, 1
    %v2500 = vrot.slane %v2305, 1
    %v2501 = vrot.slane %v2307, 1
    %v2502 = vrot.slane %v2309, 1
    %v2503 = vrot.slane %v2311, 1
    %v2504 = vrot.slane %v2313, 1
    %v2505 = vrot.slane %v2315, 1
    %v2506 = vrot.slane %v2317, 1
    %v2507 = vrot.slane %v2319, 1
    %v2508 = vrot.slane %v2321, 1
    %v2509 = vrot.slane %v2323, 1
    %v2510 = vrot.slane %v2325, 1
    %v2511 = vrot.slane %v2327, 1
    %v2512 = vrot.slane %v2329, 1
    %v2513 = vrot.slane %v2331, 1
    %v2514 = vrot.slane %v2333, 1
    %v2515 = vrot.slane %v2335, 1
    %v2516 = vrot.slane %v2337, 1
    %v2517 = vrot.slane %v2276, 1
    %v2518 = vrot.slane %v2278, 1
    %v2519 = vrot.slane %v2280, 1
    %v2520 = vrot.slane %v2282, 1
    %v2521 = vrot.slane %v2284, 1
    %v2522 = vrot.slane %v2286, 1
    %v2523 = vrot.slane %v2288, 1
    %v2524 = vrot.slane %v2290, 1
    %v2525 = vrot.slane %v2292, 1
    %v2526 = vrot.slane %v2294, 1
    %v2527 = vrot.slane %v2296, 1
    %v2528 = vrot.slane %v2298, 1
    %v2529 = vrot.slane %v2300, 1
    %v2530 = vrot.slane %v2302, 1
    %v2531 = vrot.slane %v2304, 1
    %v2532 = vrot.slane %v2306, 1
    %v2533 = vrot.slane %v2308, 1
    %v2534 = vrot.slane %v2310, 1
    %v2535 = vrot.slane %v2312, 1
    %v2536 = vrot.slane %v2314, 1
    %v2537 = vrot.slane %v2316, 1
    %v2538 = vrot.slane %v2318, 1
    %v2539 = vrot.slane %v2320, 1
    %v2540 = vrot.slane %v2322, 1
    %v2541 = vrot.slane %v2324, 1
    %v2542 = vrot.slane %v2326, 1
    %v2543 = vrot.slane %v2328, 1
    %v2544 = vrot.slane %v2330, 1
    %v2545 = vrot.slane %v2332, 1
    %v2546 = vrot.slane %v2334, 1
    %v2547 = vrot.slane %v2336, 1
    %v2548 = vrot.slane %v2338, 1
    %v2549 = vsel %vm474, %v2485, %v2517
    %v2550 = vsel %vm474, %v2486, %v2518
    %v2551 = vsel %vm474, %v2487, %v2519
    %v2552 = vsel %vm474, %v2488, %v2520
    %v2553 = vsel %vm474, %v2489, %v2521
    %v2554 = vsel %vm474, %v2490, %v2522
    %v2555 = vsel %vm474, %v2491, %v2523
    %v2556 = vsel %vm474, %v2492, %v2524
    %v2557 = vsel %vm474, %v2493, %v2525
    %v2558 = vsel %vm474, %v2494, %v2526
    %v2559 = vsel %vm474, %v2495, %v2527
    %v2560 = vsel %vm474, %v2496, %v2528
    %v2561 = vsel %vm474, %v2497, %v2529
    %v2562 = vsel %vm474, %v2498, %v2530
    %v2563 = vsel %vm474, %v2499, %v2531
    %v2564 = vsel %vm474, %v2500, %v2532
    %v2565 = vsel %vm474, %v2501, %v2533
    %v2566 = vsel %vm474, %v2502, %v2534
    %v2567 = vsel %vm474, %v2503, %v2535
    %v2568 = vsel %vm474, %v2504, %v2536
    %v2569 = vsel %vm474, %v2505, %v2537
    %v2570 = vsel %vm474, %v2506, %v2538
    %v2571 = vsel %vm474, %v2507, %v2539
    %v2572 = vsel %vm474, %v2508, %v2540
    %v2573 = vsel %vm474, %v2509, %v2541
    %v2574 = vsel %vm474, %v2510, %v2542
    %v2575 = vsel %vm474, %v2511, %v2543
    %v2576 = vsel %vm474, %v2512, %v2544
    %v2577 = vsel %vm474, %v2513, %v2545
    %v2578 = vsel %vm474, %v2514, %v2546
    %v2579 = vsel %vm474, %v2515, %v2547
    %v2580 = vsel %vm474, %v2516, %v2548
    %v2581 = vsel %vm474, %v2517, %v2485
    %v2582 = vsel %vm474, %v2518, %v2486
    %v2583 = vsel %vm474, %v2519, %v2487
    %v2584 = vsel %vm474, %v2520, %v2488
    %v2585 = vsel %vm474, %v2521, %v2489
    %v2586 = vsel %vm474, %v2522, %v2490
    %v2587 = vsel %vm474, %v2523, %v2491
    %v2588 = vsel %vm474, %v2524, %v2492
    %v2589 = vsel %vm474, %v2525, %v2493
    %v2590 = vsel %vm474, %v2526, %v2494
    %v2591 = vsel %vm474, %v2527, %v2495
    %v2592 = vsel %vm474, %v2528, %v2496
    %v2593 = vsel %vm474, %v2529, %v2497
    %v2594 = vsel %vm474, %v2530, %v2498
    %v2595 = vsel %vm474, %v2531, %v2499
    %v2596 = vsel %vm474, %v2532, %v2500
    %v2597 = vsel %vm474, %v2533, %v2501
    %v2598 = vsel %vm474, %v2534, %v2502
    %v2599 = vsel %vm474, %v2535, %v2503
    %v2600 = vsel %vm474, %v2536, %v2504
    %v2601 = vsel %vm474, %v2537, %v2505
    %v2602 = vsel %vm474, %v2538, %v2506
    %v2603 = vsel %vm474, %v2539, %v2507
    %v2604 = vsel %vm474, %v2540, %v2508
    %v2605 = vsel %vm474, %v2541, %v2509
    %v2606 = vsel %vm474, %v2542, %v2510
    %v2607 = vsel %vm474, %v2543, %v2511
    %v2608 = vsel %vm474, %v2544, %v2512
    %v2609 = vsel %vm474, %v2545, %v2513
    %v2610 = vsel %vm474, %v2546, %v2514
    %v2611 = vsel %vm474, %v2547, %v2515
    %v2612 = vsel %vm474, %v2548, %v2516
    %v2613 = vmul.f32 %v2453, %v2339
    %v2614 = vmul.f32 %v2421, %v2340
    %v2615 = vmul.f32 %v2454, %v2339
    %v2616 = vmul.f32 %v2422, %v2340
    %v2617 = vmul.f32 %v2455, %v2339
    %v2618 = vmul.f32 %v2423, %v2340
    %v2619 = vmul.f32 %v2456, %v2339
    %v2620 = vmul.f32 %v2424, %v2340
    %v2621 = vmul.f32 %v2457, %v2339
    %v2622 = vmul.f32 %v2425, %v2340
    %v2623 = vmul.f32 %v2458, %v2339
    %v2624 = vmul.f32 %v2426, %v2340
    %v2625 = vmul.f32 %v2459, %v2339
    %v2626 = vmul.f32 %v2427, %v2340
    %v2627 = vmul.f32 %v2460, %v2339
    %v2628 = vmul.f32 %v2428, %v2340
    %v2629 = vmul.f32 %v2461, %v2339
    %v2630 = vmul.f32 %v2429, %v2340
    %v2631 = vmul.f32 %v2462, %v2339
    %v2632 = vmul.f32 %v2430, %v2340
    %v2633 = vmul.f32 %v2463, %v2339
    %v2634 = vmul.f32 %v2431, %v2340
    %v2635 = vmul.f32 %v2464, %v2339
    %v2636 = vmul.f32 %v2432, %v2340
    %v2637 = vmul.f32 %v2465, %v2339
    %v2638 = vmul.f32 %v2433, %v2340
    %v2639 = vmul.f32 %v2466, %v2339
    %v2640 = vmul.f32 %v2434, %v2340
    %v2641 = vmul.f32 %v2467, %v2339
    %v2642 = vmul.f32 %v2435, %v2340
    %v2643 = vmul.f32 %v2469, %v2339
    %v2644 = vmul.f32 %v2437, %v2340
    %v2645 = vmul.f32 %v2470, %v2339
    %v2646 = vmul.f32 %v2438, %v2340
    %v2647 = vmul.f32 %v2471, %v2339
    %v2648 = vmul.f32 %v2439, %v2340
    %v2649 = vmul.f32 %v2472, %v2339
    %v2650 = vmul.f32 %v2440, %v2340
    %v2651 = vmul.f32 %v2473, %v2339
    %v2652 = vmul.f32 %v2441, %v2340
    %v2653 = vmul.f32 %v2474, %v2339
    %v2654 = vmul.f32 %v2442, %v2340
    %v2655 = vmul.f32 %v2475, %v2339
    %v2656 = vmul.f32 %v2443, %v2340
    %v2657 = vmul.f32 %v2476, %v2339
    %v2658 = vmul.f32 %v2444, %v2340
    %v2659 = vmul.f32 %v2477, %v2339
    %v2660 = vmul.f32 %v2445, %v2340
    %v2661 = vmul.f32 %v2478, %v2339
    %v2662 = vmul.f32 %v2446, %v2340
    %v2663 = vmul.f32 %v2479, %v2339
    %v2664 = vmul.f32 %v2447, %v2340
    %v2665 = vmul.f32 %v2480, %v2339
    %v2666 = vmul.f32 %v2448, %v2340
    %v2667 = vmul.f32 %v2481, %v2339
    %v2668 = vmul.f32 %v2449, %v2340
    %v2669 = vmul.f32 %v2482, %v2339
    %v2670 = vmul.f32 %v2450, %v2340
    %v2671 = vmul.f32 %v2483, %v2339
    %v2672 = vmul.f32 %v2451, %v2340
    %v2673 = vmul.f32 %v2275, %v2341
    %v2674 = vmul.f32 %v2276, %v2342
    %v2675 = vmul.f32 %v2277, %v2341
    %v2676 = vmul.f32 %v2278, %v2342
    %v2677 = vmul.f32 %v2279, %v2341
    %v2678 = vmul.f32 %v2280, %v2342
    %v2679 = vmul.f32 %v2281, %v2341
    %v2680 = vmul.f32 %v2282, %v2342
    %v2681 = vmul.f32 %v2283, %v2341
    %v2682 = vmul.f32 %v2284, %v2342
    %v2683 = vmul.f32 %v2285, %v2341
    %v2684 = vmul.f32 %v2286, %v2342
    %v2685 = vmul.f32 %v2287, %v2341
    %v2686 = vmul.f32 %v2288, %v2342
    %v2687 = vmul.f32 %v2289, %v2341
    %v2688 = vmul.f32 %v2290, %v2342
    %v2689 = vmul.f32 %v2291, %v2341
    %v2690 = vmul.f32 %v2292, %v2342
    %v2691 = vmul.f32 %v2293, %v2341
    %v2692 = vmul.f32 %v2294, %v2342
    %v2693 = vmul.f32 %v2295, %v2341
    %v2694 = vmul.f32 %v2296, %v2342
    %v2695 = vmul.f32 %v2297, %v2341
    %v2696 = vmul.f32 %v2298, %v2342
    %v2697 = vmul.f32 %v2299, %v2341
    %v2698 = vmul.f32 %v2300, %v2342
    %v2699 = vmul.f32 %v2301, %v2341
    %v2700 = vmul.f32 %v2302, %v2342
    %v2701 = vmul.f32 %v2303, %v2341
    %v2702 = vmul.f32 %v2304, %v2342
    %v2703 = vmul.f32 %v2307, %v2341
    %v2704 = vmul.f32 %v2308, %v2342
    %v2705 = vmul.f32 %v2309, %v2341
    %v2706 = vmul.f32 %v2310, %v2342
    %v2707 = vmul.f32 %v2311, %v2341
    %v2708 = vmul.f32 %v2312, %v2342
    %v2709 = vmul.f32 %v2313, %v2341
    %v2710 = vmul.f32 %v2314, %v2342
    %v2711 = vmul.f32 %v2315, %v2341
    %v2712 = vmul.f32 %v2316, %v2342
    %v2713 = vmul.f32 %v2317, %v2341
    %v2714 = vmul.f32 %v2318, %v2342
    %v2715 = vmul.f32 %v2319, %v2341
    %v2716 = vmul.f32 %v2320, %v2342
    %v2717 = vmul.f32 %v2321, %v2341
    %v2718 = vmul.f32 %v2322, %v2342
    %v2719 = vmul.f32 %v2323, %v2341
    %v2720 = vmul.f32 %v2324, %v2342
    %v2721 = vmul.f32 %v2325, %v2341
    %v2722 = vmul.f32 %v2326, %v2342
    %v2723 = vmul.f32 %v2327, %v2341
    %v2724 = vmul.f32 %v2328, %v2342
    %v2725 = vmul.f32 %v2329, %v2341
    %v2726 = vmul.f32 %v2330, %v2342
    %v2727 = vmul.f32 %v2331, %v2341
    %v2728 = vmul.f32 %v2332, %v2342
    %v2729 = vmul.f32 %v2333, %v2341
    %v2730 = vmul.f32 %v2334, %v2342
    %v2731 = vmul.f32 %v2335, %v2341
    %v2732 = vmul.f32 %v2336, %v2342
    %v2733 = vadd.f32 %v2613, %v2673
    %v2734 = vadd.f32 %v2614, %v2674
    %v2735 = vadd.f32 %v2615, %v2675
    %v2736 = vadd.f32 %v2616, %v2676
    %v2737 = vadd.f32 %v2617, %v2677
    %v2738 = vadd.f32 %v2618, %v2678
    %v2739 = vadd.f32 %v2619, %v2679
    %v2740 = vadd.f32 %v2620, %v2680
    %v2741 = vadd.f32 %v2621, %v2681
    %v2742 = vadd.f32 %v2622, %v2682
    %v2743 = vadd.f32 %v2623, %v2683
    %v2744 = vadd.f32 %v2624, %v2684
    %v2745 = vadd.f32 %v2625, %v2685
    %v2746 = vadd.f32 %v2626, %v2686
    %v2747 = vadd.f32 %v2627, %v2687
    %v2748 = vadd.f32 %v2628, %v2688
    %v2749 = vadd.f32 %v2629, %v2689
    %v2750 = vadd.f32 %v2630, %v2690
    %v2751 = vadd.f32 %v2631, %v2691
    %v2752 = vadd.f32 %v2632, %v2692
    %v2753 = vadd.f32 %v2633, %v2693
    %v2754 = vadd.f32 %v2634, %v2694
    %v2755 = vadd.f32 %v2635, %v2695
    %v2756 = vadd.f32 %v2636, %v2696
    %v2757 = vadd.f32 %v2637, %v2697
    %v2758 = vadd.f32 %v2638, %v2698
    %v2759 = vadd.f32 %v2639, %v2699
    %v2760 = vadd.f32 %v2640, %v2700
    %v2761 = vadd.f32 %v2641, %v2701
    %v2762 = vadd.f32 %v2642, %v2702
    %v2763 = vadd.f32 %v2643, %v2703
    %v2764 = vadd.f32 %v2644, %v2704
    %v2765 = vadd.f32 %v2645, %v2705
    %v2766 = vadd.f32 %v2646, %v2706
    %v2767 = vadd.f32 %v2647, %v2707
    %v2768 = vadd.f32 %v2648, %v2708
    %v2769 = vadd.f32 %v2649, %v2709
    %v2770 = vadd.f32 %v2650, %v2710
    %v2771 = vadd.f32 %v2651, %v2711
    %v2772 = vadd.f32 %v2652, %v2712
    %v2773 = vadd.f32 %v2653, %v2713
    %v2774 = vadd.f32 %v2654, %v2714
    %v2775 = vadd.f32 %v2655, %v2715
    %v2776 = vadd.f32 %v2656, %v2716
    %v2777 = vadd.f32 %v2657, %v2717
    %v2778 = vadd.f32 %v2658, %v2718
    %v2779 = vadd.f32 %v2659, %v2719
    %v2780 = vadd.f32 %v2660, %v2720
    %v2781 = vadd.f32 %v2661, %v2721
    %v2782 = vadd.f32 %v2662, %v2722
    %v2783 = vadd.f32 %v2663, %v2723
    %v2784 = vadd.f32 %v2664, %v2724
    %v2785 = vadd.f32 %v2665, %v2725
    %v2786 = vadd.f32 %v2666, %v2726
    %v2787 = vadd.f32 %v2667, %v2727
    %v2788 = vadd.f32 %v2668, %v2728
    %v2789 = vadd.f32 %v2669, %v2729
    %v2790 = vadd.f32 %v2670, %v2730
    %v2791 = vadd.f32 %v2671, %v2731
    %v2792 = vadd.f32 %v2672, %v2732
    %v2793 = vmul.f32 %v2549, %v2343
    %v2794 = vmul.f32 %v2581, %v2344
    %v2795 = vmul.f32 %v2550, %v2343
    %v2796 = vmul.f32 %v2582, %v2344
    %v2797 = vmul.f32 %v2551, %v2343
    %v2798 = vmul.f32 %v2583, %v2344
    %v2799 = vmul.f32 %v2552, %v2343
    %v2800 = vmul.f32 %v2584, %v2344
    %v2801 = vmul.f32 %v2553, %v2343
    %v2802 = vmul.f32 %v2585, %v2344
    %v2803 = vmul.f32 %v2554, %v2343
    %v2804 = vmul.f32 %v2586, %v2344
    %v2805 = vmul.f32 %v2555, %v2343
    %v2806 = vmul.f32 %v2587, %v2344
    %v2807 = vmul.f32 %v2556, %v2343
    %v2808 = vmul.f32 %v2588, %v2344
    %v2809 = vmul.f32 %v2557, %v2343
    %v2810 = vmul.f32 %v2589, %v2344
    %v2811 = vmul.f32 %v2558, %v2343
    %v2812 = vmul.f32 %v2590, %v2344
    %v2813 = vmul.f32 %v2559, %v2343
    %v2814 = vmul.f32 %v2591, %v2344
    %v2815 = vmul.f32 %v2560, %v2343
    %v2816 = vmul.f32 %v2592, %v2344
    %v2817 = vmul.f32 %v2561, %v2343
    %v2818 = vmul.f32 %v2593, %v2344
    %v2819 = vmul.f32 %v2562, %v2343
    %v2820 = vmul.f32 %v2594, %v2344
    %v2821 = vmul.f32 %v2563, %v2343
    %v2822 = vmul.f32 %v2595, %v2344
    %v2823 = vmul.f32 %v2565, %v2343
    %v2824 = vmul.f32 %v2597, %v2344
    %v2825 = vmul.f32 %v2566, %v2343
    %v2826 = vmul.f32 %v2598, %v2344
    %v2827 = vmul.f32 %v2567, %v2343
    %v2828 = vmul.f32 %v2599, %v2344
    %v2829 = vmul.f32 %v2568, %v2343
    %v2830 = vmul.f32 %v2600, %v2344
    %v2831 = vmul.f32 %v2569, %v2343
    %v2832 = vmul.f32 %v2601, %v2344
    %v2833 = vmul.f32 %v2570, %v2343
    %v2834 = vmul.f32 %v2602, %v2344
    %v2835 = vmul.f32 %v2571, %v2343
    %v2836 = vmul.f32 %v2603, %v2344
    %v2837 = vmul.f32 %v2572, %v2343
    %v2838 = vmul.f32 %v2604, %v2344
    %v2839 = vmul.f32 %v2573, %v2343
    %v2840 = vmul.f32 %v2605, %v2344
    %v2841 = vmul.f32 %v2574, %v2343
    %v2842 = vmul.f32 %v2606, %v2344
    %v2843 = vmul.f32 %v2575, %v2343
    %v2844 = vmul.f32 %v2607, %v2344
    %v2845 = vmul.f32 %v2576, %v2343
    %v2846 = vmul.f32 %v2608, %v2344
    %v2847 = vmul.f32 %v2577, %v2343
    %v2848 = vmul.f32 %v2609, %v2344
    %v2849 = vmul.f32 %v2578, %v2343
    %v2850 = vmul.f32 %v2610, %v2344
    %v2851 = vmul.f32 %v2579, %v2343
    %v2852 = vmul.f32 %v2611, %v2344
    %v2853 = vadd.f32 %v2733, %v2793
    %v2854 = vadd.f32 %v2734, %v2794
    %v2855 = vadd.f32 %v2735, %v2795
    %v2856 = vadd.f32 %v2736, %v2796
    %v2857 = vadd.f32 %v2737, %v2797
    %v2858 = vadd.f32 %v2738, %v2798
    %v2859 = vadd.f32 %v2739, %v2799
    %v2860 = vadd.f32 %v2740, %v2800
    %v2861 = vadd.f32 %v2741, %v2801
    %v2862 = vadd.f32 %v2742, %v2802
    %v2863 = vadd.f32 %v2743, %v2803
    %v2864 = vadd.f32 %v2744, %v2804
    %v2865 = vadd.f32 %v2745, %v2805
    %v2866 = vadd.f32 %v2746, %v2806
    %v2867 = vadd.f32 %v2747, %v2807
    %v2868 = vadd.f32 %v2748, %v2808
    %v2869 = vadd.f32 %v2749, %v2809
    %v2870 = vadd.f32 %v2750, %v2810
    %v2871 = vadd.f32 %v2751, %v2811
    %v2872 = vadd.f32 %v2752, %v2812
    %v2873 = vadd.f32 %v2753, %v2813
    %v2874 = vadd.f32 %v2754, %v2814
    %v2875 = vadd.f32 %v2755, %v2815
    %v2876 = vadd.f32 %v2756, %v2816
    %v2877 = vadd.f32 %v2757, %v2817
    %v2878 = vadd.f32 %v2758, %v2818
    %v2879 = vadd.f32 %v2759, %v2819
    %v2880 = vadd.f32 %v2760, %v2820
    %v2881 = vadd.f32 %v2761, %v2821
    %v2882 = vadd.f32 %v2762, %v2822
    %v2883 = vadd.f32 %v2763, %v2823
    %v2884 = vadd.f32 %v2764, %v2824
    %v2885 = vadd.f32 %v2765, %v2825
    %v2886 = vadd.f32 %v2766, %v2826
    %v2887 = vadd.f32 %v2767, %v2827
    %v2888 = vadd.f32 %v2768, %v2828
    %v2889 = vadd.f32 %v2769, %v2829
    %v2890 = vadd.f32 %v2770, %v2830
    %v2891 = vadd.f32 %v2771, %v2831
    %v2892 = vadd.f32 %v2772, %v2832
    %v2893 = vadd.f32 %v2773, %v2833
    %v2894 = vadd.f32 %v2774, %v2834
    %v2895 = vadd.f32 %v2775, %v2835
    %v2896 = vadd.f32 %v2776, %v2836
    %v2897 = vadd.f32 %v2777, %v2837
    %v2898 = vadd.f32 %v2778, %v2838
    %v2899 = vadd.f32 %v2779, %v2839
    %v2900 = vadd.f32 %v2780, %v2840
    %v2901 = vadd.f32 %v2781, %v2841
    %v2902 = vadd.f32 %v2782, %v2842
    %v2903 = vadd.f32 %v2783, %v2843
    %v2904 = vadd.f32 %v2784, %v2844
    %v2905 = vadd.f32 %v2785, %v2845
    %v2906 = vadd.f32 %v2786, %v2846
    %v2907 = vadd.f32 %v2787, %v2847
    %v2908 = vadd.f32 %v2788, %v2848
    %v2909 = vadd.f32 %v2789, %v2849
    %v2910 = vadd.f32 %v2790, %v2850
    %v2911 = vadd.f32 %v2791, %v2851
    %v2912 = vadd.f32 %v2792, %v2852
    %v2913 = vmul.f32 %v2453, %v2345
    %v2914 = vmul.f32 %v2421, %v2346
    %v2915 = vmul.f32 %v2454, %v2345
    %v2916 = vmul.f32 %v2422, %v2346
    %v2917 = vmul.f32 %v2455, %v2345
    %v2918 = vmul.f32 %v2423, %v2346
    %v2919 = vmul.f32 %v2456, %v2345
    %v2920 = vmul.f32 %v2424, %v2346
    %v2921 = vmul.f32 %v2457, %v2345
    %v2922 = vmul.f32 %v2425, %v2346
    %v2923 = vmul.f32 %v2458, %v2345
    %v2924 = vmul.f32 %v2426, %v2346
    %v2925 = vmul.f32 %v2459, %v2345
    %v2926 = vmul.f32 %v2427, %v2346
    %v2927 = vmul.f32 %v2460, %v2345
    %v2928 = vmul.f32 %v2428, %v2346
    %v2929 = vmul.f32 %v2461, %v2345
    %v2930 = vmul.f32 %v2429, %v2346
    %v2931 = vmul.f32 %v2462, %v2345
    %v2932 = vmul.f32 %v2430, %v2346
    %v2933 = vmul.f32 %v2463, %v2345
    %v2934 = vmul.f32 %v2431, %v2346
    %v2935 = vmul.f32 %v2464, %v2345
    %v2936 = vmul.f32 %v2432, %v2346
    %v2937 = vmul.f32 %v2465, %v2345
    %v2938 = vmul.f32 %v2433, %v2346
    %v2939 = vmul.f32 %v2466, %v2345
    %v2940 = vmul.f32 %v2434, %v2346
    %v2941 = vmul.f32 %v2467, %v2345
    %v2942 = vmul.f32 %v2435, %v2346
    %v2943 = vmul.f32 %v2468, %v2345
    %v2944 = vmul.f32 %v2436, %v2346
    %v2945 = vmul.f32 %v2469, %v2345
    %v2946 = vmul.f32 %v2437, %v2346
    %v2947 = vmul.f32 %v2470, %v2345
    %v2948 = vmul.f32 %v2438, %v2346
    %v2949 = vmul.f32 %v2471, %v2345
    %v2950 = vmul.f32 %v2439, %v2346
    %v2951 = vmul.f32 %v2472, %v2345
    %v2952 = vmul.f32 %v2440, %v2346
    %v2953 = vmul.f32 %v2473, %v2345
    %v2954 = vmul.f32 %v2441, %v2346
    %v2955 = vmul.f32 %v2474, %v2345
    %v2956 = vmul.f32 %v2442, %v2346
    %v2957 = vmul.f32 %v2475, %v2345
    %v2958 = vmul.f32 %v2443, %v2346
    %v2959 = vmul.f32 %v2476, %v2345
    %v2960 = vmul.f32 %v2444, %v2346
    %v2961 = vmul.f32 %v2477, %v2345
    %v2962 = vmul.f32 %v2445, %v2346
    %v2963 = vmul.f32 %v2478, %v2345
    %v2964 = vmul.f32 %v2446, %v2346
    %v2965 = vmul.f32 %v2479, %v2345
    %v2966 = vmul.f32 %v2447, %v2346
    %v2967 = vmul.f32 %v2480, %v2345
    %v2968 = vmul.f32 %v2448, %v2346
    %v2969 = vmul.f32 %v2481, %v2345
    %v2970 = vmul.f32 %v2449, %v2346
    %v2971 = vmul.f32 %v2482, %v2345
    %v2972 = vmul.f32 %v2450, %v2346
    %v2973 = vmul.f32 %v2483, %v2345
    %v2974 = vmul.f32 %v2451, %v2346
    %v2975 = vmul.f32 %v2484, %v2345
    %v2976 = vmul.f32 %v2452, %v2346
    %v2977 = vmul.f32 %v2275, %v2347
    %v2978 = vmul.f32 %v2276, %v2348
    %v2979 = vmul.f32 %v2277, %v2347
    %v2980 = vmul.f32 %v2278, %v2348
    %v2981 = vmul.f32 %v2279, %v2347
    %v2982 = vmul.f32 %v2280, %v2348
    %v2983 = vmul.f32 %v2281, %v2347
    %v2984 = vmul.f32 %v2282, %v2348
    %v2985 = vmul.f32 %v2283, %v2347
    %v2986 = vmul.f32 %v2284, %v2348
    %v2987 = vmul.f32 %v2285, %v2347
    %v2988 = vmul.f32 %v2286, %v2348
    %v2989 = vmul.f32 %v2287, %v2347
    %v2990 = vmul.f32 %v2288, %v2348
    %v2991 = vmul.f32 %v2289, %v2347
    %v2992 = vmul.f32 %v2290, %v2348
    %v2993 = vmul.f32 %v2291, %v2347
    %v2994 = vmul.f32 %v2292, %v2348
    %v2995 = vmul.f32 %v2293, %v2347
    %v2996 = vmul.f32 %v2294, %v2348
    %v2997 = vmul.f32 %v2295, %v2347
    %v2998 = vmul.f32 %v2296, %v2348
    %v2999 = vmul.f32 %v2297, %v2347
    %v3000 = vmul.f32 %v2298, %v2348
    %v3001 = vmul.f32 %v2299, %v2347
    %v3002 = vmul.f32 %v2300, %v2348
    %v3003 = vmul.f32 %v2301, %v2347
    %v3004 = vmul.f32 %v2302, %v2348
    %v3005 = vmul.f32 %v2303, %v2347
    %v3006 = vmul.f32 %v2304, %v2348
    %v3007 = vmul.f32 %v2305, %v2347
    %v3008 = vmul.f32 %v2306, %v2348
    %v3009 = vmul.f32 %v2307, %v2347
    %v3010 = vmul.f32 %v2308, %v2348
    %v3011 = vmul.f32 %v2309, %v2347
    %v3012 = vmul.f32 %v2310, %v2348
    %v3013 = vmul.f32 %v2311, %v2347
    %v3014 = vmul.f32 %v2312, %v2348
    %v3015 = vmul.f32 %v2313, %v2347
    %v3016 = vmul.f32 %v2314, %v2348
    %v3017 = vmul.f32 %v2315, %v2347
    %v3018 = vmul.f32 %v2316, %v2348
    %v3019 = vmul.f32 %v2317, %v2347
    %v3020 = vmul.f32 %v2318, %v2348
    %v3021 = vmul.f32 %v2319, %v2347
    %v3022 = vmul.f32 %v2320, %v2348
    %v3023 = vmul.f32 %v2321, %v2347
    %v3024 = vmul.f32 %v2322, %v2348
    %v3025 = vmul.f32 %v2323, %v2347
    %v3026 = vmul.f32 %v2324, %v2348
    %v3027 = vmul.f32 %v2325, %v2347
    %v3028 = vmul.f32 %v2326, %v2348
    %v3029 = vmul.f32 %v2327, %v2347
    %v3030 = vmul.f32 %v2328, %v2348
    %v3031 = vmul.f32 %v2329, %v2347
    %v3032 = vmul.f32 %v2330, %v2348
    %v3033 = vmul.f32 %v2331, %v2347
    %v3034 = vmul.f32 %v2332, %v2348
    %v3035 = vmul.f32 %v2333, %v2347
    %v3036 = vmul.f32 %v2334, %v2348
    %v3037 = vmul.f32 %v2335, %v2347
    %v3038 = vmul.f32 %v2336, %v2348
    %v3039 = vmul.f32 %v2337, %v2347
    %v3040 = vmul.f32 %v2338, %v2348
    %v3041 = vadd.f32 %v2913, %v2977
    %v3042 = vadd.f32 %v2914, %v2978
    %v3043 = vadd.f32 %v2915, %v2979
    %v3044 = vadd.f32 %v2916, %v2980
    %v3045 = vadd.f32 %v2917, %v2981
    %v3046 = vadd.f32 %v2918, %v2982
    %v3047 = vadd.f32 %v2919, %v2983
    %v3048 = vadd.f32 %v2920, %v2984
    %v3049 = vadd.f32 %v2921, %v2985
    %v3050 = vadd.f32 %v2922, %v2986
    %v3051 = vadd.f32 %v2923, %v2987
    %v3052 = vadd.f32 %v2924, %v2988
    %v3053 = vadd.f32 %v2925, %v2989
    %v3054 = vadd.f32 %v2926, %v2990
    %v3055 = vadd.f32 %v2927, %v2991
    %v3056 = vadd.f32 %v2928, %v2992
    %v3057 = vadd.f32 %v2929, %v2993
    %v3058 = vadd.f32 %v2930, %v2994
    %v3059 = vadd.f32 %v2931, %v2995
    %v3060 = vadd.f32 %v2932, %v2996
    %v3061 = vadd.f32 %v2933, %v2997
    %v3062 = vadd.f32 %v2934, %v2998
    %v3063 = vadd.f32 %v2935, %v2999
    %v3064 = vadd.f32 %v2936, %v3000
    %v3065 = vadd.f32 %v2937, %v3001
    %v3066 = vadd.f32 %v2938, %v3002
    %v3067 = vadd.f32 %v2939, %v3003
    %v3068 = vadd.f32 %v2940, %v3004
    %v3069 = vadd.f32 %v2941, %v3005
    %v3070 = vadd.f32 %v2942, %v3006
    %v3071 = vadd.f32 %v2943, %v3007
    %v3072 = vadd.f32 %v2944, %v3008
    %v3073 = vadd.f32 %v2945, %v3009
    %v3074 = vadd.f32 %v2946, %v3010
    %v3075 = vadd.f32 %v2947, %v3011
    %v3076 = vadd.f32 %v2948, %v3012
    %v3077 = vadd.f32 %v2949, %v3013
    %v3078 = vadd.f32 %v2950, %v3014
    %v3079 = vadd.f32 %v2951, %v3015
    %v3080 = vadd.f32 %v2952, %v3016
    %v3081 = vadd.f32 %v2953, %v3017
    %v3082 = vadd.f32 %v2954, %v3018
    %v3083 = vadd.f32 %v2955, %v3019
    %v3084 = vadd.f32 %v2956, %v3020
    %v3085 = vadd.f32 %v2957, %v3021
    %v3086 = vadd.f32 %v2958, %v3022
    %v3087 = vadd.f32 %v2959, %v3023
    %v3088 = vadd.f32 %v2960, %v3024
    %v3089 = vadd.f32 %v2961, %v3025
    %v3090 = vadd.f32 %v2962, %v3026
    %v3091 = vadd.f32 %v2963, %v3027
    %v3092 = vadd.f32 %v2964, %v3028
    %v3093 = vadd.f32 %v2965, %v3029
    %v3094 = vadd.f32 %v2966, %v3030
    %v3095 = vadd.f32 %v2967, %v3031
    %v3096 = vadd.f32 %v2968, %v3032
    %v3097 = vadd.f32 %v2969, %v3033
    %v3098 = vadd.f32 %v2970, %v3034
    %v3099 = vadd.f32 %v2971, %v3035
    %v3100 = vadd.f32 %v2972, %v3036
    %v3101 = vadd.f32 %v2973, %v3037
    %v3102 = vadd.f32 %v2974, %v3038
    %v3103 = vadd.f32 %v2975, %v3039
    %v3104 = vadd.f32 %v2976, %v3040
    %v3105 = vmul.f32 %v2549, %v2349
    %v3106 = vmul.f32 %v2581, %v2350
    %v3107 = vmul.f32 %v2550, %v2349
    %v3108 = vmul.f32 %v2582, %v2350
    %v3109 = vmul.f32 %v2551, %v2349
    %v3110 = vmul.f32 %v2583, %v2350
    %v3111 = vmul.f32 %v2552, %v2349
    %v3112 = vmul.f32 %v2584, %v2350
    %v3113 = vmul.f32 %v2553, %v2349
    %v3114 = vmul.f32 %v2585, %v2350
    %v3115 = vmul.f32 %v2554, %v2349
    %v3116 = vmul.f32 %v2586, %v2350
    %v3117 = vmul.f32 %v2555, %v2349
    %v3118 = vmul.f32 %v2587, %v2350
    %v3119 = vmul.f32 %v2556, %v2349
    %v3120 = vmul.f32 %v2588, %v2350
    %v3121 = vmul.f32 %v2557, %v2349
    %v3122 = vmul.f32 %v2589, %v2350
    %v3123 = vmul.f32 %v2558, %v2349
    %v3124 = vmul.f32 %v2590, %v2350
    %v3125 = vmul.f32 %v2559, %v2349
    %v3126 = vmul.f32 %v2591, %v2350
    %v3127 = vmul.f32 %v2560, %v2349
    %v3128 = vmul.f32 %v2592, %v2350
    %v3129 = vmul.f32 %v2561, %v2349
    %v3130 = vmul.f32 %v2593, %v2350
    %v3131 = vmul.f32 %v2562, %v2349
    %v3132 = vmul.f32 %v2594, %v2350
    %v3133 = vmul.f32 %v2563, %v2349
    %v3134 = vmul.f32 %v2595, %v2350
    %v3135 = vmul.f32 %v2564, %v2349
    %v3136 = vmul.f32 %v2596, %v2350
    %v3137 = vmul.f32 %v2565, %v2349
    %v3138 = vmul.f32 %v2597, %v2350
    %v3139 = vmul.f32 %v2566, %v2349
    %v3140 = vmul.f32 %v2598, %v2350
    %v3141 = vmul.f32 %v2567, %v2349
    %v3142 = vmul.f32 %v2599, %v2350
    %v3143 = vmul.f32 %v2568, %v2349
    %v3144 = vmul.f32 %v2600, %v2350
    %v3145 = vmul.f32 %v2569, %v2349
    %v3146 = vmul.f32 %v2601, %v2350
    %v3147 = vmul.f32 %v2570, %v2349
    %v3148 = vmul.f32 %v2602, %v2350
    %v3149 = vmul.f32 %v2571, %v2349
    %v3150 = vmul.f32 %v2603, %v2350
    %v3151 = vmul.f32 %v2572, %v2349
    %v3152 = vmul.f32 %v2604, %v2350
    %v3153 = vmul.f32 %v2573, %v2349
    %v3154 = vmul.f32 %v2605, %v2350
    %v3155 = vmul.f32 %v2574, %v2349
    %v3156 = vmul.f32 %v2606, %v2350
    %v3157 = vmul.f32 %v2575, %v2349
    %v3158 = vmul.f32 %v2607, %v2350
    %v3159 = vmul.f32 %v2576, %v2349
    %v3160 = vmul.f32 %v2608, %v2350
    %v3161 = vmul.f32 %v2577, %v2349
    %v3162 = vmul.f32 %v2609, %v2350
    %v3163 = vmul.f32 %v2578, %v2349
    %v3164 = vmul.f32 %v2610, %v2350
    %v3165 = vmul.f32 %v2579, %v2349
    %v3166 = vmul.f32 %v2611, %v2350
    %v3167 = vmul.f32 %v2580, %v2349
    %v3168 = vmul.f32 %v2612, %v2350
    %v3169 = vadd.f32 %v3041, %v3105
    %v3170 = vadd.f32 %v3042, %v3106
    %v3171 = vadd.f32 %v3043, %v3107
    %v3172 = vadd.f32 %v3044, %v3108
    %v3173 = vadd.f32 %v3045, %v3109
    %v3174 = vadd.f32 %v3046, %v3110
    %v3175 = vadd.f32 %v3047, %v3111
    %v3176 = vadd.f32 %v3048, %v3112
    %v3177 = vadd.f32 %v3049, %v3113
    %v3178 = vadd.f32 %v3050, %v3114
    %v3179 = vadd.f32 %v3051, %v3115
    %v3180 = vadd.f32 %v3052, %v3116
    %v3181 = vadd.f32 %v3053, %v3117
    %v3182 = vadd.f32 %v3054, %v3118
    %v3183 = vadd.f32 %v3055, %v3119
    %v3184 = vadd.f32 %v3056, %v3120
    %v3185 = vadd.f32 %v3057, %v3121
    %v3186 = vadd.f32 %v3058, %v3122
    %v3187 = vadd.f32 %v3059, %v3123
    %v3188 = vadd.f32 %v3060, %v3124
    %v3189 = vadd.f32 %v3061, %v3125
    %v3190 = vadd.f32 %v3062, %v3126
    %v3191 = vadd.f32 %v3063, %v3127
    %v3192 = vadd.f32 %v3064, %v3128
    %v3193 = vadd.f32 %v3065, %v3129
    %v3194 = vadd.f32 %v3066, %v3130
    %v3195 = vadd.f32 %v3067, %v3131
    %v3196 = vadd.f32 %v3068, %v3132
    %v3197 = vadd.f32 %v3069, %v3133
    %v3198 = vadd.f32 %v3070, %v3134
    %v3199 = vadd.f32 %v3071, %v3135
    %v3200 = vadd.f32 %v3072, %v3136
    %v3201 = vadd.f32 %v3073, %v3137
    %v3202 = vadd.f32 %v3074, %v3138
    %v3203 = vadd.f32 %v3075, %v3139
    %v3204 = vadd.f32 %v3076, %v3140
    %v3205 = vadd.f32 %v3077, %v3141
    %v3206 = vadd.f32 %v3078, %v3142
    %v3207 = vadd.f32 %v3079, %v3143
    %v3208 = vadd.f32 %v3080, %v3144
    %v3209 = vadd.f32 %v3081, %v3145
    %v3210 = vadd.f32 %v3082, %v3146
    %v3211 = vadd.f32 %v3083, %v3147
    %v3212 = vadd.f32 %v3084, %v3148
    %v3213 = vadd.f32 %v3085, %v3149
    %v3214 = vadd.f32 %v3086, %v3150
    %v3215 = vadd.f32 %v3087, %v3151
    %v3216 = vadd.f32 %v3088, %v3152
    %v3217 = vadd.f32 %v3089, %v3153
    %v3218 = vadd.f32 %v3090, %v3154
    %v3219 = vadd.f32 %v3091, %v3155
    %v3220 = vadd.f32 %v3092, %v3156
    %v3221 = vadd.f32 %v3093, %v3157
    %v3222 = vadd.f32 %v3094, %v3158
    %v3223 = vadd.f32 %v3095, %v3159
    %v3224 = vadd.f32 %v3096, %v3160
    %v3225 = vadd.f32 %v3097, %v3161
    %v3226 = vadd.f32 %v3098, %v3162
    %v3227 = vadd.f32 %v3099, %v3163
    %v3228 = vadd.f32 %v3100, %v3164
    %v3229 = vadd.f32 %v3101, %v3165
    %v3230 = vadd.f32 %v3102, %v3166
    %v3231 = vadd.f32 %v3103, %v3167
    %v3232 = vadd.f32 %v3104, %v3168
    %v3233 = vmul.f32 %v2454, %v2351
    %v3234 = vmul.f32 %v2422, %v2352
    %v3235 = vmul.f32 %v2455, %v2351
    %v3236 = vmul.f32 %v2423, %v2352
    %v3237 = vmul.f32 %v2456, %v2351
    %v3238 = vmul.f32 %v2424, %v2352
    %v3239 = vmul.f32 %v2457, %v2351
    %v3240 = vmul.f32 %v2425, %v2352
    %v3241 = vmul.f32 %v2458, %v2351
    %v3242 = vmul.f32 %v2426, %v2352
    %v3243 = vmul.f32 %v2459, %v2351
    %v3244 = vmul.f32 %v2427, %v2352
    %v3245 = vmul.f32 %v2460, %v2351
    %v3246 = vmul.f32 %v2428, %v2352
    %v3247 = vmul.f32 %v2461, %v2351
    %v3248 = vmul.f32 %v2429, %v2352
    %v3249 = vmul.f32 %v2462, %v2351
    %v3250 = vmul.f32 %v2430, %v2352
    %v3251 = vmul.f32 %v2463, %v2351
    %v3252 = vmul.f32 %v2431, %v2352
    %v3253 = vmul.f32 %v2464, %v2351
    %v3254 = vmul.f32 %v2432, %v2352
    %v3255 = vmul.f32 %v2465, %v2351
    %v3256 = vmul.f32 %v2433, %v2352
    %v3257 = vmul.f32 %v2466, %v2351
    %v3258 = vmul.f32 %v2434, %v2352
    %v3259 = vmul.f32 %v2467, %v2351
    %v3260 = vmul.f32 %v2435, %v2352
    %v3261 = vmul.f32 %v2468, %v2351
    %v3262 = vmul.f32 %v2436, %v2352
    %v3263 = vmul.f32 %v2470, %v2351
    %v3264 = vmul.f32 %v2438, %v2352
    %v3265 = vmul.f32 %v2471, %v2351
    %v3266 = vmul.f32 %v2439, %v2352
    %v3267 = vmul.f32 %v2472, %v2351
    %v3268 = vmul.f32 %v2440, %v2352
    %v3269 = vmul.f32 %v2473, %v2351
    %v3270 = vmul.f32 %v2441, %v2352
    %v3271 = vmul.f32 %v2474, %v2351
    %v3272 = vmul.f32 %v2442, %v2352
    %v3273 = vmul.f32 %v2475, %v2351
    %v3274 = vmul.f32 %v2443, %v2352
    %v3275 = vmul.f32 %v2476, %v2351
    %v3276 = vmul.f32 %v2444, %v2352
    %v3277 = vmul.f32 %v2477, %v2351
    %v3278 = vmul.f32 %v2445, %v2352
    %v3279 = vmul.f32 %v2478, %v2351
    %v3280 = vmul.f32 %v2446, %v2352
    %v3281 = vmul.f32 %v2479, %v2351
    %v3282 = vmul.f32 %v2447, %v2352
    %v3283 = vmul.f32 %v2480, %v2351
    %v3284 = vmul.f32 %v2448, %v2352
    %v3285 = vmul.f32 %v2481, %v2351
    %v3286 = vmul.f32 %v2449, %v2352
    %v3287 = vmul.f32 %v2482, %v2351
    %v3288 = vmul.f32 %v2450, %v2352
    %v3289 = vmul.f32 %v2483, %v2351
    %v3290 = vmul.f32 %v2451, %v2352
    %v3291 = vmul.f32 %v2484, %v2351
    %v3292 = vmul.f32 %v2452, %v2352
    %v3293 = vmul.f32 %v2277, %v2353
    %v3294 = vmul.f32 %v2278, %v2354
    %v3295 = vmul.f32 %v2279, %v2353
    %v3296 = vmul.f32 %v2280, %v2354
    %v3297 = vmul.f32 %v2281, %v2353
    %v3298 = vmul.f32 %v2282, %v2354
    %v3299 = vmul.f32 %v2283, %v2353
    %v3300 = vmul.f32 %v2284, %v2354
    %v3301 = vmul.f32 %v2285, %v2353
    %v3302 = vmul.f32 %v2286, %v2354
    %v3303 = vmul.f32 %v2287, %v2353
    %v3304 = vmul.f32 %v2288, %v2354
    %v3305 = vmul.f32 %v2289, %v2353
    %v3306 = vmul.f32 %v2290, %v2354
    %v3307 = vmul.f32 %v2291, %v2353
    %v3308 = vmul.f32 %v2292, %v2354
    %v3309 = vmul.f32 %v2293, %v2353
    %v3310 = vmul.f32 %v2294, %v2354
    %v3311 = vmul.f32 %v2295, %v2353
    %v3312 = vmul.f32 %v2296, %v2354
    %v3313 = vmul.f32 %v2297, %v2353
    %v3314 = vmul.f32 %v2298, %v2354
    %v3315 = vmul.f32 %v2299, %v2353
    %v3316 = vmul.f32 %v2300, %v2354
    %v3317 = vmul.f32 %v2301, %v2353
    %v3318 = vmul.f32 %v2302, %v2354
    %v3319 = vmul.f32 %v2303, %v2353
    %v3320 = vmul.f32 %v2304, %v2354
    %v3321 = vmul.f32 %v2305, %v2353
    %v3322 = vmul.f32 %v2306, %v2354
    %v3323 = vmul.f32 %v2309, %v2353
    %v3324 = vmul.f32 %v2310, %v2354
    %v3325 = vmul.f32 %v2311, %v2353
    %v3326 = vmul.f32 %v2312, %v2354
    %v3327 = vmul.f32 %v2313, %v2353
    %v3328 = vmul.f32 %v2314, %v2354
    %v3329 = vmul.f32 %v2315, %v2353
    %v3330 = vmul.f32 %v2316, %v2354
    %v3331 = vmul.f32 %v2317, %v2353
    %v3332 = vmul.f32 %v2318, %v2354
    %v3333 = vmul.f32 %v2319, %v2353
    %v3334 = vmul.f32 %v2320, %v2354
    %v3335 = vmul.f32 %v2321, %v2353
    %v3336 = vmul.f32 %v2322, %v2354
    %v3337 = vmul.f32 %v2323, %v2353
    %v3338 = vmul.f32 %v2324, %v2354
    %v3339 = vmul.f32 %v2325, %v2353
    %v3340 = vmul.f32 %v2326, %v2354
    %v3341 = vmul.f32 %v2327, %v2353
    %v3342 = vmul.f32 %v2328, %v2354
    %v3343 = vmul.f32 %v2329, %v2353
    %v3344 = vmul.f32 %v2330, %v2354
    %v3345 = vmul.f32 %v2331, %v2353
    %v3346 = vmul.f32 %v2332, %v2354
    %v3347 = vmul.f32 %v2333, %v2353
    %v3348 = vmul.f32 %v2334, %v2354
    %v3349 = vmul.f32 %v2335, %v2353
    %v3350 = vmul.f32 %v2336, %v2354
    %v3351 = vmul.f32 %v2337, %v2353
    %v3352 = vmul.f32 %v2338, %v2354
    %v3353 = vadd.f32 %v3233, %v3293
    %v3354 = vadd.f32 %v3234, %v3294
    %v3355 = vadd.f32 %v3235, %v3295
    %v3356 = vadd.f32 %v3236, %v3296
    %v3357 = vadd.f32 %v3237, %v3297
    %v3358 = vadd.f32 %v3238, %v3298
    %v3359 = vadd.f32 %v3239, %v3299
    %v3360 = vadd.f32 %v3240, %v3300
    %v3361 = vadd.f32 %v3241, %v3301
    %v3362 = vadd.f32 %v3242, %v3302
    %v3363 = vadd.f32 %v3243, %v3303
    %v3364 = vadd.f32 %v3244, %v3304
    %v3365 = vadd.f32 %v3245, %v3305
    %v3366 = vadd.f32 %v3246, %v3306
    %v3367 = vadd.f32 %v3247, %v3307
    %v3368 = vadd.f32 %v3248, %v3308
    %v3369 = vadd.f32 %v3249, %v3309
    %v3370 = vadd.f32 %v3250, %v3310
    %v3371 = vadd.f32 %v3251, %v3311
    %v3372 = vadd.f32 %v3252, %v3312
    %v3373 = vadd.f32 %v3253, %v3313
    %v3374 = vadd.f32 %v3254, %v3314
    %v3375 = vadd.f32 %v3255, %v3315
    %v3376 = vadd.f32 %v3256, %v3316
    %v3377 = vadd.f32 %v3257, %v3317
    %v3378 = vadd.f32 %v3258, %v3318
    %v3379 = vadd.f32 %v3259, %v3319
    %v3380 = vadd.f32 %v3260, %v3320
    %v3381 = vadd.f32 %v3261, %v3321
    %v3382 = vadd.f32 %v3262, %v3322
    %v3383 = vadd.f32 %v3263, %v3323
    %v3384 = vadd.f32 %v3264, %v3324
    %v3385 = vadd.f32 %v3265, %v3325
    %v3386 = vadd.f32 %v3266, %v3326
    %v3387 = vadd.f32 %v3267, %v3327
    %v3388 = vadd.f32 %v3268, %v3328
    %v3389 = vadd.f32 %v3269, %v3329
    %v3390 = vadd.f32 %v3270, %v3330
    %v3391 = vadd.f32 %v3271, %v3331
    %v3392 = vadd.f32 %v3272, %v3332
    %v3393 = vadd.f32 %v3273, %v3333
    %v3394 = vadd.f32 %v3274, %v3334
    %v3395 = vadd.f32 %v3275, %v3335
    %v3396 = vadd.f32 %v3276, %v3336
    %v3397 = vadd.f32 %v3277, %v3337
    %v3398 = vadd.f32 %v3278, %v3338
    %v3399 = vadd.f32 %v3279, %v3339
    %v3400 = vadd.f32 %v3280, %v3340
    %v3401 = vadd.f32 %v3281, %v3341
    %v3402 = vadd.f32 %v3282, %v3342
    %v3403 = vadd.f32 %v3283, %v3343
    %v3404 = vadd.f32 %v3284, %v3344
    %v3405 = vadd.f32 %v3285, %v3345
    %v3406 = vadd.f32 %v3286, %v3346
    %v3407 = vadd.f32 %v3287, %v3347
    %v3408 = vadd.f32 %v3288, %v3348
    %v3409 = vadd.f32 %v3289, %v3349
    %v3410 = vadd.f32 %v3290, %v3350
    %v3411 = vadd.f32 %v3291, %v3351
    %v3412 = vadd.f32 %v3292, %v3352
    %v3413 = vmul.f32 %v2550, %v2355
    %v3414 = vmul.f32 %v2582, %v2356
    %v3415 = vmul.f32 %v2551, %v2355
    %v3416 = vmul.f32 %v2583, %v2356
    %v3417 = vmul.f32 %v2552, %v2355
    %v3418 = vmul.f32 %v2584, %v2356
    %v3419 = vmul.f32 %v2553, %v2355
    %v3420 = vmul.f32 %v2585, %v2356
    %v3421 = vmul.f32 %v2554, %v2355
    %v3422 = vmul.f32 %v2586, %v2356
    %v3423 = vmul.f32 %v2555, %v2355
    %v3424 = vmul.f32 %v2587, %v2356
    %v3425 = vmul.f32 %v2556, %v2355
    %v3426 = vmul.f32 %v2588, %v2356
    %v3427 = vmul.f32 %v2557, %v2355
    %v3428 = vmul.f32 %v2589, %v2356
    %v3429 = vmul.f32 %v2558, %v2355
    %v3430 = vmul.f32 %v2590, %v2356
    %v3431 = vmul.f32 %v2559, %v2355
    %v3432 = vmul.f32 %v2591, %v2356
    %v3433 = vmul.f32 %v2560, %v2355
    %v3434 = vmul.f32 %v2592, %v2356
    %v3435 = vmul.f32 %v2561, %v2355
    %v3436 = vmul.f32 %v2593, %v2356
    %v3437 = vmul.f32 %v2562, %v2355
    %v3438 = vmul.f32 %v2594, %v2356
    %v3439 = vmul.f32 %v2563, %v2355
    %v3440 = vmul.f32 %v2595, %v2356
    %v3441 = vmul.f32 %v2564, %v2355
    %v3442 = vmul.f32 %v2596, %v2356
    %v3443 = vmul.f32 %v2566, %v2355
    %v3444 = vmul.f32 %v2598, %v2356
    %v3445 = vmul.f32 %v2567, %v2355
    %v3446 = vmul.f32 %v2599, %v2356
    %v3447 = vmul.f32 %v2568, %v2355
    %v3448 = vmul.f32 %v2600, %v2356
    %v3449 = vmul.f32 %v2569, %v2355
    %v3450 = vmul.f32 %v2601, %v2356
    %v3451 = vmul.f32 %v2570, %v2355
    %v3452 = vmul.f32 %v2602, %v2356
    %v3453 = vmul.f32 %v2571, %v2355
    %v3454 = vmul.f32 %v2603, %v2356
    %v3455 = vmul.f32 %v2572, %v2355
    %v3456 = vmul.f32 %v2604, %v2356
    %v3457 = vmul.f32 %v2573, %v2355
    %v3458 = vmul.f32 %v2605, %v2356
    %v3459 = vmul.f32 %v2574, %v2355
    %v3460 = vmul.f32 %v2606, %v2356
    %v3461 = vmul.f32 %v2575, %v2355
    %v3462 = vmul.f32 %v2607, %v2356
    %v3463 = vmul.f32 %v2576, %v2355
    %v3464 = vmul.f32 %v2608, %v2356
    %v3465 = vmul.f32 %v2577, %v2355
    %v3466 = vmul.f32 %v2609, %v2356
    %v3467 = vmul.f32 %v2578, %v2355
    %v3468 = vmul.f32 %v2610, %v2356
    %v3469 = vmul.f32 %v2579, %v2355
    %v3470 = vmul.f32 %v2611, %v2356
    %v3471 = vmul.f32 %v2580, %v2355
    %v3472 = vmul.f32 %v2612, %v2356
    %v3473 = vadd.f32 %v3353, %v3413
    %v3474 = vadd.f32 %v3354, %v3414
    %v3475 = vadd.f32 %v3355, %v3415
    %v3476 = vadd.f32 %v3356, %v3416
    %v3477 = vadd.f32 %v3357, %v3417
    %v3478 = vadd.f32 %v3358, %v3418
    %v3479 = vadd.f32 %v3359, %v3419
    %v3480 = vadd.f32 %v3360, %v3420
    %v3481 = vadd.f32 %v3361, %v3421
    %v3482 = vadd.f32 %v3362, %v3422
    %v3483 = vadd.f32 %v3363, %v3423
    %v3484 = vadd.f32 %v3364, %v3424
    %v3485 = vadd.f32 %v3365, %v3425
    %v3486 = vadd.f32 %v3366, %v3426
    %v3487 = vadd.f32 %v3367, %v3427
    %v3488 = vadd.f32 %v3368, %v3428
    %v3489 = vadd.f32 %v3369, %v3429
    %v3490 = vadd.f32 %v3370, %v3430
    %v3491 = vadd.f32 %v3371, %v3431
    %v3492 = vadd.f32 %v3372, %v3432
    %v3493 = vadd.f32 %v3373, %v3433
    %v3494 = vadd.f32 %v3374, %v3434
    %v3495 = vadd.f32 %v3375, %v3435
    %v3496 = vadd.f32 %v3376, %v3436
    %v3497 = vadd.f32 %v3377, %v3437
    %v3498 = vadd.f32 %v3378, %v3438
    %v3499 = vadd.f32 %v3379, %v3439
    %v3500 = vadd.f32 %v3380, %v3440
    %v3501 = vadd.f32 %v3381, %v3441
    %v3502 = vadd.f32 %v3382, %v3442
    %v3503 = vadd.f32 %v3383, %v3443
    %v3504 = vadd.f32 %v3384, %v3444
    %v3505 = vadd.f32 %v3385, %v3445
    %v3506 = vadd.f32 %v3386, %v3446
    %v3507 = vadd.f32 %v3387, %v3447
    %v3508 = vadd.f32 %v3388, %v3448
    %v3509 = vadd.f32 %v3389, %v3449
    %v3510 = vadd.f32 %v3390, %v3450
    %v3511 = vadd.f32 %v3391, %v3451
    %v3512 = vadd.f32 %v3392, %v3452
    %v3513 = vadd.f32 %v3393, %v3453
    %v3514 = vadd.f32 %v3394, %v3454
    %v3515 = vadd.f32 %v3395, %v3455
    %v3516 = vadd.f32 %v3396, %v3456
    %v3517 = vadd.f32 %v3397, %v3457
    %v3518 = vadd.f32 %v3398, %v3458
    %v3519 = vadd.f32 %v3399, %v3459
    %v3520 = vadd.f32 %v3400, %v3460
    %v3521 = vadd.f32 %v3401, %v3461
    %v3522 = vadd.f32 %v3402, %v3462
    %v3523 = vadd.f32 %v3403, %v3463
    %v3524 = vadd.f32 %v3404, %v3464
    %v3525 = vadd.f32 %v3405, %v3465
    %v3526 = vadd.f32 %v3406, %v3466
    %v3527 = vadd.f32 %v3407, %v3467
    %v3528 = vadd.f32 %v3408, %v3468
    %v3529 = vadd.f32 %v3409, %v3469
    %v3530 = vadd.f32 %v3410, %v3470
    %v3531 = vadd.f32 %v3411, %v3471
    %v3532 = vadd.f32 %v3412, %v3472
    %v3533 = vadd.f32 %v3169, 0.0
    %v3534 = vadd.f32 %v3170, 0.0
    %v3535 = vadd.f32 %v3171, %v2853
    %v3536 = vadd.f32 %v3172, %v2854
    %v3537 = vadd.f32 %v3173, %v2855
    %v3538 = vadd.f32 %v3174, %v2856
    %v3539 = vadd.f32 %v3175, %v2857
    %v3540 = vadd.f32 %v3176, %v2858
    %v3541 = vadd.f32 %v3177, %v2859
    %v3542 = vadd.f32 %v3178, %v2860
    %v3543 = vadd.f32 %v3179, %v2861
    %v3544 = vadd.f32 %v3180, %v2862
    %v3545 = vadd.f32 %v3181, %v2863
    %v3546 = vadd.f32 %v3182, %v2864
    %v3547 = vadd.f32 %v3183, %v2865
    %v3548 = vadd.f32 %v3184, %v2866
    %v3549 = vadd.f32 %v3185, %v2867
    %v3550 = vadd.f32 %v3186, %v2868
    %v3551 = vadd.f32 %v3187, %v2869
    %v3552 = vadd.f32 %v3188, %v2870
    %v3553 = vadd.f32 %v3189, %v2871
    %v3554 = vadd.f32 %v3190, %v2872
    %v3555 = vadd.f32 %v3191, %v2873
    %v3556 = vadd.f32 %v3192, %v2874
    %v3557 = vadd.f32 %v3193, %v2875
    %v3558 = vadd.f32 %v3194, %v2876
    %v3559 = vadd.f32 %v3195, %v2877
    %v3560 = vadd.f32 %v3196, %v2878
    %v3561 = vadd.f32 %v3197, %v2879
    %v3562 = vadd.f32 %v3198, %v2880
    %v3563 = vadd.f32 %v3199, %v2881
    %v3564 = vadd.f32 %v3200, %v2882
    %v3565 = vadd.f32 %v3201, 0.0
    %v3566 = vadd.f32 %v3202, 0.0
    %v3567 = vadd.f32 %v3203, %v2883
    %v3568 = vadd.f32 %v3204, %v2884
    %v3569 = vadd.f32 %v3205, %v2885
    %v3570 = vadd.f32 %v3206, %v2886
    %v3571 = vadd.f32 %v3207, %v2887
    %v3572 = vadd.f32 %v3208, %v2888
    %v3573 = vadd.f32 %v3209, %v2889
    %v3574 = vadd.f32 %v3210, %v2890
    %v3575 = vadd.f32 %v3211, %v2891
    %v3576 = vadd.f32 %v3212, %v2892
    %v3577 = vadd.f32 %v3213, %v2893
    %v3578 = vadd.f32 %v3214, %v2894
    %v3579 = vadd.f32 %v3215, %v2895
    %v3580 = vadd.f32 %v3216, %v2896
    %v3581 = vadd.f32 %v3217, %v2897
    %v3582 = vadd.f32 %v3218, %v2898
    %v3583 = vadd.f32 %v3219, %v2899
    %v3584 = vadd.f32 %v3220, %v2900
    %v3585 = vadd.f32 %v3221, %v2901
    %v3586 = vadd.f32 %v3222, %v2902
    %v3587 = vadd.f32 %v3223, %v2903
    %v3588 = vadd.f32 %v3224, %v2904
    %v3589 = vadd.f32 %v3225, %v2905
    %v3590 = vadd.f32 %v3226, %v2906
    %v3591 = vadd.f32 %v3227, %v2907
    %v3592 = vadd.f32 %v3228, %v2908
    %v3593 = vadd.f32 %v3229, %v2909
    %v3594 = vadd.f32 %v3230, %v2910
    %v3595 = vadd.f32 %v3231, %v2911
    %v3596 = vadd.f32 %v3232, %v2912
    %v3597 = vadd.f32 %v3533, %v3473
    %v3598 = vadd.f32 %v3534, %v3474
    %v3599 = vadd.f32 %v3535, %v3475
    %v3600 = vadd.f32 %v3536, %v3476
    %v3601 = vadd.f32 %v3537, %v3477
    %v3602 = vadd.f32 %v3538, %v3478
    %v3603 = vadd.f32 %v3539, %v3479
    %v3604 = vadd.f32 %v3540, %v3480
    %v3605 = vadd.f32 %v3541, %v3481
    %v3606 = vadd.f32 %v3542, %v3482
    %v3607 = vadd.f32 %v3543, %v3483
    %v3608 = vadd.f32 %v3544, %v3484
    %v3609 = vadd.f32 %v3545, %v3485
    %v3610 = vadd.f32 %v3546, %v3486
    %v3611 = vadd.f32 %v3547, %v3487
    %v3612 = vadd.f32 %v3548, %v3488
    %v3613 = vadd.f32 %v3549, %v3489
    %v3614 = vadd.f32 %v3550, %v3490
    %v3615 = vadd.f32 %v3551, %v3491
    %v3616 = vadd.f32 %v3552, %v3492
    %v3617 = vadd.f32 %v3553, %v3493
    %v3618 = vadd.f32 %v3554, %v3494
    %v3619 = vadd.f32 %v3555, %v3495
    %v3620 = vadd.f32 %v3556, %v3496
    %v3621 = vadd.f32 %v3557, %v3497
    %v3622 = vadd.f32 %v3558, %v3498
    %v3623 = vadd.f32 %v3559, %v3499
    %v3624 = vadd.f32 %v3560, %v3500
    %v3625 = vadd.f32 %v3561, %v3501
    %v3626 = vadd.f32 %v3562, %v3502
    %v3627 = vadd.f32 %v3563, 0.0
    %v3628 = vadd.f32 %v3564, 0.0
    %v3629 = vadd.f32 %v3565, %v3503
    %v3630 = vadd.f32 %v3566, %v3504
    %v3631 = vadd.f32 %v3567, %v3505
    %v3632 = vadd.f32 %v3568, %v3506
    %v3633 = vadd.f32 %v3569, %v3507
    %v3634 = vadd.f32 %v3570, %v3508
    %v3635 = vadd.f32 %v3571, %v3509
    %v3636 = vadd.f32 %v3572, %v3510
    %v3637 = vadd.f32 %v3573, %v3511
    %v3638 = vadd.f32 %v3574, %v3512
    %v3639 = vadd.f32 %v3575, %v3513
    %v3640 = vadd.f32 %v3576, %v3514
    %v3641 = vadd.f32 %v3577, %v3515
    %v3642 = vadd.f32 %v3578, %v3516
    %v3643 = vadd.f32 %v3579, %v3517
    %v3644 = vadd.f32 %v3580, %v3518
    %v3645 = vadd.f32 %v3581, %v3519
    %v3646 = vadd.f32 %v3582, %v3520
    %v3647 = vadd.f32 %v3583, %v3521
    %v3648 = vadd.f32 %v3584, %v3522
    %v3649 = vadd.f32 %v3585, %v3523
    %v3650 = vadd.f32 %v3586, %v3524
    %v3651 = vadd.f32 %v3587, %v3525
    %v3652 = vadd.f32 %v3588, %v3526
    %v3653 = vadd.f32 %v3589, %v3527
    %v3654 = vadd.f32 %v3590, %v3528
    %v3655 = vadd.f32 %v3591, %v3529
    %v3656 = vadd.f32 %v3592, %v3530
    %v3657 = vadd.f32 %v3593, %v3531
    %v3658 = vadd.f32 %v3594, %v3532
    %v3659 = vadd.f32 %v3595, 0.0
    %v3660 = vadd.f32 %v3596, 0.0
    %v3661 = vpack.c.bf16 %v3598, %v3597
    %v3662 = vpack.c.bf16 %v3600, %v3599
    %v3663 = vpack.c.bf16 %v3602, %v3601
    %v3664 = vpack.c.bf16 %v3604, %v3603
    %v3665 = vpack.c.bf16 %v3606, %v3605
    %v3666 = vpack.c.bf16 %v3608, %v3607
    %v3667 = vpack.c.bf16 %v3610, %v3609
    %v3668 = vpack.c.bf16 %v3612, %v3611
    %v3669 = vpack.c.bf16 %v3614, %v3613
    %v3670 = vpack.c.bf16 %v3616, %v3615
    %v3671 = vpack.c.bf16 %v3618, %v3617
    %v3672 = vpack.c.bf16 %v3620, %v3619
    %v3673 = vpack.c.bf16 %v3622, %v3621
    %v3674 = vpack.c.bf16 %v3624, %v3623
    %v3675 = vpack.c.bf16 %v3626, %v3625
    %v3676 = vpack.c.bf16 %v3628, %v3627
    %v3677 = vpack.c.bf16 %v3630, %v3629
    %v3678 = vpack.c.bf16 %v3632, %v3631
    %v3679 = vpack.c.bf16 %v3634, %v3633
    %v3680 = vpack.c.bf16 %v3636, %v3635
    %v3681 = vpack.c.bf16 %v3638, %v3637
    %v3682 = vpack.c.bf16 %v3640, %v3639
    %v3683 = vpack.c.bf16 %v3642, %v3641
    %v3684 = vpack.c.bf16 %v3644, %v3643
    %v3685 = vpack.c.bf16 %v3646, %v3645
    %v3686 = vpack.c.bf16 %v3648, %v3647
    %v3687 = vpack.c.bf16 %v3650, %v3649
    %v3688 = vpack.c.bf16 %v3652, %v3651
    %v3689 = vpack.c.bf16 %v3654, %v3653
    %v3690 = vpack.c.bf16 %v3656, %v3655
    %v3691 = vpack.c.bf16 %v3658, %v3657
    %v3692 = vpack.c.bf16 %v3660, %v3659
    %v3693 = vld [vmem:[%s9] sm:$0xf]
    %v3694 = vld [vmem:[%s9 + $0x4] sm:$0xf]
    %v3695 = vld [vmem:[%s9 + $0x8] sm:$0xf]
    %v3696 = vld [vmem:[%s9 + $0xc] sm:$0xf]
    %v3701 = vunpack.c.l.b16 %v3693
    %v3702 = vunpack.c.l.b16 %v3694
    %v3703 = vunpack.c.l.b16 %v3695
    %v3704 = vunpack.c.l.b16 %v3696
    %v3705 = vpack.c.b16 %v3702, %v3701
    %v3706 = vpack.c.b16 %v3704, %v3703
    %v3710 = vsel %vm2005, %v3661, 0
    %v3713 = vsel %vm2005, %v3662, 0
    %v3716 = vsel %vm2005, %v3663, 0
    %v3719 = vsel %vm2005, %v3664, 0
    %v3722 = vsel %vm2005, %v3665, 0
    %v3725 = vsel %vm2005, %v3666, 0
    %v3728 = vsel %vm2005, %v3667, 0
    %v3731 = vsel %vm2005, %v3668, 0
    %v3734 = vsel %vm2005, %v3669, 0
    %v3737 = vsel %vm2005, %v3670, 0
    %v3740 = vsel %vm2005, %v3671, 0
    %v3743 = vsel %vm2005, %v3672, 0
    %v3746 = vsel %vm2005, %v3673, 0
    %v3749 = vsel %vm2005, %v3674, 0
    %v3752 = vsel %vm2005, %v3675, 0
    %v3755 = vsel %vm2005, %v3676, 0
    %v3758 = vsel %vm2005, %v3677, 0
    %v3761 = vsel %vm2005, %v3678, 0
    %v3764 = vsel %vm2005, %v3679, 0
    %v3767 = vsel %vm2005, %v3680, 0
    %v3770 = vsel %vm2005, %v3681, 0
    %v3773 = vsel %vm2005, %v3682, 0
    %v3776 = vsel %vm2005, %v3683, 0
    %v3779 = vsel %vm2005, %v3684, 0
    %v3782 = vsel %vm2005, %v3685, 0
    %v3785 = vsel %vm2005, %v3686, 0
    %v3788 = vsel %vm2005, %v3687, 0
    %v3791 = vsel %vm2005, %v3688, 0
    %v3794 = vsel %vm2005, %v3689, 0
    %v3797 = vsel %vm2005, %v3690, 0
    %v3800 = vsel %vm2005, %v3691, 0
    %v3803 = vsel %vm2005, %v3692, 0
    %3805 = vmatpush.bf16.msra.mxu0 0
    %3806 = vmatpush.bf16.msra.mxu0 0
    %3807 = vmatpush.bf16.msra.mxu0 0
    %3808 = vmatpush.bf16.msra.mxu0 0
    %3809 = vmatpush.bf16.msra.mxu0 0
    %3810 = vmatpush.bf16.msra.mxu0 0
    %3811 = vmatpush.bf16.msra.mxu0 %v3706
    %3812 = vmatpush.bf16.msra.mxu0 %v3705
    %3813 = vmatmul.bf16.gmra.mxu0 %v3710
    %v3814 = vpop.f32.mrf.mxu0
    %v3815 = vadd.f32 0.0, %v3814
    %v3816 = vpop.f32.mrf.mxu0
    %v3817 = vadd.f32 0.0, %v3816
    %3818 = vmatmul.bf16.gmra.mxu0 %v3713
    %v3819 = vpop.f32.mrf.mxu0
    %v3820 = vadd.f32 0.0, %v3819
    %v3821 = vpop.f32.mrf.mxu0
    %v3822 = vadd.f32 0.0, %v3821
    %3823 = vmatmul.bf16.gmra.mxu0 %v3716
    %v3824 = vpop.f32.mrf.mxu0
    %v3825 = vadd.f32 0.0, %v3824
    %v3826 = vpop.f32.mrf.mxu0
    %v3827 = vadd.f32 0.0, %v3826
    %3828 = vmatmul.bf16.gmra.mxu0 %v3719
    %v3829 = vpop.f32.mrf.mxu0
    %v3830 = vadd.f32 0.0, %v3829
    %v3831 = vpop.f32.mrf.mxu0
    %v3832 = vadd.f32 0.0, %v3831
    %3833 = vmatmul.bf16.gmra.mxu0 %v3722
    %v3834 = vpop.f32.mrf.mxu0
    %v3835 = vadd.f32 0.0, %v3834
    %v3836 = vpop.f32.mrf.mxu0
    %v3837 = vadd.f32 0.0, %v3836
    %3838 = vmatmul.bf16.gmra.mxu0 %v3725
    %v3839 = vpop.f32.mrf.mxu0
    %v3840 = vadd.f32 0.0, %v3839
    %v3841 = vpop.f32.mrf.mxu0
    %v3842 = vadd.f32 0.0, %v3841
    %3843 = vmatmul.bf16.gmra.mxu0 %v3728
    %v3844 = vpop.f32.mrf.mxu0
    %v3845 = vadd.f32 0.0, %v3844
    %v3846 = vpop.f32.mrf.mxu0
    %v3847 = vadd.f32 0.0, %v3846
    %3848 = vmatmul.bf16.gmra.mxu0 %v3731
    %v3849 = vpop.f32.mrf.mxu0
    %v3850 = vadd.f32 0.0, %v3849
    %v3851 = vpop.f32.mrf.mxu0
    %v3852 = vadd.f32 0.0, %v3851
    %3853 = vmatmul.bf16.gmra.mxu0 %v3734
    %v3854 = vpop.f32.mrf.mxu0
    %v3855 = vadd.f32 0.0, %v3854
    %v3856 = vpop.f32.mrf.mxu0
    %v3857 = vadd.f32 0.0, %v3856
    %3858 = vmatmul.bf16.gmra.mxu0 %v3737
    %v3859 = vpop.f32.mrf.mxu0
    %v3860 = vadd.f32 0.0, %v3859
    %v3861 = vpop.f32.mrf.mxu0
    %v3862 = vadd.f32 0.0, %v3861
    %3863 = vmatmul.bf16.gmra.mxu0 %v3740
    %v3864 = vpop.f32.mrf.mxu0
    %v3865 = vadd.f32 0.0, %v3864
    %v3866 = vpop.f32.mrf.mxu0
    %v3867 = vadd.f32 0.0, %v3866
    %3868 = vmatmul.bf16.gmra.mxu0 %v3743
    %v3869 = vpop.f32.mrf.mxu0
    %v3870 = vadd.f32 0.0, %v3869
    %v3871 = vpop.f32.mrf.mxu0
    %v3872 = vadd.f32 0.0, %v3871
    %3873 = vmatmul.bf16.gmra.mxu0 %v3746
    %v3874 = vpop.f32.mrf.mxu0
    %v3875 = vadd.f32 0.0, %v3874
    %v3876 = vpop.f32.mrf.mxu0
    %v3877 = vadd.f32 0.0, %v3876
    %3878 = vmatmul.bf16.gmra.mxu0 %v3749
    %v3879 = vpop.f32.mrf.mxu0
    %v3880 = vadd.f32 0.0, %v3879
    %v3881 = vpop.f32.mrf.mxu0
    %v3882 = vadd.f32 0.0, %v3881
    %3883 = vmatmul.bf16.gmra.mxu0 %v3752
    %v3884 = vpop.f32.mrf.mxu0
    %v3885 = vadd.f32 0.0, %v3884
    %v3886 = vpop.f32.mrf.mxu0
    %v3887 = vadd.f32 0.0, %v3886
    %3888 = vmatmul.bf16.gmra.mxu0 %v3755
    %v3889 = vpop.f32.mrf.mxu0
    %v3890 = vadd.f32 0.0, %v3889
    %v3891 = vpop.f32.mrf.mxu0
    %v3892 = vadd.f32 0.0, %v3891
    %3893 = vmatmul.bf16.gmra.mxu0 %v3758
    %v3894 = vpop.f32.mrf.mxu0
    %v3895 = vadd.f32 0.0, %v3894
    %v3896 = vpop.f32.mrf.mxu0
    %v3897 = vadd.f32 0.0, %v3896
    %3898 = vmatmul.bf16.gmra.mxu0 %v3761
    %v3899 = vpop.f32.mrf.mxu0
    %v3900 = vadd.f32 0.0, %v3899
    %v3901 = vpop.f32.mrf.mxu0
    %v3902 = vadd.f32 0.0, %v3901
    %3903 = vmatmul.bf16.gmra.mxu0 %v3764
    %v3904 = vpop.f32.mrf.mxu0
    %v3905 = vadd.f32 0.0, %v3904
    %v3906 = vpop.f32.mrf.mxu0
    %v3907 = vadd.f32 0.0, %v3906
    %3908 = vmatmul.bf16.gmra.mxu0 %v3767
    %v3909 = vpop.f32.mrf.mxu0
    %v3910 = vadd.f32 0.0, %v3909
    %v3911 = vpop.f32.mrf.mxu0
    %v3912 = vadd.f32 0.0, %v3911
    %3913 = vmatmul.bf16.gmra.mxu0 %v3770
    %v3914 = vpop.f32.mrf.mxu0
    %v3915 = vadd.f32 0.0, %v3914
    %v3916 = vpop.f32.mrf.mxu0
    %v3917 = vadd.f32 0.0, %v3916
    %3918 = vmatmul.bf16.gmra.mxu0 %v3773
    %v3919 = vpop.f32.mrf.mxu0
    %v3920 = vadd.f32 0.0, %v3919
    %v3921 = vpop.f32.mrf.mxu0
    %v3922 = vadd.f32 0.0, %v3921
    %3923 = vmatmul.bf16.gmra.mxu0 %v3776
    %v3924 = vpop.f32.mrf.mxu0
    %v3925 = vadd.f32 0.0, %v3924
    %v3926 = vpop.f32.mrf.mxu0
    %v3927 = vadd.f32 0.0, %v3926
    %3928 = vmatmul.bf16.gmra.mxu0 %v3779
    %v3929 = vpop.f32.mrf.mxu0
    %v3930 = vadd.f32 0.0, %v3929
    %v3931 = vpop.f32.mrf.mxu0
    %v3932 = vadd.f32 0.0, %v3931
    %3933 = vmatmul.bf16.gmra.mxu0 %v3782
    %v3934 = vpop.f32.mrf.mxu0
    %v3935 = vadd.f32 0.0, %v3934
    %v3936 = vpop.f32.mrf.mxu0
    %v3937 = vadd.f32 0.0, %v3936
    %3938 = vmatmul.bf16.gmra.mxu0 %v3785
    %v3939 = vpop.f32.mrf.mxu0
    %v3940 = vadd.f32 0.0, %v3939
    %v3941 = vpop.f32.mrf.mxu0
    %v3942 = vadd.f32 0.0, %v3941
    %3943 = vmatmul.bf16.gmra.mxu0 %v3788
    %v3944 = vpop.f32.mrf.mxu0
    %v3945 = vadd.f32 0.0, %v3944
    %v3946 = vpop.f32.mrf.mxu0
    %v3947 = vadd.f32 0.0, %v3946
    %3948 = vmatmul.bf16.gmra.mxu0 %v3791
    %v3949 = vpop.f32.mrf.mxu0
    %v3950 = vadd.f32 0.0, %v3949
    %v3951 = vpop.f32.mrf.mxu0
    %v3952 = vadd.f32 0.0, %v3951
    %3953 = vmatmul.bf16.gmra.mxu0 %v3794
    %v3954 = vpop.f32.mrf.mxu0
    %v3955 = vadd.f32 0.0, %v3954
    %v3956 = vpop.f32.mrf.mxu0
    %v3957 = vadd.f32 0.0, %v3956
    %3958 = vmatmul.bf16.gmra.mxu0 %v3797
    %v3959 = vpop.f32.mrf.mxu0
    %v3960 = vadd.f32 0.0, %v3959
    %v3961 = vpop.f32.mrf.mxu0
    %v3962 = vadd.f32 0.0, %v3961
    %3963 = vmatmul.bf16.gmra.mxu0 %v3800
    %v3964 = vpop.f32.mrf.mxu0
    %v3965 = vadd.f32 0.0, %v3964
    %v3966 = vpop.f32.mrf.mxu0
    %v3967 = vadd.f32 0.0, %v3966
    %3968 = vmatmul.bf16.gmra.mxu0 %v3803
    %v3969 = vpop.f32.mrf.mxu0
    %v3970 = vadd.f32 0.0, %v3969
    %v3971 = vpop.f32.mrf.mxu0
    %v3972 = vadd.f32 0.0, %v3971
    %3973 = vdwg.mxu0
    %v3974 = vadd.f32 %v3815, %v3817
    %v3975 = vadd.f32 %v3974, %v3820
    %v3976 = vadd.f32 %v3975, %v3822
    %v3977 = vadd.f32 %v3976, %v3825
    %v3978 = vadd.f32 %v3977, %v3827
    %v3979 = vadd.f32 %v3978, %v3830
    %v3980 = vadd.f32 %v3979, %v3832
    %v3981 = vadd.f32 %v3980, %v3835
    %v3982 = vadd.f32 %v3981, %v3837
    %v3983 = vadd.f32 %v3982, %v3840
    %v3984 = vadd.f32 %v3983, %v3842
    %v3985 = vadd.f32 %v3984, %v3845
    %v3986 = vadd.f32 %v3985, %v3847
    %v3987 = vadd.f32 %v3986, %v3850
    %v3988 = vadd.f32 %v3987, %v3852
    %v3989 = vadd.f32 %v3988, %v3855
    %v3990 = vadd.f32 %v3989, %v3857
    %v3991 = vadd.f32 %v3990, %v3860
    %v3992 = vadd.f32 %v3991, %v3862
    %v3993 = vadd.f32 %v3992, %v3865
    %v3994 = vadd.f32 %v3993, %v3867
    %v3995 = vadd.f32 %v3994, %v3870
    %v3996 = vadd.f32 %v3995, %v3872
    %v3997 = vadd.f32 %v3996, %v3875
    %v3998 = vadd.f32 %v3997, %v3877
    %v3999 = vadd.f32 %v3998, %v3880
    %v4000 = vadd.f32 %v3999, %v3882
    %v4001 = vadd.f32 %v4000, %v3885
    %v4002 = vadd.f32 %v4001, %v3887
    %v4003 = vadd.f32 %v4002, %v3890
    %v4004 = vadd.f32 %v4003, %v3892
    %v4005 = vrot.slane %v4004, 4
    %v4006 = vadd.f32 %v4004, %v4005
    %v4007 = vrot.slane %v4006, 2
    %v4008 = vadd.f32 %v4006, %v4007
    %v4009 = vrot.slane %v4008, 1
    %v4010 = vadd.f32 %v4008, %v4009
    %v4011 = vadd.f32 %v3895, %v3897
    %v4012 = vadd.f32 %v4011, %v3900
    %v4013 = vadd.f32 %v4012, %v3902
    %v4014 = vadd.f32 %v4013, %v3905
    %v4015 = vadd.f32 %v4014, %v3907
    %v4016 = vadd.f32 %v4015, %v3910
    %v4017 = vadd.f32 %v4016, %v3912
    %v4018 = vadd.f32 %v4017, %v3915
    %v4019 = vadd.f32 %v4018, %v3917
    %v4020 = vadd.f32 %v4019, %v3920
    %v4021 = vadd.f32 %v4020, %v3922
    %v4022 = vadd.f32 %v4021, %v3925
    %v4023 = vadd.f32 %v4022, %v3927
    %v4024 = vadd.f32 %v4023, %v3930
    %v4025 = vadd.f32 %v4024, %v3932
    %v4026 = vadd.f32 %v4025, %v3935
    %v4027 = vadd.f32 %v4026, %v3937
    %v4028 = vadd.f32 %v4027, %v3940
    %v4029 = vadd.f32 %v4028, %v3942
    %v4030 = vadd.f32 %v4029, %v3945
    %v4031 = vadd.f32 %v4030, %v3947
    %v4032 = vadd.f32 %v4031, %v3950
    %v4033 = vadd.f32 %v4032, %v3952
    %v4034 = vadd.f32 %v4033, %v3955
    %v4035 = vadd.f32 %v4034, %v3957
    %v4036 = vadd.f32 %v4035, %v3960
    %v4037 = vadd.f32 %v4036, %v3962
    %v4038 = vadd.f32 %v4037, %v3965
    %v4039 = vadd.f32 %v4038, %v3967
    %v4040 = vadd.f32 %v4039, %v3970
    %v4041 = vadd.f32 %v4040, %v3972
    %v4042 = vrot.slane %v4041, 4
    %v4043 = vadd.f32 %v4041, %v4042
    %v4044 = vrot.slane %v4043, 2
    %v4045 = vadd.f32 %v4043, %v4044
    %v4046 = vrot.slane %v4045, 1
    %v4047 = vadd.f32 %v4045, %v4046
    %v4048 = vmul.f32 %v3815, %v3815
    %v4049 = vmul.f32 %v3817, %v3817
    %v4050 = vmul.f32 %v3820, %v3820
    %v4051 = vmul.f32 %v3822, %v3822
    %v4052 = vmul.f32 %v3825, %v3825
    %v4053 = vmul.f32 %v3827, %v3827
    %v4054 = vmul.f32 %v3830, %v3830
    %v4055 = vmul.f32 %v3832, %v3832
    %v4056 = vmul.f32 %v3835, %v3835
    %v4057 = vmul.f32 %v3837, %v3837
    %v4058 = vmul.f32 %v3840, %v3840
    %v4059 = vmul.f32 %v3842, %v3842
    %v4060 = vmul.f32 %v3845, %v3845
    %v4061 = vmul.f32 %v3847, %v3847
    %v4062 = vmul.f32 %v3850, %v3850
    %v4063 = vmul.f32 %v3852, %v3852
    %v4064 = vmul.f32 %v3855, %v3855
    %v4065 = vmul.f32 %v3857, %v3857
    %v4066 = vmul.f32 %v3860, %v3860
    %v4067 = vmul.f32 %v3862, %v3862
    %v4068 = vmul.f32 %v3865, %v3865
    %v4069 = vmul.f32 %v3867, %v3867
    %v4070 = vmul.f32 %v3870, %v3870
    %v4071 = vmul.f32 %v3872, %v3872
    %v4072 = vmul.f32 %v3875, %v3875
    %v4073 = vmul.f32 %v3877, %v3877
    %v4074 = vmul.f32 %v3880, %v3880
    %v4075 = vmul.f32 %v3882, %v3882
    %v4076 = vmul.f32 %v3885, %v3885
    %v4077 = vmul.f32 %v3887, %v3887
    %v4078 = vmul.f32 %v3890, %v3890
    %v4079 = vmul.f32 %v3892, %v3892
    %v4080 = vmul.f32 %v3895, %v3895
    %v4081 = vmul.f32 %v3897, %v3897
    %v4082 = vmul.f32 %v3900, %v3900
    %v4083 = vmul.f32 %v3902, %v3902
    %v4084 = vmul.f32 %v3905, %v3905
    %v4085 = vmul.f32 %v3907, %v3907
    %v4086 = vmul.f32 %v3910, %v3910
    %v4087 = vmul.f32 %v3912, %v3912
    %v4088 = vmul.f32 %v3915, %v3915
    %v4089 = vmul.f32 %v3917, %v3917
    %v4090 = vmul.f32 %v3920, %v3920
    %v4091 = vmul.f32 %v3922, %v3922
    %v4092 = vmul.f32 %v3925, %v3925
    %v4093 = vmul.f32 %v3927, %v3927
    %v4094 = vmul.f32 %v3930, %v3930
    %v4095 = vmul.f32 %v3932, %v3932
    %v4096 = vmul.f32 %v3935, %v3935
    %v4097 = vmul.f32 %v3937, %v3937
    %v4098 = vmul.f32 %v3940, %v3940
    %v4099 = vmul.f32 %v3942, %v3942
    %v4100 = vmul.f32 %v3945, %v3945
    %v4101 = vmul.f32 %v3947, %v3947
    %v4102 = vmul.f32 %v3950, %v3950
    %v4103 = vmul.f32 %v3952, %v3952
    %v4104 = vmul.f32 %v3955, %v3955
    %v4105 = vmul.f32 %v3957, %v3957
    %v4106 = vmul.f32 %v3960, %v3960
    %v4107 = vmul.f32 %v3962, %v3962
    %v4108 = vmul.f32 %v3965, %v3965
    %v4109 = vmul.f32 %v3967, %v3967
    %v4110 = vmul.f32 %v3970, %v3970
    %v4111 = vmul.f32 %v3972, %v3972
    %v4112 = vadd.f32 %v4048, %v4049
    %v4113 = vadd.f32 %v4112, %v4050
    %v4114 = vadd.f32 %v4113, %v4051
    %v4115 = vadd.f32 %v4114, %v4052
    %v4116 = vadd.f32 %v4115, %v4053
    %v4117 = vadd.f32 %v4116, %v4054
    %v4118 = vadd.f32 %v4117, %v4055
    %v4119 = vadd.f32 %v4118, %v4056
    %v4120 = vadd.f32 %v4119, %v4057
    %v4121 = vadd.f32 %v4120, %v4058
    %v4122 = vadd.f32 %v4121, %v4059
    %v4123 = vadd.f32 %v4122, %v4060
    %v4124 = vadd.f32 %v4123, %v4061
    %v4125 = vadd.f32 %v4124, %v4062
    %v4126 = vadd.f32 %v4125, %v4063
    %v4127 = vadd.f32 %v4126, %v4064
    %v4128 = vadd.f32 %v4127, %v4065
    %v4129 = vadd.f32 %v4128, %v4066
    %v4130 = vadd.f32 %v4129, %v4067
    %v4131 = vadd.f32 %v4130, %v4068
    %v4132 = vadd.f32 %v4131, %v4069
    %v4133 = vadd.f32 %v4132, %v4070
    %v4134 = vadd.f32 %v4133, %v4071
    %v4135 = vadd.f32 %v4134, %v4072
    %v4136 = vadd.f32 %v4135, %v4073
    %v4137 = vadd.f32 %v4136, %v4074
    %v4138 = vadd.f32 %v4137, %v4075
    %v4139 = vadd.f32 %v4138, %v4076
    %v4140 = vadd.f32 %v4139, %v4077
    %v4141 = vadd.f32 %v4140, %v4078
    %v4142 = vadd.f32 %v4141, %v4079
    %v4143 = vrot.slane %v4142, 4
    %v4144 = vadd.f32 %v4142, %v4143
    %v4145 = vrot.slane %v4144, 2
    %v4146 = vadd.f32 %v4144, %v4145
    %v4147 = vrot.slane %v4146, 1
    %v4148 = vadd.f32 %v4146, %v4147
    %v4149 = vadd.f32 %v4080, %v4081
    %v4150 = vadd.f32 %v4149, %v4082
    %v4151 = vadd.f32 %v4150, %v4083
    %v4152 = vadd.f32 %v4151, %v4084
    %v4153 = vadd.f32 %v4152, %v4085
    %v4154 = vadd.f32 %v4153, %v4086
    %v4155 = vadd.f32 %v4154, %v4087
    %v4156 = vadd.f32 %v4155, %v4088
    %v4157 = vadd.f32 %v4156, %v4089
    %v4158 = vadd.f32 %v4157, %v4090
    %v4159 = vadd.f32 %v4158, %v4091
    %v4160 = vadd.f32 %v4159, %v4092
    %v4161 = vadd.f32 %v4160, %v4093
    %v4162 = vadd.f32 %v4161, %v4094
    %v4163 = vadd.f32 %v4162, %v4095
    %v4164 = vadd.f32 %v4163, %v4096
    %v4165 = vadd.f32 %v4164, %v4097
    %v4166 = vadd.f32 %v4165, %v4098
    %v4167 = vadd.f32 %v4166, %v4099
    %v4168 = vadd.f32 %v4167, %v4100
    %v4169 = vadd.f32 %v4168, %v4101
    %v4170 = vadd.f32 %v4169, %v4102
    %v4171 = vadd.f32 %v4170, %v4103
    %v4172 = vadd.f32 %v4171, %v4104
    %v4173 = vadd.f32 %v4172, %v4105
    %v4174 = vadd.f32 %v4173, %v4106
    %v4175 = vadd.f32 %v4174, %v4107
    %v4176 = vadd.f32 %v4175, %v4108
    %v4177 = vadd.f32 %v4176, %v4109
    %v4178 = vadd.f32 %v4177, %v4110
    %v4179 = vadd.f32 %v4178, %v4111
    %v4180 = vrot.slane %v4179, 4
    %v4181 = vadd.f32 %v4179, %v4180
    %v4182 = vrot.slane %v4181, 2
    %v4183 = vadd.f32 %v4181, %v4182
    %v4184 = vrot.slane %v4183, 1
    %v4185 = vadd.f32 %v4183, %v4184
    %v4186 = vld [vmem:[%s12] sm:$0xff]
    %v4187 = vld [vmem:[%s12 + $0x8] sm:$0xff]
    %v4188 = vld [vmem:[%s12 + $0x10] sm:$0xff]
    %v4189 = vld [vmem:[%s12 + $0x18] sm:$0xff]
    %v4190 = vld [vmem:[%s12 + $0x20] sm:$0xff]
    %v4191 = vld [vmem:[%s12 + $0x28] sm:$0xff]
    %v4192 = vld [vmem:[%s12 + $0x30] sm:$0xff]
    %v4193 = vld [vmem:[%s12 + $0x38] sm:$0xff]
    %v4194 = vld [vmem:[%s12 + $0x40] sm:$0xff]
    %v4195 = vld [vmem:[%s12 + $0x48] sm:$0xff]
    %v4196 = vld [vmem:[%s12 + $0x50] sm:$0xff]
    %v4197 = vld [vmem:[%s12 + $0x58] sm:$0xff]
    %v4198 = vld [vmem:[%s12 + $0x60] sm:$0xff]
    %v4199 = vld [vmem:[%s12 + $0x68] sm:$0xff]
    %v4200 = vld [vmem:[%s12 + $0x70] sm:$0xff]
    %v4201 = vld [vmem:[%s12 + $0x78] sm:$0xff]
    %v4206 = vrot.slane %v4047, 7
    %vm4207 = vcmask 1041409
    %v4208 = vsel %vm4207, %v4206, %v4010
    %v4209 = vrot.slane %v4148, 6
    %vm4210 = vcmask 1042434
    %v4211 = vsel %vm4210, %v4209, %v4208
    %v4212 = vrot.slane %v4185, 5
    %vm4213 = vcmask 1043459
    %v4214 = vsel %vm4213, %v4212, %v4211
    %4216 = vmatpush.msra.mxu0 %v4201
    %4217 = vmatpush.msra.mxu0 %v4200
    %4218 = vmatpush.msra.mxu0 %v4199
    %4219 = vmatpush.msra.mxu0 %v4198
    %4220 = vmatpush.msra.mxu0 %v4197
    %4221 = vmatpush.msra.mxu0 %v4196
    %4222 = vmatpush.msra.mxu0 %v4195
    %4223 = vmatpush.msra.mxu0 %v4194
    %4224 = vmatpush.msra.mxu0 %v4193
    %4225 = vmatpush.msra.mxu0 %v4192
    %4226 = vmatpush.msra.mxu0 %v4191
    %4227 = vmatpush.msra.mxu0 %v4190
    %4228 = vmatpush.msra.mxu0 %v4189
    %4229 = vmatpush.msra.mxu0 %v4188
    %4230 = vmatpush.msra.mxu0 %v4187
    %4231 = vmatpush.msra.mxu0 %v4186
    %4232 = vmatmul.f32.gmra.mxu0 %v4214
    %v4233 = vpop.f32.mrf.mxu0
    %v4234 = vadd.f32 0.0, %v4233
    %4235 = vdwg.mxu0
    %v4237 = vrot.slane %v4234, 2
    %v4239 = vmul.f32 %v4234, %v4234
    %v4240 = vsub.f32 %v4237, %v4239
    %v4241 = vadd.f32 %v4240, 1e-05
    %v4242 = vrsqrt.pop %v4241
    %v4243 = vmul.f32 %v4242, %v4241
    %v4244 = vmul.f32 %v4243, %v4242
    %v4245 = vmul.f32 0.5, %v4244
    %v4246 = vsub.f32 1.5, %v4245
    %v4247 = vmul.f32 %v4242, %v4246
    %vm4248 = vweird.f32 %v4241
    %vm4249 = vweird.f32 %v4242
    %vm4250 = vmor %vm4248, %vm4249
    %v4251 = vsel %vm4250, %v4242, %v4247
    %v4252 = vld [vmem:[%s13] sm:$0xf]
    %4254 = vst [vmem:[#allocation1] ss:$4 sm:$0xff] %v4234
    %s4255 = scalar_lea.vmem [#allocation1], 1
    %4256 = vst [vmem:[%s4255] ss:$4 sm:$0xff] %v4251
    %v4257 = vld.sshfl [vmem:[#allocation1] sm:$0xff pattern:$0x73625140]
    %vm4258 = vcmask 31744
    %v4259 = vsel %vm4258, %v4257, 0
    %v4262 = vsel %vm1820, %v4252, 0
    %4264 = vmatpush.msra.mxu0 0.0
    %4265 = vmatpush.msra.mxu0 0.0
    %4266 = vmatpush.msra.mxu0 0.0
    %4267 = vmatpush.msra.mxu0 0.0
    %4268 = vmatpush.msra.mxu0 0.0
    %4269 = vmatpush.msra.mxu0 0.0
    %4270 = vmatpush.msra.mxu0 0.0
    %4271 = vmatpush.msra.mxu0 0.0
    %4272 = vmatpush.msra.mxu0 0.0
    %4273 = vmatpush.msra.mxu0 0.0
    %4274 = vmatpush.msra.mxu0 0.0
    %4275 = vmatpush.msra.mxu0 0.0
    %4276 = vmatpush.msra.mxu0 0.0
    %4277 = vmatpush.msra.mxu0 0.0
    %4278 = vmatpush.msra.mxu0 0.0
    %4279 = vmatpush.msra.mxu0 %v4262
    %4280 = vmatmul.f32.gmra.mxu0 %v4259
    %v4281 = vpop.f32.mrf.mxu0
    %v4282 = vadd.f32 0.0, %v4281
    %4283 = vdwg.mxu0
    %v4285 = vrot.slane %v4282, 2
    %v4287 = vld [vmem:[%s10] sm:$0x1]
    %v4289 = vperm.slane %v4287, 0
    %v4291 = vmul.f32 %v4285, %v4289
    %v4292 = vld [vmem:[%s11] sm:$0x1]
    %v4293 = vmul.f32 %v4282, %v4291
    %v4295 = vperm.slane %v4292, 0
    %v4297 = vsub.f32 %v4295, %v4293
    %v4299 = vrot.slane %v4291, 1
    %v4300 = vrot.slane %v4291, 2
    %v4301 = vrot.slane %v4291, 3
    %vm4302 = vcmask 1040384
    %v4303 = vsel %vm4302, %v4291, %v4299
    %v4304 = vsel %vm4210, %v4300, %v4301
    %vm4305 = vcmask 1041408
    %v4306 = vsel %vm4305, %v4303, %v4304
    %v4307 = vsel %vm4207, %v4291, %v4299
    %v4308 = vsel %vm4213, %v4300, %v4301
    %vm4309 = vcmask 1042433
    %v4310 = vsel %vm4309, %v4307, %v4308
    %v4311 = vrot.slane %v4310, 1
    %v4312 = vperm.slane %v4306, 0
    %v4313 = vperm.slane %v4311, 0
    %v4316 = vmul.f32 %v3815, %v4312
    %v4317 = vmul.f32 %v3817, %v4312
    %v4318 = vmul.f32 %v3820, %v4312
    %v4319 = vmul.f32 %v3822, %v4312
    %v4320 = vmul.f32 %v3825, %v4312
    %v4321 = vmul.f32 %v3827, %v4312
    %v4322 = vmul.f32 %v3830, %v4312
    %v4323 = vmul.f32 %v3832, %v4312
    %v4324 = vmul.f32 %v3835, %v4312
    %v4325 = vmul.f32 %v3837, %v4312
    %v4326 = vmul.f32 %v3840, %v4312
    %v4327 = vmul.f32 %v3842, %v4312
    %v4328 = vmul.f32 %v3845, %v4312
    %v4329 = vmul.f32 %v3847, %v4312
    %v4330 = vmul.f32 %v3850, %v4312
    %v4331 = vmul.f32 %v3852, %v4312
    %v4332 = vmul.f32 %v3855, %v4312
    %v4333 = vmul.f32 %v3857, %v4312
    %v4334 = vmul.f32 %v3860, %v4312
    %v4335 = vmul.f32 %v3862, %v4312
    %v4336 = vmul.f32 %v3865, %v4312
    %v4337 = vmul.f32 %v3867, %v4312
    %v4338 = vmul.f32 %v3870, %v4312
    %v4339 = vmul.f32 %v3872, %v4312
    %v4340 = vmul.f32 %v3875, %v4312
    %v4341 = vmul.f32 %v3877, %v4312
    %v4342 = vmul.f32 %v3880, %v4312
    %v4343 = vmul.f32 %v3882, %v4312
    %v4344 = vmul.f32 %v3885, %v4312
    %v4345 = vmul.f32 %v3887, %v4312
    %v4346 = vmul.f32 %v3890, %v4312
    %v4347 = vmul.f32 %v3892, %v4312
    %v4348 = vmul.f32 %v3895, %v4313
    %v4349 = vmul.f32 %v3897, %v4313
    %v4350 = vmul.f32 %v3900, %v4313
    %v4351 = vmul.f32 %v3902, %v4313
    %v4352 = vmul.f32 %v3905, %v4313
    %v4353 = vmul.f32 %v3907, %v4313
    %v4354 = vmul.f32 %v3910, %v4313
    %v4355 = vmul.f32 %v3912, %v4313
    %v4356 = vmul.f32 %v3915, %v4313
    %v4357 = vmul.f32 %v3917, %v4313
    %v4358 = vmul.f32 %v3920, %v4313
    %v4359 = vmul.f32 %v3922, %v4313
    %v4360 = vmul.f32 %v3925, %v4313
    %v4361 = vmul.f32 %v3927, %v4313
    %v4362 = vmul.f32 %v3930, %v4313
    %v4363 = vmul.f32 %v3932, %v4313
    %v4364 = vmul.f32 %v3935, %v4313
    %v4365 = vmul.f32 %v3937, %v4313
    %v4366 = vmul.f32 %v3940, %v4313
    %v4367 = vmul.f32 %v3942, %v4313
    %v4368 = vmul.f32 %v3945, %v4313
    %v4369 = vmul.f32 %v3947, %v4313
    %v4370 = vmul.f32 %v3950, %v4313
    %v4371 = vmul.f32 %v3952, %v4313
    %v4372 = vmul.f32 %v3955, %v4313
    %v4373 = vmul.f32 %v3957, %v4313
    %v4374 = vmul.f32 %v3960, %v4313
    %v4375 = vmul.f32 %v3962, %v4313
    %v4376 = vmul.f32 %v3965, %v4313
    %v4377 = vmul.f32 %v3967, %v4313
    %v4378 = vmul.f32 %v3970, %v4313
    %v4379 = vmul.f32 %v3972, %v4313
    %v4381 = vrot.slane %v4297, 1
    %v4382 = vperm.slane %v4297, 0
    %v4383 = vperm.slane %v4381, 0
    %v4386 = vadd.f32 %v4316, %v4382
    %v4387 = vadd.f32 %v4317, %v4382
    %v4388 = vadd.f32 %v4318, %v4382
    %v4389 = vadd.f32 %v4319, %v4382
    %v4390 = vadd.f32 %v4320, %v4382
    %v4391 = vadd.f32 %v4321, %v4382
    %v4392 = vadd.f32 %v4322, %v4382
    %v4393 = vadd.f32 %v4323, %v4382
    %v4394 = vadd.f32 %v4324, %v4382
    %v4395 = vadd.f32 %v4325, %v4382
    %v4396 = vadd.f32 %v4326, %v4382
    %v4397 = vadd.f32 %v4327, %v4382
    %v4398 = vadd.f32 %v4328, %v4382
    %v4399 = vadd.f32 %v4329, %v4382
    %v4400 = vadd.f32 %v4330, %v4382
    %v4401 = vadd.f32 %v4331, %v4382
    %v4402 = vadd.f32 %v4332, %v4382
    %v4403 = vadd.f32 %v4333, %v4382
    %v4404 = vadd.f32 %v4334, %v4382
    %v4405 = vadd.f32 %v4335, %v4382
    %v4406 = vadd.f32 %v4336, %v4382
    %v4407 = vadd.f32 %v4337, %v4382
    %v4408 = vadd.f32 %v4338, %v4382
    %v4409 = vadd.f32 %v4339, %v4382
    %v4410 = vadd.f32 %v4340, %v4382
    %v4411 = vadd.f32 %v4341, %v4382
    %v4412 = vadd.f32 %v4342, %v4382
    %v4413 = vadd.f32 %v4343, %v4382
    %v4414 = vadd.f32 %v4344, %v4382
    %v4415 = vadd.f32 %v4345, %v4382
    %v4416 = vadd.f32 %v4346, %v4382
    %v4417 = vadd.f32 %v4347, %v4382
    %v4418 = vadd.f32 %v4348, %v4383
    %v4419 = vadd.f32 %v4349, %v4383
    %v4420 = vadd.f32 %v4350, %v4383
    %v4421 = vadd.f32 %v4351, %v4383
    %v4422 = vadd.f32 %v4352, %v4383
    %v4423 = vadd.f32 %v4353, %v4383
    %v4424 = vadd.f32 %v4354, %v4383
    %v4425 = vadd.f32 %v4355, %v4383
    %v4426 = vadd.f32 %v4356, %v4383
    %v4427 = vadd.f32 %v4357, %v4383
    %v4428 = vadd.f32 %v4358, %v4383
    %v4429 = vadd.f32 %v4359, %v4383
    %v4430 = vadd.f32 %v4360, %v4383
    %v4431 = vadd.f32 %v4361, %v4383
    %v4432 = vadd.f32 %v4362, %v4383
    %v4433 = vadd.f32 %v4363, %v4383
    %v4434 = vadd.f32 %v4364, %v4383
    %v4435 = vadd.f32 %v4365, %v4383
    %v4436 = vadd.f32 %v4366, %v4383
    %v4437 = vadd.f32 %v4367, %v4383
    %v4438 = vadd.f32 %v4368, %v4383
    %v4439 = vadd.f32 %v4369, %v4383
    %v4440 = vadd.f32 %v4370, %v4383
    %v4441 = vadd.f32 %v4371, %v4383
    %v4442 = vadd.f32 %v4372, %v4383
    %v4443 = vadd.f32 %v4373, %v4383
    %v4444 = vadd.f32 %v4374, %v4383
    %v4445 = vadd.f32 %v4375, %v4383
    %v4446 = vadd.f32 %v4376, %v4383
    %v4447 = vadd.f32 %v4377, %v4383
    %v4448 = vadd.f32 %v4378, %v4383
    %v4449 = vadd.f32 %v4379, %v4383
    %v4450 = vxor.u32 %v4386, 2147483648
    %v4451 = vxor.u32 %v4387, 2147483648
    %v4452 = vxor.u32 %v4388, 2147483648
    %v4453 = vxor.u32 %v4389, 2147483648
    %v4454 = vxor.u32 %v4390, 2147483648
    %v4455 = vxor.u32 %v4391, 2147483648
    %v4456 = vxor.u32 %v4392, 2147483648
    %v4457 = vxor.u32 %v4393, 2147483648
    %v4458 = vxor.u32 %v4394, 2147483648
    %v4459 = vxor.u32 %v4395, 2147483648
    %v4460 = vxor.u32 %v4396, 2147483648
    %v4461 = vxor.u32 %v4397, 2147483648
    %v4462 = vxor.u32 %v4398, 2147483648
    %v4463 = vxor.u32 %v4399, 2147483648
    %v4464 = vxor.u32 %v4400, 2147483648
    %v4465 = vxor.u32 %v4401, 2147483648
    %v4466 = vxor.u32 %v4402, 2147483648
    %v4467 = vxor.u32 %v4403, 2147483648
    %v4468 = vxor.u32 %v4404, 2147483648
    %v4469 = vxor.u32 %v4405, 2147483648
    %v4470 = vxor.u32 %v4406, 2147483648
    %v4471 = vxor.u32 %v4407, 2147483648
    %v4472 = vxor.u32 %v4408, 2147483648
    %v4473 = vxor.u32 %v4409, 2147483648
    %v4474 = vxor.u32 %v4410, 2147483648
    %v4475 = vxor.u32 %v4411, 2147483648
    %v4476 = vxor.u32 %v4412, 2147483648
    %v4477 = vxor.u32 %v4413, 2147483648
    %v4478 = vxor.u32 %v4414, 2147483648
    %v4479 = vxor.u32 %v4415, 2147483648
    %v4480 = vxor.u32 %v4416, 2147483648
    %v4481 = vxor.u32 %v4417, 2147483648
    %v4482 = vxor.u32 %v4418, 2147483648
    %v4483 = vxor.u32 %v4419, 2147483648
    %v4484 = vxor.u32 %v4420, 2147483648
    %v4485 = vxor.u32 %v4421, 2147483648
    %v4486 = vxor.u32 %v4422, 2147483648
    %v4487 = vxor.u32 %v4423, 2147483648
    %v4488 = vxor.u32 %v4424, 2147483648
    %v4489 = vxor.u32 %v4425, 2147483648
    %v4490 = vxor.u32 %v4426, 2147483648
    %v4491 = vxor.u32 %v4427, 2147483648
    %v4492 = vxor.u32 %v4428, 2147483648
    %v4493 = vxor.u32 %v4429, 2147483648
    %v4494 = vxor.u32 %v4430, 2147483648
    %v4495 = vxor.u32 %v4431, 2147483648
    %v4496 = vxor.u32 %v4432, 2147483648
    %v4497 = vxor.u32 %v4433, 2147483648
    %v4498 = vxor.u32 %v4434, 2147483648
    %v4499 = vxor.u32 %v4435, 2147483648
    %v4500 = vxor.u32 %v4436, 2147483648
    %v4501 = vxor.u32 %v4437, 2147483648
    %v4502 = vxor.u32 %v4438, 2147483648
    %v4503 = vxor.u32 %v4439, 2147483648
    %v4504 = vxor.u32 %v4440, 2147483648
    %v4505 = vxor.u32 %v4441, 2147483648
    %v4506 = vxor.u32 %v4442, 2147483648
    %v4507 = vxor.u32 %v4443, 2147483648
    %v4508 = vxor.u32 %v4444, 2147483648
    %v4509 = vxor.u32 %v4445, 2147483648
    %v4510 = vxor.u32 %v4446, 2147483648
    %v4511 = vxor.u32 %v4447, 2147483648
    %v4512 = vxor.u32 %v4448, 2147483648
    %v4513 = vxor.u32 %v4449, 2147483648
    %v4514 = vmul.f32 %v4450, 1.442695
    %v4515 = vpow.pop %v4514
    %v4516 = vmul.f32 %v4451, 1.442695
    %v4517 = vpow.pop %v4516
    %v4518 = vmul.f32 %v4452, 1.442695
    %v4519 = vpow.pop %v4518
    %v4520 = vmul.f32 %v4453, 1.442695
    %v4521 = vpow.pop %v4520
    %v4522 = vmul.f32 %v4454, 1.442695
    %v4523 = vpow.pop %v4522
    %v4524 = vmul.f32 %v4455, 1.442695
    %v4525 = vpow.pop %v4524
    %v4526 = vmul.f32 %v4456, 1.442695
    %v4527 = vpow.pop %v4526
    %v4528 = vmul.f32 %v4457, 1.442695
    %v4529 = vpow.pop %v4528
    %v4530 = vmul.f32 %v4458, 1.442695
    %v4531 = vpow.pop %v4530
    %v4532 = vmul.f32 %v4459, 1.442695
    %v4533 = vpow.pop %v4532
    %v4534 = vmul.f32 %v4460, 1.442695
    %v4535 = vpow.pop %v4534
    %v4536 = vmul.f32 %v4461, 1.442695
    %v4537 = vpow.pop %v4536
    %v4538 = vmul.f32 %v4462, 1.442695
    %v4539 = vpow.pop %v4538
    %v4540 = vmul.f32 %v4463, 1.442695
    %v4541 = vpow.pop %v4540
    %v4542 = vmul.f32 %v4464, 1.442695
    %v4543 = vpow.pop %v4542
    %v4544 = vmul.f32 %v4465, 1.442695
    %v4545 = vpow.pop %v4544
    %v4546 = vmul.f32 %v4466, 1.442695
    %v4547 = vpow.pop %v4546
    %v4548 = vmul.f32 %v4467, 1.442695
    %v4549 = vpow.pop %v4548
    %v4550 = vmul.f32 %v4468, 1.442695
    %v4551 = vpow.pop %v4550
    %v4552 = vmul.f32 %v4469, 1.442695
    %v4553 = vpow.pop %v4552
    %v4554 = vmul.f32 %v4470, 1.442695
    %v4555 = vpow.pop %v4554
    %v4556 = vmul.f32 %v4471, 1.442695
    %v4557 = vpow.pop %v4556
    %v4558 = vmul.f32 %v4472, 1.442695
    %v4559 = vpow.pop %v4558
    %v4560 = vmul.f32 %v4473, 1.442695
    %v4561 = vpow.pop %v4560
    %v4562 = vmul.f32 %v4474, 1.442695
    %v4563 = vpow.pop %v4562
    %v4564 = vmul.f32 %v4475, 1.442695
    %v4565 = vpow.pop %v4564
    %v4566 = vmul.f32 %v4476, 1.442695
    %v4567 = vpow.pop %v4566
    %v4568 = vmul.f32 %v4477, 1.442695
    %v4569 = vpow.pop %v4568
    %v4570 = vmul.f32 %v4478, 1.442695
    %v4571 = vpow.pop %v4570
    %v4572 = vmul.f32 %v4479, 1.442695
    %v4573 = vpow.pop %v4572
    %v4574 = vmul.f32 %v4480, 1.442695
    %v4575 = vpow.pop %v4574
    %v4576 = vmul.f32 %v4481, 1.442695
    %v4577 = vpow.pop %v4576
    %v4578 = vmul.f32 %v4482, 1.442695
    %v4579 = vpow.pop %v4578
    %v4580 = vmul.f32 %v4483, 1.442695
    %v4581 = vpow.pop %v4580
    %v4582 = vmul.f32 %v4484, 1.442695
    %v4583 = vpow.pop %v4582
    %v4584 = vmul.f32 %v4485, 1.442695
    %v4585 = vpow.pop %v4584
    %v4586 = vmul.f32 %v4486, 1.442695
    %v4587 = vpow.pop %v4586
    %v4588 = vmul.f32 %v4487, 1.442695
    %v4589 = vpow.pop %v4588
    %v4590 = vmul.f32 %v4488, 1.442695
    %v4591 = vpow.pop %v4590
    %v4592 = vmul.f32 %v4489, 1.442695
    %v4593 = vpow.pop %v4592
    %v4594 = vmul.f32 %v4490, 1.442695
    %v4595 = vpow.pop %v4594
    %v4596 = vmul.f32 %v4491, 1.442695
    %v4597 = vpow.pop %v4596
    %v4598 = vmul.f32 %v4492, 1.442695
    %v4599 = vpow.pop %v4598
    %v4600 = vmul.f32 %v4493, 1.442695
    %v4601 = vpow.pop %v4600
    %v4602 = vmul.f32 %v4494, 1.442695
    %v4603 = vpow.pop %v4602
    %v4604 = vmul.f32 %v4495, 1.442695
    %v4605 = vpow.pop %v4604
    %v4606 = vmul.f32 %v4496, 1.442695
    %v4607 = vpow.pop %v4606
    %v4608 = vmul.f32 %v4497, 1.442695
    %v4609 = vpow.pop %v4608
    %v4610 = vmul.f32 %v4498, 1.442695
    %v4611 = vpow.pop %v4610
    %v4612 = vmul.f32 %v4499, 1.442695
    %v4613 = vpow.pop %v4612
    %v4614 = vmul.f32 %v4500, 1.442695
    %v4615 = vpow.pop %v4614
    %v4616 = vmul.f32 %v4501, 1.442695
    %v4617 = vpow.pop %v4616
    %v4618 = vmul.f32 %v4502, 1.442695
    %v4619 = vpow.pop %v4618
    %v4620 = vmul.f32 %v4503, 1.442695
    %v4621 = vpow.pop %v4620
    %v4622 = vmul.f32 %v4504, 1.442695
    %v4623 = vpow.pop %v4622
    %v4624 = vmul.f32 %v4505, 1.442695
    %v4625 = vpow.pop %v4624
    %v4626 = vmul.f32 %v4506, 1.442695
    %v4627 = vpow.pop %v4626
    %v4628 = vmul.f32 %v4507, 1.442695
    %v4629 = vpow.pop %v4628
    %v4630 = vmul.f32 %v4508, 1.442695
    %v4631 = vpow.pop %v4630
    %v4632 = vmul.f32 %v4509, 1.442695
    %v4633 = vpow.pop %v4632
    %v4634 = vmul.f32 %v4510, 1.442695
    %v4635 = vpow.pop %v4634
    %v4636 = vmul.f32 %v4511, 1.442695
    %v4637 = vpow.pop %v4636
    %v4638 = vmul.f32 %v4512, 1.442695
    %v4639 = vpow.pop %v4638
    %v4640 = vmul.f32 %v4513, 1.442695
    %v4641 = vpow.pop %v4640
    %v4642 = vadd.f32 %v4515, 1.0
    %v4643 = vadd.f32 %v4517, 1.0
    %v4644 = vadd.f32 %v4519, 1.0
    %v4645 = vadd.f32 %v4521, 1.0
    %v4646 = vadd.f32 %v4523, 1.0
    %v4647 = vadd.f32 %v4525, 1.0
    %v4648 = vadd.f32 %v4527, 1.0
    %v4649 = vadd.f32 %v4529, 1.0
    %v4650 = vadd.f32 %v4531, 1.0
    %v4651 = vadd.f32 %v4533, 1.0
    %v4652 = vadd.f32 %v4535, 1.0
    %v4653 = vadd.f32 %v4537, 1.0
    %v4654 = vadd.f32 %v4539, 1.0
    %v4655 = vadd.f32 %v4541, 1.0
    %v4656 = vadd.f32 %v4543, 1.0
    %v4657 = vadd.f32 %v4545, 1.0
    %v4658 = vadd.f32 %v4547, 1.0
    %v4659 = vadd.f32 %v4549, 1.0
    %v4660 = vadd.f32 %v4551, 1.0
    %v4661 = vadd.f32 %v4553, 1.0
    %v4662 = vadd.f32 %v4555, 1.0
    %v4663 = vadd.f32 %v4557, 1.0
    %v4664 = vadd.f32 %v4559, 1.0
    %v4665 = vadd.f32 %v4561, 1.0
    %v4666 = vadd.f32 %v4563, 1.0
    %v4667 = vadd.f32 %v4565, 1.0
    %v4668 = vadd.f32 %v4567, 1.0
    %v4669 = vadd.f32 %v4569, 1.0
    %v4670 = vadd.f32 %v4571, 1.0
    %v4671 = vadd.f32 %v4573, 1.0
    %v4672 = vadd.f32 %v4575, 1.0
    %v4673 = vadd.f32 %v4577, 1.0
    %v4674 = vadd.f32 %v4579, 1.0
    %v4675 = vadd.f32 %v4581, 1.0
    %v4676 = vadd.f32 %v4583, 1.0
    %v4677 = vadd.f32 %v4585, 1.0
    %v4678 = vadd.f32 %v4587, 1.0
    %v4679 = vadd.f32 %v4589, 1.0
    %v4680 = vadd.f32 %v4591, 1.0
    %v4681 = vadd.f32 %v4593, 1.0
    %v4682 = vadd.f32 %v4595, 1.0
    %v4683 = vadd.f32 %v4597, 1.0
    %v4684 = vadd.f32 %v4599, 1.0
    %v4685 = vadd.f32 %v4601, 1.0
    %v4686 = vadd.f32 %v4603, 1.0
    %v4687 = vadd.f32 %v4605, 1.0
    %v4688 = vadd.f32 %v4607, 1.0
    %v4689 = vadd.f32 %v4609, 1.0
    %v4690 = vadd.f32 %v4611, 1.0
    %v4691 = vadd.f32 %v4613, 1.0
    %v4692 = vadd.f32 %v4615, 1.0
    %v4693 = vadd.f32 %v4617, 1.0
    %v4694 = vadd.f32 %v4619, 1.0
    %v4695 = vadd.f32 %v4621, 1.0
    %v4696 = vadd.f32 %v4623, 1.0
    %v4697 = vadd.f32 %v4625, 1.0
    %v4698 = vadd.f32 %v4627, 1.0
    %v4699 = vadd.f32 %v4629, 1.0
    %v4700 = vadd.f32 %v4631, 1.0
    %v4701 = vadd.f32 %v4633, 1.0
    %v4702 = vadd.f32 %v4635, 1.0
    %v4703 = vadd.f32 %v4637, 1.0
    %v4704 = vadd.f32 %v4639, 1.0
    %v4705 = vadd.f32 %v4641, 1.0
    %v4706 = vrcp.pop %v4642
    %v4707 = vmul.f32 %v4642, %v4706
    %v4708 = vsub.f32 1.0, %v4707
    %v4709 = vmul.f32 %v4706, %v4708
    %v4710 = vadd.f32 %v4706, %v4709
    %vm4711 = vweird.f32 %v4642
    %vm4712 = vweird.f32 %v4706
    %vm4713 = vmor %vm4711, %vm4712
    %v4714 = vsel %vm4713, %v4706, %v4710
    %v4715 = vand.u32 2147483647, %v4642
    %vm4716 = vcmp.eq.f32.partialorder %v4715, 8.507059e+37
    %v4717 = vand.u32 %v4642, 2147483648
    %v4718 = vor.u32 1.1754944e-38, %v4717
    %v4719 = vsel %vm4716, %v4718, %v4714
    %v4720 = vmul.f32 1.0, %v4719
    %v4721 = vrcp.pop %v4643
    %v4722 = vmul.f32 %v4643, %v4721
    %v4723 = vsub.f32 1.0, %v4722
    %v4724 = vmul.f32 %v4721, %v4723
    %v4725 = vadd.f32 %v4721, %v4724
    %vm4726 = vweird.f32 %v4643
    %vm4727 = vweird.f32 %v4721
    %vm4728 = vmor %vm4726, %vm4727
    %v4729 = vsel %vm4728, %v4721, %v4725
    %v4730 = vand.u32 2147483647, %v4643
    %vm4731 = vcmp.eq.f32.partialorder %v4730, 8.507059e+37
    %v4732 = vand.u32 %v4643, 2147483648
    %v4733 = vor.u32 1.1754944e-38, %v4732
    %v4734 = vsel %vm4731, %v4733, %v4729
    %v4735 = vmul.f32 1.0, %v4734
    %v4736 = vrcp.pop %v4644
    %v4737 = vmul.f32 %v4644, %v4736
    %v4738 = vsub.f32 1.0, %v4737
    %v4739 = vmul.f32 %v4736, %v4738
    %v4740 = vadd.f32 %v4736, %v4739
    %vm4741 = vweird.f32 %v4644
    %vm4742 = vweird.f32 %v4736
    %vm4743 = vmor %vm4741, %vm4742
    %v4744 = vsel %vm4743, %v4736, %v4740
    %v4745 = vand.u32 2147483647, %v4644
    %vm4746 = vcmp.eq.f32.partialorder %v4745, 8.507059e+37
    %v4747 = vand.u32 %v4644, 2147483648
    %v4748 = vor.u32 1.1754944e-38, %v4747
    %v4749 = vsel %vm4746, %v4748, %v4744
    %v4750 = vmul.f32 1.0, %v4749
    %v4751 = vrcp.pop %v4645
    %v4752 = vmul.f32 %v4645, %v4751
    %v4753 = vsub.f32 1.0, %v4752
    %v4754 = vmul.f32 %v4751, %v4753
    %v4755 = vadd.f32 %v4751, %v4754
    %vm4756 = vweird.f32 %v4645
    %vm4757 = vweird.f32 %v4751
    %vm4758 = vmor %vm4756, %vm4757
    %v4759 = vsel %vm4758, %v4751, %v4755
    %v4760 = vand.u32 2147483647, %v4645
    %vm4761 = vcmp.eq.f32.partialorder %v4760, 8.507059e+37
    %v4762 = vand.u32 %v4645, 2147483648
    %v4763 = vor.u32 1.1754944e-38, %v4762
    %v4764 = vsel %vm4761, %v4763, %v4759
    %v4765 = vmul.f32 1.0, %v4764
    %v4766 = vrcp.pop %v4646
    %v4767 = vmul.f32 %v4646, %v4766
    %v4768 = vsub.f32 1.0, %v4767
    %v4769 = vmul.f32 %v4766, %v4768
    %v4770 = vadd.f32 %v4766, %v4769
    %vm4771 = vweird.f32 %v4646
    %vm4772 = vweird.f32 %v4766
    %vm4773 = vmor %vm4771, %vm4772
    %v4774 = vsel %vm4773, %v4766, %v4770
    %v4775 = vand.u32 2147483647, %v4646
    %vm4776 = vcmp.eq.f32.partialorder %v4775, 8.507059e+37
    %v4777 = vand.u32 %v4646, 2147483648
    %v4778 = vor.u32 1.1754944e-38, %v4777
    %v4779 = vsel %vm4776, %v4778, %v4774
    %v4780 = vmul.f32 1.0, %v4779
    %v4781 = vrcp.pop %v4647
    %v4782 = vmul.f32 %v4647, %v4781
    %v4783 = vsub.f32 1.0, %v4782
    %v4784 = vmul.f32 %v4781, %v4783
    %v4785 = vadd.f32 %v4781, %v4784
    %vm4786 = vweird.f32 %v4647
    %vm4787 = vweird.f32 %v4781
    %vm4788 = vmor %vm4786, %vm4787
    %v4789 = vsel %vm4788, %v4781, %v4785
    %v4790 = vand.u32 2147483647, %v4647
    %vm4791 = vcmp.eq.f32.partialorder %v4790, 8.507059e+37
    %v4792 = vand.u32 %v4647, 2147483648
    %v4793 = vor.u32 1.1754944e-38, %v4792
    %v4794 = vsel %vm4791, %v4793, %v4789
    %v4795 = vmul.f32 1.0, %v4794
    %v4796 = vrcp.pop %v4648
    %v4797 = vmul.f32 %v4648, %v4796
    %v4798 = vsub.f32 1.0, %v4797
    %v4799 = vmul.f32 %v4796, %v4798
    %v4800 = vadd.f32 %v4796, %v4799
    %vm4801 = vweird.f32 %v4648
    %vm4802 = vweird.f32 %v4796
    %vm4803 = vmor %vm4801, %vm4802
    %v4804 = vsel %vm4803, %v4796, %v4800
    %v4805 = vand.u32 2147483647, %v4648
    %vm4806 = vcmp.eq.f32.partialorder %v4805, 8.507059e+37
    %v4807 = vand.u32 %v4648, 2147483648
    %v4808 = vor.u32 1.1754944e-38, %v4807
    %v4809 = vsel %vm4806, %v4808, %v4804
    %v4810 = vmul.f32 1.0, %v4809
    %v4811 = vrcp.pop %v4649
    %v4812 = vmul.f32 %v4649, %v4811
    %v4813 = vsub.f32 1.0, %v4812
    %v4814 = vmul.f32 %v4811, %v4813
    %v4815 = vadd.f32 %v4811, %v4814
    %vm4816 = vweird.f32 %v4649
    %vm4817 = vweird.f32 %v4811
    %vm4818 = vmor %vm4816, %vm4817
    %v4819 = vsel %vm4818, %v4811, %v4815
    %v4820 = vand.u32 2147483647, %v4649
    %vm4821 = vcmp.eq.f32.partialorder %v4820, 8.507059e+37
    %v4822 = vand.u32 %v4649, 2147483648
    %v4823 = vor.u32 1.1754944e-38, %v4822
    %v4824 = vsel %vm4821, %v4823, %v4819
    %v4825 = vmul.f32 1.0, %v4824
    %v4826 = vrcp.pop %v4650
    %v4827 = vmul.f32 %v4650, %v4826
    %v4828 = vsub.f32 1.0, %v4827
    %v4829 = vmul.f32 %v4826, %v4828
    %v4830 = vadd.f32 %v4826, %v4829
    %vm4831 = vweird.f32 %v4650
    %vm4832 = vweird.f32 %v4826
    %vm4833 = vmor %vm4831, %vm4832
    %v4834 = vsel %vm4833, %v4826, %v4830
    %v4835 = vand.u32 2147483647, %v4650
    %vm4836 = vcmp.eq.f32.partialorder %v4835, 8.507059e+37
    %v4837 = vand.u32 %v4650, 2147483648
    %v4838 = vor.u32 1.1754944e-38, %v4837
    %v4839 = vsel %vm4836, %v4838, %v4834
    %v4840 = vmul.f32 1.0, %v4839
    %v4841 = vrcp.pop %v4651
    %v4842 = vmul.f32 %v4651, %v4841
    %v4843 = vsub.f32 1.0, %v4842
    %v4844 = vmul.f32 %v4841, %v4843
    %v4845 = vadd.f32 %v4841, %v4844
    %vm4846 = vweird.f32 %v4651
    %vm4847 = vweird.f32 %v4841
    %vm4848 = vmor %vm4846, %vm4847
    %v4849 = vsel %vm4848, %v4841, %v4845
    %v4850 = vand.u32 2147483647, %v4651
    %vm4851 = vcmp.eq.f32.partialorder %v4850, 8.507059e+37
    %v4852 = vand.u32 %v4651, 2147483648
    %v4853 = vor.u32 1.1754944e-38, %v4852
    %v4854 = vsel %vm4851, %v4853, %v4849
    %v4855 = vmul.f32 1.0, %v4854
    %v4856 = vrcp.pop %v4652
    %v4857 = vmul.f32 %v4652, %v4856
    %v4858 = vsub.f32 1.0, %v4857
    %v4859 = vmul.f32 %v4856, %v4858
    %v4860 = vadd.f32 %v4856, %v4859
    %vm4861 = vweird.f32 %v4652
    %vm4862 = vweird.f32 %v4856
    %vm4863 = vmor %vm4861, %vm4862
    %v4864 = vsel %vm4863, %v4856, %v4860
    %v4865 = vand.u32 2147483647, %v4652
    %vm4866 = vcmp.eq.f32.partialorder %v4865, 8.507059e+37
    %v4867 = vand.u32 %v4652, 2147483648
    %v4868 = vor.u32 1.1754944e-38, %v4867
    %v4869 = vsel %vm4866, %v4868, %v4864
    %v4870 = vmul.f32 1.0, %v4869
    %v4871 = vrcp.pop %v4653
    %v4872 = vmul.f32 %v4653, %v4871
    %v4873 = vsub.f32 1.0, %v4872
    %v4874 = vmul.f32 %v4871, %v4873
    %v4875 = vadd.f32 %v4871, %v4874
    %vm4876 = vweird.f32 %v4653
    %vm4877 = vweird.f32 %v4871
    %vm4878 = vmor %vm4876, %vm4877
    %v4879 = vsel %vm4878, %v4871, %v4875
    %v4880 = vand.u32 2147483647, %v4653
    %vm4881 = vcmp.eq.f32.partialorder %v4880, 8.507059e+37
    %v4882 = vand.u32 %v4653, 2147483648
    %v4883 = vor.u32 1.1754944e-38, %v4882
    %v4884 = vsel %vm4881, %v4883, %v4879
    %v4885 = vmul.f32 1.0, %v4884
    %v4886 = vrcp.pop %v4654
    %v4887 = vmul.f32 %v4654, %v4886
    %v4888 = vsub.f32 1.0, %v4887
    %v4889 = vmul.f32 %v4886, %v4888
    %v4890 = vadd.f32 %v4886, %v4889
    %vm4891 = vweird.f32 %v4654
    %vm4892 = vweird.f32 %v4886
    %vm4893 = vmor %vm4891, %vm4892
    %v4894 = vsel %vm4893, %v4886, %v4890
    %v4895 = vand.u32 2147483647, %v4654
    %vm4896 = vcmp.eq.f32.partialorder %v4895, 8.507059e+37
    %v4897 = vand.u32 %v4654, 2147483648
    %v4898 = vor.u32 1.1754944e-38, %v4897
    %v4899 = vsel %vm4896, %v4898, %v4894
    %v4900 = vmul.f32 1.0, %v4899
    %v4901 = vrcp.pop %v4655
    %v4902 = vmul.f32 %v4655, %v4901
    %v4903 = vsub.f32 1.0, %v4902
    %v4904 = vmul.f32 %v4901, %v4903
    %v4905 = vadd.f32 %v4901, %v4904
    %vm4906 = vweird.f32 %v4655
    %vm4907 = vweird.f32 %v4901
    %vm4908 = vmor %vm4906, %vm4907
    %v4909 = vsel %vm4908, %v4901, %v4905
    %v4910 = vand.u32 2147483647, %v4655
    %vm4911 = vcmp.eq.f32.partialorder %v4910, 8.507059e+37
    %v4912 = vand.u32 %v4655, 2147483648
    %v4913 = vor.u32 1.1754944e-38, %v4912
    %v4914 = vsel %vm4911, %v4913, %v4909
    %v4915 = vmul.f32 1.0, %v4914
    %v4916 = vrcp.pop %v4656
    %v4917 = vmul.f32 %v4656, %v4916
    %v4918 = vsub.f32 1.0, %v4917
    %v4919 = vmul.f32 %v4916, %v4918
    %v4920 = vadd.f32 %v4916, %v4919
    %vm4921 = vweird.f32 %v4656
    %vm4922 = vweird.f32 %v4916
    %vm4923 = vmor %vm4921, %vm4922
    %v4924 = vsel %vm4923, %v4916, %v4920
    %v4925 = vand.u32 2147483647, %v4656
    %vm4926 = vcmp.eq.f32.partialorder %v4925, 8.507059e+37
    %v4927 = vand.u32 %v4656, 2147483648
    %v4928 = vor.u32 1.1754944e-38, %v4927
    %v4929 = vsel %vm4926, %v4928, %v4924
    %v4930 = vmul.f32 1.0, %v4929
    %v4931 = vrcp.pop %v4657
    %v4932 = vmul.f32 %v4657, %v4931
    %v4933 = vsub.f32 1.0, %v4932
    %v4934 = vmul.f32 %v4931, %v4933
    %v4935 = vadd.f32 %v4931, %v4934
    %vm4936 = vweird.f32 %v4657
    %vm4937 = vweird.f32 %v4931
    %vm4938 = vmor %vm4936, %vm4937
    %v4939 = vsel %vm4938, %v4931, %v4935
    %v4940 = vand.u32 2147483647, %v4657
    %vm4941 = vcmp.eq.f32.partialorder %v4940, 8.507059e+37
    %v4942 = vand.u32 %v4657, 2147483648
    %v4943 = vor.u32 1.1754944e-38, %v4942
    %v4944 = vsel %vm4941, %v4943, %v4939
    %v4945 = vmul.f32 1.0, %v4944
    %v4946 = vrcp.pop %v4658
    %v4947 = vmul.f32 %v4658, %v4946
    %v4948 = vsub.f32 1.0, %v4947
    %v4949 = vmul.f32 %v4946, %v4948
    %v4950 = vadd.f32 %v4946, %v4949
    %vm4951 = vweird.f32 %v4658
    %vm4952 = vweird.f32 %v4946
    %vm4953 = vmor %vm4951, %vm4952
    %v4954 = vsel %vm4953, %v4946, %v4950
    %v4955 = vand.u32 2147483647, %v4658
    %vm4956 = vcmp.eq.f32.partialorder %v4955, 8.507059e+37
    %v4957 = vand.u32 %v4658, 2147483648
    %v4958 = vor.u32 1.1754944e-38, %v4957
    %v4959 = vsel %vm4956, %v4958, %v4954
    %v4960 = vmul.f32 1.0, %v4959
    %v4961 = vrcp.pop %v4659
    %v4962 = vmul.f32 %v4659, %v4961
    %v4963 = vsub.f32 1.0, %v4962
    %v4964 = vmul.f32 %v4961, %v4963
    %v4965 = vadd.f32 %v4961, %v4964
    %vm4966 = vweird.f32 %v4659
    %vm4967 = vweird.f32 %v4961
    %vm4968 = vmor %vm4966, %vm4967
    %v4969 = vsel %vm4968, %v4961, %v4965
    %v4970 = vand.u32 2147483647, %v4659
    %vm4971 = vcmp.eq.f32.partialorder %v4970, 8.507059e+37
    %v4972 = vand.u32 %v4659, 2147483648
    %v4973 = vor.u32 1.1754944e-38, %v4972
    %v4974 = vsel %vm4971, %v4973, %v4969
    %v4975 = vmul.f32 1.0, %v4974
    %v4976 = vrcp.pop %v4660
    %v4977 = vmul.f32 %v4660, %v4976
    %v4978 = vsub.f32 1.0, %v4977
    %v4979 = vmul.f32 %v4976, %v4978
    %v4980 = vadd.f32 %v4976, %v4979
    %vm4981 = vweird.f32 %v4660
    %vm4982 = vweird.f32 %v4976
    %vm4983 = vmor %vm4981, %vm4982
    %v4984 = vsel %vm4983, %v4976, %v4980
    %v4985 = vand.u32 2147483647, %v4660
    %vm4986 = vcmp.eq.f32.partialorder %v4985, 8.507059e+37
    %v4987 = vand.u32 %v4660, 2147483648
    %v4988 = vor.u32 1.1754944e-38, %v4987
    %v4989 = vsel %vm4986, %v4988, %v4984
    %v4990 = vmul.f32 1.0, %v4989
    %v4991 = vrcp.pop %v4661
    %v4992 = vmul.f32 %v4661, %v4991
    %v4993 = vsub.f32 1.0, %v4992
    %v4994 = vmul.f32 %v4991, %v4993
    %v4995 = vadd.f32 %v4991, %v4994
    %vm4996 = vweird.f32 %v4661
    %vm4997 = vweird.f32 %v4991
    %vm4998 = vmor %vm4996, %vm4997
    %v4999 = vsel %vm4998, %v4991, %v4995
    %v5000 = vand.u32 2147483647, %v4661
    %vm5001 = vcmp.eq.f32.partialorder %v5000, 8.507059e+37
    %v5002 = vand.u32 %v4661, 2147483648
    %v5003 = vor.u32 1.1754944e-38, %v5002
    %v5004 = vsel %vm5001, %v5003, %v4999
    %v5005 = vmul.f32 1.0, %v5004
    %v5006 = vrcp.pop %v4662
    %v5007 = vmul.f32 %v4662, %v5006
    %v5008 = vsub.f32 1.0, %v5007
    %v5009 = vmul.f32 %v5006, %v5008
    %v5010 = vadd.f32 %v5006, %v5009
    %vm5011 = vweird.f32 %v4662
    %vm5012 = vweird.f32 %v5006
    %vm5013 = vmor %vm5011, %vm5012
    %v5014 = vsel %vm5013, %v5006, %v5010
    %v5015 = vand.u32 2147483647, %v4662
    %vm5016 = vcmp.eq.f32.partialorder %v5015, 8.507059e+37
    %v5017 = vand.u32 %v4662, 2147483648
    %v5018 = vor.u32 1.1754944e-38, %v5017
    %v5019 = vsel %vm5016, %v5018, %v5014
    %v5020 = vmul.f32 1.0, %v5019
    %v5021 = vrcp.pop %v4663
    %v5022 = vmul.f32 %v4663, %v5021
    %v5023 = vsub.f32 1.0, %v5022
    %v5024 = vmul.f32 %v5021, %v5023
    %v5025 = vadd.f32 %v5021, %v5024
    %vm5026 = vweird.f32 %v4663
    %vm5027 = vweird.f32 %v5021
    %vm5028 = vmor %vm5026, %vm5027
    %v5029 = vsel %vm5028, %v5021, %v5025
    %v5030 = vand.u32 2147483647, %v4663
    %vm5031 = vcmp.eq.f32.partialorder %v5030, 8.507059e+37
    %v5032 = vand.u32 %v4663, 2147483648
    %v5033 = vor.u32 1.1754944e-38, %v5032
    %v5034 = vsel %vm5031, %v5033, %v5029
    %v5035 = vmul.f32 1.0, %v5034
    %v5036 = vrcp.pop %v4664
    %v5037 = vmul.f32 %v4664, %v5036
    %v5038 = vsub.f32 1.0, %v5037
    %v5039 = vmul.f32 %v5036, %v5038
    %v5040 = vadd.f32 %v5036, %v5039
    %vm5041 = vweird.f32 %v4664
    %vm5042 = vweird.f32 %v5036
    %vm5043 = vmor %vm5041, %vm5042
    %v5044 = vsel %vm5043, %v5036, %v5040
    %v5045 = vand.u32 2147483647, %v4664
    %vm5046 = vcmp.eq.f32.partialorder %v5045, 8.507059e+37
    %v5047 = vand.u32 %v4664, 2147483648
    %v5048 = vor.u32 1.1754944e-38, %v5047
    %v5049 = vsel %vm5046, %v5048, %v5044
    %v5050 = vmul.f32 1.0, %v5049
    %v5051 = vrcp.pop %v4665
    %v5052 = vmul.f32 %v4665, %v5051
    %v5053 = vsub.f32 1.0, %v5052
    %v5054 = vmul.f32 %v5051, %v5053
    %v5055 = vadd.f32 %v5051, %v5054
    %vm5056 = vweird.f32 %v4665
    %vm5057 = vweird.f32 %v5051
    %vm5058 = vmor %vm5056, %vm5057
    %v5059 = vsel %vm5058, %v5051, %v5055
    %v5060 = vand.u32 2147483647, %v4665
    %vm5061 = vcmp.eq.f32.partialorder %v5060, 8.507059e+37
    %v5062 = vand.u32 %v4665, 2147483648
    %v5063 = vor.u32 1.1754944e-38, %v5062
    %v5064 = vsel %vm5061, %v5063, %v5059
    %v5065 = vmul.f32 1.0, %v5064
    %v5066 = vrcp.pop %v4666
    %v5067 = vmul.f32 %v4666, %v5066
    %v5068 = vsub.f32 1.0, %v5067
    %v5069 = vmul.f32 %v5066, %v5068
    %v5070 = vadd.f32 %v5066, %v5069
    %vm5071 = vweird.f32 %v4666
    %vm5072 = vweird.f32 %v5066
    %vm5073 = vmor %vm5071, %vm5072
    %v5074 = vsel %vm5073, %v5066, %v5070
    %v5075 = vand.u32 2147483647, %v4666
    %vm5076 = vcmp.eq.f32.partialorder %v5075, 8.507059e+37
    %v5077 = vand.u32 %v4666, 2147483648
    %v5078 = vor.u32 1.1754944e-38, %v5077
    %v5079 = vsel %vm5076, %v5078, %v5074
    %v5080 = vmul.f32 1.0, %v5079
    %v5081 = vrcp.pop %v4667
    %v5082 = vmul.f32 %v4667, %v5081
    %v5083 = vsub.f32 1.0, %v5082
    %v5084 = vmul.f32 %v5081, %v5083
    %v5085 = vadd.f32 %v5081, %v5084
    %vm5086 = vweird.f32 %v4667
    %vm5087 = vweird.f32 %v5081
    %vm5088 = vmor %vm5086, %vm5087
    %v5089 = vsel %vm5088, %v5081, %v5085
    %v5090 = vand.u32 2147483647, %v4667
    %vm5091 = vcmp.eq.f32.partialorder %v5090, 8.507059e+37
    %v5092 = vand.u32 %v4667, 2147483648
    %v5093 = vor.u32 1.1754944e-38, %v5092
    %v5094 = vsel %vm5091, %v5093, %v5089
    %v5095 = vmul.f32 1.0, %v5094
    %v5096 = vrcp.pop %v4668
    %v5097 = vmul.f32 %v4668, %v5096
    %v5098 = vsub.f32 1.0, %v5097
    %v5099 = vmul.f32 %v5096, %v5098
    %v5100 = vadd.f32 %v5096, %v5099
    %vm5101 = vweird.f32 %v4668
    %vm5102 = vweird.f32 %v5096
    %vm5103 = vmor %vm5101, %vm5102
    %v5104 = vsel %vm5103, %v5096, %v5100
    %v5105 = vand.u32 2147483647, %v4668
    %vm5106 = vcmp.eq.f32.partialorder %v5105, 8.507059e+37
    %v5107 = vand.u32 %v4668, 2147483648
    %v5108 = vor.u32 1.1754944e-38, %v5107
    %v5109 = vsel %vm5106, %v5108, %v5104
    %v5110 = vmul.f32 1.0, %v5109
    %v5111 = vrcp.pop %v4669
    %v5112 = vmul.f32 %v4669, %v5111
    %v5113 = vsub.f32 1.0, %v5112
    %v5114 = vmul.f32 %v5111, %v5113
    %v5115 = vadd.f32 %v5111, %v5114
    %vm5116 = vweird.f32 %v4669
    %vm5117 = vweird.f32 %v5111
    %vm5118 = vmor %vm5116, %vm5117
    %v5119 = vsel %vm5118, %v5111, %v5115
    %v5120 = vand.u32 2147483647, %v4669
    %vm5121 = vcmp.eq.f32.partialorder %v5120, 8.507059e+37
    %v5122 = vand.u32 %v4669, 2147483648
    %v5123 = vor.u32 1.1754944e-38, %v5122
    %v5124 = vsel %vm5121, %v5123, %v5119
    %v5125 = vmul.f32 1.0, %v5124
    %v5126 = vrcp.pop %v4670
    %v5127 = vmul.f32 %v4670, %v5126
    %v5128 = vsub.f32 1.0, %v5127
    %v5129 = vmul.f32 %v5126, %v5128
    %v5130 = vadd.f32 %v5126, %v5129
    %vm5131 = vweird.f32 %v4670
    %vm5132 = vweird.f32 %v5126
    %vm5133 = vmor %vm5131, %vm5132
    %v5134 = vsel %vm5133, %v5126, %v5130
    %v5135 = vand.u32 2147483647, %v4670
    %vm5136 = vcmp.eq.f32.partialorder %v5135, 8.507059e+37
    %v5137 = vand.u32 %v4670, 2147483648
    %v5138 = vor.u32 1.1754944e-38, %v5137
    %v5139 = vsel %vm5136, %v5138, %v5134
    %v5140 = vmul.f32 1.0, %v5139
    %v5141 = vrcp.pop %v4671
    %v5142 = vmul.f32 %v4671, %v5141
    %v5143 = vsub.f32 1.0, %v5142
    %v5144 = vmul.f32 %v5141, %v5143
    %v5145 = vadd.f32 %v5141, %v5144
    %vm5146 = vweird.f32 %v4671
    %vm5147 = vweird.f32 %v5141
    %vm5148 = vmor %vm5146, %vm5147
    %v5149 = vsel %vm5148, %v5141, %v5145
    %v5150 = vand.u32 2147483647, %v4671
    %vm5151 = vcmp.eq.f32.partialorder %v5150, 8.507059e+37
    %v5152 = vand.u32 %v4671, 2147483648
    %v5153 = vor.u32 1.1754944e-38, %v5152
    %v5154 = vsel %vm5151, %v5153, %v5149
    %v5155 = vmul.f32 1.0, %v5154
    %v5156 = vrcp.pop %v4672
    %v5157 = vmul.f32 %v4672, %v5156
    %v5158 = vsub.f32 1.0, %v5157
    %v5159 = vmul.f32 %v5156, %v5158
    %v5160 = vadd.f32 %v5156, %v5159
    %vm5161 = vweird.f32 %v4672
    %vm5162 = vweird.f32 %v5156
    %vm5163 = vmor %vm5161, %vm5162
    %v5164 = vsel %vm5163, %v5156, %v5160
    %v5165 = vand.u32 2147483647, %v4672
    %vm5166 = vcmp.eq.f32.partialorder %v5165, 8.507059e+37
    %v5167 = vand.u32 %v4672, 2147483648
    %v5168 = vor.u32 1.1754944e-38, %v5167
    %v5169 = vsel %vm5166, %v5168, %v5164
    %v5170 = vmul.f32 1.0, %v5169
    %v5171 = vrcp.pop %v4673
    %v5172 = vmul.f32 %v4673, %v5171
    %v5173 = vsub.f32 1.0, %v5172
    %v5174 = vmul.f32 %v5171, %v5173
    %v5175 = vadd.f32 %v5171, %v5174
    %vm5176 = vweird.f32 %v4673
    %vm5177 = vweird.f32 %v5171
    %vm5178 = vmor %vm5176, %vm5177
    %v5179 = vsel %vm5178, %v5171, %v5175
    %v5180 = vand.u32 2147483647, %v4673
    %vm5181 = vcmp.eq.f32.partialorder %v5180, 8.507059e+37
    %v5182 = vand.u32 %v4673, 2147483648
    %v5183 = vor.u32 1.1754944e-38, %v5182
    %v5184 = vsel %vm5181, %v5183, %v5179
    %v5185 = vmul.f32 1.0, %v5184
    %v5186 = vrcp.pop %v4674
    %v5187 = vmul.f32 %v4674, %v5186
    %v5188 = vsub.f32 1.0, %v5187
    %v5189 = vmul.f32 %v5186, %v5188
    %v5190 = vadd.f32 %v5186, %v5189
    %vm5191 = vweird.f32 %v4674
    %vm5192 = vweird.f32 %v5186
    %vm5193 = vmor %vm5191, %vm5192
    %v5194 = vsel %vm5193, %v5186, %v5190
    %v5195 = vand.u32 2147483647, %v4674
    %vm5196 = vcmp.eq.f32.partialorder %v5195, 8.507059e+37
    %v5197 = vand.u32 %v4674, 2147483648
    %v5198 = vor.u32 1.1754944e-38, %v5197
    %v5199 = vsel %vm5196, %v5198, %v5194
    %v5200 = vmul.f32 1.0, %v5199
    %v5201 = vrcp.pop %v4675
    %v5202 = vmul.f32 %v4675, %v5201
    %v5203 = vsub.f32 1.0, %v5202
    %v5204 = vmul.f32 %v5201, %v5203
    %v5205 = vadd.f32 %v5201, %v5204
    %vm5206 = vweird.f32 %v4675
    %vm5207 = vweird.f32 %v5201
    %vm5208 = vmor %vm5206, %vm5207
    %v5209 = vsel %vm5208, %v5201, %v5205
    %v5210 = vand.u32 2147483647, %v4675
    %vm5211 = vcmp.eq.f32.partialorder %v5210, 8.507059e+37
    %v5212 = vand.u32 %v4675, 2147483648
    %v5213 = vor.u32 1.1754944e-38, %v5212
    %v5214 = vsel %vm5211, %v5213, %v5209
    %v5215 = vmul.f32 1.0, %v5214
    %v5216 = vrcp.pop %v4676
    %v5217 = vmul.f32 %v4676, %v5216
    %v5218 = vsub.f32 1.0, %v5217
    %v5219 = vmul.f32 %v5216, %v5218
    %v5220 = vadd.f32 %v5216, %v5219
    %vm5221 = vweird.f32 %v4676
    %vm5222 = vweird.f32 %v5216
    %vm5223 = vmor %vm5221, %vm5222
    %v5224 = vsel %vm5223, %v5216, %v5220
    %v5225 = vand.u32 2147483647, %v4676
    %vm5226 = vcmp.eq.f32.partialorder %v5225, 8.507059e+37
    %v5227 = vand.u32 %v4676, 2147483648
    %v5228 = vor.u32 1.1754944e-38, %v5227
    %v5229 = vsel %vm5226, %v5228, %v5224
    %v5230 = vmul.f32 1.0, %v5229
    %v5231 = vrcp.pop %v4677
    %v5232 = vmul.f32 %v4677, %v5231
    %v5233 = vsub.f32 1.0, %v5232
    %v5234 = vmul.f32 %v5231, %v5233
    %v5235 = vadd.f32 %v5231, %v5234
    %vm5236 = vweird.f32 %v4677
    %vm5237 = vweird.f32 %v5231
    %vm5238 = vmor %vm5236, %vm5237
    %v5239 = vsel %vm5238, %v5231, %v5235
    %v5240 = vand.u32 2147483647, %v4677
    %vm5241 = vcmp.eq.f32.partialorder %v5240, 8.507059e+37
    %v5242 = vand.u32 %v4677, 2147483648
    %v5243 = vor.u32 1.1754944e-38, %v5242
    %v5244 = vsel %vm5241, %v5243, %v5239
    %v5245 = vmul.f32 1.0, %v5244
    %v5246 = vrcp.pop %v4678
    %v5247 = vmul.f32 %v4678, %v5246
    %v5248 = vsub.f32 1.0, %v5247
    %v5249 = vmul.f32 %v5246, %v5248
    %v5250 = vadd.f32 %v5246, %v5249
    %vm5251 = vweird.f32 %v4678
    %vm5252 = vweird.f32 %v5246
    %vm5253 = vmor %vm5251, %vm5252
    %v5254 = vsel %vm5253, %v5246, %v5250
    %v5255 = vand.u32 2147483647, %v4678
    %vm5256 = vcmp.eq.f32.partialorder %v5255, 8.507059e+37
    %v5257 = vand.u32 %v4678, 2147483648
    %v5258 = vor.u32 1.1754944e-38, %v5257
    %v5259 = vsel %vm5256, %v5258, %v5254
    %v5260 = vmul.f32 1.0, %v5259
    %v5261 = vrcp.pop %v4679
    %v5262 = vmul.f32 %v4679, %v5261
    %v5263 = vsub.f32 1.0, %v5262
    %v5264 = vmul.f32 %v5261, %v5263
    %v5265 = vadd.f32 %v5261, %v5264
    %vm5266 = vweird.f32 %v4679
    %vm5267 = vweird.f32 %v5261
    %vm5268 = vmor %vm5266, %vm5267
    %v5269 = vsel %vm5268, %v5261, %v5265
    %v5270 = vand.u32 2147483647, %v4679
    %vm5271 = vcmp.eq.f32.partialorder %v5270, 8.507059e+37
    %v5272 = vand.u32 %v4679, 2147483648
    %v5273 = vor.u32 1.1754944e-38, %v5272
    %v5274 = vsel %vm5271, %v5273, %v5269
    %v5275 = vmul.f32 1.0, %v5274
    %v5276 = vrcp.pop %v4680
    %v5277 = vmul.f32 %v4680, %v5276
    %v5278 = vsub.f32 1.0, %v5277
    %v5279 = vmul.f32 %v5276, %v5278
    %v5280 = vadd.f32 %v5276, %v5279
    %vm5281 = vweird.f32 %v4680
    %vm5282 = vweird.f32 %v5276
    %vm5283 = vmor %vm5281, %vm5282
    %v5284 = vsel %vm5283, %v5276, %v5280
    %v5285 = vand.u32 2147483647, %v4680
    %vm5286 = vcmp.eq.f32.partialorder %v5285, 8.507059e+37
    %v5287 = vand.u32 %v4680, 2147483648
    %v5288 = vor.u32 1.1754944e-38, %v5287
    %v5289 = vsel %vm5286, %v5288, %v5284
    %v5290 = vmul.f32 1.0, %v5289
    %v5291 = vrcp.pop %v4681
    %v5292 = vmul.f32 %v4681, %v5291
    %v5293 = vsub.f32 1.0, %v5292
    %v5294 = vmul.f32 %v5291, %v5293
    %v5295 = vadd.f32 %v5291, %v5294
    %vm5296 = vweird.f32 %v4681
    %vm5297 = vweird.f32 %v5291
    %vm5298 = vmor %vm5296, %vm5297
    %v5299 = vsel %vm5298, %v5291, %v5295
    %v5300 = vand.u32 2147483647, %v4681
    %vm5301 = vcmp.eq.f32.partialorder %v5300, 8.507059e+37
    %v5302 = vand.u32 %v4681, 2147483648
    %v5303 = vor.u32 1.1754944e-38, %v5302
    %v5304 = vsel %vm5301, %v5303, %v5299
    %v5305 = vmul.f32 1.0, %v5304
    %v5306 = vrcp.pop %v4682
    %v5307 = vmul.f32 %v4682, %v5306
    %v5308 = vsub.f32 1.0, %v5307
    %v5309 = vmul.f32 %v5306, %v5308
    %v5310 = vadd.f32 %v5306, %v5309
    %vm5311 = vweird.f32 %v4682
    %vm5312 = vweird.f32 %v5306
    %vm5313 = vmor %vm5311, %vm5312
    %v5314 = vsel %vm5313, %v5306, %v5310
    %v5315 = vand.u32 2147483647, %v4682
    %vm5316 = vcmp.eq.f32.partialorder %v5315, 8.507059e+37
    %v5317 = vand.u32 %v4682, 2147483648
    %v5318 = vor.u32 1.1754944e-38, %v5317
    %v5319 = vsel %vm5316, %v5318, %v5314
    %v5320 = vmul.f32 1.0, %v5319
    %v5321 = vrcp.pop %v4683
    %v5322 = vmul.f32 %v4683, %v5321
    %v5323 = vsub.f32 1.0, %v5322
    %v5324 = vmul.f32 %v5321, %v5323
    %v5325 = vadd.f32 %v5321, %v5324
    %vm5326 = vweird.f32 %v4683
    %vm5327 = vweird.f32 %v5321
    %vm5328 = vmor %vm5326, %vm5327
    %v5329 = vsel %vm5328, %v5321, %v5325
    %v5330 = vand.u32 2147483647, %v4683
    %vm5331 = vcmp.eq.f32.partialorder %v5330, 8.507059e+37
    %v5332 = vand.u32 %v4683, 2147483648
    %v5333 = vor.u32 1.1754944e-38, %v5332
    %v5334 = vsel %vm5331, %v5333, %v5329
    %v5335 = vmul.f32 1.0, %v5334
    %v5336 = vrcp.pop %v4684
    %v5337 = vmul.f32 %v4684, %v5336
    %v5338 = vsub.f32 1.0, %v5337
    %v5339 = vmul.f32 %v5336, %v5338
    %v5340 = vadd.f32 %v5336, %v5339
    %vm5341 = vweird.f32 %v4684
    %vm5342 = vweird.f32 %v5336
    %vm5343 = vmor %vm5341, %vm5342
    %v5344 = vsel %vm5343, %v5336, %v5340
    %v5345 = vand.u32 2147483647, %v4684
    %vm5346 = vcmp.eq.f32.partialorder %v5345, 8.507059e+37
    %v5347 = vand.u32 %v4684, 2147483648
    %v5348 = vor.u32 1.1754944e-38, %v5347
    %v5349 = vsel %vm5346, %v5348, %v5344
    %v5350 = vmul.f32 1.0, %v5349
    %v5351 = vrcp.pop %v4685
    %v5352 = vmul.f32 %v4685, %v5351
    %v5353 = vsub.f32 1.0, %v5352
    %v5354 = vmul.f32 %v5351, %v5353
    %v5355 = vadd.f32 %v5351, %v5354
    %vm5356 = vweird.f32 %v4685
    %vm5357 = vweird.f32 %v5351
    %vm5358 = vmor %vm5356, %vm5357
    %v5359 = vsel %vm5358, %v5351, %v5355
    %v5360 = vand.u32 2147483647, %v4685
    %vm5361 = vcmp.eq.f32.partialorder %v5360, 8.507059e+37
    %v5362 = vand.u32 %v4685, 2147483648
    %v5363 = vor.u32 1.1754944e-38, %v5362
    %v5364 = vsel %vm5361, %v5363, %v5359
    %v5365 = vmul.f32 1.0, %v5364
    %v5366 = vrcp.pop %v4686
    %v5367 = vmul.f32 %v4686, %v5366
    %v5368 = vsub.f32 1.0, %v5367
    %v5369 = vmul.f32 %v5366, %v5368
    %v5370 = vadd.f32 %v5366, %v5369
    %vm5371 = vweird.f32 %v4686
    %vm5372 = vweird.f32 %v5366
    %vm5373 = vmor %vm5371, %vm5372
    %v5374 = vsel %vm5373, %v5366, %v5370
    %v5375 = vand.u32 2147483647, %v4686
    %vm5376 = vcmp.eq.f32.partialorder %v5375, 8.507059e+37
    %v5377 = vand.u32 %v4686, 2147483648
    %v5378 = vor.u32 1.1754944e-38, %v5377
    %v5379 = vsel %vm5376, %v5378, %v5374
    %v5380 = vmul.f32 1.0, %v5379
    %v5381 = vrcp.pop %v4687
    %v5382 = vmul.f32 %v4687, %v5381
    %v5383 = vsub.f32 1.0, %v5382
    %v5384 = vmul.f32 %v5381, %v5383
    %v5385 = vadd.f32 %v5381, %v5384
    %vm5386 = vweird.f32 %v4687
    %vm5387 = vweird.f32 %v5381
    %vm5388 = vmor %vm5386, %vm5387
    %v5389 = vsel %vm5388, %v5381, %v5385
    %v5390 = vand.u32 2147483647, %v4687
    %vm5391 = vcmp.eq.f32.partialorder %v5390, 8.507059e+37
    %v5392 = vand.u32 %v4687, 2147483648
    %v5393 = vor.u32 1.1754944e-38, %v5392
    %v5394 = vsel %vm5391, %v5393, %v5389
    %v5395 = vmul.f32 1.0, %v5394
    %v5396 = vrcp.pop %v4688
    %v5397 = vmul.f32 %v4688, %v5396
    %v5398 = vsub.f32 1.0, %v5397
    %v5399 = vmul.f32 %v5396, %v5398
    %v5400 = vadd.f32 %v5396, %v5399
    %vm5401 = vweird.f32 %v4688
    %vm5402 = vweird.f32 %v5396
    %vm5403 = vmor %vm5401, %vm5402
    %v5404 = vsel %vm5403, %v5396, %v5400
    %v5405 = vand.u32 2147483647, %v4688
    %vm5406 = vcmp.eq.f32.partialorder %v5405, 8.507059e+37
    %v5407 = vand.u32 %v4688, 2147483648
    %v5408 = vor.u32 1.1754944e-38, %v5407
    %v5409 = vsel %vm5406, %v5408, %v5404
    %v5410 = vmul.f32 1.0, %v5409
    %v5411 = vrcp.pop %v4689
    %v5412 = vmul.f32 %v4689, %v5411
    %v5413 = vsub.f32 1.0, %v5412
    %v5414 = vmul.f32 %v5411, %v5413
    %v5415 = vadd.f32 %v5411, %v5414
    %vm5416 = vweird.f32 %v4689
    %vm5417 = vweird.f32 %v5411
    %vm5418 = vmor %vm5416, %vm5417
    %v5419 = vsel %vm5418, %v5411, %v5415
    %v5420 = vand.u32 2147483647, %v4689
    %vm5421 = vcmp.eq.f32.partialorder %v5420, 8.507059e+37
    %v5422 = vand.u32 %v4689, 2147483648
    %v5423 = vor.u32 1.1754944e-38, %v5422
    %v5424 = vsel %vm5421, %v5423, %v5419
    %v5425 = vmul.f32 1.0, %v5424
    %v5426 = vrcp.pop %v4690
    %v5427 = vmul.f32 %v4690, %v5426
    %v5428 = vsub.f32 1.0, %v5427
    %v5429 = vmul.f32 %v5426, %v5428
    %v5430 = vadd.f32 %v5426, %v5429
    %vm5431 = vweird.f32 %v4690
    %vm5432 = vweird.f32 %v5426
    %vm5433 = vmor %vm5431, %vm5432
    %v5434 = vsel %vm5433, %v5426, %v5430
    %v5435 = vand.u32 2147483647, %v4690
    %vm5436 = vcmp.eq.f32.partialorder %v5435, 8.507059e+37
    %v5437 = vand.u32 %v4690, 2147483648
    %v5438 = vor.u32 1.1754944e-38, %v5437
    %v5439 = vsel %vm5436, %v5438, %v5434
    %v5440 = vmul.f32 1.0, %v5439
    %v5441 = vrcp.pop %v4691
    %v5442 = vmul.f32 %v4691, %v5441
    %v5443 = vsub.f32 1.0, %v5442
    %v5444 = vmul.f32 %v5441, %v5443
    %v5445 = vadd.f32 %v5441, %v5444
    %vm5446 = vweird.f32 %v4691
    %vm5447 = vweird.f32 %v5441
    %vm5448 = vmor %vm5446, %vm5447
    %v5449 = vsel %vm5448, %v5441, %v5445
    %v5450 = vand.u32 2147483647, %v4691
    %vm5451 = vcmp.eq.f32.partialorder %v5450, 8.507059e+37
    %v5452 = vand.u32 %v4691, 2147483648
    %v5453 = vor.u32 1.1754944e-38, %v5452
    %v5454 = vsel %vm5451, %v5453, %v5449
    %v5455 = vmul.f32 1.0, %v5454
    %v5456 = vrcp.pop %v4692
    %v5457 = vmul.f32 %v4692, %v5456
    %v5458 = vsub.f32 1.0, %v5457
    %v5459 = vmul.f32 %v5456, %v5458
    %v5460 = vadd.f32 %v5456, %v5459
    %vm5461 = vweird.f32 %v4692
    %vm5462 = vweird.f32 %v5456
    %vm5463 = vmor %vm5461, %vm5462
    %v5464 = vsel %vm5463, %v5456, %v5460
    %v5465 = vand.u32 2147483647, %v4692
    %vm5466 = vcmp.eq.f32.partialorder %v5465, 8.507059e+37
    %v5467 = vand.u32 %v4692, 2147483648
    %v5468 = vor.u32 1.1754944e-38, %v5467
    %v5469 = vsel %vm5466, %v5468, %v5464
    %v5470 = vmul.f32 1.0, %v5469
    %v5471 = vrcp.pop %v4693
    %v5472 = vmul.f32 %v4693, %v5471
    %v5473 = vsub.f32 1.0, %v5472
    %v5474 = vmul.f32 %v5471, %v5473
    %v5475 = vadd.f32 %v5471, %v5474
    %vm5476 = vweird.f32 %v4693
    %vm5477 = vweird.f32 %v5471
    %vm5478 = vmor %vm5476, %vm5477
    %v5479 = vsel %vm5478, %v5471, %v5475
    %v5480 = vand.u32 2147483647, %v4693
    %vm5481 = vcmp.eq.f32.partialorder %v5480, 8.507059e+37
    %v5482 = vand.u32 %v4693, 2147483648
    %v5483 = vor.u32 1.1754944e-38, %v5482
    %v5484 = vsel %vm5481, %v5483, %v5479
    %v5485 = vmul.f32 1.0, %v5484
    %v5486 = vrcp.pop %v4694
    %v5487 = vmul.f32 %v4694, %v5486
    %v5488 = vsub.f32 1.0, %v5487
    %v5489 = vmul.f32 %v5486, %v5488
    %v5490 = vadd.f32 %v5486, %v5489
    %vm5491 = vweird.f32 %v4694
    %vm5492 = vweird.f32 %v5486
    %vm5493 = vmor %vm5491, %vm5492
    %v5494 = vsel %vm5493, %v5486, %v5490
    %v5495 = vand.u32 2147483647, %v4694
    %vm5496 = vcmp.eq.f32.partialorder %v5495, 8.507059e+37
    %v5497 = vand.u32 %v4694, 2147483648
    %v5498 = vor.u32 1.1754944e-38, %v5497
    %v5499 = vsel %vm5496, %v5498, %v5494
    %v5500 = vmul.f32 1.0, %v5499
    %v5501 = vrcp.pop %v4695
    %v5502 = vmul.f32 %v4695, %v5501
    %v5503 = vsub.f32 1.0, %v5502
    %v5504 = vmul.f32 %v5501, %v5503
    %v5505 = vadd.f32 %v5501, %v5504
    %vm5506 = vweird.f32 %v4695
    %vm5507 = vweird.f32 %v5501
    %vm5508 = vmor %vm5506, %vm5507
    %v5509 = vsel %vm5508, %v5501, %v5505
    %v5510 = vand.u32 2147483647, %v4695
    %vm5511 = vcmp.eq.f32.partialorder %v5510, 8.507059e+37
    %v5512 = vand.u32 %v4695, 2147483648
    %v5513 = vor.u32 1.1754944e-38, %v5512
    %v5514 = vsel %vm5511, %v5513, %v5509
    %v5515 = vmul.f32 1.0, %v5514
    %v5516 = vrcp.pop %v4696
    %v5517 = vmul.f32 %v4696, %v5516
    %v5518 = vsub.f32 1.0, %v5517
    %v5519 = vmul.f32 %v5516, %v5518
    %v5520 = vadd.f32 %v5516, %v5519
    %vm5521 = vweird.f32 %v4696
    %vm5522 = vweird.f32 %v5516
    %vm5523 = vmor %vm5521, %vm5522
    %v5524 = vsel %vm5523, %v5516, %v5520
    %v5525 = vand.u32 2147483647, %v4696
    %vm5526 = vcmp.eq.f32.partialorder %v5525, 8.507059e+37
    %v5527 = vand.u32 %v4696, 2147483648
    %v5528 = vor.u32 1.1754944e-38, %v5527
    %v5529 = vsel %vm5526, %v5528, %v5524
    %v5530 = vmul.f32 1.0, %v5529
    %v5531 = vrcp.pop %v4697
    %v5532 = vmul.f32 %v4697, %v5531
    %v5533 = vsub.f32 1.0, %v5532
    %v5534 = vmul.f32 %v5531, %v5533
    %v5535 = vadd.f32 %v5531, %v5534
    %vm5536 = vweird.f32 %v4697
    %vm5537 = vweird.f32 %v5531
    %vm5538 = vmor %vm5536, %vm5537
    %v5539 = vsel %vm5538, %v5531, %v5535
    %v5540 = vand.u32 2147483647, %v4697
    %vm5541 = vcmp.eq.f32.partialorder %v5540, 8.507059e+37
    %v5542 = vand.u32 %v4697, 2147483648
    %v5543 = vor.u32 1.1754944e-38, %v5542
    %v5544 = vsel %vm5541, %v5543, %v5539
    %v5545 = vmul.f32 1.0, %v5544
    %v5546 = vrcp.pop %v4698
    %v5547 = vmul.f32 %v4698, %v5546
    %v5548 = vsub.f32 1.0, %v5547
    %v5549 = vmul.f32 %v5546, %v5548
    %v5550 = vadd.f32 %v5546, %v5549
    %vm5551 = vweird.f32 %v4698
    %vm5552 = vweird.f32 %v5546
    %vm5553 = vmor %vm5551, %vm5552
    %v5554 = vsel %vm5553, %v5546, %v5550
    %v5555 = vand.u32 2147483647, %v4698
    %vm5556 = vcmp.eq.f32.partialorder %v5555, 8.507059e+37
    %v5557 = vand.u32 %v4698, 2147483648
    %v5558 = vor.u32 1.1754944e-38, %v5557
    %v5559 = vsel %vm5556, %v5558, %v5554
    %v5560 = vmul.f32 1.0, %v5559
    %v5561 = vrcp.pop %v4699
    %v5562 = vmul.f32 %v4699, %v5561
    %v5563 = vsub.f32 1.0, %v5562
    %v5564 = vmul.f32 %v5561, %v5563
    %v5565 = vadd.f32 %v5561, %v5564
    %vm5566 = vweird.f32 %v4699
    %vm5567 = vweird.f32 %v5561
    %vm5568 = vmor %vm5566, %vm5567
    %v5569 = vsel %vm5568, %v5561, %v5565
    %v5570 = vand.u32 2147483647, %v4699
    %vm5571 = vcmp.eq.f32.partialorder %v5570, 8.507059e+37
    %v5572 = vand.u32 %v4699, 2147483648
    %v5573 = vor.u32 1.1754944e-38, %v5572
    %v5574 = vsel %vm5571, %v5573, %v5569
    %v5575 = vmul.f32 1.0, %v5574
    %v5576 = vrcp.pop %v4700
    %v5577 = vmul.f32 %v4700, %v5576
    %v5578 = vsub.f32 1.0, %v5577
    %v5579 = vmul.f32 %v5576, %v5578
    %v5580 = vadd.f32 %v5576, %v5579
    %vm5581 = vweird.f32 %v4700
    %vm5582 = vweird.f32 %v5576
    %vm5583 = vmor %vm5581, %vm5582
    %v5584 = vsel %vm5583, %v5576, %v5580
    %v5585 = vand.u32 2147483647, %v4700
    %vm5586 = vcmp.eq.f32.partialorder %v5585, 8.507059e+37
    %v5587 = vand.u32 %v4700, 2147483648
    %v5588 = vor.u32 1.1754944e-38, %v5587
    %v5589 = vsel %vm5586, %v5588, %v5584
    %v5590 = vmul.f32 1.0, %v5589
    %v5591 = vrcp.pop %v4701
    %v5592 = vmul.f32 %v4701, %v5591
    %v5593 = vsub.f32 1.0, %v5592
    %v5594 = vmul.f32 %v5591, %v5593
    %v5595 = vadd.f32 %v5591, %v5594
    %vm5596 = vweird.f32 %v4701
    %vm5597 = vweird.f32 %v5591
    %vm5598 = vmor %vm5596, %vm5597
    %v5599 = vsel %vm5598, %v5591, %v5595
    %v5600 = vand.u32 2147483647, %v4701
    %vm5601 = vcmp.eq.f32.partialorder %v5600, 8.507059e+37
    %v5602 = vand.u32 %v4701, 2147483648
    %v5603 = vor.u32 1.1754944e-38, %v5602
    %v5604 = vsel %vm5601, %v5603, %v5599
    %v5605 = vmul.f32 1.0, %v5604
    %v5606 = vrcp.pop %v4702
    %v5607 = vmul.f32 %v4702, %v5606
    %v5608 = vsub.f32 1.0, %v5607
    %v5609 = vmul.f32 %v5606, %v5608
    %v5610 = vadd.f32 %v5606, %v5609
    %vm5611 = vweird.f32 %v4702
    %vm5612 = vweird.f32 %v5606
    %vm5613 = vmor %vm5611, %vm5612
    %v5614 = vsel %vm5613, %v5606, %v5610
    %v5615 = vand.u32 2147483647, %v4702
    %vm5616 = vcmp.eq.f32.partialorder %v5615, 8.507059e+37
    %v5617 = vand.u32 %v4702, 2147483648
    %v5618 = vor.u32 1.1754944e-38, %v5617
    %v5619 = vsel %vm5616, %v5618, %v5614
    %v5620 = vmul.f32 1.0, %v5619
    %v5621 = vrcp.pop %v4703
    %v5622 = vmul.f32 %v4703, %v5621
    %v5623 = vsub.f32 1.0, %v5622
    %v5624 = vmul.f32 %v5621, %v5623
    %v5625 = vadd.f32 %v5621, %v5624
    %vm5626 = vweird.f32 %v4703
    %vm5627 = vweird.f32 %v5621
    %vm5628 = vmor %vm5626, %vm5627
    %v5629 = vsel %vm5628, %v5621, %v5625
    %v5630 = vand.u32 2147483647, %v4703
    %vm5631 = vcmp.eq.f32.partialorder %v5630, 8.507059e+37
    %v5632 = vand.u32 %v4703, 2147483648
    %v5633 = vor.u32 1.1754944e-38, %v5632
    %v5634 = vsel %vm5631, %v5633, %v5629
    %v5635 = vmul.f32 1.0, %v5634
    %v5636 = vrcp.pop %v4704
    %v5637 = vmul.f32 %v4704, %v5636
    %v5638 = vsub.f32 1.0, %v5637
    %v5639 = vmul.f32 %v5636, %v5638
    %v5640 = vadd.f32 %v5636, %v5639
    %vm5641 = vweird.f32 %v4704
    %vm5642 = vweird.f32 %v5636
    %vm5643 = vmor %vm5641, %vm5642
    %v5644 = vsel %vm5643, %v5636, %v5640
    %v5645 = vand.u32 2147483647, %v4704
    %vm5646 = vcmp.eq.f32.partialorder %v5645, 8.507059e+37
    %v5647 = vand.u32 %v4704, 2147483648
    %v5648 = vor.u32 1.1754944e-38, %v5647
    %v5649 = vsel %vm5646, %v5648, %v5644
    %v5650 = vmul.f32 1.0, %v5649
    %v5651 = vrcp.pop %v4705
    %v5652 = vmul.f32 %v4705, %v5651
    %v5653 = vsub.f32 1.0, %v5652
    %v5654 = vmul.f32 %v5651, %v5653
    %v5655 = vadd.f32 %v5651, %v5654
    %vm5656 = vweird.f32 %v4705
    %vm5657 = vweird.f32 %v5651
    %vm5658 = vmor %vm5656, %vm5657
    %v5659 = vsel %vm5658, %v5651, %v5655
    %v5660 = vand.u32 2147483647, %v4705
    %vm5661 = vcmp.eq.f32.partialorder %v5660, 8.507059e+37
    %v5662 = vand.u32 %v4705, 2147483648
    %v5663 = vor.u32 1.1754944e-38, %v5662
    %v5664 = vsel %vm5661, %v5663, %v5659
    %v5665 = vmul.f32 1.0, %v5664
    %vm5666 = vcmp.ge.f32.partialorder %v4386, 0.0
    %vm5667 = vcmp.ge.f32.partialorder %v4387, 0.0
    %vm5668 = vcmp.ge.f32.partialorder %v4388, 0.0
    %vm5669 = vcmp.ge.f32.partialorder %v4389, 0.0
    %vm5670 = vcmp.ge.f32.partialorder %v4390, 0.0
    %vm5671 = vcmp.ge.f32.partialorder %v4391, 0.0
    %vm5672 = vcmp.ge.f32.partialorder %v4392, 0.0
    %vm5673 = vcmp.ge.f32.partialorder %v4393, 0.0
    %vm5674 = vcmp.ge.f32.partialorder %v4394, 0.0
    %vm5675 = vcmp.ge.f32.partialorder %v4395, 0.0
    %vm5676 = vcmp.ge.f32.partialorder %v4396, 0.0
    %vm5677 = vcmp.ge.f32.partialorder %v4397, 0.0
    %vm5678 = vcmp.ge.f32.partialorder %v4398, 0.0
    %vm5679 = vcmp.ge.f32.partialorder %v4399, 0.0
    %vm5680 = vcmp.ge.f32.partialorder %v4400, 0.0
    %vm5681 = vcmp.ge.f32.partialorder %v4401, 0.0
    %vm5682 = vcmp.ge.f32.partialorder %v4402, 0.0
    %vm5683 = vcmp.ge.f32.partialorder %v4403, 0.0
    %vm5684 = vcmp.ge.f32.partialorder %v4404, 0.0
    %vm5685 = vcmp.ge.f32.partialorder %v4405, 0.0
    %vm5686 = vcmp.ge.f32.partialorder %v4406, 0.0
    %vm5687 = vcmp.ge.f32.partialorder %v4407, 0.0
    %vm5688 = vcmp.ge.f32.partialorder %v4408, 0.0
    %vm5689 = vcmp.ge.f32.partialorder %v4409, 0.0
    %vm5690 = vcmp.ge.f32.partialorder %v4410, 0.0
    %vm5691 = vcmp.ge.f32.partialorder %v4411, 0.0
    %vm5692 = vcmp.ge.f32.partialorder %v4412, 0.0
    %vm5693 = vcmp.ge.f32.partialorder %v4413, 0.0
    %vm5694 = vcmp.ge.f32.partialorder %v4414, 0.0
    %vm5695 = vcmp.ge.f32.partialorder %v4415, 0.0
    %vm5696 = vcmp.ge.f32.partialorder %v4416, 0.0
    %vm5697 = vcmp.ge.f32.partialorder %v4417, 0.0
    %vm5698 = vcmp.ge.f32.partialorder %v4418, 0.0
    %vm5699 = vcmp.ge.f32.partialorder %v4419, 0.0
    %vm5700 = vcmp.ge.f32.partialorder %v4420, 0.0
    %vm5701 = vcmp.ge.f32.partialorder %v4421, 0.0
    %vm5702 = vcmp.ge.f32.partialorder %v4422, 0.0
    %vm5703 = vcmp.ge.f32.partialorder %v4423, 0.0
    %vm5704 = vcmp.ge.f32.partialorder %v4424, 0.0
    %vm5705 = vcmp.ge.f32.partialorder %v4425, 0.0
    %vm5706 = vcmp.ge.f32.partialorder %v4426, 0.0
    %vm5707 = vcmp.ge.f32.partialorder %v4427, 0.0
    %vm5708 = vcmp.ge.f32.partialorder %v4428, 0.0
    %vm5709 = vcmp.ge.f32.partialorder %v4429, 0.0
    %vm5710 = vcmp.ge.f32.partialorder %v4430, 0.0
    %vm5711 = vcmp.ge.f32.partialorder %v4431, 0.0
    %vm5712 = vcmp.ge.f32.partialorder %v4432, 0.0
    %vm5713 = vcmp.ge.f32.partialorder %v4433, 0.0
    %vm5714 = vcmp.ge.f32.partialorder %v4434, 0.0
    %vm5715 = vcmp.ge.f32.partialorder %v4435, 0.0
    %vm5716 = vcmp.ge.f32.partialorder %v4436, 0.0
    %vm5717 = vcmp.ge.f32.partialorder %v4437, 0.0
    %vm5718 = vcmp.ge.f32.partialorder %v4438, 0.0
    %vm5719 = vcmp.ge.f32.partialorder %v4439, 0.0
    %vm5720 = vcmp.ge.f32.partialorder %v4440, 0.0
    %vm5721 = vcmp.ge.f32.partialorder %v4441, 0.0
    %vm5722 = vcmp.ge.f32.partialorder %v4442, 0.0
    %vm5723 = vcmp.ge.f32.partialorder %v4443, 0.0
    %vm5724 = vcmp.ge.f32.partialorder %v4444, 0.0
    %vm5725 = vcmp.ge.f32.partialorder %v4445, 0.0
    %vm5726 = vcmp.ge.f32.partialorder %v4446, 0.0
    %vm5727 = vcmp.ge.f32.partialorder %v4447, 0.0
    %vm5728 = vcmp.ge.f32.partialorder %v4448, 0.0
    %vm5729 = vcmp.ge.f32.partialorder %v4449, 0.0
    %v5730 = vmul.f32 %v4386, 0.01
    %v5731 = vmul.f32 %v4387, 0.01
    %v5732 = vmul.f32 %v4388, 0.01
    %v5733 = vmul.f32 %v4389, 0.01
    %v5734 = vmul.f32 %v4390, 0.01
    %v5735 = vmul.f32 %v4391, 0.01
    %v5736 = vmul.f32 %v4392, 0.01
    %v5737 = vmul.f32 %v4393, 0.01
    %v5738 = vmul.f32 %v4394, 0.01
    %v5739 = vmul.f32 %v4395, 0.01
    %v5740 = vmul.f32 %v4396, 0.01
    %v5741 = vmul.f32 %v4397, 0.01
    %v5742 = vmul.f32 %v4398, 0.01
    %v5743 = vmul.f32 %v4399, 0.01
    %v5744 = vmul.f32 %v4400, 0.01
    %v5745 = vmul.f32 %v4401, 0.01
    %v5746 = vmul.f32 %v4402, 0.01
    %v5747 = vmul.f32 %v4403, 0.01
    %v5748 = vmul.f32 %v4404, 0.01
    %v5749 = vmul.f32 %v4405, 0.01
    %v5750 = vmul.f32 %v4406, 0.01
    %v5751 = vmul.f32 %v4407, 0.01
    %v5752 = vmul.f32 %v4408, 0.01
    %v5753 = vmul.f32 %v4409, 0.01
    %v5754 = vmul.f32 %v4410, 0.01
    %v5755 = vmul.f32 %v4411, 0.01
    %v5756 = vmul.f32 %v4412, 0.01
    %v5757 = vmul.f32 %v4413, 0.01
    %v5758 = vmul.f32 %v4414, 0.01
    %v5759 = vmul.f32 %v4415, 0.01
    %v5760 = vmul.f32 %v4416, 0.01
    %v5761 = vmul.f32 %v4417, 0.01
    %v5762 = vmul.f32 %v4418, 0.01
    %v5763 = vmul.f32 %v4419, 0.01
    %v5764 = vmul.f32 %v4420, 0.01
    %v5765 = vmul.f32 %v4421, 0.01
    %v5766 = vmul.f32 %v4422, 0.01
    %v5767 = vmul.f32 %v4423, 0.01
    %v5768 = vmul.f32 %v4424, 0.01
    %v5769 = vmul.f32 %v4425, 0.01
    %v5770 = vmul.f32 %v4426, 0.01
    %v5771 = vmul.f32 %v4427, 0.01
    %v5772 = vmul.f32 %v4428, 0.01
    %v5773 = vmul.f32 %v4429, 0.01
    %v5774 = vmul.f32 %v4430, 0.01
    %v5775 = vmul.f32 %v4431, 0.01
    %v5776 = vmul.f32 %v4432, 0.01
    %v5777 = vmul.f32 %v4433, 0.01
    %v5778 = vmul.f32 %v4434, 0.01
    %v5779 = vmul.f32 %v4435, 0.01
    %v5780 = vmul.f32 %v4436, 0.01
    %v5781 = vmul.f32 %v4437, 0.01
    %v5782 = vmul.f32 %v4438, 0.01
    %v5783 = vmul.f32 %v4439, 0.01
    %v5784 = vmul.f32 %v4440, 0.01
    %v5785 = vmul.f32 %v4441, 0.01
    %v5786 = vmul.f32 %v4442, 0.01
    %v5787 = vmul.f32 %v4443, 0.01
    %v5788 = vmul.f32 %v4444, 0.01
    %v5789 = vmul.f32 %v4445, 0.01
    %v5790 = vmul.f32 %v4446, 0.01
    %v5791 = vmul.f32 %v4447, 0.01
    %v5792 = vmul.f32 %v4448, 0.01
    %v5793 = vmul.f32 %v4449, 0.01
    %v5794 = vsel %vm5666, %v4386, %v5730
    %v5795 = vsel %vm5667, %v4387, %v5731
    %v5796 = vsel %vm5668, %v4388, %v5732
    %v5797 = vsel %vm5669, %v4389, %v5733
    %v5798 = vsel %vm5670, %v4390, %v5734
    %v5799 = vsel %vm5671, %v4391, %v5735
    %v5800 = vsel %vm5672, %v4392, %v5736
    %v5801 = vsel %vm5673, %v4393, %v5737
    %v5802 = vsel %vm5674, %v4394, %v5738
    %v5803 = vsel %vm5675, %v4395, %v5739
    %v5804 = vsel %vm5676, %v4396, %v5740
    %v5805 = vsel %vm5677, %v4397, %v5741
    %v5806 = vsel %vm5678, %v4398, %v5742
    %v5807 = vsel %vm5679, %v4399, %v5743
    %v5808 = vsel %vm5680, %v4400, %v5744
    %v5809 = vsel %vm5681, %v4401, %v5745
    %v5810 = vsel %vm5682, %v4402, %v5746
    %v5811 = vsel %vm5683, %v4403, %v5747
    %v5812 = vsel %vm5684, %v4404, %v5748
    %v5813 = vsel %vm5685, %v4405, %v5749
    %v5814 = vsel %vm5686, %v4406, %v5750
    %v5815 = vsel %vm5687, %v4407, %v5751
    %v5816 = vsel %vm5688, %v4408, %v5752
    %v5817 = vsel %vm5689, %v4409, %v5753
    %v5818 = vsel %vm5690, %v4410, %v5754
    %v5819 = vsel %vm5691, %v4411, %v5755
    %v5820 = vsel %vm5692, %v4412, %v5756
    %v5821 = vsel %vm5693, %v4413, %v5757
    %v5822 = vsel %vm5694, %v4414, %v5758
    %v5823 = vsel %vm5695, %v4415, %v5759
    %v5824 = vsel %vm5696, %v4416, %v5760
    %v5825 = vsel %vm5697, %v4417, %v5761
    %v5826 = vsel %vm5698, %v4418, %v5762
    %v5827 = vsel %vm5699, %v4419, %v5763
    %v5828 = vsel %vm5700, %v4420, %v5764
    %v5829 = vsel %vm5701, %v4421, %v5765
    %v5830 = vsel %vm5702, %v4422, %v5766
    %v5831 = vsel %vm5703, %v4423, %v5767
    %v5832 = vsel %vm5704, %v4424, %v5768
    %v5833 = vsel %vm5705, %v4425, %v5769
    %v5834 = vsel %vm5706, %v4426, %v5770
    %v5835 = vsel %vm5707, %v4427, %v5771
    %v5836 = vsel %vm5708, %v4428, %v5772
    %v5837 = vsel %vm5709, %v4429, %v5773
    %v5838 = vsel %vm5710, %v4430, %v5774
    %v5839 = vsel %vm5711, %v4431, %v5775
    %v5840 = vsel %vm5712, %v4432, %v5776
    %v5841 = vsel %vm5713, %v4433, %v5777
    %v5842 = vsel %vm5714, %v4434, %v5778
    %v5843 = vsel %vm5715, %v4435, %v5779
    %v5844 = vsel %vm5716, %v4436, %v5780
    %v5845 = vsel %vm5717, %v4437, %v5781
    %v5846 = vsel %vm5718, %v4438, %v5782
    %v5847 = vsel %vm5719, %v4439, %v5783
    %v5848 = vsel %vm5720, %v4440, %v5784
    %v5849 = vsel %vm5721, %v4441, %v5785
    %v5850 = vsel %vm5722, %v4442, %v5786
    %v5851 = vsel %vm5723, %v4443, %v5787
    %v5852 = vsel %vm5724, %v4444, %v5788
    %v5853 = vsel %vm5725, %v4445, %v5789
    %v5854 = vsel %vm5726, %v4446, %v5790
    %v5855 = vsel %vm5727, %v4447, %v5791
    %v5856 = vsel %vm5728, %v4448, %v5792
    %v5857 = vsel %vm5729, %v4449, %v5793
    %5922 = vrot.lane.b32.xlu0 %v196, 32
    %v5923 = vpop.permute.xlu0 %5922
    %5924 = vrot.lane.b32.xlu0 %v197, 32
    %v5925 = vpop.permute.xlu0 %5924
    %5926 = vrot.lane.b32.xlu0 %v198, 32
    %v5927 = vpop.permute.xlu0 %5926
    %5928 = vrot.lane.b32.xlu0 %v199, 32
    %v5929 = vpop.permute.xlu0 %5928
    %5930 = vrot.lane.b32.xlu0 %v200, 32
    %v5931 = vpop.permute.xlu0 %5930
    %5932 = vrot.lane.b32.xlu0 %v201, 32
    %v5933 = vpop.permute.xlu0 %5932
    %5934 = vrot.lane.b32.xlu0 %v202, 32
    %v5935 = vpop.permute.xlu0 %5934
    %5936 = vrot.lane.b32.xlu0 %v203, 32
    %v5937 = vpop.permute.xlu0 %5936
    %5938 = vrot.lane.b32.xlu0 %v204, 32
    %v5939 = vpop.permute.xlu0 %5938
    %5940 = vrot.lane.b32.xlu0 %v205, 32
    %v5941 = vpop.permute.xlu0 %5940
    %5942 = vrot.lane.b32.xlu0 %v206, 32
    %v5943 = vpop.permute.xlu0 %5942
    %5944 = vrot.lane.b32.xlu0 %v207, 32
    %v5945 = vpop.permute.xlu0 %5944
    %5946 = vrot.lane.b32.xlu0 %v208, 32
    %v5947 = vpop.permute.xlu0 %5946
    %5948 = vrot.lane.b32.xlu0 %v209, 32
    %v5949 = vpop.permute.xlu0 %5948
    %5950 = vrot.lane.b32.xlu0 %v210, 32
    %v5951 = vpop.permute.xlu0 %5950
    %5952 = vrot.lane.b32.xlu0 %v211, 32
    %v5953 = vpop.permute.xlu0 %5952
    %5954 = vrot.lane.b32.xlu0 %v212, 32
    %v5955 = vpop.permute.xlu0 %5954
    %5956 = vrot.lane.b32.xlu0 %v213, 32
    %v5957 = vpop.permute.xlu0 %5956
    %5958 = vrot.lane.b32.xlu0 %v214, 32
    %v5959 = vpop.permute.xlu0 %5958
    %5960 = vrot.lane.b32.xlu0 %v215, 32
    %v5961 = vpop.permute.xlu0 %5960
    %5962 = vrot.lane.b32.xlu0 %v216, 32
    %v5963 = vpop.permute.xlu0 %5962
    %5964 = vrot.lane.b32.xlu0 %v217, 32
    %v5965 = vpop.permute.xlu0 %5964
    %5966 = vrot.lane.b32.xlu0 %v218, 32
    %v5967 = vpop.permute.xlu0 %5966
    %5968 = vrot.lane.b32.xlu0 %v219, 32
    %v5969 = vpop.permute.xlu0 %5968
    %5970 = vrot.lane.b32.xlu0 %v220, 32
    %v5971 = vpop.permute.xlu0 %5970
    %5972 = vrot.lane.b32.xlu0 %v221, 32
    %v5973 = vpop.permute.xlu0 %5972
    %5974 = vrot.lane.b32.xlu0 %v222, 32
    %v5975 = vpop.permute.xlu0 %5974
    %5976 = vrot.lane.b32.xlu0 %v223, 32
    %v5977 = vpop.permute.xlu0 %5976
    %5978 = vrot.lane.b32.xlu0 %v224, 32
    %v5979 = vpop.permute.xlu0 %5978
    %5980 = vrot.lane.b32.xlu0 %v225, 32
    %v5981 = vpop.permute.xlu0 %5980
    %5982 = vrot.lane.b32.xlu0 %v226, 32
    %v5983 = vpop.permute.xlu0 %5982
    %5984 = vrot.lane.b32.xlu0 %v227, 32
    %v5985 = vpop.permute.xlu0 %5984
    %5986 = vrot.lane.b32.xlu0 %v228, 32
    %v5987 = vpop.permute.xlu0 %5986
    %5988 = vrot.lane.b32.xlu0 %v229, 32
    %v5989 = vpop.permute.xlu0 %5988
    %5990 = vrot.lane.b32.xlu0 %v230, 32
    %v5991 = vpop.permute.xlu0 %5990
    %5992 = vrot.lane.b32.xlu0 %v231, 32
    %v5993 = vpop.permute.xlu0 %5992
    %5994 = vrot.lane.b32.xlu0 %v232, 32
    %v5995 = vpop.permute.xlu0 %5994
    %5996 = vrot.lane.b32.xlu0 %v233, 32
    %v5997 = vpop.permute.xlu0 %5996
    %5998 = vrot.lane.b32.xlu0 %v234, 32
    %v5999 = vpop.permute.xlu0 %5998
    %6000 = vrot.lane.b32.xlu0 %v235, 32
    %v6001 = vpop.permute.xlu0 %6000
    %6002 = vrot.lane.b32.xlu0 %v236, 32
    %v6003 = vpop.permute.xlu0 %6002
    %6004 = vrot.lane.b32.xlu0 %v237, 32
    %v6005 = vpop.permute.xlu0 %6004
    %6006 = vrot.lane.b32.xlu0 %v238, 32
    %v6007 = vpop.permute.xlu0 %6006
    %6008 = vrot.lane.b32.xlu0 %v239, 32
    %v6009 = vpop.permute.xlu0 %6008
    %6010 = vrot.lane.b32.xlu0 %v240, 32
    %v6011 = vpop.permute.xlu0 %6010
    %6012 = vrot.lane.b32.xlu0 %v241, 32
    %v6013 = vpop.permute.xlu0 %6012
    %6014 = vrot.lane.b32.xlu0 %v242, 32
    %v6015 = vpop.permute.xlu0 %6014
    %6016 = vrot.lane.b32.xlu0 %v243, 32
    %v6017 = vpop.permute.xlu0 %6016
    %6018 = vrot.lane.b32.xlu0 %v244, 32
    %v6019 = vpop.permute.xlu0 %6018
    %6020 = vrot.lane.b32.xlu0 %v245, 32
    %v6021 = vpop.permute.xlu0 %6020
    %6022 = vrot.lane.b32.xlu0 %v246, 32
    %v6023 = vpop.permute.xlu0 %6022
    %6024 = vrot.lane.b32.xlu0 %v247, 32
    %v6025 = vpop.permute.xlu0 %6024
    %6026 = vrot.lane.b32.xlu0 %v248, 32
    %v6027 = vpop.permute.xlu0 %6026
    %6028 = vrot.lane.b32.xlu0 %v249, 32
    %v6029 = vpop.permute.xlu0 %6028
    %6030 = vrot.lane.b32.xlu0 %v250, 32
    %v6031 = vpop.permute.xlu0 %6030
    %6032 = vrot.lane.b32.xlu0 %v251, 32
    %v6033 = vpop.permute.xlu0 %6032
    %6034 = vrot.lane.b32.xlu0 %v252, 32
    %v6035 = vpop.permute.xlu0 %6034
    %6036 = vrot.lane.b32.xlu0 %v253, 32
    %v6037 = vpop.permute.xlu0 %6036
    %6038 = vrot.lane.b32.xlu0 %v254, 32
    %v6039 = vpop.permute.xlu0 %6038
    %6040 = vrot.lane.b32.xlu0 %v255, 32
    %v6041 = vpop.permute.xlu0 %6040
    %6042 = vrot.lane.b32.xlu0 %v256, 32
    %v6043 = vpop.permute.xlu0 %6042
    %6044 = vrot.lane.b32.xlu0 %v257, 32
    %v6045 = vpop.permute.xlu0 %6044
    %6046 = vrot.lane.b32.xlu0 %v258, 32
    %v6047 = vpop.permute.xlu0 %6046
    %6048 = vrot.lane.b32.xlu0 %v259, 32
    %v6049 = vpop.permute.xlu0 %6048
    %v6114 = vmul.f32 %v4720, %v5923
    %v6115 = vmul.f32 %v4735, %v5925
    %v6116 = vmul.f32 %v4750, %v5927
    %v6117 = vmul.f32 %v4765, %v5929
    %v6118 = vmul.f32 %v4780, %v5931
    %v6119 = vmul.f32 %v4795, %v5933
    %v6120 = vmul.f32 %v4810, %v5935
    %v6121 = vmul.f32 %v4825, %v5937
    %v6122 = vmul.f32 %v4840, %v5939
    %v6123 = vmul.f32 %v4855, %v5941
    %v6124 = vmul.f32 %v4870, %v5943
    %v6125 = vmul.f32 %v4885, %v5945
    %v6126 = vmul.f32 %v4900, %v5947
    %v6127 = vmul.f32 %v4915, %v5949
    %v6128 = vmul.f32 %v4930, %v5951
    %v6129 = vmul.f32 %v4945, %v5953
    %v6130 = vmul.f32 %v4960, %v5955
    %v6131 = vmul.f32 %v4975, %v5957
    %v6132 = vmul.f32 %v4990, %v5959
    %v6133 = vmul.f32 %v5005, %v5961
    %v6134 = vmul.f32 %v5020, %v5963
    %v6135 = vmul.f32 %v5035, %v5965
    %v6136 = vmul.f32 %v5050, %v5967
    %v6137 = vmul.f32 %v5065, %v5969
    %v6138 = vmul.f32 %v5080, %v5971
    %v6139 = vmul.f32 %v5095, %v5973
    %v6140 = vmul.f32 %v5110, %v5975
    %v6141 = vmul.f32 %v5125, %v5977
    %v6142 = vmul.f32 %v5140, %v5979
    %v6143 = vmul.f32 %v5155, %v5981
    %v6144 = vmul.f32 %v5170, %v5983
    %v6145 = vmul.f32 %v5185, %v5985
    %v6146 = vmul.f32 %v5200, %v5987
    %v6147 = vmul.f32 %v5215, %v5989
    %v6148 = vmul.f32 %v5230, %v5991
    %v6149 = vmul.f32 %v5245, %v5993
    %v6150 = vmul.f32 %v5260, %v5995
    %v6151 = vmul.f32 %v5275, %v5997
    %v6152 = vmul.f32 %v5290, %v5999
    %v6153 = vmul.f32 %v5305, %v6001
    %v6154 = vmul.f32 %v5320, %v6003
    %v6155 = vmul.f32 %v5335, %v6005
    %v6156 = vmul.f32 %v5350, %v6007
    %v6157 = vmul.f32 %v5365, %v6009
    %v6158 = vmul.f32 %v5380, %v6011
    %v6159 = vmul.f32 %v5395, %v6013
    %v6160 = vmul.f32 %v5410, %v6015
    %v6161 = vmul.f32 %v5425, %v6017
    %v6162 = vmul.f32 %v5440, %v6019
    %v6163 = vmul.f32 %v5455, %v6021
    %v6164 = vmul.f32 %v5470, %v6023
    %v6165 = vmul.f32 %v5485, %v6025
    %v6166 = vmul.f32 %v5500, %v6027
    %v6167 = vmul.f32 %v5515, %v6029
    %v6168 = vmul.f32 %v5530, %v6031
    %v6169 = vmul.f32 %v5545, %v6033
    %v6170 = vmul.f32 %v5560, %v6035
    %v6171 = vmul.f32 %v5575, %v6037
    %v6172 = vmul.f32 %v5590, %v6039
    %v6173 = vmul.f32 %v5605, %v6041
    %v6174 = vmul.f32 %v5620, %v6043
    %v6175 = vmul.f32 %v5635, %v6045
    %v6176 = vmul.f32 %v5650, %v6047
    %v6177 = vmul.f32 %v5665, %v6049
    %6242 = vrot.lane.b32.xlu0 %v5794, 64
    %v6243 = vpop.permute.xlu0 %6242
    %6244 = vrot.lane.b32.xlu0 %v5795, 64
    %v6245 = vpop.permute.xlu0 %6244
    %6246 = vrot.lane.b32.xlu0 %v5796, 64
    %v6247 = vpop.permute.xlu0 %6246
    %6248 = vrot.lane.b32.xlu0 %v5797, 64
    %v6249 = vpop.permute.xlu0 %6248
    %6250 = vrot.lane.b32.xlu0 %v5798, 64
    %v6251 = vpop.permute.xlu0 %6250
    %6252 = vrot.lane.b32.xlu0 %v5799, 64
    %v6253 = vpop.permute.xlu0 %6252
    %6254 = vrot.lane.b32.xlu0 %v5800, 64
    %v6255 = vpop.permute.xlu0 %6254
    %6256 = vrot.lane.b32.xlu0 %v5801, 64
    %v6257 = vpop.permute.xlu0 %6256
    %6258 = vrot.lane.b32.xlu0 %v5802, 64
    %v6259 = vpop.permute.xlu0 %6258
    %6260 = vrot.lane.b32.xlu0 %v5803, 64
    %v6261 = vpop.permute.xlu0 %6260
    %6262 = vrot.lane.b32.xlu0 %v5804, 64
    %v6263 = vpop.permute.xlu0 %6262
    %6264 = vrot.lane.b32.xlu0 %v5805, 64
    %v6265 = vpop.permute.xlu0 %6264
    %6266 = vrot.lane.b32.xlu0 %v5806, 64
    %v6267 = vpop.permute.xlu0 %6266
    %6268 = vrot.lane.b32.xlu0 %v5807, 64
    %v6269 = vpop.permute.xlu0 %6268
    %6270 = vrot.lane.b32.xlu0 %v5808, 64
    %v6271 = vpop.permute.xlu0 %6270
    %6272 = vrot.lane.b32.xlu0 %v5809, 64
    %v6273 = vpop.permute.xlu0 %6272
    %6274 = vrot.lane.b32.xlu0 %v5810, 64
    %v6275 = vpop.permute.xlu0 %6274
    %6276 = vrot.lane.b32.xlu0 %v5811, 64
    %v6277 = vpop.permute.xlu0 %6276
    %6278 = vrot.lane.b32.xlu0 %v5812, 64
    %v6279 = vpop.permute.xlu0 %6278
    %6280 = vrot.lane.b32.xlu0 %v5813, 64
    %v6281 = vpop.permute.xlu0 %6280
    %6282 = vrot.lane.b32.xlu0 %v5814, 64
    %v6283 = vpop.permute.xlu0 %6282
    %6284 = vrot.lane.b32.xlu0 %v5815, 64
    %v6285 = vpop.permute.xlu0 %6284
    %6286 = vrot.lane.b32.xlu0 %v5816, 64
    %v6287 = vpop.permute.xlu0 %6286
    %6288 = vrot.lane.b32.xlu0 %v5817, 64
    %v6289 = vpop.permute.xlu0 %6288
    %6290 = vrot.lane.b32.xlu0 %v5818, 64
    %v6291 = vpop.permute.xlu0 %6290
    %6292 = vrot.lane.b32.xlu0 %v5819, 64
    %v6293 = vpop.permute.xlu0 %6292
    %6294 = vrot.lane.b32.xlu0 %v5820, 64
    %v6295 = vpop.permute.xlu0 %6294
    %6296 = vrot.lane.b32.xlu0 %v5821, 64
    %v6297 = vpop.permute.xlu0 %6296
    %6298 = vrot.lane.b32.xlu0 %v5822, 64
    %v6299 = vpop.permute.xlu0 %6298
    %6300 = vrot.lane.b32.xlu0 %v5823, 64
    %v6301 = vpop.permute.xlu0 %6300
    %6302 = vrot.lane.b32.xlu0 %v5824, 64
    %v6303 = vpop.permute.xlu0 %6302
    %6304 = vrot.lane.b32.xlu0 %v5825, 64
    %v6305 = vpop.permute.xlu0 %6304
    %6306 = vrot.lane.b32.xlu0 %v5826, 64
    %v6307 = vpop.permute.xlu0 %6306
    %6308 = vrot.lane.b32.xlu0 %v5827, 64
    %v6309 = vpop.permute.xlu0 %6308
    %6310 = vrot.lane.b32.xlu0 %v5828, 64
    %v6311 = vpop.permute.xlu0 %6310
    %6312 = vrot.lane.b32.xlu0 %v5829, 64
    %v6313 = vpop.permute.xlu0 %6312
    %6314 = vrot.lane.b32.xlu0 %v5830, 64
    %v6315 = vpop.permute.xlu0 %6314
    %6316 = vrot.lane.b32.xlu0 %v5831, 64
    %v6317 = vpop.permute.xlu0 %6316
    %6318 = vrot.lane.b32.xlu0 %v5832, 64
    %v6319 = vpop.permute.xlu0 %6318
    %6320 = vrot.lane.b32.xlu0 %v5833, 64
    %v6321 = vpop.permute.xlu0 %6320
    %6322 = vrot.lane.b32.xlu0 %v5834, 64
    %v6323 = vpop.permute.xlu0 %6322
    %6324 = vrot.lane.b32.xlu0 %v5835, 64
    %v6325 = vpop.permute.xlu0 %6324
    %6326 = vrot.lane.b32.xlu0 %v5836, 64
    %v6327 = vpop.permute.xlu0 %6326
    %6328 = vrot.lane.b32.xlu0 %v5837, 64
    %v6329 = vpop.permute.xlu0 %6328
    %6330 = vrot.lane.b32.xlu0 %v5838, 64
    %v6331 = vpop.permute.xlu0 %6330
    %6332 = vrot.lane.b32.xlu0 %v5839, 64
    %v6333 = vpop.permute.xlu0 %6332
    %6334 = vrot.lane.b32.xlu0 %v5840, 64
    %v6335 = vpop.permute.xlu0 %6334
    %6336 = vrot.lane.b32.xlu0 %v5841, 64
    %v6337 = vpop.permute.xlu0 %6336
    %6338 = vrot.lane.b32.xlu0 %v5842, 64
    %v6339 = vpop.permute.xlu0 %6338
    %6340 = vrot.lane.b32.xlu0 %v5843, 64
    %v6341 = vpop.permute.xlu0 %6340
    %6342 = vrot.lane.b32.xlu0 %v5844, 64
    %v6343 = vpop.permute.xlu0 %6342
    %6344 = vrot.lane.b32.xlu0 %v5845, 64
    %v6345 = vpop.permute.xlu0 %6344
    %6346 = vrot.lane.b32.xlu0 %v5846, 64
    %v6347 = vpop.permute.xlu0 %6346
    %6348 = vrot.lane.b32.xlu0 %v5847, 64
    %v6349 = vpop.permute.xlu0 %6348
    %6350 = vrot.lane.b32.xlu0 %v5848, 64
    %v6351 = vpop.permute.xlu0 %6350
    %6352 = vrot.lane.b32.xlu0 %v5849, 64
    %v6353 = vpop.permute.xlu0 %6352
    %6354 = vrot.lane.b32.xlu0 %v5850, 64
    %v6355 = vpop.permute.xlu0 %6354
    %6356 = vrot.lane.b32.xlu0 %v5851, 64
    %v6357 = vpop.permute.xlu0 %6356
    %6358 = vrot.lane.b32.xlu0 %v5852, 64
    %v6359 = vpop.permute.xlu0 %6358
    %6360 = vrot.lane.b32.xlu0 %v5853, 64
    %v6361 = vpop.permute.xlu0 %6360
    %6362 = vrot.lane.b32.xlu0 %v5854, 64
    %v6363 = vpop.permute.xlu0 %6362
    %6364 = vrot.lane.b32.xlu0 %v5855, 64
    %v6365 = vpop.permute.xlu0 %6364
    %6366 = vrot.lane.b32.xlu0 %v5856, 64
    %v6367 = vpop.permute.xlu0 %6366
    %6368 = vrot.lane.b32.xlu0 %v5857, 64
    %v6369 = vpop.permute.xlu0 %6368
    %v6434 = vmul.f32 %v4720, %v6243
    %v6435 = vmul.f32 %v4735, %v6245
    %v6436 = vmul.f32 %v4750, %v6247
    %v6437 = vmul.f32 %v4765, %v6249
    %v6438 = vmul.f32 %v4780, %v6251
    %v6439 = vmul.f32 %v4795, %v6253
    %v6440 = vmul.f32 %v4810, %v6255
    %v6441 = vmul.f32 %v4825, %v6257
    %v6442 = vmul.f32 %v4840, %v6259
    %v6443 = vmul.f32 %v4855, %v6261
    %v6444 = vmul.f32 %v4870, %v6263
    %v6445 = vmul.f32 %v4885, %v6265
    %v6446 = vmul.f32 %v4900, %v6267
    %v6447 = vmul.f32 %v4915, %v6269
    %v6448 = vmul.f32 %v4930, %v6271
    %v6449 = vmul.f32 %v4945, %v6273
    %v6450 = vmul.f32 %v4960, %v6275
    %v6451 = vmul.f32 %v4975, %v6277
    %v6452 = vmul.f32 %v4990, %v6279
    %v6453 = vmul.f32 %v5005, %v6281
    %v6454 = vmul.f32 %v5020, %v6283
    %v6455 = vmul.f32 %v5035, %v6285
    %v6456 = vmul.f32 %v5050, %v6287
    %v6457 = vmul.f32 %v5065, %v6289
    %v6458 = vmul.f32 %v5080, %v6291
    %v6459 = vmul.f32 %v5095, %v6293
    %v6460 = vmul.f32 %v5110, %v6295
    %v6461 = vmul.f32 %v5125, %v6297
    %v6462 = vmul.f32 %v5140, %v6299
    %v6463 = vmul.f32 %v5155, %v6301
    %v6464 = vmul.f32 %v5170, %v6303
    %v6465 = vmul.f32 %v5185, %v6305
    %v6466 = vmul.f32 %v5200, %v6307
    %v6467 = vmul.f32 %v5215, %v6309
    %v6468 = vmul.f32 %v5230, %v6311
    %v6469 = vmul.f32 %v5245, %v6313
    %v6470 = vmul.f32 %v5260, %v6315
    %v6471 = vmul.f32 %v5275, %v6317
    %v6472 = vmul.f32 %v5290, %v6319
    %v6473 = vmul.f32 %v5305, %v6321
    %v6474 = vmul.f32 %v5320, %v6323
    %v6475 = vmul.f32 %v5335, %v6325
    %v6476 = vmul.f32 %v5350, %v6327
    %v6477 = vmul.f32 %v5365, %v6329
    %v6478 = vmul.f32 %v5380, %v6331
    %v6479 = vmul.f32 %v5395, %v6333
    %v6480 = vmul.f32 %v5410, %v6335
    %v6481 = vmul.f32 %v5425, %v6337
    %v6482 = vmul.f32 %v5440, %v6339
    %v6483 = vmul.f32 %v5455, %v6341
    %v6484 = vmul.f32 %v5470, %v6343
    %v6485 = vmul.f32 %v5485, %v6345
    %v6486 = vmul.f32 %v5500, %v6347
    %v6487 = vmul.f32 %v5515, %v6349
    %v6488 = vmul.f32 %v5530, %v6351
    %v6489 = vmul.f32 %v5545, %v6353
    %v6490 = vmul.f32 %v5560, %v6355
    %v6491 = vmul.f32 %v5575, %v6357
    %v6492 = vmul.f32 %v5590, %v6359
    %v6493 = vmul.f32 %v5605, %v6361
    %v6494 = vmul.f32 %v5620, %v6363
    %v6495 = vmul.f32 %v5635, %v6365
    %v6496 = vmul.f32 %v5650, %v6367
    %v6497 = vmul.f32 %v5665, %v6369
    %6562 = vrot.lane.b32.xlu0 %v6434, 32
    %v6563 = vpop.permute.xlu0 %6562
    %6564 = vrot.lane.b32.xlu0 %v6435, 32
    %v6565 = vpop.permute.xlu0 %6564
    %6566 = vrot.lane.b32.xlu0 %v6436, 32
    %v6567 = vpop.permute.xlu0 %6566
    %6568 = vrot.lane.b32.xlu0 %v6437, 32
    %v6569 = vpop.permute.xlu0 %6568
    %6570 = vrot.lane.b32.xlu0 %v6438, 32
    %v6571 = vpop.permute.xlu0 %6570
    %6572 = vrot.lane.b32.xlu0 %v6439, 32
    %v6573 = vpop.permute.xlu0 %6572
    %6574 = vrot.lane.b32.xlu0 %v6440, 32
    %v6575 = vpop.permute.xlu0 %6574
    %6576 = vrot.lane.b32.xlu0 %v6441, 32
    %v6577 = vpop.permute.xlu0 %6576
    %6578 = vrot.lane.b32.xlu0 %v6442, 32
    %v6579 = vpop.permute.xlu0 %6578
    %6580 = vrot.lane.b32.xlu0 %v6443, 32
    %v6581 = vpop.permute.xlu0 %6580
    %6582 = vrot.lane.b32.xlu0 %v6444, 32
    %v6583 = vpop.permute.xlu0 %6582
    %6584 = vrot.lane.b32.xlu0 %v6445, 32
    %v6585 = vpop.permute.xlu0 %6584
    %6586 = vrot.lane.b32.xlu0 %v6446, 32
    %v6587 = vpop.permute.xlu0 %6586
    %6588 = vrot.lane.b32.xlu0 %v6447, 32
    %v6589 = vpop.permute.xlu0 %6588
    %6590 = vrot.lane.b32.xlu0 %v6448, 32
    %v6591 = vpop.permute.xlu0 %6590
    %6592 = vrot.lane.b32.xlu0 %v6449, 32
    %v6593 = vpop.permute.xlu0 %6592
    %6594 = vrot.lane.b32.xlu0 %v6450, 32
    %v6595 = vpop.permute.xlu0 %6594
    %6596 = vrot.lane.b32.xlu0 %v6451, 32
    %v6597 = vpop.permute.xlu0 %6596
    %6598 = vrot.lane.b32.xlu0 %v6452, 32
    %v6599 = vpop.permute.xlu0 %6598
    %6600 = vrot.lane.b32.xlu0 %v6453, 32
    %v6601 = vpop.permute.xlu0 %6600
    %6602 = vrot.lane.b32.xlu0 %v6454, 32
    %v6603 = vpop.permute.xlu0 %6602
    %6604 = vrot.lane.b32.xlu0 %v6455, 32
    %v6605 = vpop.permute.xlu0 %6604
    %6606 = vrot.lane.b32.xlu0 %v6456, 32
    %v6607 = vpop.permute.xlu0 %6606
    %6608 = vrot.lane.b32.xlu0 %v6457, 32
    %v6609 = vpop.permute.xlu0 %6608
    %6610 = vrot.lane.b32.xlu0 %v6458, 32
    %v6611 = vpop.permute.xlu0 %6610
    %6612 = vrot.lane.b32.xlu0 %v6459, 32
    %v6613 = vpop.permute.xlu0 %6612
    %6614 = vrot.lane.b32.xlu0 %v6460, 32
    %v6615 = vpop.permute.xlu0 %6614
    %6616 = vrot.lane.b32.xlu0 %v6461, 32
    %v6617 = vpop.permute.xlu0 %6616
    %6618 = vrot.lane.b32.xlu0 %v6462, 32
    %v6619 = vpop.permute.xlu0 %6618
    %6620 = vrot.lane.b32.xlu0 %v6463, 32
    %v6621 = vpop.permute.xlu0 %6620
    %6622 = vrot.lane.b32.xlu0 %v6464, 32
    %v6623 = vpop.permute.xlu0 %6622
    %6624 = vrot.lane.b32.xlu0 %v6465, 32
    %v6625 = vpop.permute.xlu0 %6624
    %6626 = vrot.lane.b32.xlu0 %v6466, 32
    %v6627 = vpop.permute.xlu0 %6626
    %6628 = vrot.lane.b32.xlu0 %v6467, 32
    %v6629 = vpop.permute.xlu0 %6628
    %6630 = vrot.lane.b32.xlu0 %v6468, 32
    %v6631 = vpop.permute.xlu0 %6630
    %6632 = vrot.lane.b32.xlu0 %v6469, 32
    %v6633 = vpop.permute.xlu0 %6632
    %6634 = vrot.lane.b32.xlu0 %v6470, 32
    %v6635 = vpop.permute.xlu0 %6634
    %6636 = vrot.lane.b32.xlu0 %v6471, 32
    %v6637 = vpop.permute.xlu0 %6636
    %6638 = vrot.lane.b32.xlu0 %v6472, 32
    %v6639 = vpop.permute.xlu0 %6638
    %6640 = vrot.lane.b32.xlu0 %v6473, 32
    %v6641 = vpop.permute.xlu0 %6640
    %6642 = vrot.lane.b32.xlu0 %v6474, 32
    %v6643 = vpop.permute.xlu0 %6642
    %6644 = vrot.lane.b32.xlu0 %v6475, 32
    %v6645 = vpop.permute.xlu0 %6644
    %6646 = vrot.lane.b32.xlu0 %v6476, 32
    %v6647 = vpop.permute.xlu0 %6646
    %6648 = vrot.lane.b32.xlu0 %v6477, 32
    %v6649 = vpop.permute.xlu0 %6648
    %6650 = vrot.lane.b32.xlu0 %v6478, 32
    %v6651 = vpop.permute.xlu0 %6650
    %6652 = vrot.lane.b32.xlu0 %v6479, 32
    %v6653 = vpop.permute.xlu0 %6652
    %6654 = vrot.lane.b32.xlu0 %v6480, 32
    %v6655 = vpop.permute.xlu0 %6654
    %6656 = vrot.lane.b32.xlu0 %v6481, 32
    %v6657 = vpop.permute.xlu0 %6656
    %6658 = vrot.lane.b32.xlu0 %v6482, 32
    %v6659 = vpop.permute.xlu0 %6658
    %6660 = vrot.lane.b32.xlu0 %v6483, 32
    %v6661 = vpop.permute.xlu0 %6660
    %6662 = vrot.lane.b32.xlu0 %v6484, 32
    %v6663 = vpop.permute.xlu0 %6662
    %6664 = vrot.lane.b32.xlu0 %v6485, 32
    %v6665 = vpop.permute.xlu0 %6664
    %6666 = vrot.lane.b32.xlu0 %v6486, 32
    %v6667 = vpop.permute.xlu0 %6666
    %6668 = vrot.lane.b32.xlu0 %v6487, 32
    %v6669 = vpop.permute.xlu0 %6668
    %6670 = vrot.lane.b32.xlu0 %v6488, 32
    %v6671 = vpop.permute.xlu0 %6670
    %6672 = vrot.lane.b32.xlu0 %v6489, 32
    %v6673 = vpop.permute.xlu0 %6672
    %6674 = vrot.lane.b32.xlu0 %v6490, 32
    %v6675 = vpop.permute.xlu0 %6674
    %6676 = vrot.lane.b32.xlu0 %v6491, 32
    %v6677 = vpop.permute.xlu0 %6676
    %6678 = vrot.lane.b32.xlu0 %v6492, 32
    %v6679 = vpop.permute.xlu0 %6678
    %6680 = vrot.lane.b32.xlu0 %v6493, 32
    %v6681 = vpop.permute.xlu0 %6680
    %6682 = vrot.lane.b32.xlu0 %v6494, 32
    %v6683 = vpop.permute.xlu0 %6682
    %6684 = vrot.lane.b32.xlu0 %v6495, 32
    %v6685 = vpop.permute.xlu0 %6684
    %6686 = vrot.lane.b32.xlu0 %v6496, 32
    %v6687 = vpop.permute.xlu0 %6686
    %6688 = vrot.lane.b32.xlu0 %v6497, 32
    %v6689 = vpop.permute.xlu0 %6688
    %v6754 = vadd.f32 %v6114, %v6563
    %v6755 = vadd.f32 %v6115, %v6565
    %v6756 = vadd.f32 %v6116, %v6567
    %v6757 = vadd.f32 %v6117, %v6569
    %v6758 = vadd.f32 %v6118, %v6571
    %v6759 = vadd.f32 %v6119, %v6573
    %v6760 = vadd.f32 %v6120, %v6575
    %v6761 = vadd.f32 %v6121, %v6577
    %v6762 = vadd.f32 %v6122, %v6579
    %v6763 = vadd.f32 %v6123, %v6581
    %v6764 = vadd.f32 %v6124, %v6583
    %v6765 = vadd.f32 %v6125, %v6585
    %v6766 = vadd.f32 %v6126, %v6587
    %v6767 = vadd.f32 %v6127, %v6589
    %v6768 = vadd.f32 %v6128, %v6591
    %v6769 = vadd.f32 %v6129, %v6593
    %v6770 = vadd.f32 %v6130, %v6595
    %v6771 = vadd.f32 %v6131, %v6597
    %v6772 = vadd.f32 %v6132, %v6599
    %v6773 = vadd.f32 %v6133, %v6601
    %v6774 = vadd.f32 %v6134, %v6603
    %v6775 = vadd.f32 %v6135, %v6605
    %v6776 = vadd.f32 %v6136, %v6607
    %v6777 = vadd.f32 %v6137, %v6609
    %v6778 = vadd.f32 %v6138, %v6611
    %v6779 = vadd.f32 %v6139, %v6613
    %v6780 = vadd.f32 %v6140, %v6615
    %v6781 = vadd.f32 %v6141, %v6617
    %v6782 = vadd.f32 %v6142, %v6619
    %v6783 = vadd.f32 %v6143, %v6621
    %v6784 = vadd.f32 %v6144, %v6623
    %v6785 = vadd.f32 %v6145, %v6625
    %v6786 = vadd.f32 %v6146, %v6627
    %v6787 = vadd.f32 %v6147, %v6629
    %v6788 = vadd.f32 %v6148, %v6631
    %v6789 = vadd.f32 %v6149, %v6633
    %v6790 = vadd.f32 %v6150, %v6635
    %v6791 = vadd.f32 %v6151, %v6637
    %v6792 = vadd.f32 %v6152, %v6639
    %v6793 = vadd.f32 %v6153, %v6641
    %v6794 = vadd.f32 %v6154, %v6643
    %v6795 = vadd.f32 %v6155, %v6645
    %v6796 = vadd.f32 %v6156, %v6647
    %v6797 = vadd.f32 %v6157, %v6649
    %v6798 = vadd.f32 %v6158, %v6651
    %v6799 = vadd.f32 %v6159, %v6653
    %v6800 = vadd.f32 %v6160, %v6655
    %v6801 = vadd.f32 %v6161, %v6657
    %v6802 = vadd.f32 %v6162, %v6659
    %v6803 = vadd.f32 %v6163, %v6661
    %v6804 = vadd.f32 %v6164, %v6663
    %v6805 = vadd.f32 %v6165, %v6665
    %v6806 = vadd.f32 %v6166, %v6667
    %v6807 = vadd.f32 %v6167, %v6669
    %v6808 = vadd.f32 %v6168, %v6671
    %v6809 = vadd.f32 %v6169, %v6673
    %v6810 = vadd.f32 %v6170, %v6675
    %v6811 = vadd.f32 %v6171, %v6677
    %v6812 = vadd.f32 %v6172, %v6679
    %v6813 = vadd.f32 %v6173, %v6681
    %v6814 = vadd.f32 %v6174, %v6683
    %v6815 = vadd.f32 %v6175, %v6685
    %v6816 = vadd.f32 %v6176, %v6687
    %v6817 = vadd.f32 %v6177, %v6689
    %vm6818 = vcmp.ge.f32.partialorder %v6754, 0.0
    %vm6819 = vcmp.ge.f32.partialorder %v6755, 0.0
    %vm6820 = vcmp.ge.f32.partialorder %v6756, 0.0
    %vm6821 = vcmp.ge.f32.partialorder %v6757, 0.0
    %vm6822 = vcmp.ge.f32.partialorder %v6758, 0.0
    %vm6823 = vcmp.ge.f32.partialorder %v6759, 0.0
    %vm6824 = vcmp.ge.f32.partialorder %v6760, 0.0
    %vm6825 = vcmp.ge.f32.partialorder %v6761, 0.0
    %vm6826 = vcmp.ge.f32.partialorder %v6762, 0.0
    %vm6827 = vcmp.ge.f32.partialorder %v6763, 0.0
    %vm6828 = vcmp.ge.f32.partialorder %v6764, 0.0
    %vm6829 = vcmp.ge.f32.partialorder %v6765, 0.0
    %vm6830 = vcmp.ge.f32.partialorder %v6766, 0.0
    %vm6831 = vcmp.ge.f32.partialorder %v6767, 0.0
    %vm6832 = vcmp.ge.f32.partialorder %v6768, 0.0
    %vm6833 = vcmp.ge.f32.partialorder %v6769, 0.0
    %vm6834 = vcmp.ge.f32.partialorder %v6770, 0.0
    %vm6835 = vcmp.ge.f32.partialorder %v6771, 0.0
    %vm6836 = vcmp.ge.f32.partialorder %v6772, 0.0
    %vm6837 = vcmp.ge.f32.partialorder %v6773, 0.0
    %vm6838 = vcmp.ge.f32.partialorder %v6774, 0.0
    %vm6839 = vcmp.ge.f32.partialorder %v6775, 0.0
    %vm6840 = vcmp.ge.f32.partialorder %v6776, 0.0
    %vm6841 = vcmp.ge.f32.partialorder %v6777, 0.0
    %vm6842 = vcmp.ge.f32.partialorder %v6778, 0.0
    %vm6843 = vcmp.ge.f32.partialorder %v6779, 0.0
    %vm6844 = vcmp.ge.f32.partialorder %v6780, 0.0
    %vm6845 = vcmp.ge.f32.partialorder %v6781, 0.0
    %vm6846 = vcmp.ge.f32.partialorder %v6782, 0.0
    %vm6847 = vcmp.ge.f32.partialorder %v6783, 0.0
    %vm6848 = vcmp.ge.f32.partialorder %v6784, 0.0
    %vm6849 = vcmp.ge.f32.partialorder %v6785, 0.0
    %vm6850 = vcmp.ge.f32.partialorder %v6786, 0.0
    %vm6851 = vcmp.ge.f32.partialorder %v6787, 0.0
    %vm6852 = vcmp.ge.f32.partialorder %v6788, 0.0
    %vm6853 = vcmp.ge.f32.partialorder %v6789, 0.0
    %vm6854 = vcmp.ge.f32.partialorder %v6790, 0.0
    %vm6855 = vcmp.ge.f32.partialorder %v6791, 0.0
    %vm6856 = vcmp.ge.f32.partialorder %v6792, 0.0
    %vm6857 = vcmp.ge.f32.partialorder %v6793, 0.0
    %vm6858 = vcmp.ge.f32.partialorder %v6794, 0.0
    %vm6859 = vcmp.ge.f32.partialorder %v6795, 0.0
    %vm6860 = vcmp.ge.f32.partialorder %v6796, 0.0
    %vm6861 = vcmp.ge.f32.partialorder %v6797, 0.0
    %vm6862 = vcmp.ge.f32.partialorder %v6798, 0.0
    %vm6863 = vcmp.ge.f32.partialorder %v6799, 0.0
    %vm6864 = vcmp.ge.f32.partialorder %v6800, 0.0
    %vm6865 = vcmp.ge.f32.partialorder %v6801, 0.0
    %vm6866 = vcmp.ge.f32.partialorder %v6802, 0.0
    %vm6867 = vcmp.ge.f32.partialorder %v6803, 0.0
    %vm6868 = vcmp.ge.f32.partialorder %v6804, 0.0
    %vm6869 = vcmp.ge.f32.partialorder %v6805, 0.0
    %vm6870 = vcmp.ge.f32.partialorder %v6806, 0.0
    %vm6871 = vcmp.ge.f32.partialorder %v6807, 0.0
    %vm6872 = vcmp.ge.f32.partialorder %v6808, 0.0
    %vm6873 = vcmp.ge.f32.partialorder %v6809, 0.0
    %vm6874 = vcmp.ge.f32.partialorder %v6810, 0.0
    %vm6875 = vcmp.ge.f32.partialorder %v6811, 0.0
    %vm6876 = vcmp.ge.f32.partialorder %v6812, 0.0
    %vm6877 = vcmp.ge.f32.partialorder %v6813, 0.0
    %vm6878 = vcmp.ge.f32.partialorder %v6814, 0.0
    %vm6879 = vcmp.ge.f32.partialorder %v6815, 0.0
    %vm6880 = vcmp.ge.f32.partialorder %v6816, 0.0
    %vm6881 = vcmp.ge.f32.partialorder %v6817, 0.0
    %v6882 = vmul.f32 %v6754, 0.01
    %v6883 = vmul.f32 %v6755, 0.01
    %v6884 = vmul.f32 %v6756, 0.01
    %v6885 = vmul.f32 %v6757, 0.01
    %v6886 = vmul.f32 %v6758, 0.01
    %v6887 = vmul.f32 %v6759, 0.01
    %v6888 = vmul.f32 %v6760, 0.01
    %v6889 = vmul.f32 %v6761, 0.01
    %v6890 = vmul.f32 %v6762, 0.01
    %v6891 = vmul.f32 %v6763, 0.01
    %v6892 = vmul.f32 %v6764, 0.01
    %v6893 = vmul.f32 %v6765, 0.01
    %v6894 = vmul.f32 %v6766, 0.01
    %v6895 = vmul.f32 %v6767, 0.01
    %v6896 = vmul.f32 %v6768, 0.01
    %v6897 = vmul.f32 %v6769, 0.01
    %v6898 = vmul.f32 %v6770, 0.01
    %v6899 = vmul.f32 %v6771, 0.01
    %v6900 = vmul.f32 %v6772, 0.01
    %v6901 = vmul.f32 %v6773, 0.01
    %v6902 = vmul.f32 %v6774, 0.01
    %v6903 = vmul.f32 %v6775, 0.01
    %v6904 = vmul.f32 %v6776, 0.01
    %v6905 = vmul.f32 %v6777, 0.01
    %v6906 = vmul.f32 %v6778, 0.01
    %v6907 = vmul.f32 %v6779, 0.01
    %v6908 = vmul.f32 %v6780, 0.01
    %v6909 = vmul.f32 %v6781, 0.01
    %v6910 = vmul.f32 %v6782, 0.01
    %v6911 = vmul.f32 %v6783, 0.01
    %v6912 = vmul.f32 %v6784, 0.01
    %v6913 = vmul.f32 %v6785, 0.01
    %v6914 = vmul.f32 %v6786, 0.01
    %v6915 = vmul.f32 %v6787, 0.01
    %v6916 = vmul.f32 %v6788, 0.01
    %v6917 = vmul.f32 %v6789, 0.01
    %v6918 = vmul.f32 %v6790, 0.01
    %v6919 = vmul.f32 %v6791, 0.01
    %v6920 = vmul.f32 %v6792, 0.01
    %v6921 = vmul.f32 %v6793, 0.01
    %v6922 = vmul.f32 %v6794, 0.01
    %v6923 = vmul.f32 %v6795, 0.01
    %v6924 = vmul.f32 %v6796, 0.01
    %v6925 = vmul.f32 %v6797, 0.01
    %v6926 = vmul.f32 %v6798, 0.01
    %v6927 = vmul.f32 %v6799, 0.01
    %v6928 = vmul.f32 %v6800, 0.01
    %v6929 = vmul.f32 %v6801, 0.01
    %v6930 = vmul.f32 %v6802, 0.01
    %v6931 = vmul.f32 %v6803, 0.01
    %v6932 = vmul.f32 %v6804, 0.01
    %v6933 = vmul.f32 %v6805, 0.01
    %v6934 = vmul.f32 %v6806, 0.01
    %v6935 = vmul.f32 %v6807, 0.01
    %v6936 = vmul.f32 %v6808, 0.01
    %v6937 = vmul.f32 %v6809, 0.01
    %v6938 = vmul.f32 %v6810, 0.01
    %v6939 = vmul.f32 %v6811, 0.01
    %v6940 = vmul.f32 %v6812, 0.01
    %v6941 = vmul.f32 %v6813, 0.01
    %v6942 = vmul.f32 %v6814, 0.01
    %v6943 = vmul.f32 %v6815, 0.01
    %v6944 = vmul.f32 %v6816, 0.01
    %v6945 = vmul.f32 %v6817, 0.01
    %v6946 = vsel %vm6818, %v6754, %v6882
    %v6947 = vsel %vm6819, %v6755, %v6883
    %v6948 = vsel %vm6820, %v6756, %v6884
    %v6949 = vsel %vm6821, %v6757, %v6885
    %v6950 = vsel %vm6822, %v6758, %v6886
    %v6951 = vsel %vm6823, %v6759, %v6887
    %v6952 = vsel %vm6824, %v6760, %v6888
    %v6953 = vsel %vm6825, %v6761, %v6889
    %v6954 = vsel %vm6826, %v6762, %v6890
    %v6955 = vsel %vm6827, %v6763, %v6891
    %v6956 = vsel %vm6828, %v6764, %v6892
    %v6957 = vsel %vm6829, %v6765, %v6893
    %v6958 = vsel %vm6830, %v6766, %v6894
    %v6959 = vsel %vm6831, %v6767, %v6895
    %v6960 = vsel %vm6832, %v6768, %v6896
    %v6961 = vsel %vm6833, %v6769, %v6897
    %v6962 = vsel %vm6834, %v6770, %v6898
    %v6963 = vsel %vm6835, %v6771, %v6899
    %v6964 = vsel %vm6836, %v6772, %v6900
    %v6965 = vsel %vm6837, %v6773, %v6901
    %v6966 = vsel %vm6838, %v6774, %v6902
    %v6967 = vsel %vm6839, %v6775, %v6903
    %v6968 = vsel %vm6840, %v6776, %v6904
    %v6969 = vsel %vm6841, %v6777, %v6905
    %v6970 = vsel %vm6842, %v6778, %v6906
    %v6971 = vsel %vm6843, %v6779, %v6907
    %v6972 = vsel %vm6844, %v6780, %v6908
    %v6973 = vsel %vm6845, %v6781, %v6909
    %v6974 = vsel %vm6846, %v6782, %v6910
    %v6975 = vsel %vm6847, %v6783, %v6911
    %v6976 = vsel %vm6848, %v6784, %v6912
    %v6977 = vsel %vm6849, %v6785, %v6913
    %v6978 = vsel %vm6850, %v6786, %v6914
    %v6979 = vsel %vm6851, %v6787, %v6915
    %v6980 = vsel %vm6852, %v6788, %v6916
    %v6981 = vsel %vm6853, %v6789, %v6917
    %v6982 = vsel %vm6854, %v6790, %v6918
    %v6983 = vsel %vm6855, %v6791, %v6919
    %v6984 = vsel %vm6856, %v6792, %v6920
    %v6985 = vsel %vm6857, %v6793, %v6921
    %v6986 = vsel %vm6858, %v6794, %v6922
    %v6987 = vsel %vm6859, %v6795, %v6923
    %v6988 = vsel %vm6860, %v6796, %v6924
    %v6989 = vsel %vm6861, %v6797, %v6925
    %v6990 = vsel %vm6862, %v6798, %v6926
    %v6991 = vsel %vm6863, %v6799, %v6927
    %v6992 = vsel %vm6864, %v6800, %v6928
    %v6993 = vsel %vm6865, %v6801, %v6929
    %v6994 = vsel %vm6866, %v6802, %v6930
    %v6995 = vsel %vm6867, %v6803, %v6931
    %v6996 = vsel %vm6868, %v6804, %v6932
    %v6997 = vsel %vm6869, %v6805, %v6933
    %v6998 = vsel %vm6870, %v6806, %v6934
    %v6999 = vsel %vm6871, %v6807, %v6935
    %v7000 = vsel %vm6872, %v6808, %v6936
    %v7001 = vsel %vm6873, %v6809, %v6937
    %v7002 = vsel %vm6874, %v6810, %v6938
    %v7003 = vsel %vm6875, %v6811, %v6939
    %v7004 = vsel %vm6876, %v6812, %v6940
    %v7005 = vsel %vm6877, %v6813, %v6941
    %v7006 = vsel %vm6878, %v6814, %v6942
    %v7007 = vsel %vm6879, %v6815, %v6943
    %v7008 = vsel %vm6880, %v6816, %v6944
    %v7009 = vsel %vm6881, %v6817, %v6945
    %7074 = vrot.lane.b32.xlu0 %v6946, 64
    %v7075 = vpop.permute.xlu0 %7074
    %7076 = vrot.lane.b32.xlu0 %v6947, 64
    %v7077 = vpop.permute.xlu0 %7076
    %7078 = vrot.lane.b32.xlu0 %v6948, 64
    %v7079 = vpop.permute.xlu0 %7078
    %7080 = vrot.lane.b32.xlu0 %v6949, 64
    %v7081 = vpop.permute.xlu0 %7080
    %7082 = vrot.lane.b32.xlu0 %v6950, 64
    %v7083 = vpop.permute.xlu0 %7082
    %7084 = vrot.lane.b32.xlu0 %v6951, 64
    %v7085 = vpop.permute.xlu0 %7084
    %7086 = vrot.lane.b32.xlu0 %v6952, 64
    %v7087 = vpop.permute.xlu0 %7086
    %7088 = vrot.lane.b32.xlu0 %v6953, 64
    %v7089 = vpop.permute.xlu0 %7088
    %7090 = vrot.lane.b32.xlu0 %v6954, 64
    %v7091 = vpop.permute.xlu0 %7090
    %7092 = vrot.lane.b32.xlu0 %v6955, 64
    %v7093 = vpop.permute.xlu0 %7092
    %7094 = vrot.lane.b32.xlu0 %v6956, 64
    %v7095 = vpop.permute.xlu0 %7094
    %7096 = vrot.lane.b32.xlu0 %v6957, 64
    %v7097 = vpop.permute.xlu0 %7096
    %7098 = vrot.lane.b32.xlu0 %v6958, 64
    %v7099 = vpop.permute.xlu0 %7098
    %7100 = vrot.lane.b32.xlu0 %v6959, 64
    %v7101 = vpop.permute.xlu0 %7100
    %7102 = vrot.lane.b32.xlu0 %v6960, 64
    %v7103 = vpop.permute.xlu0 %7102
    %7104 = vrot.lane.b32.xlu0 %v6961, 64
    %v7105 = vpop.permute.xlu0 %7104
    %7106 = vrot.lane.b32.xlu0 %v6962, 64
    %v7107 = vpop.permute.xlu0 %7106
    %7108 = vrot.lane.b32.xlu0 %v6963, 64
    %v7109 = vpop.permute.xlu0 %7108
    %7110 = vrot.lane.b32.xlu0 %v6964, 64
    %v7111 = vpop.permute.xlu0 %7110
    %7112 = vrot.lane.b32.xlu0 %v6965, 64
    %v7113 = vpop.permute.xlu0 %7112
    %7114 = vrot.lane.b32.xlu0 %v6966, 64
    %v7115 = vpop.permute.xlu0 %7114
    %7116 = vrot.lane.b32.xlu0 %v6967, 64
    %v7117 = vpop.permute.xlu0 %7116
    %7118 = vrot.lane.b32.xlu0 %v6968, 64
    %v7119 = vpop.permute.xlu0 %7118
    %7120 = vrot.lane.b32.xlu0 %v6969, 64
    %v7121 = vpop.permute.xlu0 %7120
    %7122 = vrot.lane.b32.xlu0 %v6970, 64
    %v7123 = vpop.permute.xlu0 %7122
    %7124 = vrot.lane.b32.xlu0 %v6971, 64
    %v7125 = vpop.permute.xlu0 %7124
    %7126 = vrot.lane.b32.xlu0 %v6972, 64
    %v7127 = vpop.permute.xlu0 %7126
    %7128 = vrot.lane.b32.xlu0 %v6973, 64
    %v7129 = vpop.permute.xlu0 %7128
    %7130 = vrot.lane.b32.xlu0 %v6974, 64
    %v7131 = vpop.permute.xlu0 %7130
    %7132 = vrot.lane.b32.xlu0 %v6975, 64
    %v7133 = vpop.permute.xlu0 %7132
    %7134 = vrot.lane.b32.xlu0 %v6976, 64
    %v7135 = vpop.permute.xlu0 %7134
    %7136 = vrot.lane.b32.xlu0 %v6977, 64
    %v7137 = vpop.permute.xlu0 %7136
    %7138 = vrot.lane.b32.xlu0 %v6978, 64
    %v7139 = vpop.permute.xlu0 %7138
    %7140 = vrot.lane.b32.xlu0 %v6979, 64
    %v7141 = vpop.permute.xlu0 %7140
    %7142 = vrot.lane.b32.xlu0 %v6980, 64
    %v7143 = vpop.permute.xlu0 %7142
    %7144 = vrot.lane.b32.xlu0 %v6981, 64
    %v7145 = vpop.permute.xlu0 %7144
    %7146 = vrot.lane.b32.xlu0 %v6982, 64
    %v7147 = vpop.permute.xlu0 %7146
    %7148 = vrot.lane.b32.xlu0 %v6983, 64
    %v7149 = vpop.permute.xlu0 %7148
    %7150 = vrot.lane.b32.xlu0 %v6984, 64
    %v7151 = vpop.permute.xlu0 %7150
    %7152 = vrot.lane.b32.xlu0 %v6985, 64
    %v7153 = vpop.permute.xlu0 %7152
    %7154 = vrot.lane.b32.xlu0 %v6986, 64
    %v7155 = vpop.permute.xlu0 %7154
    %7156 = vrot.lane.b32.xlu0 %v6987, 64
    %v7157 = vpop.permute.xlu0 %7156
    %7158 = vrot.lane.b32.xlu0 %v6988, 64
    %v7159 = vpop.permute.xlu0 %7158
    %7160 = vrot.lane.b32.xlu0 %v6989, 64
    %v7161 = vpop.permute.xlu0 %7160
    %7162 = vrot.lane.b32.xlu0 %v6990, 64
    %v7163 = vpop.permute.xlu0 %7162
    %7164 = vrot.lane.b32.xlu0 %v6991, 64
    %v7165 = vpop.permute.xlu0 %7164
    %7166 = vrot.lane.b32.xlu0 %v6992, 64
    %v7167 = vpop.permute.xlu0 %7166
    %7168 = vrot.lane.b32.xlu0 %v6993, 64
    %v7169 = vpop.permute.xlu0 %7168
    %7170 = vrot.lane.b32.xlu0 %v6994, 64
    %v7171 = vpop.permute.xlu0 %7170
    %7172 = vrot.lane.b32.xlu0 %v6995, 64
    %v7173 = vpop.permute.xlu0 %7172
    %7174 = vrot.lane.b32.xlu0 %v6996, 64
    %v7175 = vpop.permute.xlu0 %7174
    %7176 = vrot.lane.b32.xlu0 %v6997, 64
    %v7177 = vpop.permute.xlu0 %7176
    %7178 = vrot.lane.b32.xlu0 %v6998, 64
    %v7179 = vpop.permute.xlu0 %7178
    %7180 = vrot.lane.b32.xlu0 %v6999, 64
    %v7181 = vpop.permute.xlu0 %7180
    %7182 = vrot.lane.b32.xlu0 %v7000, 64
    %v7183 = vpop.permute.xlu0 %7182
    %7184 = vrot.lane.b32.xlu0 %v7001, 64
    %v7185 = vpop.permute.xlu0 %7184
    %7186 = vrot.lane.b32.xlu0 %v7002, 64
    %v7187 = vpop.permute.xlu0 %7186
    %7188 = vrot.lane.b32.xlu0 %v7003, 64
    %v7189 = vpop.permute.xlu0 %7188
    %7190 = vrot.lane.b32.xlu0 %v7004, 64
    %v7191 = vpop.permute.xlu0 %7190
    %7192 = vrot.lane.b32.xlu0 %v7005, 64
    %v7193 = vpop.permute.xlu0 %7192
    %7194 = vrot.lane.b32.xlu0 %v7006, 64
    %v7195 = vpop.permute.xlu0 %7194
    %7196 = vrot.lane.b32.xlu0 %v7007, 64
    %v7197 = vpop.permute.xlu0 %7196
    %7198 = vrot.lane.b32.xlu0 %v7008, 64
    %v7199 = vpop.permute.xlu0 %7198
    %7200 = vrot.lane.b32.xlu0 %v7009, 64
    %v7201 = vpop.permute.xlu0 %7200
    %v7266 = vmul.f32 %v4720, %v7075
    %v7267 = vmul.f32 %v4735, %v7077
    %v7268 = vmul.f32 %v4750, %v7079
    %v7269 = vmul.f32 %v4765, %v7081
    %v7270 = vmul.f32 %v4780, %v7083
    %v7271 = vmul.f32 %v4795, %v7085
    %v7272 = vmul.f32 %v4810, %v7087
    %v7273 = vmul.f32 %v4825, %v7089
    %v7274 = vmul.f32 %v4840, %v7091
    %v7275 = vmul.f32 %v4855, %v7093
    %v7276 = vmul.f32 %v4870, %v7095
    %v7277 = vmul.f32 %v4885, %v7097
    %v7278 = vmul.f32 %v4900, %v7099
    %v7279 = vmul.f32 %v4915, %v7101
    %v7280 = vmul.f32 %v4930, %v7103
    %v7281 = vmul.f32 %v4945, %v7105
    %v7282 = vmul.f32 %v4960, %v7107
    %v7283 = vmul.f32 %v4975, %v7109
    %v7284 = vmul.f32 %v4990, %v7111
    %v7285 = vmul.f32 %v5005, %v7113
    %v7286 = vmul.f32 %v5020, %v7115
    %v7287 = vmul.f32 %v5035, %v7117
    %v7288 = vmul.f32 %v5050, %v7119
    %v7289 = vmul.f32 %v5065, %v7121
    %v7290 = vmul.f32 %v5080, %v7123
    %v7291 = vmul.f32 %v5095, %v7125
    %v7292 = vmul.f32 %v5110, %v7127
    %v7293 = vmul.f32 %v5125, %v7129
    %v7294 = vmul.f32 %v5140, %v7131
    %v7295 = vmul.f32 %v5155, %v7133
    %v7296 = vmul.f32 %v5170, %v7135
    %v7297 = vmul.f32 %v5185, %v7137
    %v7298 = vmul.f32 %v5200, %v7139
    %v7299 = vmul.f32 %v5215, %v7141
    %v7300 = vmul.f32 %v5230, %v7143
    %v7301 = vmul.f32 %v5245, %v7145
    %v7302 = vmul.f32 %v5260, %v7147
    %v7303 = vmul.f32 %v5275, %v7149
    %v7304 = vmul.f32 %v5290, %v7151
    %v7305 = vmul.f32 %v5305, %v7153
    %v7306 = vmul.f32 %v5320, %v7155
    %v7307 = vmul.f32 %v5335, %v7157
    %v7308 = vmul.f32 %v5350, %v7159
    %v7309 = vmul.f32 %v5365, %v7161
    %v7310 = vmul.f32 %v5380, %v7163
    %v7311 = vmul.f32 %v5395, %v7165
    %v7312 = vmul.f32 %v5410, %v7167
    %v7313 = vmul.f32 %v5425, %v7169
    %v7314 = vmul.f32 %v5440, %v7171
    %v7315 = vmul.f32 %v5455, %v7173
    %v7316 = vmul.f32 %v5470, %v7175
    %v7317 = vmul.f32 %v5485, %v7177
    %v7318 = vmul.f32 %v5500, %v7179
    %v7319 = vmul.f32 %v5515, %v7181
    %v7320 = vmul.f32 %v5530, %v7183
    %v7321 = vmul.f32 %v5545, %v7185
    %v7322 = vmul.f32 %v5560, %v7187
    %v7323 = vmul.f32 %v5575, %v7189
    %v7324 = vmul.f32 %v5590, %v7191
    %v7325 = vmul.f32 %v5605, %v7193
    %v7326 = vmul.f32 %v5620, %v7195
    %v7327 = vmul.f32 %v5635, %v7197
    %v7328 = vmul.f32 %v5650, %v7199
    %v7329 = vmul.f32 %v5665, %v7201
    %7394 = vrot.lane.b32.xlu0 %v7266, 32
    %v7395 = vpop.permute.xlu0 %7394
    %7396 = vrot.lane.b32.xlu0 %v7267, 32
    %v7397 = vpop.permute.xlu0 %7396
    %7398 = vrot.lane.b32.xlu0 %v7268, 32
    %v7399 = vpop.permute.xlu0 %7398
    %7400 = vrot.lane.b32.xlu0 %v7269, 32
    %v7401 = vpop.permute.xlu0 %7400
    %7402 = vrot.lane.b32.xlu0 %v7270, 32
    %v7403 = vpop.permute.xlu0 %7402
    %7404 = vrot.lane.b32.xlu0 %v7271, 32
    %v7405 = vpop.permute.xlu0 %7404
    %7406 = vrot.lane.b32.xlu0 %v7272, 32
    %v7407 = vpop.permute.xlu0 %7406
    %7408 = vrot.lane.b32.xlu0 %v7273, 32
    %v7409 = vpop.permute.xlu0 %7408
    %7410 = vrot.lane.b32.xlu0 %v7274, 32
    %v7411 = vpop.permute.xlu0 %7410
    %7412 = vrot.lane.b32.xlu0 %v7275, 32
    %v7413 = vpop.permute.xlu0 %7412
    %7414 = vrot.lane.b32.xlu0 %v7276, 32
    %v7415 = vpop.permute.xlu0 %7414
    %7416 = vrot.lane.b32.xlu0 %v7277, 32
    %v7417 = vpop.permute.xlu0 %7416
    %7418 = vrot.lane.b32.xlu0 %v7278, 32
    %v7419 = vpop.permute.xlu0 %7418
    %7420 = vrot.lane.b32.xlu0 %v7279, 32
    %v7421 = vpop.permute.xlu0 %7420
    %7422 = vrot.lane.b32.xlu0 %v7280, 32
    %v7423 = vpop.permute.xlu0 %7422
    %7424 = vrot.lane.b32.xlu0 %v7281, 32
    %v7425 = vpop.permute.xlu0 %7424
    %7426 = vrot.lane.b32.xlu0 %v7282, 32
    %v7427 = vpop.permute.xlu0 %7426
    %7428 = vrot.lane.b32.xlu0 %v7283, 32
    %v7429 = vpop.permute.xlu0 %7428
    %7430 = vrot.lane.b32.xlu0 %v7284, 32
    %v7431 = vpop.permute.xlu0 %7430
    %7432 = vrot.lane.b32.xlu0 %v7285, 32
    %v7433 = vpop.permute.xlu0 %7432
    %7434 = vrot.lane.b32.xlu0 %v7286, 32
    %v7435 = vpop.permute.xlu0 %7434
    %7436 = vrot.lane.b32.xlu0 %v7287, 32
    %v7437 = vpop.permute.xlu0 %7436
    %7438 = vrot.lane.b32.xlu0 %v7288, 32
    %v7439 = vpop.permute.xlu0 %7438
    %7440 = vrot.lane.b32.xlu0 %v7289, 32
    %v7441 = vpop.permute.xlu0 %7440
    %7442 = vrot.lane.b32.xlu0 %v7290, 32
    %v7443 = vpop.permute.xlu0 %7442
    %7444 = vrot.lane.b32.xlu0 %v7291, 32
    %v7445 = vpop.permute.xlu0 %7444
    %7446 = vrot.lane.b32.xlu0 %v7292, 32
    %v7447 = vpop.permute.xlu0 %7446
    %7448 = vrot.lane.b32.xlu0 %v7293, 32
    %v7449 = vpop.permute.xlu0 %7448
    %7450 = vrot.lane.b32.xlu0 %v7294, 32
    %v7451 = vpop.permute.xlu0 %7450
    %7452 = vrot.lane.b32.xlu0 %v7295, 32
    %v7453 = vpop.permute.xlu0 %7452
    %7454 = vrot.lane.b32.xlu0 %v7296, 32
    %v7455 = vpop.permute.xlu0 %7454
    %7456 = vrot.lane.b32.xlu0 %v7297, 32
    %v7457 = vpop.permute.xlu0 %7456
    %7458 = vrot.lane.b32.xlu0 %v7298, 32
    %v7459 = vpop.permute.xlu0 %7458
    %7460 = vrot.lane.b32.xlu0 %v7299, 32
    %v7461 = vpop.permute.xlu0 %7460
    %7462 = vrot.lane.b32.xlu0 %v7300, 32
    %v7463 = vpop.permute.xlu0 %7462
    %7464 = vrot.lane.b32.xlu0 %v7301, 32
    %v7465 = vpop.permute.xlu0 %7464
    %7466 = vrot.lane.b32.xlu0 %v7302, 32
    %v7467 = vpop.permute.xlu0 %7466
    %7468 = vrot.lane.b32.xlu0 %v7303, 32
    %v7469 = vpop.permute.xlu0 %7468
    %7470 = vrot.lane.b32.xlu0 %v7304, 32
    %v7471 = vpop.permute.xlu0 %7470
    %7472 = vrot.lane.b32.xlu0 %v7305, 32
    %v7473 = vpop.permute.xlu0 %7472
    %7474 = vrot.lane.b32.xlu0 %v7306, 32
    %v7475 = vpop.permute.xlu0 %7474
    %7476 = vrot.lane.b32.xlu0 %v7307, 32
    %v7477 = vpop.permute.xlu0 %7476
    %7478 = vrot.lane.b32.xlu0 %v7308, 32
    %v7479 = vpop.permute.xlu0 %7478
    %7480 = vrot.lane.b32.xlu0 %v7309, 32
    %v7481 = vpop.permute.xlu0 %7480
    %7482 = vrot.lane.b32.xlu0 %v7310, 32
    %v7483 = vpop.permute.xlu0 %7482
    %7484 = vrot.lane.b32.xlu0 %v7311, 32
    %v7485 = vpop.permute.xlu0 %7484
    %7486 = vrot.lane.b32.xlu0 %v7312, 32
    %v7487 = vpop.permute.xlu0 %7486
    %7488 = vrot.lane.b32.xlu0 %v7313, 32
    %v7489 = vpop.permute.xlu0 %7488
    %7490 = vrot.lane.b32.xlu0 %v7314, 32
    %v7491 = vpop.permute.xlu0 %7490
    %7492 = vrot.lane.b32.xlu0 %v7315, 32
    %v7493 = vpop.permute.xlu0 %7492
    %7494 = vrot.lane.b32.xlu0 %v7316, 32
    %v7495 = vpop.permute.xlu0 %7494
    %7496 = vrot.lane.b32.xlu0 %v7317, 32
    %v7497 = vpop.permute.xlu0 %7496
    %7498 = vrot.lane.b32.xlu0 %v7318, 32
    %v7499 = vpop.permute.xlu0 %7498
    %7500 = vrot.lane.b32.xlu0 %v7319, 32
    %v7501 = vpop.permute.xlu0 %7500
    %7502 = vrot.lane.b32.xlu0 %v7320, 32
    %v7503 = vpop.permute.xlu0 %7502
    %7504 = vrot.lane.b32.xlu0 %v7321, 32
    %v7505 = vpop.permute.xlu0 %7504
    %7506 = vrot.lane.b32.xlu0 %v7322, 32
    %v7507 = vpop.permute.xlu0 %7506
    %7508 = vrot.lane.b32.xlu0 %v7323, 32
    %v7509 = vpop.permute.xlu0 %7508
    %7510 = vrot.lane.b32.xlu0 %v7324, 32
    %v7511 = vpop.permute.xlu0 %7510
    %7512 = vrot.lane.b32.xlu0 %v7325, 32
    %v7513 = vpop.permute.xlu0 %7512
    %7514 = vrot.lane.b32.xlu0 %v7326, 32
    %v7515 = vpop.permute.xlu0 %7514
    %7516 = vrot.lane.b32.xlu0 %v7327, 32
    %v7517 = vpop.permute.xlu0 %7516
    %7518 = vrot.lane.b32.xlu0 %v7328, 32
    %v7519 = vpop.permute.xlu0 %7518
    %7520 = vrot.lane.b32.xlu0 %v7329, 32
    %v7521 = vpop.permute.xlu0 %7520
    %7586 = vst.msk [vmem:[#allocation5] sm:$0xff] %vm2005, %v7395
    %7587 = vst.msk [vmem:[#allocation5 + $0x8] sm:$0xff] %vm2005, %v7397
    %7588 = vst.msk [vmem:[#allocation5 + $0x10] sm:$0xff] %vm2005, %v7399
    %7589 = vst.msk [vmem:[#allocation5 + $0x18] sm:$0xff] %vm2005, %v7401
    %7590 = vst.msk [vmem:[#allocation5 + $0x20] sm:$0xff] %vm2005, %v7403
    %7591 = vst.msk [vmem:[#allocation5 + $0x28] sm:$0xff] %vm2005, %v7405
    %7592 = vst.msk [vmem:[#allocation5 + $0x30] sm:$0xff] %vm2005, %v7407
    %7593 = vst.msk [vmem:[#allocation5 + $0x38] sm:$0xff] %vm2005, %v7409
    %7594 = vst.msk [vmem:[#allocation5 + $0x40] sm:$0xff] %vm2005, %v7411
    %7595 = vst.msk [vmem:[#allocation5 + $0x48] sm:$0xff] %vm2005, %v7413
    %7596 = vst.msk [vmem:[#allocation5 + $0x50] sm:$0xff] %vm2005, %v7415
    %7597 = vst.msk [vmem:[#allocation5 + $0x58] sm:$0xff] %vm2005, %v7417
    %7598 = vst.msk [vmem:[#allocation5 + $0x60] sm:$0xff] %vm2005, %v7419
    %7599 = vst.msk [vmem:[#allocation5 + $0x68] sm:$0xff] %vm2005, %v7421
    %7600 = vst.msk [vmem:[#allocation5 + $0x70] sm:$0xff] %vm2005, %v7423
    %7601 = vst.msk [vmem:[#allocation5 + $0x78] sm:$0xff] %vm2005, %v7425
    %7602 = vst.msk [vmem:[#allocation5 + $0x80] sm:$0xff] %vm2005, %v7427
    %7603 = vst.msk [vmem:[#allocation5 + $0x88] sm:$0xff] %vm2005, %v7429
    %7604 = vst.msk [vmem:[#allocation5 + $0x90] sm:$0xff] %vm2005, %v7431
    %7605 = vst.msk [vmem:[#allocation5 + $0x98] sm:$0xff] %vm2005, %v7433
    %7606 = vst.msk [vmem:[#allocation5 + $0xa0] sm:$0xff] %vm2005, %v7435
    %7607 = vst.msk [vmem:[#allocation5 + $0xa8] sm:$0xff] %vm2005, %v7437
    %7608 = vst.msk [vmem:[#allocation5 + $0xb0] sm:$0xff] %vm2005, %v7439
    %7609 = vst.msk [vmem:[#allocation5 + $0xb8] sm:$0xff] %vm2005, %v7441
    %7610 = vst.msk [vmem:[#allocation5 + $0xc0] sm:$0xff] %vm2005, %v7443
    %7611 = vst.msk [vmem:[#allocation5 + $0xc8] sm:$0xff] %vm2005, %v7445
    %7612 = vst.msk [vmem:[#allocation5 + $0xd0] sm:$0xff] %vm2005, %v7447
    %7613 = vst.msk [vmem:[#allocation5 + $0xd8] sm:$0xff] %vm2005, %v7449
    %7614 = vst.msk [vmem:[#allocation5 + $0xe0] sm:$0xff] %vm2005, %v7451
    %7615 = vst.msk [vmem:[#allocation5 + $0xe8] sm:$0xff] %vm2005, %v7453
    %7616 = vst.msk [vmem:[#allocation5 + $0xf0] sm:$0xff] %vm2005, %v7455
    %7617 = vst.msk [vmem:[#allocation5 + $0xf8] sm:$0xff] %vm2005, %v7457
    %7618 = vst.msk [vmem:[#allocation5 + $0x100] sm:$0xff] %vm2005, %v7459
    %7619 = vst.msk [vmem:[#allocation5 + $0x108] sm:$0xff] %vm2005, %v7461
    %7620 = vst.msk [vmem:[#allocation5 + $0x110] sm:$0xff] %vm2005, %v7463
    %7621 = vst.msk [vmem:[#allocation5 + $0x118] sm:$0xff] %vm2005, %v7465
    %7622 = vst.msk [vmem:[#allocation5 + $0x120] sm:$0xff] %vm2005, %v7467
    %7623 = vst.msk [vmem:[#allocation5 + $0x128] sm:$0xff] %vm2005, %v7469
    %7624 = vst.msk [vmem:[#allocation5 + $0x130] sm:$0xff] %vm2005, %v7471
    %7625 = vst.msk [vmem:[#allocation5 + $0x138] sm:$0xff] %vm2005, %v7473
    %7626 = vst.msk [vmem:[#allocation5 + $0x140] sm:$0xff] %vm2005, %v7475
    %7627 = vst.msk [vmem:[#allocation5 + $0x148] sm:$0xff] %vm2005, %v7477
    %7628 = vst.msk [vmem:[#allocation5 + $0x150] sm:$0xff] %vm2005, %v7479
    %7629 = vst.msk [vmem:[#allocation5 + $0x158] sm:$0xff] %vm2005, %v7481
    %7630 = vst.msk [vmem:[#allocation5 + $0x160] sm:$0xff] %vm2005, %v7483
    %7631 = vst.msk [vmem:[#allocation5 + $0x168] sm:$0xff] %vm2005, %v7485
    %7632 = vst.msk [vmem:[#allocation5 + $0x170] sm:$0xff] %vm2005, %v7487
    %7633 = vst.msk [vmem:[#allocation5 + $0x178] sm:$0xff] %vm2005, %v7489
    %7634 = vst.msk [vmem:[#allocation5 + $0x180] sm:$0xff] %vm2005, %v7491
    %7635 = vst.msk [vmem:[#allocation5 + $0x188] sm:$0xff] %vm2005, %v7493
    %7636 = vst.msk [vmem:[#allocation5 + $0x190] sm:$0xff] %vm2005, %v7495
    %7637 = vst.msk [vmem:[#allocation5 + $0x198] sm:$0xff] %vm2005, %v7497
    %7638 = vst.msk [vmem:[#allocation5 + $0x1a0] sm:$0xff] %vm2005, %v7499
    %7639 = vst.msk [vmem:[#allocation5 + $0x1a8] sm:$0xff] %vm2005, %v7501
    %7640 = vst.msk [vmem:[#allocation5 + $0x1b0] sm:$0xff] %vm2005, %v7503
    %7641 = vst.msk [vmem:[#allocation5 + $0x1b8] sm:$0xff] %vm2005, %v7505
    %7642 = vst.msk [vmem:[#allocation5 + $0x1c0] sm:$0xff] %vm2005, %v7507
    %7643 = vst.msk [vmem:[#allocation5 + $0x1c8] sm:$0xff] %vm2005, %v7509
    %7644 = vst.msk [vmem:[#allocation5 + $0x1d0] sm:$0xff] %vm2005, %v7511
    %7645 = vst.msk [vmem:[#allocation5 + $0x1d8] sm:$0xff] %vm2005, %v7513
    %7646 = vst.msk [vmem:[#allocation5 + $0x1e0] sm:$0xff] %vm2005, %v7515
    %7647 = vst.msk [vmem:[#allocation5 + $0x1e8] sm:$0xff] %vm2005, %v7517
    %7648 = vst.msk [vmem:[#allocation5 + $0x1f0] sm:$0xff] %vm2005, %v7519
    %7649 = vst.msk [vmem:[#allocation5 + $0x1f8] sm:$0xff] %vm2005, %v7521
    %7714 = vrot.lane.b32.xlu0 %v6754, 96
    %v7715 = vpop.permute.xlu0 %7714
    %7716 = vrot.lane.b32.xlu0 %v6755, 96
    %v7717 = vpop.permute.xlu0 %7716
    %7718 = vrot.lane.b32.xlu0 %v6756, 96
    %v7719 = vpop.permute.xlu0 %7718
    %7720 = vrot.lane.b32.xlu0 %v6757, 96
    %v7721 = vpop.permute.xlu0 %7720
    %7722 = vrot.lane.b32.xlu0 %v6758, 96
    %v7723 = vpop.permute.xlu0 %7722
    %7724 = vrot.lane.b32.xlu0 %v6759, 96
    %v7725 = vpop.permute.xlu0 %7724
    %7726 = vrot.lane.b32.xlu0 %v6760, 96
    %v7727 = vpop.permute.xlu0 %7726
    %7728 = vrot.lane.b32.xlu0 %v6761, 96
    %v7729 = vpop.permute.xlu0 %7728
    %7730 = vrot.lane.b32.xlu0 %v6762, 96
    %v7731 = vpop.permute.xlu0 %7730
    %7732 = vrot.lane.b32.xlu0 %v6763, 96
    %v7733 = vpop.permute.xlu0 %7732
    %7734 = vrot.lane.b32.xlu0 %v6764, 96
    %v7735 = vpop.permute.xlu0 %7734
    %7736 = vrot.lane.b32.xlu0 %v6765, 96
    %v7737 = vpop.permute.xlu0 %7736
    %7738 = vrot.lane.b32.xlu0 %v6766, 96
    %v7739 = vpop.permute.xlu0 %7738
    %7740 = vrot.lane.b32.xlu0 %v6767, 96
    %v7741 = vpop.permute.xlu0 %7740
    %7742 = vrot.lane.b32.xlu0 %v6768, 96
    %v7743 = vpop.permute.xlu0 %7742
    %7744 = vrot.lane.b32.xlu0 %v6769, 96
    %v7745 = vpop.permute.xlu0 %7744
    %7746 = vrot.lane.b32.xlu0 %v6770, 96
    %v7747 = vpop.permute.xlu0 %7746
    %7748 = vrot.lane.b32.xlu0 %v6771, 96
    %v7749 = vpop.permute.xlu0 %7748
    %7750 = vrot.lane.b32.xlu0 %v6772, 96
    %v7751 = vpop.permute.xlu0 %7750
    %7752 = vrot.lane.b32.xlu0 %v6773, 96
    %v7753 = vpop.permute.xlu0 %7752
    %7754 = vrot.lane.b32.xlu0 %v6774, 96
    %v7755 = vpop.permute.xlu0 %7754
    %7756 = vrot.lane.b32.xlu0 %v6775, 96
    %v7757 = vpop.permute.xlu0 %7756
    %7758 = vrot.lane.b32.xlu0 %v6776, 96
    %v7759 = vpop.permute.xlu0 %7758
    %7760 = vrot.lane.b32.xlu0 %v6777, 96
    %v7761 = vpop.permute.xlu0 %7760
    %7762 = vrot.lane.b32.xlu0 %v6778, 96
    %v7763 = vpop.permute.xlu0 %7762
    %7764 = vrot.lane.b32.xlu0 %v6779, 96
    %v7765 = vpop.permute.xlu0 %7764
    %7766 = vrot.lane.b32.xlu0 %v6780, 96
    %v7767 = vpop.permute.xlu0 %7766
    %7768 = vrot.lane.b32.xlu0 %v6781, 96
    %v7769 = vpop.permute.xlu0 %7768
    %7770 = vrot.lane.b32.xlu0 %v6782, 96
    %v7771 = vpop.permute.xlu0 %7770
    %7772 = vrot.lane.b32.xlu0 %v6783, 96
    %v7773 = vpop.permute.xlu0 %7772
    %7774 = vrot.lane.b32.xlu0 %v6784, 96
    %v7775 = vpop.permute.xlu0 %7774
    %7776 = vrot.lane.b32.xlu0 %v6785, 96
    %v7777 = vpop.permute.xlu0 %7776
    %7778 = vrot.lane.b32.xlu0 %v6786, 96
    %v7779 = vpop.permute.xlu0 %7778
    %7780 = vrot.lane.b32.xlu0 %v6787, 96
    %v7781 = vpop.permute.xlu0 %7780
    %7782 = vrot.lane.b32.xlu0 %v6788, 96
    %v7783 = vpop.permute.xlu0 %7782
    %7784 = vrot.lane.b32.xlu0 %v6789, 96
    %v7785 = vpop.permute.xlu0 %7784
    %7786 = vrot.lane.b32.xlu0 %v6790, 96
    %v7787 = vpop.permute.xlu0 %7786
    %7788 = vrot.lane.b32.xlu0 %v6791, 96
    %v7789 = vpop.permute.xlu0 %7788
    %7790 = vrot.lane.b32.xlu0 %v6792, 96
    %v7791 = vpop.permute.xlu0 %7790
    %7792 = vrot.lane.b32.xlu0 %v6793, 96
    %v7793 = vpop.permute.xlu0 %7792
    %7794 = vrot.lane.b32.xlu0 %v6794, 96
    %v7795 = vpop.permute.xlu0 %7794
    %7796 = vrot.lane.b32.xlu0 %v6795, 96
    %v7797 = vpop.permute.xlu0 %7796
    %7798 = vrot.lane.b32.xlu0 %v6796, 96
    %v7799 = vpop.permute.xlu0 %7798
    %7800 = vrot.lane.b32.xlu0 %v6797, 96
    %v7801 = vpop.permute.xlu0 %7800
    %7802 = vrot.lane.b32.xlu0 %v6798, 96
    %v7803 = vpop.permute.xlu0 %7802
    %7804 = vrot.lane.b32.xlu0 %v6799, 96
    %v7805 = vpop.permute.xlu0 %7804
    %7806 = vrot.lane.b32.xlu0 %v6800, 96
    %v7807 = vpop.permute.xlu0 %7806
    %7808 = vrot.lane.b32.xlu0 %v6801, 96
    %v7809 = vpop.permute.xlu0 %7808
    %7810 = vrot.lane.b32.xlu0 %v6802, 96
    %v7811 = vpop.permute.xlu0 %7810
    %7812 = vrot.lane.b32.xlu0 %v6803, 96
    %v7813 = vpop.permute.xlu0 %7812
    %7814 = vrot.lane.b32.xlu0 %v6804, 96
    %v7815 = vpop.permute.xlu0 %7814
    %7816 = vrot.lane.b32.xlu0 %v6805, 96
    %v7817 = vpop.permute.xlu0 %7816
    %7818 = vrot.lane.b32.xlu0 %v6806, 96
    %v7819 = vpop.permute.xlu0 %7818
    %7820 = vrot.lane.b32.xlu0 %v6807, 96
    %v7821 = vpop.permute.xlu0 %7820
    %7822 = vrot.lane.b32.xlu0 %v6808, 96
    %v7823 = vpop.permute.xlu0 %7822
    %7824 = vrot.lane.b32.xlu0 %v6809, 96
    %v7825 = vpop.permute.xlu0 %7824
    %7826 = vrot.lane.b32.xlu0 %v6810, 96
    %v7827 = vpop.permute.xlu0 %7826
    %7828 = vrot.lane.b32.xlu0 %v6811, 96
    %v7829 = vpop.permute.xlu0 %7828
    %7830 = vrot.lane.b32.xlu0 %v6812, 96
    %v7831 = vpop.permute.xlu0 %7830
    %7832 = vrot.lane.b32.xlu0 %v6813, 96
    %v7833 = vpop.permute.xlu0 %7832
    %7834 = vrot.lane.b32.xlu0 %v6814, 96
    %v7835 = vpop.permute.xlu0 %7834
    %7836 = vrot.lane.b32.xlu0 %v6815, 96
    %v7837 = vpop.permute.xlu0 %7836
    %7838 = vrot.lane.b32.xlu0 %v6816, 96
    %v7839 = vpop.permute.xlu0 %7838
    %7840 = vrot.lane.b32.xlu0 %v6817, 96
    %v7841 = vpop.permute.xlu0 %7840
    %7906 = vst.msk [vmem:[#allocation6] sm:$0xff] %vm2005, %v7715
    %7907 = vst.msk [vmem:[#allocation6 + $0x8] sm:$0xff] %vm2005, %v7717
    %7908 = vst.msk [vmem:[#allocation6 + $0x10] sm:$0xff] %vm2005, %v7719
    %7909 = vst.msk [vmem:[#allocation6 + $0x18] sm:$0xff] %vm2005, %v7721
    %7910 = vst.msk [vmem:[#allocation6 + $0x20] sm:$0xff] %vm2005, %v7723
    %7911 = vst.msk [vmem:[#allocation6 + $0x28] sm:$0xff] %vm2005, %v7725
    %7912 = vst.msk [vmem:[#allocation6 + $0x30] sm:$0xff] %vm2005, %v7727
    %7913 = vst.msk [vmem:[#allocation6 + $0x38] sm:$0xff] %vm2005, %v7729
    %7914 = vst.msk [vmem:[#allocation6 + $0x40] sm:$0xff] %vm2005, %v7731
    %7915 = vst.msk [vmem:[#allocation6 + $0x48] sm:$0xff] %vm2005, %v7733
    %7916 = vst.msk [vmem:[#allocation6 + $0x50] sm:$0xff] %vm2005, %v7735
    %7917 = vst.msk [vmem:[#allocation6 + $0x58] sm:$0xff] %vm2005, %v7737
    %7918 = vst.msk [vmem:[#allocation6 + $0x60] sm:$0xff] %vm2005, %v7739
    %7919 = vst.msk [vmem:[#allocation6 + $0x68] sm:$0xff] %vm2005, %v7741
    %7920 = vst.msk [vmem:[#allocation6 + $0x70] sm:$0xff] %vm2005, %v7743
    %7921 = vst.msk [vmem:[#allocation6 + $0x78] sm:$0xff] %vm2005, %v7745
    %7922 = vst.msk [vmem:[#allocation6 + $0x80] sm:$0xff] %vm2005, %v7747
    %7923 = vst.msk [vmem:[#allocation6 + $0x88] sm:$0xff] %vm2005, %v7749
    %7924 = vst.msk [vmem:[#allocation6 + $0x90] sm:$0xff] %vm2005, %v7751
    %7925 = vst.msk [vmem:[#allocation6 + $0x98] sm:$0xff] %vm2005, %v7753
    %7926 = vst.msk [vmem:[#allocation6 + $0xa0] sm:$0xff] %vm2005, %v7755
    %7927 = vst.msk [vmem:[#allocation6 + $0xa8] sm:$0xff] %vm2005, %v7757
    %7928 = vst.msk [vmem:[#allocation6 + $0xb0] sm:$0xff] %vm2005, %v7759
    %7929 = vst.msk [vmem:[#allocation6 + $0xb8] sm:$0xff] %vm2005, %v7761
    %7930 = vst.msk [vmem:[#allocation6 + $0xc0] sm:$0xff] %vm2005, %v7763
    %7931 = vst.msk [vmem:[#allocation6 + $0xc8] sm:$0xff] %vm2005, %v7765
    %7932 = vst.msk [vmem:[#allocation6 + $0xd0] sm:$0xff] %vm2005, %v7767
    %7933 = vst.msk [vmem:[#allocation6 + $0xd8] sm:$0xff] %vm2005, %v7769
    %7934 = vst.msk [vmem:[#allocation6 + $0xe0] sm:$0xff] %vm2005, %v7771
    %7935 = vst.msk [vmem:[#allocation6 + $0xe8] sm:$0xff] %vm2005, %v7773
    %7936 = vst.msk [vmem:[#allocation6 + $0xf0] sm:$0xff] %vm2005, %v7775
    %7937 = vst.msk [vmem:[#allocation6 + $0xf8] sm:$0xff] %vm2005, %v7777
    %7938 = vst.msk [vmem:[#allocation6 + $0x100] sm:$0xff] %vm2005, %v7779
    %7939 = vst.msk [vmem:[#allocation6 + $0x108] sm:$0xff] %vm2005, %v7781
    %7940 = vst.msk [vmem:[#allocation6 + $0x110] sm:$0xff] %vm2005, %v7783
    %7941 = vst.msk [vmem:[#allocation6 + $0x118] sm:$0xff] %vm2005, %v7785
    %7942 = vst.msk [vmem:[#allocation6 + $0x120] sm:$0xff] %vm2005, %v7787
    %7943 = vst.msk [vmem:[#allocation6 + $0x128] sm:$0xff] %vm2005, %v7789
    %7944 = vst.msk [vmem:[#allocation6 + $0x130] sm:$0xff] %vm2005, %v7791
    %7945 = vst.msk [vmem:[#allocation6 + $0x138] sm:$0xff] %vm2005, %v7793
    %7946 = vst.msk [vmem:[#allocation6 + $0x140] sm:$0xff] %vm2005, %v7795
    %7947 = vst.msk [vmem:[#allocation6 + $0x148] sm:$0xff] %vm2005, %v7797
    %7948 = vst.msk [vmem:[#allocation6 + $0x150] sm:$0xff] %vm2005, %v7799
    %7949 = vst.msk [vmem:[#allocation6 + $0x158] sm:$0xff] %vm2005, %v7801
    %7950 = vst.msk [vmem:[#allocation6 + $0x160] sm:$0xff] %vm2005, %v7803
    %7951 = vst.msk [vmem:[#allocation6 + $0x168] sm:$0xff] %vm2005, %v7805
    %7952 = vst.msk [vmem:[#allocation6 + $0x170] sm:$0xff] %vm2005, %v7807
    %7953 = vst.msk [vmem:[#allocation6 + $0x178] sm:$0xff] %vm2005, %v7809
    %7954 = vst.msk [vmem:[#allocation6 + $0x180] sm:$0xff] %vm2005, %v7811
    %7955 = vst.msk [vmem:[#allocation6 + $0x188] sm:$0xff] %vm2005, %v7813
    %7956 = vst.msk [vmem:[#allocation6 + $0x190] sm:$0xff] %vm2005, %v7815
    %7957 = vst.msk [vmem:[#allocation6 + $0x198] sm:$0xff] %vm2005, %v7817
    %7958 = vst.msk [vmem:[#allocation6 + $0x1a0] sm:$0xff] %vm2005, %v7819
    %7959 = vst.msk [vmem:[#allocation6 + $0x1a8] sm:$0xff] %vm2005, %v7821
    %7960 = vst.msk [vmem:[#allocation6 + $0x1b0] sm:$0xff] %vm2005, %v7823
    %7961 = vst.msk [vmem:[#allocation6 + $0x1b8] sm:$0xff] %vm2005, %v7825
    %7962 = vst.msk [vmem:[#allocation6 + $0x1c0] sm:$0xff] %vm2005, %v7827
    %7963 = vst.msk [vmem:[#allocation6 + $0x1c8] sm:$0xff] %vm2005, %v7829
    %7964 = vst.msk [vmem:[#allocation6 + $0x1d0] sm:$0xff] %vm2005, %v7831
    %7965 = vst.msk [vmem:[#allocation6 + $0x1d8] sm:$0xff] %vm2005, %v7833
    %7966 = vst.msk [vmem:[#allocation6 + $0x1e0] sm:$0xff] %vm2005, %v7835
    %7967 = vst.msk [vmem:[#allocation6 + $0x1e8] sm:$0xff] %vm2005, %v7837
    %7968 = vst.msk [vmem:[#allocation6 + $0x1f0] sm:$0xff] %vm2005, %v7839
    %7969 = vst.msk [vmem:[#allocation6 + $0x1f8] sm:$0xff] %vm2005, %v7841
    // Predicated region
    $region62: #{tpu_custom_call.1} parent=1 // pred_check
      _
    $region63: #{tpu_custom_call.1} parent=1 // pred_check_branch
      %7971 = sbr.rel (0) target = $region65
    $region64: #{tpu_custom_call.1} parent=1 // pred_region
      %7973 = vsyncadd [#allocation4], 0
      %s7974 = sshll.u32 [#allocation5], 4
      %s7975 = int_to_ptr.vmem [resolvable:$true] %s7974
      %s7976 = sshll.u32 %s14, 4
      %s7977 = int_to_ptr.hbm [resolvable:$true] %s7976
      %7982 = dma.vmem_to_hbm [thread:$0]  %s7975, 8192, %s7977, [#allocation4], 128, 128, 8
    $region65: #{tpu_custom_call.1} parent=1 // pred_fallthru
      _
    // Predicated region
    $region66: #{tpu_custom_call.1} parent=1 // pred_check
      _
    $region67: #{tpu_custom_call.1} parent=1 // pred_check_branch
      %7984 = sbr.rel (0) target = $region69
    $region68: #{tpu_custom_call.1} parent=1 // pred_region
      %7986 = vsyncadd [#allocation7], 0
      %s7987 = sshll.u32 [#allocation6], 4
      %s7988 = int_to_ptr.vmem [resolvable:$true] %s7987
      %s7989 = sshll.u32 %s15, 4
      %s7990 = int_to_ptr.hbm [resolvable:$true] %s7989
      %7995 = dma.vmem_to_hbm [thread:$0]  %s7988, 8192, %s7990, [#allocation7], 128, 128, 8
    $region69: #{tpu_custom_call.1} parent=1 // pred_fallthru
      _
    // Predicated region
    $region70: #{tpu_custom_call.1} parent=1 // pred_check
      _
    $region71: #{tpu_custom_call.1} parent=1 // pred_check_branch
      %7997 = sbr.rel (0) target = $region73
    $region72: #{tpu_custom_call.1} parent=1 // pred_region
      %7999 = dma.done [#allocation4], 8192
    $region73: #{tpu_custom_call.1} parent=1 // pred_fallthru
      _
    // Predicated region
    $region74: #{tpu_custom_call.1} parent=1 // pred_check
      _
    $region75: #{tpu_custom_call.1} parent=1 // pred_check_branch
      %8001 = sbr.rel (0) target = $region77
    $region76: #{tpu_custom_call.1} parent=1 // pred_region
      %8003 = dma.done [#allocation7], 8192
    $region77: #{tpu_custom_call.1} parent=1 // pred_fallthru
      _
    %8004 = vsyncpa [#allocation3], 1
    %8005 = vsyncpa [#allocation4], 1
    %8006 = vsyncpa [#allocation7], 1

</llo_original>
